<compile_context>
chip_gen: v7x
topology: tpu7x:2x2x1
jax: 0.10.0
libtpu: 0.0.40
codegen_flags: <defaults>
</compile_context>

<pallas_src>
import functools

import jax
import jax.numpy as jnp
from jax.experimental import pallas as pl
from jax.experimental.pallas import tpu as pltpu

CONV_OUT = 64      # synthetic backbone channel count (stand-in for the resnet101 trunk)
CONV_PAD = 128     # conv output channels zero-padded to a full lane width
FEAT_DIM = 300     # resnet.fc = Linear(in_features, 300)
HIDDEN = 256       # LSTM hidden size
NUM_LAYERS = 3     # LSTM layers
OUT_PAD = 128      # head output lane-padded to 128 columns (real output is column 0)


# ----------------------------- fused Pallas kernel -----------------------------


def fused_cnn_lstm_kernel(patches_ref, convw_ref, convb_ref, pool_ref,
                          wih0_ref, whh0_ref, b0_ref,
                          wih1_ref, whh1_ref, b1_ref,
                          wih2_ref, whh2_ref, b2_ref,
                          fcw_ref, fcb_ref,
                          out_ref, *, Hd):
    """conv(3x3,'same') + ReLU + avg-pool -> 3-layer LSTM -> fused fc head, all in VMEM."""
    # --- CNN backbone: one lane-aligned im2col matmul + ReLU ---
    conv = jnp.dot(patches_ref[...], convw_ref[...],
                   preferred_element_type=jnp.float32) + convb_ref[...]      # (B*HW, CONV_PAD)
    conv = jnp.maximum(conv, 0.0).astype(jnp.bfloat16)
    # global average pool as a single MXU matmul against a (B, B*HW) block-averaging matrix
    feat = jnp.dot(pool_ref[...], conv, preferred_element_type=jnp.float32)  # (B, CONV_PAD)

    # --- 3-layer LSTM, batch=1, seq_len=B, PyTorch gate order (i,f,g,o) ---
    # (the resnet fc Linear(->300) is already folded into wih0/b0 at param-prep time.)
    def lstm_layer(x, wih_ref, whh_ref, b_ref):
        T = x.shape[0]
        whh = whh_ref[...]                                                   # (H, 4H) bf16
        # hoisted input projection: one (T,In)@(In,4H) matmul outside the time loop
        gx = jnp.dot(x.astype(jnp.bfloat16), wih_ref[...],
                     preferred_element_type=jnp.float32) + b_ref[...]        # (T, 4H) f32
        h = jnp.zeros((1, Hd), jnp.float32)
        c = jnp.zeros((1, Hd), jnp.float32)
        hs = []
        for t in range(T):                    # T (= B) is tiny and static -> unrolled
            gates = gx[t:t + 1, :] + jnp.dot(h.astype(jnp.bfloat16), whh,
                                             preferred_element_type=jnp.float32)
            i = jax.nn.sigmoid(gates[:, 0 * Hd:1 * Hd])
            f = jax.nn.sigmoid(gates[:, 1 * Hd:2 * Hd])
            g = jnp.tanh(gates[:, 2 * Hd:3 * Hd])
            o = jax.nn.sigmoid(gates[:, 3 * Hd:4 * Hd])
            c = f * c + i * g
            h = o * jnp.tanh(c)
            hs.append(h)
        # TODO(synk): nn.LSTM dropout=0.5 between layers omitted (inference semantics).
        return jnp.concatenate(hs, axis=0)                                   # (T, H) in vregs

    x = lstm_layer(feat, wih0_ref, whh0_ref, b0_ref)
    x = lstm_layer(x, wih1_ref, whh1_ref, b1_ref)
    x = lstm_layer(x, wih2_ref, whh2_ref, b2_ref)

    # --- head: fc2(fc1(.)) folded into a single lane-padded matmul (real output = column 0) ---
    out_ref[...] = jnp.dot(x.astype(jnp.bfloat16), fcw_ref[...],
                           preferred_element_type=jnp.float32) + fcb_ref[...]  # (T, OUT_PAD)


# ------------------------------ wrappers ---------------------------------------


def prepare_params(params):
    """One-time prep: fold fc_feat into layer-0 W_ih and fc2 into fc1 (exact algebra),
    zero-pad conv / head shapes to 128-lane alignment, cast matmul weights to bf16
    (accumulation stays f32 inside the kernel; biases stay f32)."""
    C = params["conv_w"].shape[2]
    kin = 9 * C
    kpad = ((kin + 127) // 128) * 128

    convw = jnp.zeros((kpad, CONV_PAD), jnp.float32)
    convw = convw.at[:kin, :CONV_OUT].set(params["conv_w"].reshape(kin, CONV_OUT))
    convb = jnp.zeros((1, CONV_PAD), jnp.float32).at[:, :CONV_OUT].set(params["conv_b"])

    # resnet fc Linear(->300) folded into layer-0 W_ih / bias; K rows padded to CONV_PAD.
    wih0 = jnp.zeros((CONV_PAD, 4 * HIDDEN), jnp.float32)
    wih0 = wih0.at[:CONV_OUT, :].set(params["fc_feat_w"] @ params["lstm_wih"][0])
    b0 = params["fc_feat_b"] @ params["lstm_wih"][0] + params["lstm_b"][0]

    # fc2 folded into fc1 (no activation in between); output columns lane-padded to OUT_PAD.
    fcw = jnp.zeros((HIDDEN, OUT_PAD), jnp.float32)
    fcw = fcw.at[:, :1].set(params["fc1_w"] @ params["fc2_w"])
    fcb = jnp.zeros((1, OUT_PAD), jnp.float32)
    fcb = fcb.at[:, :1].set(params["fc1_b"] @ params["fc2_w"] + params["fc2_b"])

    return {
        "conv_w": convw.astype(jnp.bfloat16),            # (kpad, CONV_PAD)
        "conv_b": convb,                                 # (1, CONV_PAD) f32
        "wih": [wih0.astype(jnp.bfloat16),
                params["lstm_wih"][1].astype(jnp.bfloat16),
                params["lstm_wih"][2].astype(jnp.bfloat16)],
        "whh": [w.astype(jnp.bfloat16) for w in params["lstm_whh"]],
        "b": [b0, params["lstm_b"][1], params["lstm_b"][2]],
        "fc_w": fcw.astype(jnp.bfloat16),                # (HIDDEN, OUT_PAD)
        "fc_b": fcb,                                     # (1, OUT_PAD) f32
    }


def cnn_lstm_forward_batched(x_nbchw, prepped):
    """x_nbchw: (N, B, C, H, W). N independent items ride a 'parallel' grid; the weights use
    constant index_maps so they are loaded into VMEM once and reused across all grid steps."""
    N, B, C, H, W = x_nbchw.shape
    HW = H * W
    kpad = prepped["conv_w"].shape[0]

    # JAX glue: NCHW -> NHWC, zero-pad for the 3x3 'same' conv, im2col into a lane-dense
    # (N, B*HW, kpad) patch tensor (K zero-padded to a multiple of 128 lanes).
    # TODO(synk): at realistic image sizes, move im2col into the kernel (shifted VMEM slices)
    # to avoid the 9x HBM inflation; negligible at these toy shapes.
    x_nhwc = jnp.transpose(x_nbchw, (0, 1, 3, 4, 2)).astype(jnp.float32)
    x_pad = jnp.pad(x_nhwc, ((0, 0), (0, 0), (1, 1), (1, 1), (0, 0)))
    taps = [x_pad[:, :, kh:kh + H, kw:kw + W, :].reshape(N, B * HW, C)
            for kh in range(3) for kw in range(3)]
    patches = jnp.concatenate(taps, axis=-1)                                  # (N, B*HW, 9C)
    patches = jnp.pad(patches, ((0, 0), (0, 0), (0, kpad - 9 * C))).astype(jnp.bfloat16)

    # (B, B*HW) block-averaging matrix: global average pool becomes a single matmul.
    pool = (jnp.kron(jnp.eye(B), jnp.ones((1, HW))) / HW).astype(jnp.bfloat16)

    # TODO(synk): the pretrained resnet101 trunk is not reproduced; a single 3x3 conv + ReLU
    # + global-average-pool backbone feeds the (folded) Linear(->300) head.
    # TODO(synk): the reference's x.reshape(batch, 128, 128) is shape-incompatible with the
    # 300-dim head; we keep the (1, B, 300) batch_first sequence (batch=1, seq_len=B) that
    # matches LSTM input_size=300, with zero initial h/c (as in the reference's `hidden`).
    # TODO(synk): the head is applied to out[-1, :, :]; with batch_first and batch=1 that is
    # the whole (T, 256) sequence, matching the previous interpretation.

    kernel = functools.partial(fused_cnn_lstm_kernel, Hd=HIDDEN)
    args = (patches, prepped["conv_w"], prepped["conv_b"], pool,
            prepped["wih"][0], prepped["whh"][0], prepped["b"][0],
            prepped["wih"][1], prepped["whh"][1], prepped["b"][1],
            prepped["wih"][2], prepped["whh"][2], prepped["b"][2],
            prepped["fc_w"], prepped["fc_b"])

    def weight_spec(a):                       # constant index_map -> VMEM-resident across grid
        return pl.BlockSpec(a.shape, lambda n: (0, 0))

    in_specs = ([pl.BlockSpec((None, B * HW, kpad), lambda n: (n, 0, 0))]
                + [weight_spec(a) for a in args[1:]])

    out = pl.pallas_call(
        kernel,
        out_shape=jax.ShapeDtypeStruct((N, B, OUT_PAD), jnp.float32),
        grid_spec=pltpu.PrefetchScalarGridSpec(
            num_scalar_prefetch=0,
            grid=(N,),
            in_specs=in_specs,
            out_specs=pl.BlockSpec((None, B, OUT_PAD), lambda n: (n, 0, 0)),
        ),
        compiler_params=pltpu.CompilerParams(
            dimension_semantics=("parallel",),        # shards items across v7x's 2 TCs
            vmem_limit_bytes=32 * 1024 * 1024,        # explicit headroom (v5e default is 16 MiB)
        ),
    )(*args)
    return out[:, :, :1]                              # real head output is column 0


def cnn_lstm_forward(x_nchw, prepped):
    return cnn_lstm_forward_batched(x_nchw[None], prepped)[0]


def init_params(key, C):
    ks = jax.random.split(key, 16)

    def nrm(k, shape, scale=0.05):
        return (scale * jax.random.normal(k, shape)).astype(jnp.float32)

    params = {
        "conv_w": nrm(ks[0], (3, 3, C, CONV_OUT)),
        "conv_b": nrm(ks[1], (1, CONV_OUT)),
        "fc_feat_w": nrm(ks[2], (CONV_OUT, FEAT_DIM)),
        "fc_feat_b": nrm(ks[3], (1, FEAT_DIM)),
        "fc1_w": nrm(ks[4], (HIDDEN, 128)),
        "fc1_b": nrm(ks[5], (1, 128)),
        "fc2_w": nrm(ks[6], (128, 1)),
        "fc2_b": nrm(ks[7], (1, 1)),
        "lstm_wih": [], "lstm_whh": [], "lstm_b": [],
    }
    for layer in range(NUM_LAYERS):
        in_dim = FEAT_DIM if layer == 0 else HIDDEN
        params["lstm_wih"].append(nrm(ks[8 + layer], (in_dim, 4 * HIDDEN)))
        params["lstm_whh"].append(nrm(ks[11 + layer], (HIDDEN, 4 * HIDDEN)))
        params["lstm_b"].append(
            nrm(jax.random.fold_in(ks[14], layer), (1, 4 * HIDDEN)))
    return params


if __name__ == "__main__":
    # Small shapes consistent with the module: NCHW input, batch=2, C=4, H=W=16.
    x = jax.random.normal(jax.random.PRNGKey(0), (2, 4, 16, 16), dtype=jnp.float32)
    params = init_params(jax.random.PRNGKey(42), C=4)
    prepped = prepare_params(params)

    out = jax.block_until_ready(cnn_lstm_forward(x, prepped))
    assert out.shape == (2, 1) and out.dtype == jnp.float32

    # Serving path: a grid of N items with the weights held VMEM-resident across grid steps.
    xs = jnp.stack([x, x, x], axis=0)
    outs = jax.block_until_ready(cnn_lstm_forward_batched(xs, prepped))
    assert outs.shape == (3, 2, 1)
    assert bool(jnp.allclose(outs, out[None, :, :], atol=1e-5))

    print("KERNEL_OK")
</pallas_src>

<mosaic_0001>
module attributes {stable_mosaic.version = 11 : i64} {
  func.func @fused_cnn_lstm_kernel(%arg0: i32, %arg1: memref<1x512x128xbf16, #tpu.memory_space<vmem>>, %arg2: memref<128x128xbf16, #tpu.memory_space<vmem>>, %arg3: memref<1x128xf32, #tpu.memory_space<vmem>>, %arg4: memref<2x512xbf16, #tpu.memory_space<vmem>>, %arg5: memref<128x1024xbf16, #tpu.memory_space<vmem>>, %arg6: memref<256x1024xbf16, #tpu.memory_space<vmem>>, %arg7: memref<1x1024xf32, #tpu.memory_space<vmem>>, %arg8: memref<256x1024xbf16, #tpu.memory_space<vmem>>, %arg9: memref<256x1024xbf16, #tpu.memory_space<vmem>>, %arg10: memref<1x1024xf32, #tpu.memory_space<vmem>>, %arg11: memref<256x1024xbf16, #tpu.memory_space<vmem>>, %arg12: memref<256x1024xbf16, #tpu.memory_space<vmem>>, %arg13: memref<1x1024xf32, #tpu.memory_space<vmem>>, %arg14: memref<256x128xbf16, #tpu.memory_space<vmem>>, %arg15: memref<1x128xf32, #tpu.memory_space<vmem>>, %arg16: memref<1x2x128xf32, #tpu.memory_space<vmem>>) attributes {dimension_semantics = [#tpu.dimension_semantics<parallel>], iteration_bounds = array<i64: 1>, scalar_prefetch = 0 : i64, scratch_operands = 0 : i64, tpu.core_type = #tpu.core_type<tc>, window_params = [{transform_indices = @transform_0, window_bounds = array<i64: 1, 512, 128>}, {pipeline_mode = #tpu.pipeline_mode<synchronous>, transform_indices = @transform_1, window_bounds = array<i64: 128, 128>}, {pipeline_mode = #tpu.pipeline_mode<synchronous>, transform_indices = @transform_2, window_bounds = array<i64: 1, 128>}, {pipeline_mode = #tpu.pipeline_mode<synchronous>, transform_indices = @transform_3, window_bounds = array<i64: 2, 512>}, {pipeline_mode = #tpu.pipeline_mode<synchronous>, transform_indices = @transform_4, window_bounds = array<i64: 128, 1024>}, {pipeline_mode = #tpu.pipeline_mode<synchronous>, transform_indices = @transform_5, window_bounds = array<i64: 256, 1024>}, {pipeline_mode = #tpu.pipeline_mode<synchronous>, transform_indices = @transform_6, window_bounds = array<i64: 1, 1024>}, {pipeline_mode = #tpu.pipeline_mode<synchronous>, transform_indices = @transform_7, window_bounds = array<i64: 256, 1024>}, {pipeline_mode = #tpu.pipeline_mode<synchronous>, transform_indices = @transform_8, window_bounds = array<i64: 256, 1024>}, {pipeline_mode = #tpu.pipeline_mode<synchronous>, transform_indices = @transform_9, window_bounds = array<i64: 1, 1024>}, {pipeline_mode = #tpu.pipeline_mode<synchronous>, transform_indices = @transform_10, window_bounds = array<i64: 256, 1024>}, {pipeline_mode = #tpu.pipeline_mode<synchronous>, transform_indices = @transform_11, window_bounds = array<i64: 256, 1024>}, {pipeline_mode = #tpu.pipeline_mode<synchronous>, transform_indices = @transform_12, window_bounds = array<i64: 1, 1024>}, {pipeline_mode = #tpu.pipeline_mode<synchronous>, transform_indices = @transform_13, window_bounds = array<i64: 256, 128>}, {pipeline_mode = #tpu.pipeline_mode<synchronous>, transform_indices = @transform_14, window_bounds = array<i64: 1, 128>}, {transform_indices = @transform_15, window_bounds = array<i64: 1, 2, 128>}]} {
    %c0 = arith.constant 0 : index
    %c0_0 = arith.constant 0 : index
    %c0_1 = arith.constant 0 : index
    %0 = vector.load %arg1[%c0, %c0_0, %c0_1] : memref<1x512x128xbf16, #tpu.memory_space<vmem>>, vector<1x512x128xbf16>
    %1 = vector.shape_cast %0 : vector<1x512x128xbf16> to vector<512x128xbf16>
    %c0_2 = arith.constant 0 : index
    %c0_3 = arith.constant 0 : index
    %2 = vector.load %arg2[%c0_2, %c0_3] : memref<128x128xbf16, #tpu.memory_space<vmem>>, vector<128x128xbf16>
    %cst = arith.constant dense<0.000000e+00> : vector<512x128xf32>
    %3 = tpu.matmul %1, %2, %cst {dimension_numbers = #tpu.dot_dimension_numbers<[1], [0], [0], [1], [0, 0, 1, 1], [], []>} : vector<512x128xbf16>, vector<128x128xbf16>, vector<512x128xf32> -> vector<512x128xf32>
    %c0_4 = arith.constant 0 : index
    %c0_5 = arith.constant 0 : index
    %4 = vector.load %arg3[%c0_4, %c0_5] : memref<1x128xf32, #tpu.memory_space<vmem>>, vector<1x128xf32>
    %5 = vector.broadcast %4 : vector<1x128xf32> to vector<512x128xf32>
    %6 = arith.addf %3, %5 : vector<512x128xf32>
    %cst_6 = arith.constant 0.000000e+00 : f32
    %7 = vector.broadcast %cst_6 : f32 to vector<512x128xf32>
    %8 = arith.maximumf %6, %7 : vector<512x128xf32>
    %9 = arith.truncf %8 : vector<512x128xf32> to vector<512x128xbf16>
    %c0_7 = arith.constant 0 : index
    %c0_8 = arith.constant 0 : index
    %10 = vector.load %arg4[%c0_7, %c0_8] : memref<2x512xbf16, #tpu.memory_space<vmem>>, vector<2x512xbf16>
    %cst_9 = arith.constant dense<0.000000e+00> : vector<2x128xf32>
    %11 = tpu.matmul %10, %9, %cst_9 {dimension_numbers = #tpu.dot_dimension_numbers<[1], [0], [0], [1], [0, 0, 1, 1], [], []>} : vector<2x512xbf16>, vector<512x128xbf16>, vector<2x128xf32> -> vector<2x128xf32>
    %c0_10 = arith.constant 0 : index
    %c0_11 = arith.constant 0 : index
    %12 = vector.load %arg6[%c0_10, %c0_11] : memref<256x1024xbf16, #tpu.memory_space<vmem>>, vector<256x1024xbf16>
    %13 = arith.truncf %11 : vector<2x128xf32> to vector<2x128xbf16>
    %c0_12 = arith.constant 0 : index
    %c0_13 = arith.constant 0 : index
    %14 = vector.load %arg5[%c0_12, %c0_13] : memref<128x1024xbf16, #tpu.memory_space<vmem>>, vector<128x1024xbf16>
    %cst_14 = arith.constant dense<0.000000e+00> : vector<2x1024xf32>
    %15 = tpu.matmul %13, %14, %cst_14 {dimension_numbers = #tpu.dot_dimension_numbers<[1], [0], [0], [1], [0, 0, 1, 1], [], []>} : vector<2x128xbf16>, vector<128x1024xbf16>, vector<2x1024xf32> -> vector<2x1024xf32>
    %c0_15 = arith.constant 0 : index
    %c0_16 = arith.constant 0 : index
    %16 = vector.load %arg7[%c0_15, %c0_16] : memref<1x1024xf32, #tpu.memory_space<vmem>>, vector<1x1024xf32>
    %17 = vector.broadcast %16 : vector<1x1024xf32> to vector<2x1024xf32>
    %18 = arith.addf %15, %17 : vector<2x1024xf32>
    %cst_17 = arith.constant 0.000000e+00 : f32
    %19 = vector.broadcast %cst_17 : f32 to vector<1x256xf32>
    %cst_18 = arith.constant 0.000000e+00 : f32
    %20 = vector.broadcast %cst_18 : f32 to vector<1x256xf32>
    %21 = vector.extract_strided_slice %18 {offsets = [0, 0], sizes = [1, 1024], strides = [1, 1]} : vector<2x1024xf32> to vector<1x1024xf32>
    %22 = arith.truncf %19 : vector<1x256xf32> to vector<1x256xbf16>
    %cst_19 = arith.constant dense<0.000000e+00> : vector<1x1024xf32>
    %23 = tpu.matmul %22, %12, %cst_19 {dimension_numbers = #tpu.dot_dimension_numbers<[1], [0], [0], [1], [0, 0, 1, 1], [], []>} : vector<1x256xbf16>, vector<256x1024xbf16>, vector<1x1024xf32> -> vector<1x1024xf32>
    %24 = arith.addf %21, %23 : vector<1x1024xf32>
    %25 = vector.extract_strided_slice %24 {offsets = [0, 0], sizes = [1, 256], strides = [1, 1]} : vector<1x1024xf32> to vector<1x256xf32>
    %26 = arith.negf %25 : vector<1x256xf32>
    %27 = math.exp %26 : vector<1x256xf32>
    %cst_20 = arith.constant 1.000000e+00 : f32
    %28 = vector.broadcast %cst_20 : f32 to vector<1x256xf32>
    %29 = arith.addf %28, %27 : vector<1x256xf32>
    %30 = arith.divf %28, %29 : vector<1x256xf32>
    %31 = vector.extract_strided_slice %24 {offsets = [0, 256], sizes = [1, 256], strides = [1, 1]} : vector<1x1024xf32> to vector<1x256xf32>
    %32 = arith.negf %31 : vector<1x256xf32>
    %33 = math.exp %32 : vector<1x256xf32>
    %cst_21 = arith.constant 1.000000e+00 : f32
    %34 = vector.broadcast %cst_21 : f32 to vector<1x256xf32>
    %35 = arith.addf %34, %33 : vector<1x256xf32>
    %36 = arith.divf %34, %35 : vector<1x256xf32>
    %37 = vector.extract_strided_slice %24 {offsets = [0, 512], sizes = [1, 256], strides = [1, 1]} : vector<1x1024xf32> to vector<1x256xf32>
    %38 = math.tanh %37 : vector<1x256xf32>
    %39 = vector.extract_strided_slice %24 {offsets = [0, 768], sizes = [1, 256], strides = [1, 1]} : vector<1x1024xf32> to vector<1x256xf32>
    %40 = arith.negf %39 : vector<1x256xf32>
    %41 = math.exp %40 : vector<1x256xf32>
    %cst_22 = arith.constant 1.000000e+00 : f32
    %42 = vector.broadcast %cst_22 : f32 to vector<1x256xf32>
    %43 = arith.addf %42, %41 : vector<1x256xf32>
    %44 = arith.divf %42, %43 : vector<1x256xf32>
    %45 = arith.mulf %36, %20 : vector<1x256xf32>
    %46 = arith.mulf %30, %38 : vector<1x256xf32>
    %47 = arith.addf %45, %46 : vector<1x256xf32>
    %48 = math.tanh %47 : vector<1x256xf32>
    %49 = arith.mulf %44, %48 : vector<1x256xf32>
    %50 = vector.extract_strided_slice %18 {offsets = [1, 0], sizes = [1, 1024], strides = [1, 1]} : vector<2x1024xf32> to vector<1x1024xf32>
    %51 = arith.truncf %49 : vector<1x256xf32> to vector<1x256xbf16>
    %cst_23 = arith.constant dense<0.000000e+00> : vector<1x1024xf32>
    %52 = tpu.matmul %51, %12, %cst_23 {dimension_numbers = #tpu.dot_dimension_numbers<[1], [0], [0], [1], [0, 0, 1, 1], [], []>} : vector<1x256xbf16>, vector<256x1024xbf16>, vector<1x1024xf32> -> vector<1x1024xf32>
    %53 = arith.addf %50, %52 : vector<1x1024xf32>
    %54 = vector.extract_strided_slice %53 {offsets = [0, 0], sizes = [1, 256], strides = [1, 1]} : vector<1x1024xf32> to vector<1x256xf32>
    %55 = arith.negf %54 : vector<1x256xf32>
    %56 = math.exp %55 : vector<1x256xf32>
    %cst_24 = arith.constant 1.000000e+00 : f32
    %57 = vector.broadcast %cst_24 : f32 to vector<1x256xf32>
    %58 = arith.addf %57, %56 : vector<1x256xf32>
    %59 = arith.divf %57, %58 : vector<1x256xf32>
    %60 = vector.extract_strided_slice %53 {offsets = [0, 256], sizes = [1, 256], strides = [1, 1]} : vector<1x1024xf32> to vector<1x256xf32>
    %61 = arith.negf %60 : vector<1x256xf32>
    %62 = math.exp %61 : vector<1x256xf32>
    %cst_25 = arith.constant 1.000000e+00 : f32
    %63 = vector.broadcast %cst_25 : f32 to vector<1x256xf32>
    %64 = arith.addf %63, %62 : vector<1x256xf32>
    %65 = arith.divf %63, %64 : vector<1x256xf32>
    %66 = vector.extract_strided_slice %53 {offsets = [0, 512], sizes = [1, 256], strides = [1, 1]} : vector<1x1024xf32> to vector<1x256xf32>
    %67 = math.tanh %66 : vector<1x256xf32>
    %68 = vector.extract_strided_slice %53 {offsets = [0, 768], sizes = [1, 256], strides = [1, 1]} : vector<1x1024xf32> to vector<1x256xf32>
    %69 = arith.negf %68 : vector<1x256xf32>
    %70 = math.exp %69 : vector<1x256xf32>
    %cst_26 = arith.constant 1.000000e+00 : f32
    %71 = vector.broadcast %cst_26 : f32 to vector<1x256xf32>
    %72 = arith.addf %71, %70 : vector<1x256xf32>
    %73 = arith.divf %71, %72 : vector<1x256xf32>
    %74 = arith.mulf %65, %47 : vector<1x256xf32>
    %75 = arith.mulf %59, %67 : vector<1x256xf32>
    %76 = arith.addf %74, %75 : vector<1x256xf32>
    %77 = math.tanh %76 : vector<1x256xf32>
    %78 = arith.mulf %73, %77 : vector<1x256xf32>
    %79 = tpu.concatenate %49, %78 in 0 : vector<1x256xf32>, vector<1x256xf32> -> vector<2x256xf32>
    %c0_27 = arith.constant 0 : index
    %c0_28 = arith.constant 0 : index
    %80 = vector.load %arg9[%c0_27, %c0_28] : memref<256x1024xbf16, #tpu.memory_space<vmem>>, vector<256x1024xbf16>
    %81 = arith.truncf %79 : vector<2x256xf32> to vector<2x256xbf16>
    %c0_29 = arith.constant 0 : index
    %c0_30 = arith.constant 0 : index
    %82 = vector.load %arg8[%c0_29, %c0_30] : memref<256x1024xbf16, #tpu.memory_space<vmem>>, vector<256x1024xbf16>
    %cst_31 = arith.constant dense<0.000000e+00> : vector<2x1024xf32>
    %83 = tpu.matmul %81, %82, %cst_31 {dimension_numbers = #tpu.dot_dimension_numbers<[1], [0], [0], [1], [0, 0, 1, 1], [], []>} : vector<2x256xbf16>, vector<256x1024xbf16>, vector<2x1024xf32> -> vector<2x1024xf32>
    %c0_32 = arith.constant 0 : index
    %c0_33 = arith.constant 0 : index
    %84 = vector.load %arg10[%c0_32, %c0_33] : memref<1x1024xf32, #tpu.memory_space<vmem>>, vector<1x1024xf32>
    %85 = vector.broadcast %84 : vector<1x1024xf32> to vector<2x1024xf32>
    %86 = arith.addf %83, %85 : vector<2x1024xf32>
    %cst_34 = arith.constant 0.000000e+00 : f32
    %87 = vector.broadcast %cst_34 : f32 to vector<1x256xf32>
    %cst_35 = arith.constant 0.000000e+00 : f32
    %88 = vector.broadcast %cst_35 : f32 to vector<1x256xf32>
    %89 = vector.extract_strided_slice %86 {offsets = [0, 0], sizes = [1, 1024], strides = [1, 1]} : vector<2x1024xf32> to vector<1x1024xf32>
    %90 = arith.truncf %87 : vector<1x256xf32> to vector<1x256xbf16>
    %cst_36 = arith.constant dense<0.000000e+00> : vector<1x1024xf32>
    %91 = tpu.matmul %90, %80, %cst_36 {dimension_numbers = #tpu.dot_dimension_numbers<[1], [0], [0], [1], [0, 0, 1, 1], [], []>} : vector<1x256xbf16>, vector<256x1024xbf16>, vector<1x1024xf32> -> vector<1x1024xf32>
    %92 = arith.addf %89, %91 : vector<1x1024xf32>
    %93 = vector.extract_strided_slice %92 {offsets = [0, 0], sizes = [1, 256], strides = [1, 1]} : vector<1x1024xf32> to vector<1x256xf32>
    %94 = arith.negf %93 : vector<1x256xf32>
    %95 = math.exp %94 : vector<1x256xf32>
    %cst_37 = arith.constant 1.000000e+00 : f32
    %96 = vector.broadcast %cst_37 : f32 to vector<1x256xf32>
    %97 = arith.addf %96, %95 : vector<1x256xf32>
    %98 = arith.divf %96, %97 : vector<1x256xf32>
    %99 = vector.extract_strided_slice %92 {offsets = [0, 256], sizes = [1, 256], strides = [1, 1]} : vector<1x1024xf32> to vector<1x256xf32>
    %100 = arith.negf %99 : vector<1x256xf32>
    %101 = math.exp %100 : vector<1x256xf32>
    %cst_38 = arith.constant 1.000000e+00 : f32
    %102 = vector.broadcast %cst_38 : f32 to vector<1x256xf32>
    %103 = arith.addf %102, %101 : vector<1x256xf32>
    %104 = arith.divf %102, %103 : vector<1x256xf32>
    %105 = vector.extract_strided_slice %92 {offsets = [0, 512], sizes = [1, 256], strides = [1, 1]} : vector<1x1024xf32> to vector<1x256xf32>
    %106 = math.tanh %105 : vector<1x256xf32>
    %107 = vector.extract_strided_slice %92 {offsets = [0, 768], sizes = [1, 256], strides = [1, 1]} : vector<1x1024xf32> to vector<1x256xf32>
    %108 = arith.negf %107 : vector<1x256xf32>
    %109 = math.exp %108 : vector<1x256xf32>
    %cst_39 = arith.constant 1.000000e+00 : f32
    %110 = vector.broadcast %cst_39 : f32 to vector<1x256xf32>
    %111 = arith.addf %110, %109 : vector<1x256xf32>
    %112 = arith.divf %110, %111 : vector<1x256xf32>
    %113 = arith.mulf %104, %88 : vector<1x256xf32>
    %114 = arith.mulf %98, %106 : vector<1x256xf32>
    %115 = arith.addf %113, %114 : vector<1x256xf32>
    %116 = math.tanh %115 : vector<1x256xf32>
    %117 = arith.mulf %112, %116 : vector<1x256xf32>
    %118 = vector.extract_strided_slice %86 {offsets = [1, 0], sizes = [1, 1024], strides = [1, 1]} : vector<2x1024xf32> to vector<1x1024xf32>
    %119 = arith.truncf %117 : vector<1x256xf32> to vector<1x256xbf16>
    %cst_40 = arith.constant dense<0.000000e+00> : vector<1x1024xf32>
    %120 = tpu.matmul %119, %80, %cst_40 {dimension_numbers = #tpu.dot_dimension_numbers<[1], [0], [0], [1], [0, 0, 1, 1], [], []>} : vector<1x256xbf16>, vector<256x1024xbf16>, vector<1x1024xf32> -> vector<1x1024xf32>
    %121 = arith.addf %118, %120 : vector<1x1024xf32>
    %122 = vector.extract_strided_slice %121 {offsets = [0, 0], sizes = [1, 256], strides = [1, 1]} : vector<1x1024xf32> to vector<1x256xf32>
    %123 = arith.negf %122 : vector<1x256xf32>
    %124 = math.exp %123 : vector<1x256xf32>
    %cst_41 = arith.constant 1.000000e+00 : f32
    %125 = vector.broadcast %cst_41 : f32 to vector<1x256xf32>
    %126 = arith.addf %125, %124 : vector<1x256xf32>
    %127 = arith.divf %125, %126 : vector<1x256xf32>
    %128 = vector.extract_strided_slice %121 {offsets = [0, 256], sizes = [1, 256], strides = [1, 1]} : vector<1x1024xf32> to vector<1x256xf32>
    %129 = arith.negf %128 : vector<1x256xf32>
    %130 = math.exp %129 : vector<1x256xf32>
    %cst_42 = arith.constant 1.000000e+00 : f32
    %131 = vector.broadcast %cst_42 : f32 to vector<1x256xf32>
    %132 = arith.addf %131, %130 : vector<1x256xf32>
    %133 = arith.divf %131, %132 : vector<1x256xf32>
    %134 = vector.extract_strided_slice %121 {offsets = [0, 512], sizes = [1, 256], strides = [1, 1]} : vector<1x1024xf32> to vector<1x256xf32>
    %135 = math.tanh %134 : vector<1x256xf32>
    %136 = vector.extract_strided_slice %121 {offsets = [0, 768], sizes = [1, 256], strides = [1, 1]} : vector<1x1024xf32> to vector<1x256xf32>
    %137 = arith.negf %136 : vector<1x256xf32>
    %138 = math.exp %137 : vector<1x256xf32>
    %cst_43 = arith.constant 1.000000e+00 : f32
    %139 = vector.broadcast %cst_43 : f32 to vector<1x256xf32>
    %140 = arith.addf %139, %138 : vector<1x256xf32>
    %141 = arith.divf %139, %140 : vector<1x256xf32>
    %142 = arith.mulf %133, %115 : vector<1x256xf32>
    %143 = arith.mulf %127, %135 : vector<1x256xf32>
    %144 = arith.addf %142, %143 : vector<1x256xf32>
    %145 = math.tanh %144 : vector<1x256xf32>
    %146 = arith.mulf %141, %145 : vector<1x256xf32>
    %147 = tpu.concatenate %117, %146 in 0 : vector<1x256xf32>, vector<1x256xf32> -> vector<2x256xf32>
    %c0_44 = arith.constant 0 : index
    %c0_45 = arith.constant 0 : index
    %148 = vector.load %arg12[%c0_44, %c0_45] : memref<256x1024xbf16, #tpu.memory_space<vmem>>, vector<256x1024xbf16>
    %149 = arith.truncf %147 : vector<2x256xf32> to vector<2x256xbf16>
    %c0_46 = arith.constant 0 : index
    %c0_47 = arith.constant 0 : index
    %150 = vector.load %arg11[%c0_46, %c0_47] : memref<256x1024xbf16, #tpu.memory_space<vmem>>, vector<256x1024xbf16>
    %cst_48 = arith.constant dense<0.000000e+00> : vector<2x1024xf32>
    %151 = tpu.matmul %149, %150, %cst_48 {dimension_numbers = #tpu.dot_dimension_numbers<[1], [0], [0], [1], [0, 0, 1, 1], [], []>} : vector<2x256xbf16>, vector<256x1024xbf16>, vector<2x1024xf32> -> vector<2x1024xf32>
    %c0_49 = arith.constant 0 : index
    %c0_50 = arith.constant 0 : index
    %152 = vector.load %arg13[%c0_49, %c0_50] : memref<1x1024xf32, #tpu.memory_space<vmem>>, vector<1x1024xf32>
    %153 = vector.broadcast %152 : vector<1x1024xf32> to vector<2x1024xf32>
    %154 = arith.addf %151, %153 : vector<2x1024xf32>
    %cst_51 = arith.constant 0.000000e+00 : f32
    %155 = vector.broadcast %cst_51 : f32 to vector<1x256xf32>
    %cst_52 = arith.constant 0.000000e+00 : f32
    %156 = vector.broadcast %cst_52 : f32 to vector<1x256xf32>
    %157 = vector.extract_strided_slice %154 {offsets = [0, 0], sizes = [1, 1024], strides = [1, 1]} : vector<2x1024xf32> to vector<1x1024xf32>
    %158 = arith.truncf %155 : vector<1x256xf32> to vector<1x256xbf16>
    %cst_53 = arith.constant dense<0.000000e+00> : vector<1x1024xf32>
    %159 = tpu.matmul %158, %148, %cst_53 {dimension_numbers = #tpu.dot_dimension_numbers<[1], [0], [0], [1], [0, 0, 1, 1], [], []>} : vector<1x256xbf16>, vector<256x1024xbf16>, vector<1x1024xf32> -> vector<1x1024xf32>
    %160 = arith.addf %157, %159 : vector<1x1024xf32>
    %161 = vector.extract_strided_slice %160 {offsets = [0, 0], sizes = [1, 256], strides = [1, 1]} : vector<1x1024xf32> to vector<1x256xf32>
    %162 = arith.negf %161 : vector<1x256xf32>
    %163 = math.exp %162 : vector<1x256xf32>
    %cst_54 = arith.constant 1.000000e+00 : f32
    %164 = vector.broadcast %cst_54 : f32 to vector<1x256xf32>
    %165 = arith.addf %164, %163 : vector<1x256xf32>
    %166 = arith.divf %164, %165 : vector<1x256xf32>
    %167 = vector.extract_strided_slice %160 {offsets = [0, 256], sizes = [1, 256], strides = [1, 1]} : vector<1x1024xf32> to vector<1x256xf32>
    %168 = arith.negf %167 : vector<1x256xf32>
    %169 = math.exp %168 : vector<1x256xf32>
    %cst_55 = arith.constant 1.000000e+00 : f32
    %170 = vector.broadcast %cst_55 : f32 to vector<1x256xf32>
    %171 = arith.addf %170, %169 : vector<1x256xf32>
    %172 = arith.divf %170, %171 : vector<1x256xf32>
    %173 = vector.extract_strided_slice %160 {offsets = [0, 512], sizes = [1, 256], strides = [1, 1]} : vector<1x1024xf32> to vector<1x256xf32>
    %174 = math.tanh %173 : vector<1x256xf32>
    %175 = vector.extract_strided_slice %160 {offsets = [0, 768], sizes = [1, 256], strides = [1, 1]} : vector<1x1024xf32> to vector<1x256xf32>
    %176 = arith.negf %175 : vector<1x256xf32>
    %177 = math.exp %176 : vector<1x256xf32>
    %cst_56 = arith.constant 1.000000e+00 : f32
    %178 = vector.broadcast %cst_56 : f32 to vector<1x256xf32>
    %179 = arith.addf %178, %177 : vector<1x256xf32>
    %180 = arith.divf %178, %179 : vector<1x256xf32>
    %181 = arith.mulf %172, %156 : vector<1x256xf32>
    %182 = arith.mulf %166, %174 : vector<1x256xf32>
    %183 = arith.addf %181, %182 : vector<1x256xf32>
    %184 = math.tanh %183 : vector<1x256xf32>
    %185 = arith.mulf %180, %184 : vector<1x256xf32>
    %186 = vector.extract_strided_slice %154 {offsets = [1, 0], sizes = [1, 1024], strides = [1, 1]} : vector<2x1024xf32> to vector<1x1024xf32>
    %187 = arith.truncf %185 : vector<1x256xf32> to vector<1x256xbf16>
    %cst_57 = arith.constant dense<0.000000e+00> : vector<1x1024xf32>
    %188 = tpu.matmul %187, %148, %cst_57 {dimension_numbers = #tpu.dot_dimension_numbers<[1], [0], [0], [1], [0, 0, 1, 1], [], []>} : vector<1x256xbf16>, vector<256x1024xbf16>, vector<1x1024xf32> -> vector<1x1024xf32>
    %189 = arith.addf %186, %188 : vector<1x1024xf32>
    %190 = vector.extract_strided_slice %189 {offsets = [0, 0], sizes = [1, 256], strides = [1, 1]} : vector<1x1024xf32> to vector<1x256xf32>
    %191 = arith.negf %190 : vector<1x256xf32>
    %192 = math.exp %191 : vector<1x256xf32>
    %cst_58 = arith.constant 1.000000e+00 : f32
    %193 = vector.broadcast %cst_58 : f32 to vector<1x256xf32>
    %194 = arith.addf %193, %192 : vector<1x256xf32>
    %195 = arith.divf %193, %194 : vector<1x256xf32>
    %196 = vector.extract_strided_slice %189 {offsets = [0, 256], sizes = [1, 256], strides = [1, 1]} : vector<1x1024xf32> to vector<1x256xf32>
    %197 = arith.negf %196 : vector<1x256xf32>
    %198 = math.exp %197 : vector<1x256xf32>
    %cst_59 = arith.constant 1.000000e+00 : f32
    %199 = vector.broadcast %cst_59 : f32 to vector<1x256xf32>
    %200 = arith.addf %199, %198 : vector<1x256xf32>
    %201 = arith.divf %199, %200 : vector<1x256xf32>
    %202 = vector.extract_strided_slice %189 {offsets = [0, 512], sizes = [1, 256], strides = [1, 1]} : vector<1x1024xf32> to vector<1x256xf32>
    %203 = math.tanh %202 : vector<1x256xf32>
    %204 = vector.extract_strided_slice %189 {offsets = [0, 768], sizes = [1, 256], strides = [1, 1]} : vector<1x1024xf32> to vector<1x256xf32>
    %205 = arith.negf %204 : vector<1x256xf32>
    %206 = math.exp %205 : vector<1x256xf32>
    %cst_60 = arith.constant 1.000000e+00 : f32
    %207 = vector.broadcast %cst_60 : f32 to vector<1x256xf32>
    %208 = arith.addf %207, %206 : vector<1x256xf32>
    %209 = arith.divf %207, %208 : vector<1x256xf32>
    %210 = arith.mulf %201, %183 : vector<1x256xf32>
    %211 = arith.mulf %195, %203 : vector<1x256xf32>
    %212 = arith.addf %210, %211 : vector<1x256xf32>
    %213 = math.tanh %212 : vector<1x256xf32>
    %214 = arith.mulf %209, %213 : vector<1x256xf32>
    %215 = tpu.concatenate %185, %214 in 0 : vector<1x256xf32>, vector<1x256xf32> -> vector<2x256xf32>
    %216 = arith.truncf %215 : vector<2x256xf32> to vector<2x256xbf16>
    %c0_61 = arith.constant 0 : index
    %c0_62 = arith.constant 0 : index
    %217 = vector.load %arg14[%c0_61, %c0_62] : memref<256x128xbf16, #tpu.memory_space<vmem>>, vector<256x128xbf16>
    %cst_63 = arith.constant dense<0.000000e+00> : vector<2x128xf32>
    %218 = tpu.matmul %216, %217, %cst_63 {dimension_numbers = #tpu.dot_dimension_numbers<[1], [0], [0], [1], [0, 0, 1, 1], [], []>} : vector<2x256xbf16>, vector<256x128xbf16>, vector<2x128xf32> -> vector<2x128xf32>
    %c0_64 = arith.constant 0 : index
    %c0_65 = arith.constant 0 : index
    %219 = vector.load %arg15[%c0_64, %c0_65] : memref<1x128xf32, #tpu.memory_space<vmem>>, vector<1x128xf32>
    %220 = vector.broadcast %219 : vector<1x128xf32> to vector<2x128xf32>
    %221 = arith.addf %218, %220 : vector<2x128xf32>
    %c0_66 = arith.constant 0 : index
    %c0_67 = arith.constant 0 : index
    %c0_68 = arith.constant 0 : index
    %222 = vector.load %arg16[%c0_66, %c0_67, %c0_68] : memref<1x2x128xf32, #tpu.memory_space<vmem>>, vector<1x2x128xf32>
    %223 = vector.shape_cast %222 : vector<1x2x128xf32> to vector<2x128xf32>
    %224 = vector.shape_cast %221 : vector<2x128xf32> to vector<1x2x128xf32>
    tpu.vector_store %arg16[%c0_66, %c0_67, %c0_68], %224 {strides = array<i32>} : memref<1x2x128xf32, #tpu.memory_space<vmem>>, vector<1x2x128xf32>,
    return
  }
  func.func @transform_0(%arg0: i32) -> (i32, i32, i32) {
    %c0_i32 = arith.constant 0 : i32
    %c0_i32_0 = arith.constant 0 : i32
    %c0_i32_1 = arith.constant 0 : i32
    return %arg0, %c0_i32, %c0_i32_0 : i32, i32, i32
  }
  func.func @transform_1(%arg0: i32) -> (i32, i32) {
    %c0_i32 = arith.constant 0 : i32
    %c0_i32_0 = arith.constant 0 : i32
    %c0_i32_1 = arith.constant 0 : i32
    return %c0_i32, %c0_i32_0 : i32, i32
  }
  func.func @transform_2(%arg0: i32) -> (i32, i32) {
    %c0_i32 = arith.constant 0 : i32
    %c0_i32_0 = arith.constant 0 : i32
    %c0_i32_1 = arith.constant 0 : i32
    return %c0_i32, %c0_i32_0 : i32, i32
  }
  func.func @transform_3(%arg0: i32) -> (i32, i32) {
    %c0_i32 = arith.constant 0 : i32
    %c0_i32_0 = arith.constant 0 : i32
    %c0_i32_1 = arith.constant 0 : i32
    return %c0_i32, %c0_i32_0 : i32, i32
  }
  func.func @transform_4(%arg0: i32) -> (i32, i32) {
    %c0_i32 = arith.constant 0 : i32
    %c0_i32_0 = arith.constant 0 : i32
    %c0_i32_1 = arith.constant 0 : i32
    return %c0_i32, %c0_i32_0 : i32, i32
  }
  func.func @transform_5(%arg0: i32) -> (i32, i32) {
    %c0_i32 = arith.constant 0 : i32
    %c0_i32_0 = arith.constant 0 : i32
    %c0_i32_1 = arith.constant 0 : i32
    return %c0_i32, %c0_i32_0 : i32, i32
  }
  func.func @transform_6(%arg0: i32) -> (i32, i32) {
    %c0_i32 = arith.constant 0 : i32
    %c0_i32_0 = arith.constant 0 : i32
    %c0_i32_1 = arith.constant 0 : i32
    return %c0_i32, %c0_i32_0 : i32, i32
  }
  func.func @transform_7(%arg0: i32) -> (i32, i32) {
    %c0_i32 = arith.constant 0 : i32
    %c0_i32_0 = arith.constant 0 : i32
    %c0_i32_1 = arith.constant 0 : i32
    return %c0_i32, %c0_i32_0 : i32, i32
  }
  func.func @transform_8(%arg0: i32) -> (i32, i32) {
    %c0_i32 = arith.constant 0 : i32
    %c0_i32_0 = arith.constant 0 : i32
    %c0_i32_1 = arith.constant 0 : i32
    return %c0_i32, %c0_i32_0 : i32, i32
  }
  func.func @transform_9(%arg0: i32) -> (i32, i32) {
    %c0_i32 = arith.constant 0 : i32
    %c0_i32_0 = arith.constant 0 : i32
    %c0_i32_1 = arith.constant 0 : i32
    return %c0_i32, %c0_i32_0 : i32, i32
  }
  func.func @transform_10(%arg0: i32) -> (i32, i32) {
    %c0_i32 = arith.constant 0 : i32
    %c0_i32_0 = arith.constant 0 : i32
    %c0_i32_1 = arith.constant 0 : i32
    return %c0_i32, %c0_i32_0 : i32, i32
  }
  func.func @transform_11(%arg0: i32) -> (i32, i32) {
    %c0_i32 = arith.constant 0 : i32
    %c0_i32_0 = arith.constant 0 : i32
    %c0_i32_1 = arith.constant 0 : i32
    return %c0_i32, %c0_i32_0 : i32, i32
  }
  func.func @transform_12(%arg0: i32) -> (i32, i32) {
    %c0_i32 = arith.constant 0 : i32
    %c0_i32_0 = arith.constant 0 : i32
    %c0_i32_1 = arith.constant 0 : i32
    return %c0_i32, %c0_i32_0 : i32, i32
  }
  func.func @transform_13(%arg0: i32) -> (i32, i32) {
    %c0_i32 = arith.constant 0 : i32
    %c0_i32_0 = arith.constant 0 : i32
    %c0_i32_1 = arith.constant 0 : i32
    return %c0_i32, %c0_i32_0 : i32, i32
  }
  func.func @transform_14(%arg0: i32) -> (i32, i32) {
    %c0_i32 = arith.constant 0 : i32
    %c0_i32_0 = arith.constant 0 : i32
    %c0_i32_1 = arith.constant 0 : i32
    return %c0_i32, %c0_i32_0 : i32, i32
  }
  func.func @transform_15(%arg0: i32) -> (i32, i32, i32) {
    %c0_i32 = arith.constant 0 : i32
    %c0_i32_0 = arith.constant 0 : i32
    %c0_i32_1 = arith.constant 0 : i32
    return %arg0, %c0_i32, %c0_i32_0 : i32, i32, i32
  }
}

</mosaic_0001>

<llo_original>
// kernel: tpu_custom_call.1
$region0: #{tpu_custom_call.1}
  #allocation0 [shape = 'u32[]', space=smem, size = 0x4, offset = 0x4, fixed_abs, tag = 'smem constant byte address 0x4 - core index']
  #allocation1 [shape = 'u32[144,128]{1,0:T(1,128)}', space=vmem, size = 0x12000, scoped, tag = 'internal scratch']
  %s0 = inlined_call_operand.hbm [shape: bf16[1,512,128], index: 0, kind: input, shape index: {}]
  %s1 = inlined_call_operand.hbm [shape: bf16[128,128], index: 1, kind: input, shape index: {}]
  %s2 = inlined_call_operand.vmem [shape: f32[1,128], index: 2, kind: input, shape index: {}]
  %s3 = inlined_call_operand.hbm [shape: bf16[2,512], index: 3, kind: input, shape index: {}]
  %s4 = inlined_call_operand.hbm [shape: bf16[128,1024], index: 4, kind: input, shape index: {}]
  %s5 = inlined_call_operand.hbm [shape: bf16[256,1024], index: 5, kind: input, shape index: {}]
  %s6 = inlined_call_operand.vmem [shape: f32[1,1024], index: 6, kind: input, shape index: {}]
  %s7 = inlined_call_operand.hbm [shape: bf16[256,1024], index: 7, kind: input, shape index: {}]
  %s8 = inlined_call_operand.hbm [shape: bf16[256,1024], index: 8, kind: input, shape index: {}]
  %s9 = inlined_call_operand.vmem [shape: f32[1,1024], index: 9, kind: input, shape index: {}]
  %s10 = inlined_call_operand.hbm [shape: bf16[256,1024], index: 10, kind: input, shape index: {}]
  %s11 = inlined_call_operand.hbm [shape: bf16[256,1024], index: 11, kind: input, shape index: {}]
  %s12 = inlined_call_operand.vmem [shape: f32[1,1024], index: 12, kind: input, shape index: {}]
  %s13 = inlined_call_operand.hbm [shape: bf16[256,128], index: 13, kind: input, shape index: {}]
  %s14 = inlined_call_operand.vmem [shape: f32[1,128], index: 14, kind: input, shape index: {}]
  %s15 = inlined_call_operand.hbm [shape: f32[1,2,128], index: 15, kind: output, shape index: {}]
  %s16 = sld [smem:[#allocation0]]
  $region110: #{tpu_custom_call.1} parent=0
    _
  %s18 = ssub.s32 1, %s16
  %s19 = scalar_select 0, %s18, %s16
  $region1: #{tpu_custom_call.1} parent=0
    #allocation2 [shape = 'u8[131072]{0}', space=vmem, size = 0x20000, scoped, tag = 'input window, operand 0, single buffered']
    #allocation3 [shape = 's32[1]{0}', space=sflag, size = 0x4, scoped, tag = 'scoped memory for tpu_custom_call.1']
    #allocation4 [shape = 's32[1]{0}', space=sflag, size = 0x4, scoped, tag = 'scoped memory for tpu_custom_call.1']
    #allocation5 [shape = 'u8[32768]{0}', space=vmem, size = 0x8000, scoped, tag = 'input window, operand 1, single buffered']
    #allocation6 [shape = 's32[1]{0}', space=sflag, size = 0x4, scoped, tag = 'scoped memory for tpu_custom_call.1']
    #allocation7 [shape = 'u8[2048]{0}', space=vmem, size = 0x800, scoped, tag = 'input window, operand 3, single buffered']
    #allocation8 [shape = 'u8[262144]{0}', space=vmem, size = 0x40000, scoped, tag = 'input window, operand 4, single buffered']
    #allocation9 [shape = 's32[1]{0}', space=sflag, size = 0x4, scoped, tag = 'scoped memory for tpu_custom_call.1']
    #allocation10 [shape = 'u8[524288]{0}', space=vmem, size = 0x80000, scoped, tag = 'input window, operand 5, single buffered']
    #allocation11 [shape = 'u8[524288]{0}', space=vmem, size = 0x80000, scoped, tag = 'input window, operand 7, single buffered']
    #allocation12 [shape = 's32[1]{0}', space=sflag, size = 0x4, scoped, tag = 'scoped memory for tpu_custom_call.1']
    #allocation13 [shape = 'u8[524288]{0}', space=vmem, size = 0x80000, scoped, tag = 'input window, operand 8, single buffered']
    #allocation14 [shape = 'u8[524288]{0}', space=vmem, size = 0x80000, scoped, tag = 'input window, operand 10, single buffered']
    #allocation15 [shape = 's32[1]{0}', space=sflag, size = 0x4, scoped, tag = 'scoped memory for tpu_custom_call.1']
    #allocation16 [shape = 'u8[524288]{0}', space=vmem, size = 0x80000, scoped, tag = 'input window, operand 11, single buffered']
    #allocation17 [shape = 'u8[65536]{0}', space=vmem, size = 0x10000, scoped, tag = 'input window, operand 13, single buffered']
    #allocation18 [shape = 's32[1]{0}', space=sflag, size = 0x4, scoped, tag = 'scoped memory for tpu_custom_call.1']
    #allocation19 [shape = 'u8[1024]{0}', space=vmem, size = 0x400, scoped, tag = 'output window, operand 0, single buffered']
    %20 = vsyncpa [#allocation3], 0
    %21 = vsyncpa [#allocation6], 0
    %22 = vsyncpa [#allocation9], 0
    %23 = vsyncpa [#allocation12], 0
    %24 = vsyncpa [#allocation15], 0
    %25 = vsyncpa [#allocation18], 0
    %26 = vsyncpa [#allocation4], 0
    // Predicated region
    $region2: #{tpu_custom_call.1} parent=1 // pred_check
      _
    $region3: #{tpu_custom_call.1} parent=1 // pred_check_branch
      %28 = sbr.rel (0) target = $region5
    $region4: #{tpu_custom_call.1} parent=1 // pred_region
      %s30 = ssub.s32 4096, 4096
      %31 = vsyncadd [#allocation3], %s30
      %s32 = sshll.u32 [#allocation2], 4
      %s33 = int_to_ptr.vmem [resolvable:$true] %s32
      %38 = dma.hbm_to_vmem [thread:$0]  %s0, 4096, %s33, [#allocation3], 64, 64, 4
    $region5: #{tpu_custom_call.1} parent=1 // pred_fallthru
      _
    // Predicated region
    $region6: #{tpu_custom_call.1} parent=1 // pred_check
      _
    $region7: #{tpu_custom_call.1} parent=1 // pred_check_branch
      %40 = sbr.rel (0) target = $region9
    $region8: #{tpu_custom_call.1} parent=1 // pred_region
      %s42 = ssub.s32 1024, 1024
      %43 = vsyncadd [#allocation6], %s42
      %s44 = sshll.u32 [#allocation5], 4
      %s45 = int_to_ptr.vmem [resolvable:$true] %s44
      %50 = dma.hbm_to_vmem [thread:$0]  %s1, 1024, %s45, [#allocation6], 64, 64, 4
    $region9: #{tpu_custom_call.1} parent=1 // pred_fallthru
      _
    // Predicated region
    $region10: #{tpu_custom_call.1} parent=1 // pred_check
      _
    $region11: #{tpu_custom_call.1} parent=1 // pred_check_branch
      %52 = sbr.rel (0) target = $region13
    $region12: #{tpu_custom_call.1} parent=1 // pred_region
      _
    $region13: #{tpu_custom_call.1} parent=1 // pred_fallthru
      _
    // Predicated region
    $region14: #{tpu_custom_call.1} parent=1 // pred_check
      _
    $region15: #{tpu_custom_call.1} parent=1 // pred_check_branch
      %54 = sbr.rel (0) target = $region17
    $region16: #{tpu_custom_call.1} parent=1 // pred_region
      %s56 = ssub.s32 64, 64
      %57 = vsyncadd [#allocation6], %s56
      %s59 = sshll.u32 [#allocation7], 4
      %s60 = int_to_ptr.vmem [resolvable:$true] %s59
      %62 = dma.hbm_to_vmem [thread:$0]  %s3, 64, %s60, [#allocation6]
    $region17: #{tpu_custom_call.1} parent=1 // pred_fallthru
      _
    // Predicated region
    $region18: #{tpu_custom_call.1} parent=1 // pred_check
      _
    $region19: #{tpu_custom_call.1} parent=1 // pred_check_branch
      %64 = sbr.rel (0) target = $region21
    $region20: #{tpu_custom_call.1} parent=1 // pred_region
      %s66 = ssub.s32 8192, 8192
      %67 = vsyncadd [#allocation9], %s66
      %s68 = sshll.u32 [#allocation8], 4
      %s69 = int_to_ptr.vmem [resolvable:$true] %s68
      %74 = dma.hbm_to_vmem [thread:$0]  %s4, 8192, %s69, [#allocation9], 512, 512, 32
    $region21: #{tpu_custom_call.1} parent=1 // pred_fallthru
      _
    // Predicated region
    $region22: #{tpu_custom_call.1} parent=1 // pred_check
      _
    $region23: #{tpu_custom_call.1} parent=1 // pred_check_branch
      %76 = sbr.rel (0) target = $region25
    $region24: #{tpu_custom_call.1} parent=1 // pred_region
      %s78 = ssub.s32 16384, 16384
      %79 = vsyncadd [#allocation9], %s78
      %s80 = sshll.u32 [#allocation10], 4
      %s81 = int_to_ptr.vmem [resolvable:$true] %s80
      %86 = dma.hbm_to_vmem [thread:$0]  %s5, 16384, %s81, [#allocation9], 512, 512, 32
    $region25: #{tpu_custom_call.1} parent=1 // pred_fallthru
      _
    // Predicated region
    $region26: #{tpu_custom_call.1} parent=1 // pred_check
      _
    $region27: #{tpu_custom_call.1} parent=1 // pred_check_branch
      %88 = sbr.rel (0) target = $region29
    $region28: #{tpu_custom_call.1} parent=1 // pred_region
      _
    $region29: #{tpu_custom_call.1} parent=1 // pred_fallthru
      _
    // Predicated region
    $region30: #{tpu_custom_call.1} parent=1 // pred_check
      _
    $region31: #{tpu_custom_call.1} parent=1 // pred_check_branch
      %90 = sbr.rel (0) target = $region33
    $region32: #{tpu_custom_call.1} parent=1 // pred_region
      %s92 = ssub.s32 16384, 16384
      %93 = vsyncadd [#allocation12], %s92
      %s94 = sshll.u32 [#allocation11], 4
      %s95 = int_to_ptr.vmem [resolvable:$true] %s94
      %100 = dma.hbm_to_vmem [thread:$0]  %s7, 16384, %s95, [#allocation12], 512, 512, 32
    $region33: #{tpu_custom_call.1} parent=1 // pred_fallthru
      _
    // Predicated region
    $region34: #{tpu_custom_call.1} parent=1 // pred_check
      _
    $region35: #{tpu_custom_call.1} parent=1 // pred_check_branch
      %102 = sbr.rel (0) target = $region37
    $region36: #{tpu_custom_call.1} parent=1 // pred_region
      %s104 = ssub.s32 16384, 16384
      %105 = vsyncadd [#allocation12], %s104
      %s106 = sshll.u32 [#allocation13], 4
      %s107 = int_to_ptr.vmem [resolvable:$true] %s106
      %112 = dma.hbm_to_vmem [thread:$0]  %s8, 16384, %s107, [#allocation12], 512, 512, 32
    $region37: #{tpu_custom_call.1} parent=1 // pred_fallthru
      _
    // Predicated region
    $region38: #{tpu_custom_call.1} parent=1 // pred_check
      _
    $region39: #{tpu_custom_call.1} parent=1 // pred_check_branch
      %114 = sbr.rel (0) target = $region41
    $region40: #{tpu_custom_call.1} parent=1 // pred_region
      _
    $region41: #{tpu_custom_call.1} parent=1 // pred_fallthru
      _
    // Predicated region
    $region42: #{tpu_custom_call.1} parent=1 // pred_check
      _
    $region43: #{tpu_custom_call.1} parent=1 // pred_check_branch
      %116 = sbr.rel (0) target = $region45
    $region44: #{tpu_custom_call.1} parent=1 // pred_region
      %s118 = ssub.s32 16384, 16384
      %119 = vsyncadd [#allocation15], %s118
      %s120 = sshll.u32 [#allocation14], 4
      %s121 = int_to_ptr.vmem [resolvable:$true] %s120
      %126 = dma.hbm_to_vmem [thread:$0]  %s10, 16384, %s121, [#allocation15], 512, 512, 32
    $region45: #{tpu_custom_call.1} parent=1 // pred_fallthru
      _
    // Predicated region
    $region46: #{tpu_custom_call.1} parent=1 // pred_check
      _
    $region47: #{tpu_custom_call.1} parent=1 // pred_check_branch
      %128 = sbr.rel (0) target = $region49
    $region48: #{tpu_custom_call.1} parent=1 // pred_region
      %s130 = ssub.s32 16384, 16384
      %131 = vsyncadd [#allocation15], %s130
      %s132 = sshll.u32 [#allocation16], 4
      %s133 = int_to_ptr.vmem [resolvable:$true] %s132
      %138 = dma.hbm_to_vmem [thread:$0]  %s11, 16384, %s133, [#allocation15], 512, 512, 32
    $region49: #{tpu_custom_call.1} parent=1 // pred_fallthru
      _
    // Predicated region
    $region50: #{tpu_custom_call.1} parent=1 // pred_check
      _
    $region51: #{tpu_custom_call.1} parent=1 // pred_check_branch
      %140 = sbr.rel (0) target = $region53
    $region52: #{tpu_custom_call.1} parent=1 // pred_region
      _
    $region53: #{tpu_custom_call.1} parent=1 // pred_fallthru
      _
    // Predicated region
    $region54: #{tpu_custom_call.1} parent=1 // pred_check
      _
    $region55: #{tpu_custom_call.1} parent=1 // pred_check_branch
      %142 = sbr.rel (0) target = $region57
    $region56: #{tpu_custom_call.1} parent=1 // pred_region
      %s144 = ssub.s32 2048, 2048
      %145 = vsyncadd [#allocation18], %s144
      %s146 = sshll.u32 [#allocation17], 4
      %s147 = int_to_ptr.vmem [resolvable:$true] %s146
      %152 = dma.hbm_to_vmem [thread:$0]  %s13, 2048, %s147, [#allocation18], 64, 64, 4
    $region57: #{tpu_custom_call.1} parent=1 // pred_fallthru
      _
    // Predicated region
    $region58: #{tpu_custom_call.1} parent=1 // pred_check
      _
    $region59: #{tpu_custom_call.1} parent=1 // pred_check_branch
      %154 = sbr.rel (0) target = $region61
    $region60: #{tpu_custom_call.1} parent=1 // pred_region
      _
    $region61: #{tpu_custom_call.1} parent=1 // pred_fallthru
      _
    // Predicated region
    $region62: #{tpu_custom_call.1} parent=1 // pred_check
      _
    $region63: #{tpu_custom_call.1} parent=1 // pred_check_branch
      %156 = sbr.rel (0) target = $region65
    $region64: #{tpu_custom_call.1} parent=1 // pred_region
      %157 = dma.done [#allocation3], 4096
    $region65: #{tpu_custom_call.1} parent=1 // pred_fallthru
      _
    // Predicated region
    $region66: #{tpu_custom_call.1} parent=1 // pred_check
      _
    $region67: #{tpu_custom_call.1} parent=1 // pred_check_branch
      %159 = sbr.rel (0) target = $region69
    $region68: #{tpu_custom_call.1} parent=1 // pred_region
      %160 = dma.done [#allocation6], 1024
    $region69: #{tpu_custom_call.1} parent=1 // pred_fallthru
      _
    // Predicated region
    $region70: #{tpu_custom_call.1} parent=1 // pred_check
      _
    $region71: #{tpu_custom_call.1} parent=1 // pred_check_branch
      %162 = sbr.rel (0) target = $region73
    $region72: #{tpu_custom_call.1} parent=1 // pred_region
      %163 = dma.done [#allocation6], 64
    $region73: #{tpu_custom_call.1} parent=1 // pred_fallthru
      _
    // Predicated region
    $region74: #{tpu_custom_call.1} parent=1 // pred_check
      _
    $region75: #{tpu_custom_call.1} parent=1 // pred_check_branch
      %165 = sbr.rel (0) target = $region77
    $region76: #{tpu_custom_call.1} parent=1 // pred_region
      %166 = dma.done [#allocation9], 8192
    $region77: #{tpu_custom_call.1} parent=1 // pred_fallthru
      _
    // Predicated region
    $region78: #{tpu_custom_call.1} parent=1 // pred_check
      _
    $region79: #{tpu_custom_call.1} parent=1 // pred_check_branch
      %168 = sbr.rel (0) target = $region81
    $region80: #{tpu_custom_call.1} parent=1 // pred_region
      %169 = dma.done [#allocation9], 16384
    $region81: #{tpu_custom_call.1} parent=1 // pred_fallthru
      _
    // Predicated region
    $region82: #{tpu_custom_call.1} parent=1 // pred_check
      _
    $region83: #{tpu_custom_call.1} parent=1 // pred_check_branch
      %171 = sbr.rel (0) target = $region85
    $region84: #{tpu_custom_call.1} parent=1 // pred_region
      %172 = dma.done [#allocation12], 16384
    $region85: #{tpu_custom_call.1} parent=1 // pred_fallthru
      _
    // Predicated region
    $region86: #{tpu_custom_call.1} parent=1 // pred_check
      _
    $region87: #{tpu_custom_call.1} parent=1 // pred_check_branch
      %174 = sbr.rel (0) target = $region89
    $region88: #{tpu_custom_call.1} parent=1 // pred_region
      %175 = dma.done [#allocation12], 16384
    $region89: #{tpu_custom_call.1} parent=1 // pred_fallthru
      _
    // Predicated region
    $region90: #{tpu_custom_call.1} parent=1 // pred_check
      _
    $region91: #{tpu_custom_call.1} parent=1 // pred_check_branch
      %177 = sbr.rel (0) target = $region93
    $region92: #{tpu_custom_call.1} parent=1 // pred_region
      %178 = dma.done [#allocation15], 16384
    $region93: #{tpu_custom_call.1} parent=1 // pred_fallthru
      _
    // Predicated region
    $region94: #{tpu_custom_call.1} parent=1 // pred_check
      _
    $region95: #{tpu_custom_call.1} parent=1 // pred_check_branch
      %180 = sbr.rel (0) target = $region97
    $region96: #{tpu_custom_call.1} parent=1 // pred_region
      %181 = dma.done [#allocation15], 16384
    $region97: #{tpu_custom_call.1} parent=1 // pred_fallthru
      _
    // Predicated region
    $region98: #{tpu_custom_call.1} parent=1 // pred_check
      _
    $region99: #{tpu_custom_call.1} parent=1 // pred_check_branch
      %183 = sbr.rel (0) target = $region101
    $region100: #{tpu_custom_call.1} parent=1 // pred_region
      %184 = dma.done [#allocation18], 2048
    $region101: #{tpu_custom_call.1} parent=1 // pred_fallthru
      _
    %v186 = vld [vmem:[#allocation2] sm:$0xf]
    %v187 = vld [vmem:[#allocation2 + $0x4] sm:$0xf]
    %v188 = vld [vmem:[#allocation2 + $0x8] sm:$0xf]
    %v189 = vld [vmem:[#allocation2 + $0xc] sm:$0xf]
    %v190 = vld [vmem:[#allocation2 + $0x10] sm:$0xf]
    %v191 = vld [vmem:[#allocation2 + $0x14] sm:$0xf]
    %v192 = vld [vmem:[#allocation2 + $0x18] sm:$0xf]
    %v193 = vld [vmem:[#allocation2 + $0x1c] sm:$0xf]
    %v194 = vld [vmem:[#allocation2 + $0x20] sm:$0xf]
    %v195 = vld [vmem:[#allocation2 + $0x24] sm:$0xf]
    %v196 = vld [vmem:[#allocation2 + $0x28] sm:$0xf]
    %v197 = vld [vmem:[#allocation2 + $0x2c] sm:$0xf]
    %v198 = vld [vmem:[#allocation2 + $0x30] sm:$0xf]
    %v199 = vld [vmem:[#allocation2 + $0x34] sm:$0xf]
    %v200 = vld [vmem:[#allocation2 + $0x38] sm:$0xf]
    %v201 = vld [vmem:[#allocation2 + $0x3c] sm:$0xf]
    %v202 = vld [vmem:[#allocation2 + $0x40] sm:$0xf]
    %v203 = vld [vmem:[#allocation2 + $0x44] sm:$0xf]
    %v204 = vld [vmem:[#allocation2 + $0x48] sm:$0xf]
    %v205 = vld [vmem:[#allocation2 + $0x4c] sm:$0xf]
    %v206 = vld [vmem:[#allocation2 + $0x50] sm:$0xf]
    %v207 = vld [vmem:[#allocation2 + $0x54] sm:$0xf]
    %v208 = vld [vmem:[#allocation2 + $0x58] sm:$0xf]
    %v209 = vld [vmem:[#allocation2 + $0x5c] sm:$0xf]
    %v210 = vld [vmem:[#allocation2 + $0x60] sm:$0xf]
    %v211 = vld [vmem:[#allocation2 + $0x64] sm:$0xf]
    %v212 = vld [vmem:[#allocation2 + $0x68] sm:$0xf]
    %v213 = vld [vmem:[#allocation2 + $0x6c] sm:$0xf]
    %v214 = vld [vmem:[#allocation2 + $0x70] sm:$0xf]
    %v215 = vld [vmem:[#allocation2 + $0x74] sm:$0xf]
    %v216 = vld [vmem:[#allocation2 + $0x78] sm:$0xf]
    %v217 = vld [vmem:[#allocation2 + $0x7c] sm:$0xf]
    %v218 = vld [vmem:[#allocation2 + $0x80] sm:$0xf]
    %v219 = vld [vmem:[#allocation2 + $0x84] sm:$0xf]
    %v220 = vld [vmem:[#allocation2 + $0x88] sm:$0xf]
    %v221 = vld [vmem:[#allocation2 + $0x8c] sm:$0xf]
    %v222 = vld [vmem:[#allocation2 + $0x90] sm:$0xf]
    %v223 = vld [vmem:[#allocation2 + $0x94] sm:$0xf]
    %v224 = vld [vmem:[#allocation2 + $0x98] sm:$0xf]
    %v225 = vld [vmem:[#allocation2 + $0x9c] sm:$0xf]
    %v226 = vld [vmem:[#allocation2 + $0xa0] sm:$0xf]
    %v227 = vld [vmem:[#allocation2 + $0xa4] sm:$0xf]
    %v228 = vld [vmem:[#allocation2 + $0xa8] sm:$0xf]
    %v229 = vld [vmem:[#allocation2 + $0xac] sm:$0xf]
    %v230 = vld [vmem:[#allocation2 + $0xb0] sm:$0xf]
    %v231 = vld [vmem:[#allocation2 + $0xb4] sm:$0xf]
    %v232 = vld [vmem:[#allocation2 + $0xb8] sm:$0xf]
    %v233 = vld [vmem:[#allocation2 + $0xbc] sm:$0xf]
    %v234 = vld [vmem:[#allocation2 + $0xc0] sm:$0xf]
    %v235 = vld [vmem:[#allocation2 + $0xc4] sm:$0xf]
    %v236 = vld [vmem:[#allocation2 + $0xc8] sm:$0xf]
    %v237 = vld [vmem:[#allocation2 + $0xcc] sm:$0xf]
    %v238 = vld [vmem:[#allocation2 + $0xd0] sm:$0xf]
    %v239 = vld [vmem:[#allocation2 + $0xd4] sm:$0xf]
    %v240 = vld [vmem:[#allocation2 + $0xd8] sm:$0xf]
    %v241 = vld [vmem:[#allocation2 + $0xdc] sm:$0xf]
    %v242 = vld [vmem:[#allocation2 + $0xe0] sm:$0xf]
    %v243 = vld [vmem:[#allocation2 + $0xe4] sm:$0xf]
    %v244 = vld [vmem:[#allocation2 + $0xe8] sm:$0xf]
    %v245 = vld [vmem:[#allocation2 + $0xec] sm:$0xf]
    %v246 = vld [vmem:[#allocation2 + $0xf0] sm:$0xf]
    %v247 = vld [vmem:[#allocation2 + $0xf4] sm:$0xf]
    %v248 = vld [vmem:[#allocation2 + $0xf8] sm:$0xf]
    %v249 = vld [vmem:[#allocation2 + $0xfc] sm:$0xf]
    %v250 = vld [vmem:[#allocation5] sm:$0xf]
    %v251 = vld [vmem:[#allocation5 + $0x4] sm:$0xf]
    %v252 = vld [vmem:[#allocation5 + $0x8] sm:$0xf]
    %v253 = vld [vmem:[#allocation5 + $0xc] sm:$0xf]
    %v254 = vld [vmem:[#allocation5 + $0x10] sm:$0xf]
    %v255 = vld [vmem:[#allocation5 + $0x14] sm:$0xf]
    %v256 = vld [vmem:[#allocation5 + $0x18] sm:$0xf]
    %v257 = vld [vmem:[#allocation5 + $0x1c] sm:$0xf]
    %v258 = vld [vmem:[#allocation5 + $0x20] sm:$0xf]
    %v259 = vld [vmem:[#allocation5 + $0x24] sm:$0xf]
    %v260 = vld [vmem:[#allocation5 + $0x28] sm:$0xf]
    %v261 = vld [vmem:[#allocation5 + $0x2c] sm:$0xf]
    %v262 = vld [vmem:[#allocation5 + $0x30] sm:$0xf]
    %v263 = vld [vmem:[#allocation5 + $0x34] sm:$0xf]
    %v264 = vld [vmem:[#allocation5 + $0x38] sm:$0xf]
    %v265 = vld [vmem:[#allocation5 + $0x3c] sm:$0xf]
    %v266 = vld [vmem:[%s2] sm:$0x1]
    %v268 = vlaneseq
    %v269 = vshrl.u32 %v268, 7
    %v270 = vsub.s32 0, %v269
    %v271 = vrot.slane %v266, %v270
    %v337 = vunpack.c.l.b16 %v186
    %v338 = vunpack.c.l.b16 %v187
    %v339 = vunpack.c.l.b16 %v188
    %v340 = vunpack.c.l.b16 %v189
    %v341 = vunpack.c.l.b16 %v190
    %v342 = vunpack.c.l.b16 %v191
    %v343 = vunpack.c.l.b16 %v192
    %v344 = vunpack.c.l.b16 %v193
    %v345 = vunpack.c.l.b16 %v194
    %v346 = vunpack.c.l.b16 %v195
    %v347 = vunpack.c.l.b16 %v196
    %v348 = vunpack.c.l.b16 %v197
    %v349 = vunpack.c.l.b16 %v198
    %v350 = vunpack.c.l.b16 %v199
    %v351 = vunpack.c.l.b16 %v200
    %v352 = vunpack.c.l.b16 %v201
    %v353 = vunpack.c.l.b16 %v202
    %v354 = vunpack.c.l.b16 %v203
    %v355 = vunpack.c.l.b16 %v204
    %v356 = vunpack.c.l.b16 %v205
    %v357 = vunpack.c.l.b16 %v206
    %v358 = vunpack.c.l.b16 %v207
    %v359 = vunpack.c.l.b16 %v208
    %v360 = vunpack.c.l.b16 %v209
    %v361 = vunpack.c.l.b16 %v210
    %v362 = vunpack.c.l.b16 %v211
    %v363 = vunpack.c.l.b16 %v212
    %v364 = vunpack.c.l.b16 %v213
    %v365 = vunpack.c.l.b16 %v214
    %v366 = vunpack.c.l.b16 %v215
    %v367 = vunpack.c.l.b16 %v216
    %v368 = vunpack.c.l.b16 %v217
    %v369 = vunpack.c.l.b16 %v218
    %v370 = vunpack.c.l.b16 %v219
    %v371 = vunpack.c.l.b16 %v220
    %v372 = vunpack.c.l.b16 %v221
    %v373 = vunpack.c.l.b16 %v222
    %v374 = vunpack.c.l.b16 %v223
    %v375 = vunpack.c.l.b16 %v224
    %v376 = vunpack.c.l.b16 %v225
    %v377 = vunpack.c.l.b16 %v226
    %v378 = vunpack.c.l.b16 %v227
    %v379 = vunpack.c.l.b16 %v228
    %v380 = vunpack.c.l.b16 %v229
    %v381 = vunpack.c.l.b16 %v230
    %v382 = vunpack.c.l.b16 %v231
    %v383 = vunpack.c.l.b16 %v232
    %v384 = vunpack.c.l.b16 %v233
    %v385 = vunpack.c.l.b16 %v234
    %v386 = vunpack.c.l.b16 %v235
    %v387 = vunpack.c.l.b16 %v236
    %v388 = vunpack.c.l.b16 %v237
    %v389 = vunpack.c.l.b16 %v238
    %v390 = vunpack.c.l.b16 %v239
    %v391 = vunpack.c.l.b16 %v240
    %v392 = vunpack.c.l.b16 %v241
    %v393 = vunpack.c.l.b16 %v242
    %v394 = vunpack.c.l.b16 %v243
    %v395 = vunpack.c.l.b16 %v244
    %v396 = vunpack.c.l.b16 %v245
    %v397 = vunpack.c.l.b16 %v246
    %v398 = vunpack.c.l.b16 %v247
    %v399 = vunpack.c.l.b16 %v248
    %v400 = vunpack.c.l.b16 %v249
    %v401 = vpack.c.b16 %v338, %v337
    %v402 = vpack.c.b16 %v340, %v339
    %v403 = vpack.c.b16 %v342, %v341
    %v404 = vpack.c.b16 %v344, %v343
    %v405 = vpack.c.b16 %v346, %v345
    %v406 = vpack.c.b16 %v348, %v347
    %v407 = vpack.c.b16 %v350, %v349
    %v408 = vpack.c.b16 %v352, %v351
    %v409 = vpack.c.b16 %v354, %v353
    %v410 = vpack.c.b16 %v356, %v355
    %v411 = vpack.c.b16 %v358, %v357
    %v412 = vpack.c.b16 %v360, %v359
    %v413 = vpack.c.b16 %v362, %v361
    %v414 = vpack.c.b16 %v364, %v363
    %v415 = vpack.c.b16 %v366, %v365
    %v416 = vpack.c.b16 %v368, %v367
    %v417 = vpack.c.b16 %v370, %v369
    %v418 = vpack.c.b16 %v372, %v371
    %v419 = vpack.c.b16 %v374, %v373
    %v420 = vpack.c.b16 %v376, %v375
    %v421 = vpack.c.b16 %v378, %v377
    %v422 = vpack.c.b16 %v380, %v379
    %v423 = vpack.c.b16 %v382, %v381
    %v424 = vpack.c.b16 %v384, %v383
    %v425 = vpack.c.b16 %v386, %v385
    %v426 = vpack.c.b16 %v388, %v387
    %v427 = vpack.c.b16 %v390, %v389
    %v428 = vpack.c.b16 %v392, %v391
    %v429 = vpack.c.b16 %v394, %v393
    %v430 = vpack.c.b16 %v396, %v395
    %v431 = vpack.c.b16 %v398, %v397
    %v432 = vpack.c.b16 %v400, %v399
    %v481 = vunpack.c.l.b16 %v250
    %v482 = vunpack.c.l.b16 %v251
    %v483 = vunpack.c.l.b16 %v252
    %v484 = vunpack.c.l.b16 %v253
    %v485 = vunpack.c.l.b16 %v254
    %v486 = vunpack.c.l.b16 %v255
    %v487 = vunpack.c.l.b16 %v256
    %v488 = vunpack.c.l.b16 %v257
    %v489 = vunpack.c.l.b16 %v258
    %v490 = vunpack.c.l.b16 %v259
    %v491 = vunpack.c.l.b16 %v260
    %v492 = vunpack.c.l.b16 %v261
    %v493 = vunpack.c.l.b16 %v262
    %v494 = vunpack.c.l.b16 %v263
    %v495 = vunpack.c.l.b16 %v264
    %v496 = vunpack.c.l.b16 %v265
    %v497 = vpack.c.b16 %v482, %v481
    %v498 = vpack.c.b16 %v484, %v483
    %v499 = vpack.c.b16 %v486, %v485
    %v500 = vpack.c.b16 %v488, %v487
    %v501 = vpack.c.b16 %v490, %v489
    %v502 = vpack.c.b16 %v492, %v491
    %v503 = vpack.c.b16 %v494, %v493
    %v504 = vpack.c.b16 %v496, %v495
    %513 = vmatprep.subr.bf16.mxu0 0
    %514 = vmatpush1.bf16.msra.mxu0 %v497
    %515 = vmatprep.subr.bf16.mxu0 0
    %516 = vmatpush1.bf16.msra.mxu0 %v498
    %517 = vmatprep.subr.bf16.mxu0 0
    %518 = vmatpush1.bf16.msra.mxu0 %v499
    %519 = vmatprep.subr.bf16.mxu0 0
    %520 = vmatpush1.bf16.msra.mxu0 %v500
    %521 = vmatprep.subr.bf16.mxu0 0
    %522 = vmatpush1.bf16.msra.mxu0 %v501
    %523 = vmatprep.subr.bf16.mxu0 0
    %524 = vmatpush1.bf16.msra.mxu0 %v502
    %525 = vmatprep.subr.bf16.mxu0 0
    %526 = vmatpush1.bf16.msra.mxu0 %v503
    %527 = vmatprep.subr.bf16.mxu0 0
    %528 = vmatpush1.bf16.msra.mxu0 %v504
    %529 = vmatprep.subr.bf16.mxu0 0
    %530 = vmatpush1.bf16.msra.mxu0 0
    %531 = vmatprep.subr.bf16.mxu0 0
    %532 = vmatpush1.bf16.msra.mxu0 0
    %533 = vmatprep.subr.bf16.mxu0 0
    %534 = vmatpush1.bf16.msra.mxu0 0
    %535 = vmatprep.subr.bf16.mxu0 0
    %536 = vmatpush1.bf16.msra.mxu0 0
    %537 = vmatprep.subr.bf16.mxu0 0
    %538 = vmatpush1.bf16.msra.mxu0 0
    %539 = vmatprep.subr.bf16.mxu0 0
    %540 = vmatpush1.bf16.msra.mxu0 0
    %541 = vmatprep.subr.bf16.mxu0 0
    %542 = vmatpush1.bf16.msra.mxu0 0
    %543 = vmatprep.subr.bf16.mxu0 0
    %544 = vmatpush1.bf16.msra.mxu0 0
    %545 = vmatprep.mubr.bf16.mxu0 0
    %546 = vmatmul.mubr.bf16.gmra.mrb[0].mxu0 %v401
    %v547 = vpop.f32.mrb[0].mxu0
    %v548 = vadd.f32 %v271, %v547
    %v549 = vpop.f32.mrb[0].mxu0
    %v550 = vpop.f32.mrb[0].mxu0
    %v551 = vadd.f32 %v271, %v550
    %v552 = vpop.f32.mrb[0].mxu0
    %553 = vmatprep.mubr.bf16.mxu0 0
    %554 = vmatmul.mubr.bf16.gmra.mrb[0].mxu0 %v402
    %v555 = vpop.f32.mrb[0].mxu0
    %v556 = vadd.f32 %v271, %v555
    %v557 = vpop.f32.mrb[0].mxu0
    %v558 = vpop.f32.mrb[0].mxu0
    %v559 = vadd.f32 %v271, %v558
    %v560 = vpop.f32.mrb[0].mxu0
    %561 = vmatprep.mubr.bf16.mxu0 0
    %562 = vmatmul.mubr.bf16.gmra.mrb[0].mxu0 %v403
    %v563 = vpop.f32.mrb[0].mxu0
    %v564 = vadd.f32 %v271, %v563
    %v565 = vpop.f32.mrb[0].mxu0
    %v566 = vpop.f32.mrb[0].mxu0
    %v567 = vadd.f32 %v271, %v566
    %v568 = vpop.f32.mrb[0].mxu0
    %569 = vmatprep.mubr.bf16.mxu0 0
    %570 = vmatmul.mubr.bf16.gmra.mrb[0].mxu0 %v404
    %v571 = vpop.f32.mrb[0].mxu0
    %v572 = vadd.f32 %v271, %v571
    %v573 = vpop.f32.mrb[0].mxu0
    %v574 = vpop.f32.mrb[0].mxu0
    %v575 = vadd.f32 %v271, %v574
    %v576 = vpop.f32.mrb[0].mxu0
    %577 = vmatprep.mubr.bf16.mxu0 0
    %578 = vmatmul.mubr.bf16.gmra.mrb[0].mxu0 %v405
    %v579 = vpop.f32.mrb[0].mxu0
    %v580 = vadd.f32 %v271, %v579
    %v581 = vpop.f32.mrb[0].mxu0
    %v582 = vpop.f32.mrb[0].mxu0
    %v583 = vadd.f32 %v271, %v582
    %v584 = vpop.f32.mrb[0].mxu0
    %585 = vmatprep.mubr.bf16.mxu0 0
    %586 = vmatmul.mubr.bf16.gmra.mrb[0].mxu0 %v406
    %v587 = vpop.f32.mrb[0].mxu0
    %v588 = vadd.f32 %v271, %v587
    %v589 = vpop.f32.mrb[0].mxu0
    %v590 = vpop.f32.mrb[0].mxu0
    %v591 = vadd.f32 %v271, %v590
    %v592 = vpop.f32.mrb[0].mxu0
    %593 = vmatprep.mubr.bf16.mxu0 0
    %594 = vmatmul.mubr.bf16.gmra.mrb[0].mxu0 %v407
    %v595 = vpop.f32.mrb[0].mxu0
    %v596 = vadd.f32 %v271, %v595
    %v597 = vpop.f32.mrb[0].mxu0
    %v598 = vpop.f32.mrb[0].mxu0
    %v599 = vadd.f32 %v271, %v598
    %v600 = vpop.f32.mrb[0].mxu0
    %601 = vmatprep.mubr.bf16.mxu0 0
    %602 = vmatmul.mubr.bf16.gmra.mrb[0].mxu0 %v408
    %v603 = vpop.f32.mrb[0].mxu0
    %v604 = vadd.f32 %v271, %v603
    %v605 = vpop.f32.mrb[0].mxu0
    %v606 = vpop.f32.mrb[0].mxu0
    %v607 = vadd.f32 %v271, %v606
    %v608 = vpop.f32.mrb[0].mxu0
    %609 = vmatprep.mubr.bf16.mxu0 0
    %610 = vmatmul.mubr.bf16.gmra.mrb[0].mxu0 %v409
    %v611 = vpop.f32.mrb[0].mxu0
    %v612 = vadd.f32 %v271, %v611
    %v613 = vpop.f32.mrb[0].mxu0
    %v614 = vpop.f32.mrb[0].mxu0
    %v615 = vadd.f32 %v271, %v614
    %v616 = vpop.f32.mrb[0].mxu0
    %617 = vmatprep.mubr.bf16.mxu0 0
    %618 = vmatmul.mubr.bf16.gmra.mrb[0].mxu0 %v410
    %v619 = vpop.f32.mrb[0].mxu0
    %v620 = vadd.f32 %v271, %v619
    %v621 = vpop.f32.mrb[0].mxu0
    %v622 = vpop.f32.mrb[0].mxu0
    %v623 = vadd.f32 %v271, %v622
    %v624 = vpop.f32.mrb[0].mxu0
    %625 = vmatprep.mubr.bf16.mxu0 0
    %626 = vmatmul.mubr.bf16.gmra.mrb[0].mxu0 %v411
    %v627 = vpop.f32.mrb[0].mxu0
    %v628 = vadd.f32 %v271, %v627
    %v629 = vpop.f32.mrb[0].mxu0
    %v630 = vpop.f32.mrb[0].mxu0
    %v631 = vadd.f32 %v271, %v630
    %v632 = vpop.f32.mrb[0].mxu0
    %633 = vmatprep.mubr.bf16.mxu0 0
    %634 = vmatmul.mubr.bf16.gmra.mrb[0].mxu0 %v412
    %v635 = vpop.f32.mrb[0].mxu0
    %v636 = vadd.f32 %v271, %v635
    %v637 = vpop.f32.mrb[0].mxu0
    %v638 = vpop.f32.mrb[0].mxu0
    %v639 = vadd.f32 %v271, %v638
    %v640 = vpop.f32.mrb[0].mxu0
    %641 = vmatprep.mubr.bf16.mxu0 0
    %642 = vmatmul.mubr.bf16.gmra.mrb[0].mxu0 %v413
    %v643 = vpop.f32.mrb[0].mxu0
    %v644 = vadd.f32 %v271, %v643
    %v645 = vpop.f32.mrb[0].mxu0
    %v646 = vpop.f32.mrb[0].mxu0
    %v647 = vadd.f32 %v271, %v646
    %v648 = vpop.f32.mrb[0].mxu0
    %649 = vmatprep.mubr.bf16.mxu0 0
    %650 = vmatmul.mubr.bf16.gmra.mrb[0].mxu0 %v414
    %v651 = vpop.f32.mrb[0].mxu0
    %v652 = vadd.f32 %v271, %v651
    %v653 = vpop.f32.mrb[0].mxu0
    %v654 = vpop.f32.mrb[0].mxu0
    %v655 = vadd.f32 %v271, %v654
    %v656 = vpop.f32.mrb[0].mxu0
    %657 = vmatprep.mubr.bf16.mxu0 0
    %658 = vmatmul.mubr.bf16.gmra.mrb[0].mxu0 %v415
    %v659 = vpop.f32.mrb[0].mxu0
    %v660 = vadd.f32 %v271, %v659
    %v661 = vpop.f32.mrb[0].mxu0
    %v662 = vpop.f32.mrb[0].mxu0
    %v663 = vadd.f32 %v271, %v662
    %v664 = vpop.f32.mrb[0].mxu0
    %665 = vmatprep.mubr.bf16.mxu0 0
    %666 = vmatmul.mubr.bf16.gmra.mrb[0].mxu0 %v416
    %v667 = vpop.f32.mrb[0].mxu0
    %v668 = vadd.f32 %v271, %v667
    %v669 = vpop.f32.mrb[0].mxu0
    %v670 = vpop.f32.mrb[0].mxu0
    %v671 = vadd.f32 %v271, %v670
    %v672 = vpop.f32.mrb[0].mxu0
    %673 = vmatprep.mubr.bf16.mxu0 0
    %674 = vmatmul.mubr.bf16.gmra.mrb[0].mxu0 %v417
    %v675 = vpop.f32.mrb[0].mxu0
    %v676 = vadd.f32 %v271, %v675
    %v677 = vpop.f32.mrb[0].mxu0
    %v678 = vpop.f32.mrb[0].mxu0
    %v679 = vadd.f32 %v271, %v678
    %v680 = vpop.f32.mrb[0].mxu0
    %681 = vmatprep.mubr.bf16.mxu0 0
    %682 = vmatmul.mubr.bf16.gmra.mrb[0].mxu0 %v418
    %v683 = vpop.f32.mrb[0].mxu0
    %v684 = vadd.f32 %v271, %v683
    %v685 = vpop.f32.mrb[0].mxu0
    %v686 = vpop.f32.mrb[0].mxu0
    %v687 = vadd.f32 %v271, %v686
    %v688 = vpop.f32.mrb[0].mxu0
    %689 = vmatprep.mubr.bf16.mxu0 0
    %690 = vmatmul.mubr.bf16.gmra.mrb[0].mxu0 %v419
    %v691 = vpop.f32.mrb[0].mxu0
    %v692 = vadd.f32 %v271, %v691
    %v693 = vpop.f32.mrb[0].mxu0
    %v694 = vpop.f32.mrb[0].mxu0
    %v695 = vadd.f32 %v271, %v694
    %v696 = vpop.f32.mrb[0].mxu0
    %697 = vmatprep.mubr.bf16.mxu0 0
    %698 = vmatmul.mubr.bf16.gmra.mrb[0].mxu0 %v420
    %v699 = vpop.f32.mrb[0].mxu0
    %v700 = vadd.f32 %v271, %v699
    %v701 = vpop.f32.mrb[0].mxu0
    %v702 = vpop.f32.mrb[0].mxu0
    %v703 = vadd.f32 %v271, %v702
    %v704 = vpop.f32.mrb[0].mxu0
    %705 = vmatprep.mubr.bf16.mxu0 0
    %706 = vmatmul.mubr.bf16.gmra.mrb[0].mxu0 %v421
    %v707 = vpop.f32.mrb[0].mxu0
    %v708 = vadd.f32 %v271, %v707
    %v709 = vpop.f32.mrb[0].mxu0
    %v710 = vpop.f32.mrb[0].mxu0
    %v711 = vadd.f32 %v271, %v710
    %v712 = vpop.f32.mrb[0].mxu0
    %713 = vmatprep.mubr.bf16.mxu0 0
    %714 = vmatmul.mubr.bf16.gmra.mrb[0].mxu0 %v422
    %v715 = vpop.f32.mrb[0].mxu0
    %v716 = vadd.f32 %v271, %v715
    %v717 = vpop.f32.mrb[0].mxu0
    %v718 = vpop.f32.mrb[0].mxu0
    %v719 = vadd.f32 %v271, %v718
    %v720 = vpop.f32.mrb[0].mxu0
    %721 = vmatprep.mubr.bf16.mxu0 0
    %722 = vmatmul.mubr.bf16.gmra.mrb[0].mxu0 %v423
    %v723 = vpop.f32.mrb[0].mxu0
    %v724 = vadd.f32 %v271, %v723
    %v725 = vpop.f32.mrb[0].mxu0
    %v726 = vpop.f32.mrb[0].mxu0
    %v727 = vadd.f32 %v271, %v726
    %v728 = vpop.f32.mrb[0].mxu0
    %729 = vmatprep.mubr.bf16.mxu0 0
    %730 = vmatmul.mubr.bf16.gmra.mrb[0].mxu0 %v424
    %v731 = vpop.f32.mrb[0].mxu0
    %v732 = vadd.f32 %v271, %v731
    %v733 = vpop.f32.mrb[0].mxu0
    %v734 = vpop.f32.mrb[0].mxu0
    %v735 = vadd.f32 %v271, %v734
    %v736 = vpop.f32.mrb[0].mxu0
    %737 = vmatprep.mubr.bf16.mxu0 0
    %738 = vmatmul.mubr.bf16.gmra.mrb[0].mxu0 %v425
    %v739 = vpop.f32.mrb[0].mxu0
    %v740 = vadd.f32 %v271, %v739
    %v741 = vpop.f32.mrb[0].mxu0
    %v742 = vpop.f32.mrb[0].mxu0
    %v743 = vadd.f32 %v271, %v742
    %v744 = vpop.f32.mrb[0].mxu0
    %745 = vmatprep.mubr.bf16.mxu0 0
    %746 = vmatmul.mubr.bf16.gmra.mrb[0].mxu0 %v426
    %v747 = vpop.f32.mrb[0].mxu0
    %v748 = vadd.f32 %v271, %v747
    %v749 = vpop.f32.mrb[0].mxu0
    %v750 = vpop.f32.mrb[0].mxu0
    %v751 = vadd.f32 %v271, %v750
    %v752 = vpop.f32.mrb[0].mxu0
    %753 = vmatprep.mubr.bf16.mxu0 0
    %754 = vmatmul.mubr.bf16.gmra.mrb[0].mxu0 %v427
    %v755 = vpop.f32.mrb[0].mxu0
    %v756 = vadd.f32 %v271, %v755
    %v757 = vpop.f32.mrb[0].mxu0
    %v758 = vpop.f32.mrb[0].mxu0
    %v759 = vadd.f32 %v271, %v758
    %v760 = vpop.f32.mrb[0].mxu0
    %761 = vmatprep.mubr.bf16.mxu0 0
    %762 = vmatmul.mubr.bf16.gmra.mrb[0].mxu0 %v428
    %v763 = vpop.f32.mrb[0].mxu0
    %v764 = vadd.f32 %v271, %v763
    %v765 = vpop.f32.mrb[0].mxu0
    %v766 = vpop.f32.mrb[0].mxu0
    %v767 = vadd.f32 %v271, %v766
    %v768 = vpop.f32.mrb[0].mxu0
    %769 = vmatprep.mubr.bf16.mxu0 0
    %770 = vmatmul.mubr.bf16.gmra.mrb[0].mxu0 %v429
    %v771 = vpop.f32.mrb[0].mxu0
    %v772 = vadd.f32 %v271, %v771
    %v773 = vpop.f32.mrb[0].mxu0
    %v774 = vpop.f32.mrb[0].mxu0
    %v775 = vadd.f32 %v271, %v774
    %v776 = vpop.f32.mrb[0].mxu0
    %777 = vmatprep.mubr.bf16.mxu0 0
    %778 = vmatmul.mubr.bf16.gmra.mrb[0].mxu0 %v430
    %v779 = vpop.f32.mrb[0].mxu0
    %v780 = vadd.f32 %v271, %v779
    %v781 = vpop.f32.mrb[0].mxu0
    %v782 = vpop.f32.mrb[0].mxu0
    %v783 = vadd.f32 %v271, %v782
    %v784 = vpop.f32.mrb[0].mxu0
    %785 = vmatprep.mubr.bf16.mxu0 0
    %786 = vmatmul.mubr.bf16.gmra.mrb[0].mxu0 %v431
    %v787 = vpop.f32.mrb[0].mxu0
    %v788 = vadd.f32 %v271, %v787
    %v789 = vpop.f32.mrb[0].mxu0
    %v790 = vpop.f32.mrb[0].mxu0
    %v791 = vadd.f32 %v271, %v790
    %v792 = vpop.f32.mrb[0].mxu0
    %793 = vmatprep.mubr.bf16.mxu0 0
    %794 = vmatmul.mubr.bf16.gmra.mrb[0].mxu0 %v432
    %v795 = vpop.f32.mrb[0].mxu0
    %v796 = vadd.f32 %v271, %v795
    %v797 = vpop.f32.mrb[0].mxu0
    %v798 = vpop.f32.mrb[0].mxu0
    %v799 = vadd.f32 %v271, %v798
    %v800 = vpop.f32.mrb[0].mxu0
    %801 = vdwg.mxu0
    %v802 = vmax.f32 %v548, 0.0
    %v803 = vmax.f32 %v551, 0.0
    %v804 = vmax.f32 %v556, 0.0
    %v805 = vmax.f32 %v559, 0.0
    %v806 = vmax.f32 %v564, 0.0
    %v807 = vmax.f32 %v567, 0.0
    %v808 = vmax.f32 %v572, 0.0
    %v809 = vmax.f32 %v575, 0.0
    %v810 = vmax.f32 %v580, 0.0
    %v811 = vmax.f32 %v583, 0.0
    %v812 = vmax.f32 %v588, 0.0
    %v813 = vmax.f32 %v591, 0.0
    %v814 = vmax.f32 %v596, 0.0
    %v815 = vmax.f32 %v599, 0.0
    %v816 = vmax.f32 %v604, 0.0
    %v817 = vmax.f32 %v607, 0.0
    %v818 = vmax.f32 %v612, 0.0
    %v819 = vmax.f32 %v615, 0.0
    %v820 = vmax.f32 %v620, 0.0
    %v821 = vmax.f32 %v623, 0.0
    %v822 = vmax.f32 %v628, 0.0
    %v823 = vmax.f32 %v631, 0.0
    %v824 = vmax.f32 %v636, 0.0
    %v825 = vmax.f32 %v639, 0.0
    %v826 = vmax.f32 %v644, 0.0
    %v827 = vmax.f32 %v647, 0.0
    %v828 = vmax.f32 %v652, 0.0
    %v829 = vmax.f32 %v655, 0.0
    %v830 = vmax.f32 %v660, 0.0
    %v831 = vmax.f32 %v663, 0.0
    %v832 = vmax.f32 %v668, 0.0
    %v833 = vmax.f32 %v671, 0.0
    %v834 = vmax.f32 %v676, 0.0
    %v835 = vmax.f32 %v679, 0.0
    %v836 = vmax.f32 %v684, 0.0
    %v837 = vmax.f32 %v687, 0.0
    %v838 = vmax.f32 %v692, 0.0
    %v839 = vmax.f32 %v695, 0.0
    %v840 = vmax.f32 %v700, 0.0
    %v841 = vmax.f32 %v703, 0.0
    %v842 = vmax.f32 %v708, 0.0
    %v843 = vmax.f32 %v711, 0.0
    %v844 = vmax.f32 %v716, 0.0
    %v845 = vmax.f32 %v719, 0.0
    %v846 = vmax.f32 %v724, 0.0
    %v847 = vmax.f32 %v727, 0.0
    %v848 = vmax.f32 %v732, 0.0
    %v849 = vmax.f32 %v735, 0.0
    %v850 = vmax.f32 %v740, 0.0
    %v851 = vmax.f32 %v743, 0.0
    %v852 = vmax.f32 %v748, 0.0
    %v853 = vmax.f32 %v751, 0.0
    %v854 = vmax.f32 %v756, 0.0
    %v855 = vmax.f32 %v759, 0.0
    %v856 = vmax.f32 %v764, 0.0
    %v857 = vmax.f32 %v767, 0.0
    %v858 = vmax.f32 %v772, 0.0
    %v859 = vmax.f32 %v775, 0.0
    %v860 = vmax.f32 %v780, 0.0
    %v861 = vmax.f32 %v783, 0.0
    %v862 = vmax.f32 %v788, 0.0
    %v863 = vmax.f32 %v791, 0.0
    %v864 = vmax.f32 %v796, 0.0
    %v865 = vmax.f32 %v799, 0.0
    %v866 = vpack.c.bf16 %v803, %v802
    %v867 = vpack.c.bf16 %v805, %v804
    %v868 = vpack.c.bf16 %v807, %v806
    %v869 = vpack.c.bf16 %v809, %v808
    %v870 = vpack.c.bf16 %v811, %v810
    %v871 = vpack.c.bf16 %v813, %v812
    %v872 = vpack.c.bf16 %v815, %v814
    %v873 = vpack.c.bf16 %v817, %v816
    %v874 = vpack.c.bf16 %v819, %v818
    %v875 = vpack.c.bf16 %v821, %v820
    %v876 = vpack.c.bf16 %v823, %v822
    %v877 = vpack.c.bf16 %v825, %v824
    %v878 = vpack.c.bf16 %v827, %v826
    %v879 = vpack.c.bf16 %v829, %v828
    %v880 = vpack.c.bf16 %v831, %v830
    %v881 = vpack.c.bf16 %v833, %v832
    %v882 = vpack.c.bf16 %v835, %v834
    %v883 = vpack.c.bf16 %v837, %v836
    %v884 = vpack.c.bf16 %v839, %v838
    %v885 = vpack.c.bf16 %v841, %v840
    %v886 = vpack.c.bf16 %v843, %v842
    %v887 = vpack.c.bf16 %v845, %v844
    %v888 = vpack.c.bf16 %v847, %v846
    %v889 = vpack.c.bf16 %v849, %v848
    %v890 = vpack.c.bf16 %v851, %v850
    %v891 = vpack.c.bf16 %v853, %v852
    %v892 = vpack.c.bf16 %v855, %v854
    %v893 = vpack.c.bf16 %v857, %v856
    %v894 = vpack.c.bf16 %v859, %v858
    %v895 = vpack.c.bf16 %v861, %v860
    %v896 = vpack.c.bf16 %v863, %v862
    %v897 = vpack.c.bf16 %v865, %v864
    %v898 = vld [vmem:[#allocation7] sm:$0xf]
    %v901 = vunpack.c.l.s4 1966171168
    %v902 = vunpack.c.0.s8 %v901
    %v903 = vlaneseq
    %v904 = vshrl.u32 %v903, 7
    %v905 = vsub.s32 %v902, %v904
    %v906 = vrot.slane %v898, %v905
    %v907 = vcombine.high %v906, %v906
    %v909 = vunpack.c.l.s4 1966171168
    %v910 = vunpack.c.0.s8 %v909
    %v911 = vlaneseq
    %v912 = vshrl.u32 %v911, 7
    %v913 = vsub.s32 %v910, %v912
    %v914 = vrot.slane %v906, %v913
    %v916 = vunpack.c.l.s4 1966171168
    %v917 = vunpack.c.0.s8 %v916
    %v918 = vlaneseq
    %v919 = vshrl.u32 %v918, 7
    %v920 = vsub.s32 %v917, %v919
    %v921 = vrot.slane %v907, %v920
    %v922 = vcombine.high %v914, %v914
    %v923 = vcombine.high %v921, %v921
    %928 = vmatprep.subr.bf16.mxu0 0
    %929 = vmatpush1.bf16.msra.mxu0 %v866
    %930 = vmatprep.subr.bf16.mxu0 0
    %931 = vmatpush1.bf16.msra.mxu0 %v867
    %932 = vmatprep.subr.bf16.mxu0 0
    %933 = vmatpush1.bf16.msra.mxu0 %v868
    %934 = vmatprep.subr.bf16.mxu0 0
    %935 = vmatpush1.bf16.msra.mxu0 %v869
    %936 = vmatprep.subr.bf16.mxu0 0
    %937 = vmatpush1.bf16.msra.mxu0 %v870
    %938 = vmatprep.subr.bf16.mxu0 0
    %939 = vmatpush1.bf16.msra.mxu0 %v871
    %940 = vmatprep.subr.bf16.mxu0 0
    %941 = vmatpush1.bf16.msra.mxu0 %v872
    %942 = vmatprep.subr.bf16.mxu0 0
    %943 = vmatpush1.bf16.msra.mxu0 %v873
    %944 = vmatprep.subr.bf16.mxu0 0
    %945 = vmatpush1.bf16.msra.mxu0 %v874
    %946 = vmatprep.subr.bf16.mxu0 0
    %947 = vmatpush1.bf16.msra.mxu0 %v875
    %948 = vmatprep.subr.bf16.mxu0 0
    %949 = vmatpush1.bf16.msra.mxu0 %v876
    %950 = vmatprep.subr.bf16.mxu0 0
    %951 = vmatpush1.bf16.msra.mxu0 %v877
    %952 = vmatprep.subr.bf16.mxu0 0
    %953 = vmatpush1.bf16.msra.mxu0 %v878
    %954 = vmatprep.subr.bf16.mxu0 0
    %955 = vmatpush1.bf16.msra.mxu0 %v879
    %956 = vmatprep.subr.bf16.mxu0 0
    %957 = vmatpush1.bf16.msra.mxu0 %v880
    %958 = vmatprep.subr.bf16.mxu0 0
    %959 = vmatpush1.bf16.msra.mxu0 %v881
    %960 = vmatprep.mubr.bf16.mxu0 %v921
    %961 = vmatmul.mubr.bf16.gmra.mrb[0].mxu0 %v914
    %v962 = vpop.f32.mrb[0].mxu0
    %v963 = vadd.f32 0.0, %v962
    %v964 = vpop.f32.mrb[0].mxu0
    %v965 = vpop.f32.mrb[0].mxu0
    %v966 = vpop.f32.mrb[0].mxu0
    %967 = vdwg.mxu0
    %968 = vmatprep.subr.bf16.mxu0 0
    %969 = vmatpush1.bf16.msra.mxu0 %v882
    %970 = vmatprep.subr.bf16.mxu0 0
    %971 = vmatpush1.bf16.msra.mxu0 %v883
    %972 = vmatprep.subr.bf16.mxu0 0
    %973 = vmatpush1.bf16.msra.mxu0 %v884
    %974 = vmatprep.subr.bf16.mxu0 0
    %975 = vmatpush1.bf16.msra.mxu0 %v885
    %976 = vmatprep.subr.bf16.mxu0 0
    %977 = vmatpush1.bf16.msra.mxu0 %v886
    %978 = vmatprep.subr.bf16.mxu0 0
    %979 = vmatpush1.bf16.msra.mxu0 %v887
    %980 = vmatprep.subr.bf16.mxu0 0
    %981 = vmatpush1.bf16.msra.mxu0 %v888
    %982 = vmatprep.subr.bf16.mxu0 0
    %983 = vmatpush1.bf16.msra.mxu0 %v889
    %984 = vmatprep.subr.bf16.mxu0 0
    %985 = vmatpush1.bf16.msra.mxu0 %v890
    %986 = vmatprep.subr.bf16.mxu0 0
    %987 = vmatpush1.bf16.msra.mxu0 %v891
    %988 = vmatprep.subr.bf16.mxu0 0
    %989 = vmatpush1.bf16.msra.mxu0 %v892
    %990 = vmatprep.subr.bf16.mxu0 0
    %991 = vmatpush1.bf16.msra.mxu0 %v893
    %992 = vmatprep.subr.bf16.mxu0 0
    %993 = vmatpush1.bf16.msra.mxu0 %v894
    %994 = vmatprep.subr.bf16.mxu0 0
    %995 = vmatpush1.bf16.msra.mxu0 %v895
    %996 = vmatprep.subr.bf16.mxu0 0
    %997 = vmatpush1.bf16.msra.mxu0 %v896
    %998 = vmatprep.subr.bf16.mxu0 0
    %999 = vmatpush1.bf16.msra.mxu0 %v897
    %1000 = vmatprep.mubr.bf16.mxu0 %v923
    %1001 = vmatmul.mubr.bf16.gmra.mrb[0].mxu0 %v922
    %v1002 = vpop.f32.mrb[0].mxu0
    %v1003 = vadd.f32 %v963, %v1002
    %v1004 = vpop.f32.mrb[0].mxu0
    %v1005 = vpop.f32.mrb[0].mxu0
    %v1006 = vpop.f32.mrb[0].mxu0
    %1007 = vdwg.mxu0
    %v1008 = vld [vmem:[#allocation10] sm:$0xff]
    %v1009 = vld [vmem:[#allocation10 + $0x8] sm:$0xff]
    %v1010 = vld [vmem:[#allocation10 + $0x10] sm:$0xff]
    %v1011 = vld [vmem:[#allocation10 + $0x18] sm:$0xff]
    %v1012 = vld [vmem:[#allocation10 + $0x20] sm:$0xff]
    %v1013 = vld [vmem:[#allocation10 + $0x28] sm:$0xff]
    %v1014 = vld [vmem:[#allocation10 + $0x30] sm:$0xff]
    %v1015 = vld [vmem:[#allocation10 + $0x38] sm:$0xff]
    %v1016 = vld [vmem:[#allocation10 + $0x40] sm:$0xff]
    %v1017 = vld [vmem:[#allocation10 + $0x48] sm:$0xff]
    %v1018 = vld [vmem:[#allocation10 + $0x50] sm:$0xff]
    %v1019 = vld [vmem:[#allocation10 + $0x58] sm:$0xff]
    %v1020 = vld [vmem:[#allocation10 + $0x60] sm:$0xff]
    %v1021 = vld [vmem:[#allocation10 + $0x68] sm:$0xff]
    %v1022 = vld [vmem:[#allocation10 + $0x70] sm:$0xff]
    %v1023 = vld [vmem:[#allocation10 + $0x78] sm:$0xff]
    %v1024 = vld [vmem:[#allocation10 + $0x80] sm:$0xff]
    %v1025 = vld [vmem:[#allocation10 + $0x88] sm:$0xff]
    %v1026 = vld [vmem:[#allocation10 + $0x90] sm:$0xff]
    %v1027 = vld [vmem:[#allocation10 + $0x98] sm:$0xff]
    %v1028 = vld [vmem:[#allocation10 + $0xa0] sm:$0xff]
    %v1029 = vld [vmem:[#allocation10 + $0xa8] sm:$0xff]
    %v1030 = vld [vmem:[#allocation10 + $0xb0] sm:$0xff]
    %v1031 = vld [vmem:[#allocation10 + $0xb8] sm:$0xff]
    %v1032 = vld [vmem:[#allocation10 + $0xc0] sm:$0xff]
    %v1033 = vld [vmem:[#allocation10 + $0xc8] sm:$0xff]
    %v1034 = vld [vmem:[#allocation10 + $0xd0] sm:$0xff]
    %v1035 = vld [vmem:[#allocation10 + $0xd8] sm:$0xff]
    %v1036 = vld [vmem:[#allocation10 + $0xe0] sm:$0xff]
    %v1037 = vld [vmem:[#allocation10 + $0xe8] sm:$0xff]
    %v1038 = vld [vmem:[#allocation10 + $0xf0] sm:$0xff]
    %v1039 = vld [vmem:[#allocation10 + $0xf8] sm:$0xff]
    %v1040 = vld [vmem:[#allocation10 + $0x100] sm:$0xff]
    %v1041 = vld [vmem:[#allocation10 + $0x108] sm:$0xff]
    %v1042 = vld [vmem:[#allocation10 + $0x110] sm:$0xff]
    %v1043 = vld [vmem:[#allocation10 + $0x118] sm:$0xff]
    %v1044 = vld [vmem:[#allocation10 + $0x120] sm:$0xff]
    %v1045 = vld [vmem:[#allocation10 + $0x128] sm:$0xff]
    %v1046 = vld [vmem:[#allocation10 + $0x130] sm:$0xff]
    %v1047 = vld [vmem:[#allocation10 + $0x138] sm:$0xff]
    %v1048 = vld [vmem:[#allocation10 + $0x140] sm:$0xff]
    %v1049 = vld [vmem:[#allocation10 + $0x148] sm:$0xff]
    %v1050 = vld [vmem:[#allocation10 + $0x150] sm:$0xff]
    %v1051 = vld [vmem:[#allocation10 + $0x158] sm:$0xff]
    %v1052 = vld [vmem:[#allocation10 + $0x160] sm:$0xff]
    %v1053 = vld [vmem:[#allocation10 + $0x168] sm:$0xff]
    %v1054 = vld [vmem:[#allocation10 + $0x170] sm:$0xff]
    %v1055 = vld [vmem:[#allocation10 + $0x178] sm:$0xff]
    %v1056 = vld [vmem:[#allocation10 + $0x180] sm:$0xff]
    %v1057 = vld [vmem:[#allocation10 + $0x188] sm:$0xff]
    %v1058 = vld [vmem:[#allocation10 + $0x190] sm:$0xff]
    %v1059 = vld [vmem:[#allocation10 + $0x198] sm:$0xff]
    %v1060 = vld [vmem:[#allocation10 + $0x1a0] sm:$0xff]
    %v1061 = vld [vmem:[#allocation10 + $0x1a8] sm:$0xff]
    %v1062 = vld [vmem:[#allocation10 + $0x1b0] sm:$0xff]
    %v1063 = vld [vmem:[#allocation10 + $0x1b8] sm:$0xff]
    %v1064 = vld [vmem:[#allocation10 + $0x1c0] sm:$0xff]
    %v1065 = vld [vmem:[#allocation10 + $0x1c8] sm:$0xff]
    %v1066 = vld [vmem:[#allocation10 + $0x1d0] sm:$0xff]
    %v1067 = vld [vmem:[#allocation10 + $0x1d8] sm:$0xff]
    %v1068 = vld [vmem:[#allocation10 + $0x1e0] sm:$0xff]
    %v1069 = vld [vmem:[#allocation10 + $0x1e8] sm:$0xff]
    %v1070 = vld [vmem:[#allocation10 + $0x1f0] sm:$0xff]
    %v1071 = vld [vmem:[#allocation10 + $0x1f8] sm:$0xff]
    %v1072 = vld [vmem:[#allocation10 + $0x200] sm:$0xff]
    %v1073 = vld [vmem:[#allocation10 + $0x208] sm:$0xff]
    %v1074 = vld [vmem:[#allocation10 + $0x210] sm:$0xff]
    %v1075 = vld [vmem:[#allocation10 + $0x218] sm:$0xff]
    %v1076 = vld [vmem:[#allocation10 + $0x220] sm:$0xff]
    %v1077 = vld [vmem:[#allocation10 + $0x228] sm:$0xff]
    %v1078 = vld [vmem:[#allocation10 + $0x230] sm:$0xff]
    %v1079 = vld [vmem:[#allocation10 + $0x238] sm:$0xff]
    %v1080 = vld [vmem:[#allocation10 + $0x240] sm:$0xff]
    %v1081 = vld [vmem:[#allocation10 + $0x248] sm:$0xff]
    %v1082 = vld [vmem:[#allocation10 + $0x250] sm:$0xff]
    %v1083 = vld [vmem:[#allocation10 + $0x258] sm:$0xff]
    %v1084 = vld [vmem:[#allocation10 + $0x260] sm:$0xff]
    %v1085 = vld [vmem:[#allocation10 + $0x268] sm:$0xff]
    %v1086 = vld [vmem:[#allocation10 + $0x270] sm:$0xff]
    %v1087 = vld [vmem:[#allocation10 + $0x278] sm:$0xff]
    %v1088 = vld [vmem:[#allocation10 + $0x280] sm:$0xff]
    %v1089 = vld [vmem:[#allocation10 + $0x288] sm:$0xff]
    %v1090 = vld [vmem:[#allocation10 + $0x290] sm:$0xff]
    %v1091 = vld [vmem:[#allocation10 + $0x298] sm:$0xff]
    %v1092 = vld [vmem:[#allocation10 + $0x2a0] sm:$0xff]
    %v1093 = vld [vmem:[#allocation10 + $0x2a8] sm:$0xff]
    %v1094 = vld [vmem:[#allocation10 + $0x2b0] sm:$0xff]
    %v1095 = vld [vmem:[#allocation10 + $0x2b8] sm:$0xff]
    %v1096 = vld [vmem:[#allocation10 + $0x2c0] sm:$0xff]
    %v1097 = vld [vmem:[#allocation10 + $0x2c8] sm:$0xff]
    %v1098 = vld [vmem:[#allocation10 + $0x2d0] sm:$0xff]
    %v1099 = vld [vmem:[#allocation10 + $0x2d8] sm:$0xff]
    %v1100 = vld [vmem:[#allocation10 + $0x2e0] sm:$0xff]
    %v1101 = vld [vmem:[#allocation10 + $0x2e8] sm:$0xff]
    %v1102 = vld [vmem:[#allocation10 + $0x2f0] sm:$0xff]
    %v1103 = vld [vmem:[#allocation10 + $0x2f8] sm:$0xff]
    %v1104 = vld [vmem:[#allocation10 + $0x300] sm:$0xff]
    %v1105 = vld [vmem:[#allocation10 + $0x308] sm:$0xff]
    %v1106 = vld [vmem:[#allocation10 + $0x310] sm:$0xff]
    %v1107 = vld [vmem:[#allocation10 + $0x318] sm:$0xff]
    %v1108 = vld [vmem:[#allocation10 + $0x320] sm:$0xff]
    %v1109 = vld [vmem:[#allocation10 + $0x328] sm:$0xff]
    %v1110 = vld [vmem:[#allocation10 + $0x330] sm:$0xff]
    %v1111 = vld [vmem:[#allocation10 + $0x338] sm:$0xff]
    %v1112 = vld [vmem:[#allocation10 + $0x340] sm:$0xff]
    %v1113 = vld [vmem:[#allocation10 + $0x348] sm:$0xff]
    %v1114 = vld [vmem:[#allocation10 + $0x350] sm:$0xff]
    %v1115 = vld [vmem:[#allocation10 + $0x358] sm:$0xff]
    %v1116 = vld [vmem:[#allocation10 + $0x360] sm:$0xff]
    %v1117 = vld [vmem:[#allocation10 + $0x368] sm:$0xff]
    %v1118 = vld [vmem:[#allocation10 + $0x370] sm:$0xff]
    %v1119 = vld [vmem:[#allocation10 + $0x378] sm:$0xff]
    %v1120 = vld [vmem:[#allocation10 + $0x380] sm:$0xff]
    %v1121 = vld [vmem:[#allocation10 + $0x388] sm:$0xff]
    %v1122 = vld [vmem:[#allocation10 + $0x390] sm:$0xff]
    %v1123 = vld [vmem:[#allocation10 + $0x398] sm:$0xff]
    %v1124 = vld [vmem:[#allocation10 + $0x3a0] sm:$0xff]
    %v1125 = vld [vmem:[#allocation10 + $0x3a8] sm:$0xff]
    %v1126 = vld [vmem:[#allocation10 + $0x3b0] sm:$0xff]
    %v1127 = vld [vmem:[#allocation10 + $0x3b8] sm:$0xff]
    %v1128 = vld [vmem:[#allocation10 + $0x3c0] sm:$0xff]
    %v1129 = vld [vmem:[#allocation10 + $0x3c8] sm:$0xff]
    %v1130 = vld [vmem:[#allocation10 + $0x3d0] sm:$0xff]
    %v1131 = vld [vmem:[#allocation10 + $0x3d8] sm:$0xff]
    %v1132 = vld [vmem:[#allocation10 + $0x3e0] sm:$0xff]
    %v1133 = vld [vmem:[#allocation10 + $0x3e8] sm:$0xff]
    %v1134 = vld [vmem:[#allocation10 + $0x3f0] sm:$0xff]
    %v1135 = vld [vmem:[#allocation10 + $0x3f8] sm:$0xff]
    %v1136 = vpack.c.bf16 %v1003, %v1003
    %v1137 = vld [vmem:[#allocation8] sm:$0xff]
    %v1138 = vld [vmem:[#allocation8 + $0x8] sm:$0xff]
    %v1139 = vld [vmem:[#allocation8 + $0x10] sm:$0xff]
    %v1140 = vld [vmem:[#allocation8 + $0x18] sm:$0xff]
    %v1141 = vld [vmem:[#allocation8 + $0x20] sm:$0xff]
    %v1142 = vld [vmem:[#allocation8 + $0x28] sm:$0xff]
    %v1143 = vld [vmem:[#allocation8 + $0x30] sm:$0xff]
    %v1144 = vld [vmem:[#allocation8 + $0x38] sm:$0xff]
    %v1145 = vld [vmem:[#allocation8 + $0x40] sm:$0xff]
    %v1146 = vld [vmem:[#allocation8 + $0x48] sm:$0xff]
    %v1147 = vld [vmem:[#allocation8 + $0x50] sm:$0xff]
    %v1148 = vld [vmem:[#allocation8 + $0x58] sm:$0xff]
    %v1149 = vld [vmem:[#allocation8 + $0x60] sm:$0xff]
    %v1150 = vld [vmem:[#allocation8 + $0x68] sm:$0xff]
    %v1151 = vld [vmem:[#allocation8 + $0x70] sm:$0xff]
    %v1152 = vld [vmem:[#allocation8 + $0x78] sm:$0xff]
    %v1153 = vld [vmem:[#allocation8 + $0x80] sm:$0xff]
    %v1154 = vld [vmem:[#allocation8 + $0x88] sm:$0xff]
    %v1155 = vld [vmem:[#allocation8 + $0x90] sm:$0xff]
    %v1156 = vld [vmem:[#allocation8 + $0x98] sm:$0xff]
    %v1157 = vld [vmem:[#allocation8 + $0xa0] sm:$0xff]
    %v1158 = vld [vmem:[#allocation8 + $0xa8] sm:$0xff]
    %v1159 = vld [vmem:[#allocation8 + $0xb0] sm:$0xff]
    %v1160 = vld [vmem:[#allocation8 + $0xb8] sm:$0xff]
    %v1161 = vld [vmem:[#allocation8 + $0xc0] sm:$0xff]
    %v1162 = vld [vmem:[#allocation8 + $0xc8] sm:$0xff]
    %v1163 = vld [vmem:[#allocation8 + $0xd0] sm:$0xff]
    %v1164 = vld [vmem:[#allocation8 + $0xd8] sm:$0xff]
    %v1165 = vld [vmem:[#allocation8 + $0xe0] sm:$0xff]
    %v1166 = vld [vmem:[#allocation8 + $0xe8] sm:$0xff]
    %v1167 = vld [vmem:[#allocation8 + $0xf0] sm:$0xff]
    %v1168 = vld [vmem:[#allocation8 + $0xf8] sm:$0xff]
    %v1169 = vld [vmem:[#allocation8 + $0x100] sm:$0xff]
    %v1170 = vld [vmem:[#allocation8 + $0x108] sm:$0xff]
    %v1171 = vld [vmem:[#allocation8 + $0x110] sm:$0xff]
    %v1172 = vld [vmem:[#allocation8 + $0x118] sm:$0xff]
    %v1173 = vld [vmem:[#allocation8 + $0x120] sm:$0xff]
    %v1174 = vld [vmem:[#allocation8 + $0x128] sm:$0xff]
    %v1175 = vld [vmem:[#allocation8 + $0x130] sm:$0xff]
    %v1176 = vld [vmem:[#allocation8 + $0x138] sm:$0xff]
    %v1177 = vld [vmem:[#allocation8 + $0x140] sm:$0xff]
    %v1178 = vld [vmem:[#allocation8 + $0x148] sm:$0xff]
    %v1179 = vld [vmem:[#allocation8 + $0x150] sm:$0xff]
    %v1180 = vld [vmem:[#allocation8 + $0x158] sm:$0xff]
    %v1181 = vld [vmem:[#allocation8 + $0x160] sm:$0xff]
    %v1182 = vld [vmem:[#allocation8 + $0x168] sm:$0xff]
    %v1183 = vld [vmem:[#allocation8 + $0x170] sm:$0xff]
    %v1184 = vld [vmem:[#allocation8 + $0x178] sm:$0xff]
    %v1185 = vld [vmem:[#allocation8 + $0x180] sm:$0xff]
    %v1186 = vld [vmem:[#allocation8 + $0x188] sm:$0xff]
    %v1187 = vld [vmem:[#allocation8 + $0x190] sm:$0xff]
    %v1188 = vld [vmem:[#allocation8 + $0x198] sm:$0xff]
    %v1189 = vld [vmem:[#allocation8 + $0x1a0] sm:$0xff]
    %v1190 = vld [vmem:[#allocation8 + $0x1a8] sm:$0xff]
    %v1191 = vld [vmem:[#allocation8 + $0x1b0] sm:$0xff]
    %v1192 = vld [vmem:[#allocation8 + $0x1b8] sm:$0xff]
    %v1193 = vld [vmem:[#allocation8 + $0x1c0] sm:$0xff]
    %v1194 = vld [vmem:[#allocation8 + $0x1c8] sm:$0xff]
    %v1195 = vld [vmem:[#allocation8 + $0x1d0] sm:$0xff]
    %v1196 = vld [vmem:[#allocation8 + $0x1d8] sm:$0xff]
    %v1197 = vld [vmem:[#allocation8 + $0x1e0] sm:$0xff]
    %v1198 = vld [vmem:[#allocation8 + $0x1e8] sm:$0xff]
    %v1199 = vld [vmem:[#allocation8 + $0x1f0] sm:$0xff]
    %v1200 = vld [vmem:[#allocation8 + $0x1f8] sm:$0xff]
    %v1201 = vld [vmem:[%s6] sm:$0xff]
    %v1203 = vlaneseq
    %v1204 = vshrl.u32 %v1203, 7
    %v1205 = vsub.s32 0, %v1204
    %v1206 = vrot.slane %v1201, %v1205
    %v1207 = vlaneseq
    %v1208 = vshrl.u32 %v1207, 7
    %v1209 = vsub.s32 1, %v1208
    %v1210 = vrot.slane %v1201, %v1209
    %v1211 = vlaneseq
    %v1212 = vshrl.u32 %v1211, 7
    %v1213 = vsub.s32 2, %v1212
    %v1214 = vrot.slane %v1201, %v1213
    %v1215 = vlaneseq
    %v1216 = vshrl.u32 %v1215, 7
    %v1217 = vsub.s32 3, %v1216
    %v1218 = vrot.slane %v1201, %v1217
    %v1219 = vlaneseq
    %v1220 = vshrl.u32 %v1219, 7
    %v1221 = vsub.s32 4, %v1220
    %v1222 = vrot.slane %v1201, %v1221
    %v1223 = vlaneseq
    %v1224 = vshrl.u32 %v1223, 7
    %v1225 = vsub.s32 5, %v1224
    %v1226 = vrot.slane %v1201, %v1225
    %v1227 = vlaneseq
    %v1228 = vshrl.u32 %v1227, 7
    %v1229 = vsub.s32 6, %v1228
    %v1230 = vrot.slane %v1201, %v1229
    %v1231 = vlaneseq
    %v1232 = vshrl.u32 %v1231, 7
    %v1233 = vsub.s32 7, %v1232
    %v1234 = vrot.slane %v1201, %v1233
    %v1307 = vunpack.c.l.b16 %v1137
    %v1308 = vunpack.c.h.b16 %v1137
    %v1309 = vunpack.c.l.b16 %v1138
    %v1310 = vunpack.c.h.b16 %v1138
    %v1311 = vunpack.c.l.b16 %v1139
    %v1312 = vunpack.c.h.b16 %v1139
    %v1313 = vunpack.c.l.b16 %v1140
    %v1314 = vunpack.c.h.b16 %v1140
    %v1315 = vunpack.c.l.b16 %v1141
    %v1316 = vunpack.c.h.b16 %v1141
    %v1317 = vunpack.c.l.b16 %v1142
    %v1318 = vunpack.c.h.b16 %v1142
    %v1319 = vunpack.c.l.b16 %v1143
    %v1320 = vunpack.c.h.b16 %v1143
    %v1321 = vunpack.c.l.b16 %v1144
    %v1322 = vunpack.c.h.b16 %v1144
    %v1323 = vunpack.c.l.b16 %v1145
    %v1324 = vunpack.c.h.b16 %v1145
    %v1325 = vunpack.c.l.b16 %v1146
    %v1326 = vunpack.c.h.b16 %v1146
    %v1327 = vunpack.c.l.b16 %v1147
    %v1328 = vunpack.c.h.b16 %v1147
    %v1329 = vunpack.c.l.b16 %v1148
    %v1330 = vunpack.c.h.b16 %v1148
    %v1331 = vunpack.c.l.b16 %v1149
    %v1332 = vunpack.c.h.b16 %v1149
    %v1333 = vunpack.c.l.b16 %v1150
    %v1334 = vunpack.c.h.b16 %v1150
    %v1335 = vunpack.c.l.b16 %v1151
    %v1336 = vunpack.c.h.b16 %v1151
    %v1337 = vunpack.c.l.b16 %v1152
    %v1338 = vunpack.c.h.b16 %v1152
    %v1339 = vunpack.c.l.b16 %v1153
    %v1340 = vunpack.c.h.b16 %v1153
    %v1341 = vunpack.c.l.b16 %v1154
    %v1342 = vunpack.c.h.b16 %v1154
    %v1343 = vunpack.c.l.b16 %v1155
    %v1344 = vunpack.c.h.b16 %v1155
    %v1345 = vunpack.c.l.b16 %v1156
    %v1346 = vunpack.c.h.b16 %v1156
    %v1347 = vunpack.c.l.b16 %v1157
    %v1348 = vunpack.c.h.b16 %v1157
    %v1349 = vunpack.c.l.b16 %v1158
    %v1350 = vunpack.c.h.b16 %v1158
    %v1351 = vunpack.c.l.b16 %v1159
    %v1352 = vunpack.c.h.b16 %v1159
    %v1353 = vunpack.c.l.b16 %v1160
    %v1354 = vunpack.c.h.b16 %v1160
    %v1355 = vunpack.c.l.b16 %v1161
    %v1356 = vunpack.c.h.b16 %v1161
    %v1357 = vunpack.c.l.b16 %v1162
    %v1358 = vunpack.c.h.b16 %v1162
    %v1359 = vunpack.c.l.b16 %v1163
    %v1360 = vunpack.c.h.b16 %v1163
    %v1361 = vunpack.c.l.b16 %v1164
    %v1362 = vunpack.c.h.b16 %v1164
    %v1363 = vunpack.c.l.b16 %v1165
    %v1364 = vunpack.c.h.b16 %v1165
    %v1365 = vunpack.c.l.b16 %v1166
    %v1366 = vunpack.c.h.b16 %v1166
    %v1367 = vunpack.c.l.b16 %v1167
    %v1368 = vunpack.c.h.b16 %v1167
    %v1369 = vunpack.c.l.b16 %v1168
    %v1370 = vunpack.c.h.b16 %v1168
    %v1371 = vunpack.c.l.b16 %v1169
    %v1372 = vunpack.c.h.b16 %v1169
    %v1373 = vunpack.c.l.b16 %v1170
    %v1374 = vunpack.c.h.b16 %v1170
    %v1375 = vunpack.c.l.b16 %v1171
    %v1376 = vunpack.c.h.b16 %v1171
    %v1377 = vunpack.c.l.b16 %v1172
    %v1378 = vunpack.c.h.b16 %v1172
    %v1379 = vunpack.c.l.b16 %v1173
    %v1380 = vunpack.c.h.b16 %v1173
    %v1381 = vunpack.c.l.b16 %v1174
    %v1382 = vunpack.c.h.b16 %v1174
    %v1383 = vunpack.c.l.b16 %v1175
    %v1384 = vunpack.c.h.b16 %v1175
    %v1385 = vunpack.c.l.b16 %v1176
    %v1386 = vunpack.c.h.b16 %v1176
    %v1387 = vunpack.c.l.b16 %v1177
    %v1388 = vunpack.c.h.b16 %v1177
    %v1389 = vunpack.c.l.b16 %v1178
    %v1390 = vunpack.c.h.b16 %v1178
    %v1391 = vunpack.c.l.b16 %v1179
    %v1392 = vunpack.c.h.b16 %v1179
    %v1393 = vunpack.c.l.b16 %v1180
    %v1394 = vunpack.c.h.b16 %v1180
    %v1395 = vunpack.c.l.b16 %v1181
    %v1396 = vunpack.c.h.b16 %v1181
    %v1397 = vunpack.c.l.b16 %v1182
    %v1398 = vunpack.c.h.b16 %v1182
    %v1399 = vunpack.c.l.b16 %v1183
    %v1400 = vunpack.c.h.b16 %v1183
    %v1401 = vunpack.c.l.b16 %v1184
    %v1402 = vunpack.c.h.b16 %v1184
    %v1403 = vunpack.c.l.b16 %v1185
    %v1404 = vunpack.c.h.b16 %v1185
    %v1405 = vunpack.c.l.b16 %v1186
    %v1406 = vunpack.c.h.b16 %v1186
    %v1407 = vunpack.c.l.b16 %v1187
    %v1408 = vunpack.c.h.b16 %v1187
    %v1409 = vunpack.c.l.b16 %v1188
    %v1410 = vunpack.c.h.b16 %v1188
    %v1411 = vunpack.c.l.b16 %v1189
    %v1412 = vunpack.c.h.b16 %v1189
    %v1413 = vunpack.c.l.b16 %v1190
    %v1414 = vunpack.c.h.b16 %v1190
    %v1415 = vunpack.c.l.b16 %v1191
    %v1416 = vunpack.c.h.b16 %v1191
    %v1417 = vunpack.c.l.b16 %v1192
    %v1418 = vunpack.c.h.b16 %v1192
    %v1419 = vunpack.c.l.b16 %v1193
    %v1420 = vunpack.c.h.b16 %v1193
    %v1421 = vunpack.c.l.b16 %v1194
    %v1422 = vunpack.c.h.b16 %v1194
    %v1423 = vunpack.c.l.b16 %v1195
    %v1424 = vunpack.c.h.b16 %v1195
    %v1425 = vunpack.c.l.b16 %v1196
    %v1426 = vunpack.c.h.b16 %v1196
    %v1427 = vunpack.c.l.b16 %v1197
    %v1428 = vunpack.c.h.b16 %v1197
    %v1429 = vunpack.c.l.b16 %v1198
    %v1430 = vunpack.c.h.b16 %v1198
    %v1431 = vunpack.c.l.b16 %v1199
    %v1432 = vunpack.c.h.b16 %v1199
    %v1433 = vunpack.c.l.b16 %v1200
    %v1434 = vunpack.c.h.b16 %v1200
    %v1435 = vpack.c.b16 %v1315, %v1307
    %v1436 = vpack.c.b16 %v1316, %v1308
    %v1437 = vpack.c.b16 %v1317, %v1309
    %v1438 = vpack.c.b16 %v1318, %v1310
    %v1439 = vpack.c.b16 %v1319, %v1311
    %v1440 = vpack.c.b16 %v1320, %v1312
    %v1441 = vpack.c.b16 %v1321, %v1313
    %v1442 = vpack.c.b16 %v1322, %v1314
    %v1443 = vpack.c.b16 %v1331, %v1323
    %v1444 = vpack.c.b16 %v1332, %v1324
    %v1445 = vpack.c.b16 %v1333, %v1325
    %v1446 = vpack.c.b16 %v1334, %v1326
    %v1447 = vpack.c.b16 %v1335, %v1327
    %v1448 = vpack.c.b16 %v1336, %v1328
    %v1449 = vpack.c.b16 %v1337, %v1329
    %v1450 = vpack.c.b16 %v1338, %v1330
    %v1451 = vpack.c.b16 %v1347, %v1339
    %v1452 = vpack.c.b16 %v1348, %v1340
    %v1453 = vpack.c.b16 %v1349, %v1341
    %v1454 = vpack.c.b16 %v1350, %v1342
    %v1455 = vpack.c.b16 %v1351, %v1343
    %v1456 = vpack.c.b16 %v1352, %v1344
    %v1457 = vpack.c.b16 %v1353, %v1345
    %v1458 = vpack.c.b16 %v1354, %v1346
    %v1459 = vpack.c.b16 %v1363, %v1355
    %v1460 = vpack.c.b16 %v1364, %v1356
    %v1461 = vpack.c.b16 %v1365, %v1357
    %v1462 = vpack.c.b16 %v1366, %v1358
    %v1463 = vpack.c.b16 %v1367, %v1359
    %v1464 = vpack.c.b16 %v1368, %v1360
    %v1465 = vpack.c.b16 %v1369, %v1361
    %v1466 = vpack.c.b16 %v1370, %v1362
    %v1467 = vpack.c.b16 %v1379, %v1371
    %v1468 = vpack.c.b16 %v1380, %v1372
    %v1469 = vpack.c.b16 %v1381, %v1373
    %v1470 = vpack.c.b16 %v1382, %v1374
    %v1471 = vpack.c.b16 %v1383, %v1375
    %v1472 = vpack.c.b16 %v1384, %v1376
    %v1473 = vpack.c.b16 %v1385, %v1377
    %v1474 = vpack.c.b16 %v1386, %v1378
    %v1475 = vpack.c.b16 %v1395, %v1387
    %v1476 = vpack.c.b16 %v1396, %v1388
    %v1477 = vpack.c.b16 %v1397, %v1389
    %v1478 = vpack.c.b16 %v1398, %v1390
    %v1479 = vpack.c.b16 %v1399, %v1391
    %v1480 = vpack.c.b16 %v1400, %v1392
    %v1481 = vpack.c.b16 %v1401, %v1393
    %v1482 = vpack.c.b16 %v1402, %v1394
    %v1483 = vpack.c.b16 %v1411, %v1403
    %v1484 = vpack.c.b16 %v1412, %v1404
    %v1485 = vpack.c.b16 %v1413, %v1405
    %v1486 = vpack.c.b16 %v1414, %v1406
    %v1487 = vpack.c.b16 %v1415, %v1407
    %v1488 = vpack.c.b16 %v1416, %v1408
    %v1489 = vpack.c.b16 %v1417, %v1409
    %v1490 = vpack.c.b16 %v1418, %v1410
    %v1491 = vpack.c.b16 %v1427, %v1419
    %v1492 = vpack.c.b16 %v1428, %v1420
    %v1493 = vpack.c.b16 %v1429, %v1421
    %v1494 = vpack.c.b16 %v1430, %v1422
    %v1495 = vpack.c.b16 %v1431, %v1423
    %v1496 = vpack.c.b16 %v1432, %v1424
    %v1497 = vpack.c.b16 %v1433, %v1425
    %v1498 = vpack.c.b16 %v1434, %v1426
    %1563 = vmatprep.subr.bf16.mxu0 %v1436
    %1564 = vmatpush1.bf16.msra.mxu0 %v1435
    %1565 = vmatprep.subr.bf16.mxu0 %v1444
    %1566 = vmatpush1.bf16.msra.mxu0 %v1443
    %1567 = vmatprep.subr.bf16.mxu0 %v1452
    %1568 = vmatpush1.bf16.msra.mxu0 %v1451
    %1569 = vmatprep.subr.bf16.mxu0 %v1460
    %1570 = vmatpush1.bf16.msra.mxu0 %v1459
    %1571 = vmatprep.subr.bf16.mxu0 %v1468
    %1572 = vmatpush1.bf16.msra.mxu0 %v1467
    %1573 = vmatprep.subr.bf16.mxu0 %v1476
    %1574 = vmatpush1.bf16.msra.mxu0 %v1475
    %1575 = vmatprep.subr.bf16.mxu0 %v1484
    %1576 = vmatpush1.bf16.msra.mxu0 %v1483
    %1577 = vmatprep.subr.bf16.mxu0 %v1492
    %1578 = vmatpush1.bf16.msra.mxu0 %v1491
    %1579 = vmatprep.subr.bf16.mxu0 0
    %1580 = vmatpush1.bf16.msra.mxu0 0
    %1581 = vmatprep.subr.bf16.mxu0 0
    %1582 = vmatpush1.bf16.msra.mxu0 0
    %1583 = vmatprep.subr.bf16.mxu0 0
    %1584 = vmatpush1.bf16.msra.mxu0 0
    %1585 = vmatprep.subr.bf16.mxu0 0
    %1586 = vmatpush1.bf16.msra.mxu0 0
    %1587 = vmatprep.subr.bf16.mxu0 0
    %1588 = vmatpush1.bf16.msra.mxu0 0
    %1589 = vmatprep.subr.bf16.mxu0 0
    %1590 = vmatpush1.bf16.msra.mxu0 0
    %1591 = vmatprep.subr.bf16.mxu0 0
    %1592 = vmatpush1.bf16.msra.mxu0 0
    %1593 = vmatprep.subr.bf16.mxu0 0
    %1594 = vmatpush1.bf16.msra.mxu0 0
    %1595 = vmatprep.mubr.bf16.mxu0 0
    %1596 = vmatmul.mubr.bf16.gmra.mrb[0].mxu0 %v1136
    %v1597 = vpop.f32.mrb[0].mxu0
    %v1598 = vadd.f32 %v1206, %v1597
    %v1599 = vpop.f32.mrb[0].mxu0
    %v1600 = vadd.f32 %v1210, %v1599
    %v1601 = vpop.f32.mrb[0].mxu0
    %v1602 = vpop.f32.mrb[0].mxu0
    %1603 = vdwg.mxu0
    %1604 = vmatprep.subr.bf16.mxu0 %v1438
    %1605 = vmatpush1.bf16.msra.mxu0 %v1437
    %1606 = vmatprep.subr.bf16.mxu0 %v1446
    %1607 = vmatpush1.bf16.msra.mxu0 %v1445
    %1608 = vmatprep.subr.bf16.mxu0 %v1454
    %1609 = vmatpush1.bf16.msra.mxu0 %v1453
    %1610 = vmatprep.subr.bf16.mxu0 %v1462
    %1611 = vmatpush1.bf16.msra.mxu0 %v1461
    %1612 = vmatprep.subr.bf16.mxu0 %v1470
    %1613 = vmatpush1.bf16.msra.mxu0 %v1469
    %1614 = vmatprep.subr.bf16.mxu0 %v1478
    %1615 = vmatpush1.bf16.msra.mxu0 %v1477
    %1616 = vmatprep.subr.bf16.mxu0 %v1486
    %1617 = vmatpush1.bf16.msra.mxu0 %v1485
    %1618 = vmatprep.subr.bf16.mxu0 %v1494
    %1619 = vmatpush1.bf16.msra.mxu0 %v1493
    %1620 = vmatprep.subr.bf16.mxu0 0
    %1621 = vmatpush1.bf16.msra.mxu0 0
    %1622 = vmatprep.subr.bf16.mxu0 0
    %1623 = vmatpush1.bf16.msra.mxu0 0
    %1624 = vmatprep.subr.bf16.mxu0 0
    %1625 = vmatpush1.bf16.msra.mxu0 0
    %1626 = vmatprep.subr.bf16.mxu0 0
    %1627 = vmatpush1.bf16.msra.mxu0 0
    %1628 = vmatprep.subr.bf16.mxu0 0
    %1629 = vmatpush1.bf16.msra.mxu0 0
    %1630 = vmatprep.subr.bf16.mxu0 0
    %1631 = vmatpush1.bf16.msra.mxu0 0
    %1632 = vmatprep.subr.bf16.mxu0 0
    %1633 = vmatpush1.bf16.msra.mxu0 0
    %1634 = vmatprep.subr.bf16.mxu0 0
    %1635 = vmatpush1.bf16.msra.mxu0 0
    %1636 = vmatprep.mubr.bf16.mxu0 0
    %1637 = vmatmul.mubr.bf16.gmra.mrb[0].mxu0 %v1136
    %v1638 = vpop.f32.mrb[0].mxu0
    %v1639 = vadd.f32 %v1214, %v1638
    %v1640 = vpop.f32.mrb[0].mxu0
    %v1641 = vadd.f32 %v1218, %v1640
    %v1642 = vpop.f32.mrb[0].mxu0
    %v1643 = vpop.f32.mrb[0].mxu0
    %1644 = vdwg.mxu0
    %1645 = vmatprep.subr.bf16.mxu0 %v1440
    %1646 = vmatpush1.bf16.msra.mxu0 %v1439
    %1647 = vmatprep.subr.bf16.mxu0 %v1448
    %1648 = vmatpush1.bf16.msra.mxu0 %v1447
    %1649 = vmatprep.subr.bf16.mxu0 %v1456
    %1650 = vmatpush1.bf16.msra.mxu0 %v1455
    %1651 = vmatprep.subr.bf16.mxu0 %v1464
    %1652 = vmatpush1.bf16.msra.mxu0 %v1463
    %1653 = vmatprep.subr.bf16.mxu0 %v1472
    %1654 = vmatpush1.bf16.msra.mxu0 %v1471
    %1655 = vmatprep.subr.bf16.mxu0 %v1480
    %1656 = vmatpush1.bf16.msra.mxu0 %v1479
    %1657 = vmatprep.subr.bf16.mxu0 %v1488
    %1658 = vmatpush1.bf16.msra.mxu0 %v1487
    %1659 = vmatprep.subr.bf16.mxu0 %v1496
    %1660 = vmatpush1.bf16.msra.mxu0 %v1495
    %1661 = vmatprep.subr.bf16.mxu0 0
    %1662 = vmatpush1.bf16.msra.mxu0 0
    %1663 = vmatprep.subr.bf16.mxu0 0
    %1664 = vmatpush1.bf16.msra.mxu0 0
    %1665 = vmatprep.subr.bf16.mxu0 0
    %1666 = vmatpush1.bf16.msra.mxu0 0
    %1667 = vmatprep.subr.bf16.mxu0 0
    %1668 = vmatpush1.bf16.msra.mxu0 0
    %1669 = vmatprep.subr.bf16.mxu0 0
    %1670 = vmatpush1.bf16.msra.mxu0 0
    %1671 = vmatprep.subr.bf16.mxu0 0
    %1672 = vmatpush1.bf16.msra.mxu0 0
    %1673 = vmatprep.subr.bf16.mxu0 0
    %1674 = vmatpush1.bf16.msra.mxu0 0
    %1675 = vmatprep.subr.bf16.mxu0 0
    %1676 = vmatpush1.bf16.msra.mxu0 0
    %1677 = vmatprep.mubr.bf16.mxu0 0
    %1678 = vmatmul.mubr.bf16.gmra.mrb[0].mxu0 %v1136
    %v1679 = vpop.f32.mrb[0].mxu0
    %v1680 = vadd.f32 %v1222, %v1679
    %v1681 = vpop.f32.mrb[0].mxu0
    %v1682 = vadd.f32 %v1226, %v1681
    %v1683 = vpop.f32.mrb[0].mxu0
    %v1684 = vpop.f32.mrb[0].mxu0
    %1685 = vdwg.mxu0
    %1686 = vmatprep.subr.bf16.mxu0 %v1442
    %1687 = vmatpush1.bf16.msra.mxu0 %v1441
    %1688 = vmatprep.subr.bf16.mxu0 %v1450
    %1689 = vmatpush1.bf16.msra.mxu0 %v1449
    %1690 = vmatprep.subr.bf16.mxu0 %v1458
    %1691 = vmatpush1.bf16.msra.mxu0 %v1457
    %1692 = vmatprep.subr.bf16.mxu0 %v1466
    %1693 = vmatpush1.bf16.msra.mxu0 %v1465
    %1694 = vmatprep.subr.bf16.mxu0 %v1474
    %1695 = vmatpush1.bf16.msra.mxu0 %v1473
    %1696 = vmatprep.subr.bf16.mxu0 %v1482
    %1697 = vmatpush1.bf16.msra.mxu0 %v1481
    %1698 = vmatprep.subr.bf16.mxu0 %v1490
    %1699 = vmatpush1.bf16.msra.mxu0 %v1489
    %1700 = vmatprep.subr.bf16.mxu0 %v1498
    %1701 = vmatpush1.bf16.msra.mxu0 %v1497
    %1702 = vmatprep.subr.bf16.mxu0 0
    %1703 = vmatpush1.bf16.msra.mxu0 0
    %1704 = vmatprep.subr.bf16.mxu0 0
    %1705 = vmatpush1.bf16.msra.mxu0 0
    %1706 = vmatprep.subr.bf16.mxu0 0
    %1707 = vmatpush1.bf16.msra.mxu0 0
    %1708 = vmatprep.subr.bf16.mxu0 0
    %1709 = vmatpush1.bf16.msra.mxu0 0
    %1710 = vmatprep.subr.bf16.mxu0 0
    %1711 = vmatpush1.bf16.msra.mxu0 0
    %1712 = vmatprep.subr.bf16.mxu0 0
    %1713 = vmatpush1.bf16.msra.mxu0 0
    %1714 = vmatprep.subr.bf16.mxu0 0
    %1715 = vmatpush1.bf16.msra.mxu0 0
    %1716 = vmatprep.subr.bf16.mxu0 0
    %1717 = vmatpush1.bf16.msra.mxu0 0
    %1718 = vmatprep.mubr.bf16.mxu0 0
    %1719 = vmatmul.mubr.bf16.gmra.mrb[0].mxu0 %v1136
    %v1720 = vpop.f32.mrb[0].mxu0
    %v1721 = vadd.f32 %v1230, %v1720
    %v1722 = vpop.f32.mrb[0].mxu0
    %v1723 = vadd.f32 %v1234, %v1722
    %v1724 = vpop.f32.mrb[0].mxu0
    %v1725 = vpop.f32.mrb[0].mxu0
    %1726 = vdwg.mxu0
    %v1855 = vunpack.c.l.b16 %v1008
    %v1856 = vunpack.c.h.b16 %v1008
    %v1857 = vunpack.c.l.b16 %v1009
    %v1858 = vunpack.c.h.b16 %v1009
    %v1859 = vunpack.c.l.b16 %v1010
    %v1860 = vunpack.c.h.b16 %v1010
    %v1861 = vunpack.c.l.b16 %v1011
    %v1862 = vunpack.c.h.b16 %v1011
    %v1863 = vunpack.c.l.b16 %v1012
    %v1864 = vunpack.c.h.b16 %v1012
    %v1865 = vunpack.c.l.b16 %v1013
    %v1866 = vunpack.c.h.b16 %v1013
    %v1867 = vunpack.c.l.b16 %v1014
    %v1868 = vunpack.c.h.b16 %v1014
    %v1869 = vunpack.c.l.b16 %v1015
    %v1870 = vunpack.c.h.b16 %v1015
    %v1871 = vunpack.c.l.b16 %v1016
    %v1872 = vunpack.c.h.b16 %v1016
    %v1873 = vunpack.c.l.b16 %v1017
    %v1874 = vunpack.c.h.b16 %v1017
    %v1875 = vunpack.c.l.b16 %v1018
    %v1876 = vunpack.c.h.b16 %v1018
    %v1877 = vunpack.c.l.b16 %v1019
    %v1878 = vunpack.c.h.b16 %v1019
    %v1879 = vunpack.c.l.b16 %v1020
    %v1880 = vunpack.c.h.b16 %v1020
    %v1881 = vunpack.c.l.b16 %v1021
    %v1882 = vunpack.c.h.b16 %v1021
    %v1883 = vunpack.c.l.b16 %v1022
    %v1884 = vunpack.c.h.b16 %v1022
    %v1885 = vunpack.c.l.b16 %v1023
    %v1886 = vunpack.c.h.b16 %v1023
    %v1887 = vunpack.c.l.b16 %v1024
    %v1888 = vunpack.c.h.b16 %v1024
    %v1889 = vunpack.c.l.b16 %v1025
    %v1890 = vunpack.c.h.b16 %v1025
    %v1891 = vunpack.c.l.b16 %v1026
    %v1892 = vunpack.c.h.b16 %v1026
    %v1893 = vunpack.c.l.b16 %v1027
    %v1894 = vunpack.c.h.b16 %v1027
    %v1895 = vunpack.c.l.b16 %v1028
    %v1896 = vunpack.c.h.b16 %v1028
    %v1897 = vunpack.c.l.b16 %v1029
    %v1898 = vunpack.c.h.b16 %v1029
    %v1899 = vunpack.c.l.b16 %v1030
    %v1900 = vunpack.c.h.b16 %v1030
    %v1901 = vunpack.c.l.b16 %v1031
    %v1902 = vunpack.c.h.b16 %v1031
    %v1903 = vunpack.c.l.b16 %v1032
    %v1904 = vunpack.c.h.b16 %v1032
    %v1905 = vunpack.c.l.b16 %v1033
    %v1906 = vunpack.c.h.b16 %v1033
    %v1907 = vunpack.c.l.b16 %v1034
    %v1908 = vunpack.c.h.b16 %v1034
    %v1909 = vunpack.c.l.b16 %v1035
    %v1910 = vunpack.c.h.b16 %v1035
    %v1911 = vunpack.c.l.b16 %v1036
    %v1912 = vunpack.c.h.b16 %v1036
    %v1913 = vunpack.c.l.b16 %v1037
    %v1914 = vunpack.c.h.b16 %v1037
    %v1915 = vunpack.c.l.b16 %v1038
    %v1916 = vunpack.c.h.b16 %v1038
    %v1917 = vunpack.c.l.b16 %v1039
    %v1918 = vunpack.c.h.b16 %v1039
    %v1919 = vunpack.c.l.b16 %v1040
    %v1920 = vunpack.c.h.b16 %v1040
    %v1921 = vunpack.c.l.b16 %v1041
    %v1922 = vunpack.c.h.b16 %v1041
    %v1923 = vunpack.c.l.b16 %v1042
    %v1924 = vunpack.c.h.b16 %v1042
    %v1925 = vunpack.c.l.b16 %v1043
    %v1926 = vunpack.c.h.b16 %v1043
    %v1927 = vunpack.c.l.b16 %v1044
    %v1928 = vunpack.c.h.b16 %v1044
    %v1929 = vunpack.c.l.b16 %v1045
    %v1930 = vunpack.c.h.b16 %v1045
    %v1931 = vunpack.c.l.b16 %v1046
    %v1932 = vunpack.c.h.b16 %v1046
    %v1933 = vunpack.c.l.b16 %v1047
    %v1934 = vunpack.c.h.b16 %v1047
    %v1935 = vunpack.c.l.b16 %v1048
    %v1936 = vunpack.c.h.b16 %v1048
    %v1937 = vunpack.c.l.b16 %v1049
    %v1938 = vunpack.c.h.b16 %v1049
    %v1939 = vunpack.c.l.b16 %v1050
    %v1940 = vunpack.c.h.b16 %v1050
    %v1941 = vunpack.c.l.b16 %v1051
    %v1942 = vunpack.c.h.b16 %v1051
    %v1943 = vunpack.c.l.b16 %v1052
    %v1944 = vunpack.c.h.b16 %v1052
    %v1945 = vunpack.c.l.b16 %v1053
    %v1946 = vunpack.c.h.b16 %v1053
    %v1947 = vunpack.c.l.b16 %v1054
    %v1948 = vunpack.c.h.b16 %v1054
    %v1949 = vunpack.c.l.b16 %v1055
    %v1950 = vunpack.c.h.b16 %v1055
    %v1951 = vunpack.c.l.b16 %v1056
    %v1952 = vunpack.c.h.b16 %v1056
    %v1953 = vunpack.c.l.b16 %v1057
    %v1954 = vunpack.c.h.b16 %v1057
    %v1955 = vunpack.c.l.b16 %v1058
    %v1956 = vunpack.c.h.b16 %v1058
    %v1957 = vunpack.c.l.b16 %v1059
    %v1958 = vunpack.c.h.b16 %v1059
    %v1959 = vunpack.c.l.b16 %v1060
    %v1960 = vunpack.c.h.b16 %v1060
    %v1961 = vunpack.c.l.b16 %v1061
    %v1962 = vunpack.c.h.b16 %v1061
    %v1963 = vunpack.c.l.b16 %v1062
    %v1964 = vunpack.c.h.b16 %v1062
    %v1965 = vunpack.c.l.b16 %v1063
    %v1966 = vunpack.c.h.b16 %v1063
    %v1967 = vunpack.c.l.b16 %v1064
    %v1968 = vunpack.c.h.b16 %v1064
    %v1969 = vunpack.c.l.b16 %v1065
    %v1970 = vunpack.c.h.b16 %v1065
    %v1971 = vunpack.c.l.b16 %v1066
    %v1972 = vunpack.c.h.b16 %v1066
    %v1973 = vunpack.c.l.b16 %v1067
    %v1974 = vunpack.c.h.b16 %v1067
    %v1975 = vunpack.c.l.b16 %v1068
    %v1976 = vunpack.c.h.b16 %v1068
    %v1977 = vunpack.c.l.b16 %v1069
    %v1978 = vunpack.c.h.b16 %v1069
    %v1979 = vunpack.c.l.b16 %v1070
    %v1980 = vunpack.c.h.b16 %v1070
    %v1981 = vunpack.c.l.b16 %v1071
    %v1982 = vunpack.c.h.b16 %v1071
    %v1983 = vunpack.c.l.b16 %v1072
    %v1984 = vunpack.c.h.b16 %v1072
    %v1985 = vunpack.c.l.b16 %v1073
    %v1986 = vunpack.c.h.b16 %v1073
    %v1987 = vunpack.c.l.b16 %v1074
    %v1988 = vunpack.c.h.b16 %v1074
    %v1989 = vunpack.c.l.b16 %v1075
    %v1990 = vunpack.c.h.b16 %v1075
    %v1991 = vunpack.c.l.b16 %v1076
    %v1992 = vunpack.c.h.b16 %v1076
    %v1993 = vunpack.c.l.b16 %v1077
    %v1994 = vunpack.c.h.b16 %v1077
    %v1995 = vunpack.c.l.b16 %v1078
    %v1996 = vunpack.c.h.b16 %v1078
    %v1997 = vunpack.c.l.b16 %v1079
    %v1998 = vunpack.c.h.b16 %v1079
    %v1999 = vunpack.c.l.b16 %v1080
    %v2000 = vunpack.c.h.b16 %v1080
    %v2001 = vunpack.c.l.b16 %v1081
    %v2002 = vunpack.c.h.b16 %v1081
    %v2003 = vunpack.c.l.b16 %v1082
    %v2004 = vunpack.c.h.b16 %v1082
    %v2005 = vunpack.c.l.b16 %v1083
    %v2006 = vunpack.c.h.b16 %v1083
    %v2007 = vunpack.c.l.b16 %v1084
    %v2008 = vunpack.c.h.b16 %v1084
    %v2009 = vunpack.c.l.b16 %v1085
    %v2010 = vunpack.c.h.b16 %v1085
    %v2011 = vunpack.c.l.b16 %v1086
    %v2012 = vunpack.c.h.b16 %v1086
    %v2013 = vunpack.c.l.b16 %v1087
    %v2014 = vunpack.c.h.b16 %v1087
    %v2015 = vunpack.c.l.b16 %v1088
    %v2016 = vunpack.c.h.b16 %v1088
    %v2017 = vunpack.c.l.b16 %v1089
    %v2018 = vunpack.c.h.b16 %v1089
    %v2019 = vunpack.c.l.b16 %v1090
    %v2020 = vunpack.c.h.b16 %v1090
    %v2021 = vunpack.c.l.b16 %v1091
    %v2022 = vunpack.c.h.b16 %v1091
    %v2023 = vunpack.c.l.b16 %v1092
    %v2024 = vunpack.c.h.b16 %v1092
    %v2025 = vunpack.c.l.b16 %v1093
    %v2026 = vunpack.c.h.b16 %v1093
    %v2027 = vunpack.c.l.b16 %v1094
    %v2028 = vunpack.c.h.b16 %v1094
    %v2029 = vunpack.c.l.b16 %v1095
    %v2030 = vunpack.c.h.b16 %v1095
    %v2031 = vunpack.c.l.b16 %v1096
    %v2032 = vunpack.c.h.b16 %v1096
    %v2033 = vunpack.c.l.b16 %v1097
    %v2034 = vunpack.c.h.b16 %v1097
    %v2035 = vunpack.c.l.b16 %v1098
    %v2036 = vunpack.c.h.b16 %v1098
    %v2037 = vunpack.c.l.b16 %v1099
    %v2038 = vunpack.c.h.b16 %v1099
    %v2039 = vunpack.c.l.b16 %v1100
    %v2040 = vunpack.c.h.b16 %v1100
    %v2041 = vunpack.c.l.b16 %v1101
    %v2042 = vunpack.c.h.b16 %v1101
    %v2043 = vunpack.c.l.b16 %v1102
    %v2044 = vunpack.c.h.b16 %v1102
    %v2045 = vunpack.c.l.b16 %v1103
    %v2046 = vunpack.c.h.b16 %v1103
    %v2047 = vunpack.c.l.b16 %v1104
    %v2048 = vunpack.c.h.b16 %v1104
    %v2049 = vunpack.c.l.b16 %v1105
    %v2050 = vunpack.c.h.b16 %v1105
    %v2051 = vunpack.c.l.b16 %v1106
    %v2052 = vunpack.c.h.b16 %v1106
    %v2053 = vunpack.c.l.b16 %v1107
    %v2054 = vunpack.c.h.b16 %v1107
    %v2055 = vunpack.c.l.b16 %v1108
    %v2056 = vunpack.c.h.b16 %v1108
    %v2057 = vunpack.c.l.b16 %v1109
    %v2058 = vunpack.c.h.b16 %v1109
    %v2059 = vunpack.c.l.b16 %v1110
    %v2060 = vunpack.c.h.b16 %v1110
    %v2061 = vunpack.c.l.b16 %v1111
    %v2062 = vunpack.c.h.b16 %v1111
    %v2063 = vunpack.c.l.b16 %v1112
    %v2064 = vunpack.c.h.b16 %v1112
    %v2065 = vunpack.c.l.b16 %v1113
    %v2066 = vunpack.c.h.b16 %v1113
    %v2067 = vunpack.c.l.b16 %v1114
    %v2068 = vunpack.c.h.b16 %v1114
    %v2069 = vunpack.c.l.b16 %v1115
    %v2070 = vunpack.c.h.b16 %v1115
    %v2071 = vunpack.c.l.b16 %v1116
    %v2072 = vunpack.c.h.b16 %v1116
    %v2073 = vunpack.c.l.b16 %v1117
    %v2074 = vunpack.c.h.b16 %v1117
    %v2075 = vunpack.c.l.b16 %v1118
    %v2076 = vunpack.c.h.b16 %v1118
    %v2077 = vunpack.c.l.b16 %v1119
    %v2078 = vunpack.c.h.b16 %v1119
    %v2079 = vunpack.c.l.b16 %v1120
    %v2080 = vunpack.c.h.b16 %v1120
    %v2081 = vunpack.c.l.b16 %v1121
    %v2082 = vunpack.c.h.b16 %v1121
    %v2083 = vunpack.c.l.b16 %v1122
    %v2084 = vunpack.c.h.b16 %v1122
    %v2085 = vunpack.c.l.b16 %v1123
    %v2086 = vunpack.c.h.b16 %v1123
    %v2087 = vunpack.c.l.b16 %v1124
    %v2088 = vunpack.c.h.b16 %v1124
    %v2089 = vunpack.c.l.b16 %v1125
    %v2090 = vunpack.c.h.b16 %v1125
    %v2091 = vunpack.c.l.b16 %v1126
    %v2092 = vunpack.c.h.b16 %v1126
    %v2093 = vunpack.c.l.b16 %v1127
    %v2094 = vunpack.c.h.b16 %v1127
    %v2095 = vunpack.c.l.b16 %v1128
    %v2096 = vunpack.c.h.b16 %v1128
    %v2097 = vunpack.c.l.b16 %v1129
    %v2098 = vunpack.c.h.b16 %v1129
    %v2099 = vunpack.c.l.b16 %v1130
    %v2100 = vunpack.c.h.b16 %v1130
    %v2101 = vunpack.c.l.b16 %v1131
    %v2102 = vunpack.c.h.b16 %v1131
    %v2103 = vunpack.c.l.b16 %v1132
    %v2104 = vunpack.c.h.b16 %v1132
    %v2105 = vunpack.c.l.b16 %v1133
    %v2106 = vunpack.c.h.b16 %v1133
    %v2107 = vunpack.c.l.b16 %v1134
    %v2108 = vunpack.c.h.b16 %v1134
    %v2109 = vunpack.c.l.b16 %v1135
    %v2110 = vunpack.c.h.b16 %v1135
    %v2111 = vpack.c.b16 %v1863, %v1855
    %v2112 = vpack.c.b16 %v1864, %v1856
    %v2113 = vpack.c.b16 %v1865, %v1857
    %v2114 = vpack.c.b16 %v1866, %v1858
    %v2115 = vpack.c.b16 %v1867, %v1859
    %v2116 = vpack.c.b16 %v1868, %v1860
    %v2117 = vpack.c.b16 %v1869, %v1861
    %v2118 = vpack.c.b16 %v1870, %v1862
    %v2119 = vpack.c.b16 %v1879, %v1871
    %v2120 = vpack.c.b16 %v1880, %v1872
    %v2121 = vpack.c.b16 %v1881, %v1873
    %v2122 = vpack.c.b16 %v1882, %v1874
    %v2123 = vpack.c.b16 %v1883, %v1875
    %v2124 = vpack.c.b16 %v1884, %v1876
    %v2125 = vpack.c.b16 %v1885, %v1877
    %v2126 = vpack.c.b16 %v1886, %v1878
    %v2127 = vpack.c.b16 %v1895, %v1887
    %v2128 = vpack.c.b16 %v1896, %v1888
    %v2129 = vpack.c.b16 %v1897, %v1889
    %v2130 = vpack.c.b16 %v1898, %v1890
    %v2131 = vpack.c.b16 %v1899, %v1891
    %v2132 = vpack.c.b16 %v1900, %v1892
    %v2133 = vpack.c.b16 %v1901, %v1893
    %v2134 = vpack.c.b16 %v1902, %v1894
    %v2135 = vpack.c.b16 %v1911, %v1903
    %v2136 = vpack.c.b16 %v1912, %v1904
    %v2137 = vpack.c.b16 %v1913, %v1905
    %v2138 = vpack.c.b16 %v1914, %v1906
    %v2139 = vpack.c.b16 %v1915, %v1907
    %v2140 = vpack.c.b16 %v1916, %v1908
    %v2141 = vpack.c.b16 %v1917, %v1909
    %v2142 = vpack.c.b16 %v1918, %v1910
    %v2143 = vpack.c.b16 %v1927, %v1919
    %v2144 = vpack.c.b16 %v1928, %v1920
    %v2145 = vpack.c.b16 %v1929, %v1921
    %v2146 = vpack.c.b16 %v1930, %v1922
    %v2147 = vpack.c.b16 %v1931, %v1923
    %v2148 = vpack.c.b16 %v1932, %v1924
    %v2149 = vpack.c.b16 %v1933, %v1925
    %v2150 = vpack.c.b16 %v1934, %v1926
    %v2151 = vpack.c.b16 %v1943, %v1935
    %v2152 = vpack.c.b16 %v1944, %v1936
    %v2153 = vpack.c.b16 %v1945, %v1937
    %v2154 = vpack.c.b16 %v1946, %v1938
    %v2155 = vpack.c.b16 %v1947, %v1939
    %v2156 = vpack.c.b16 %v1948, %v1940
    %v2157 = vpack.c.b16 %v1949, %v1941
    %v2158 = vpack.c.b16 %v1950, %v1942
    %v2159 = vpack.c.b16 %v1959, %v1951
    %v2160 = vpack.c.b16 %v1960, %v1952
    %v2161 = vpack.c.b16 %v1961, %v1953
    %v2162 = vpack.c.b16 %v1962, %v1954
    %v2163 = vpack.c.b16 %v1963, %v1955
    %v2164 = vpack.c.b16 %v1964, %v1956
    %v2165 = vpack.c.b16 %v1965, %v1957
    %v2166 = vpack.c.b16 %v1966, %v1958
    %v2167 = vpack.c.b16 %v1975, %v1967
    %v2168 = vpack.c.b16 %v1976, %v1968
    %v2169 = vpack.c.b16 %v1977, %v1969
    %v2170 = vpack.c.b16 %v1978, %v1970
    %v2171 = vpack.c.b16 %v1979, %v1971
    %v2172 = vpack.c.b16 %v1980, %v1972
    %v2173 = vpack.c.b16 %v1981, %v1973
    %v2174 = vpack.c.b16 %v1982, %v1974
    %v2175 = vpack.c.b16 %v1991, %v1983
    %v2176 = vpack.c.b16 %v1992, %v1984
    %v2177 = vpack.c.b16 %v1993, %v1985
    %v2178 = vpack.c.b16 %v1994, %v1986
    %v2179 = vpack.c.b16 %v1995, %v1987
    %v2180 = vpack.c.b16 %v1996, %v1988
    %v2181 = vpack.c.b16 %v1997, %v1989
    %v2182 = vpack.c.b16 %v1998, %v1990
    %v2183 = vpack.c.b16 %v2007, %v1999
    %v2184 = vpack.c.b16 %v2008, %v2000
    %v2185 = vpack.c.b16 %v2009, %v2001
    %v2186 = vpack.c.b16 %v2010, %v2002
    %v2187 = vpack.c.b16 %v2011, %v2003
    %v2188 = vpack.c.b16 %v2012, %v2004
    %v2189 = vpack.c.b16 %v2013, %v2005
    %v2190 = vpack.c.b16 %v2014, %v2006
    %v2191 = vpack.c.b16 %v2023, %v2015
    %v2192 = vpack.c.b16 %v2024, %v2016
    %v2193 = vpack.c.b16 %v2025, %v2017
    %v2194 = vpack.c.b16 %v2026, %v2018
    %v2195 = vpack.c.b16 %v2027, %v2019
    %v2196 = vpack.c.b16 %v2028, %v2020
    %v2197 = vpack.c.b16 %v2029, %v2021
    %v2198 = vpack.c.b16 %v2030, %v2022
    %v2199 = vpack.c.b16 %v2039, %v2031
    %v2200 = vpack.c.b16 %v2040, %v2032
    %v2201 = vpack.c.b16 %v2041, %v2033
    %v2202 = vpack.c.b16 %v2042, %v2034
    %v2203 = vpack.c.b16 %v2043, %v2035
    %v2204 = vpack.c.b16 %v2044, %v2036
    %v2205 = vpack.c.b16 %v2045, %v2037
    %v2206 = vpack.c.b16 %v2046, %v2038
    %v2207 = vpack.c.b16 %v2055, %v2047
    %v2208 = vpack.c.b16 %v2056, %v2048
    %v2209 = vpack.c.b16 %v2057, %v2049
    %v2210 = vpack.c.b16 %v2058, %v2050
    %v2211 = vpack.c.b16 %v2059, %v2051
    %v2212 = vpack.c.b16 %v2060, %v2052
    %v2213 = vpack.c.b16 %v2061, %v2053
    %v2214 = vpack.c.b16 %v2062, %v2054
    %v2215 = vpack.c.b16 %v2071, %v2063
    %v2216 = vpack.c.b16 %v2072, %v2064
    %v2217 = vpack.c.b16 %v2073, %v2065
    %v2218 = vpack.c.b16 %v2074, %v2066
    %v2219 = vpack.c.b16 %v2075, %v2067
    %v2220 = vpack.c.b16 %v2076, %v2068
    %v2221 = vpack.c.b16 %v2077, %v2069
    %v2222 = vpack.c.b16 %v2078, %v2070
    %v2223 = vpack.c.b16 %v2087, %v2079
    %v2224 = vpack.c.b16 %v2088, %v2080
    %v2225 = vpack.c.b16 %v2089, %v2081
    %v2226 = vpack.c.b16 %v2090, %v2082
    %v2227 = vpack.c.b16 %v2091, %v2083
    %v2228 = vpack.c.b16 %v2092, %v2084
    %v2229 = vpack.c.b16 %v2093, %v2085
    %v2230 = vpack.c.b16 %v2094, %v2086
    %v2231 = vpack.c.b16 %v2103, %v2095
    %v2232 = vpack.c.b16 %v2104, %v2096
    %v2233 = vpack.c.b16 %v2105, %v2097
    %v2234 = vpack.c.b16 %v2106, %v2098
    %v2235 = vpack.c.b16 %v2107, %v2099
    %v2236 = vpack.c.b16 %v2108, %v2100
    %v2237 = vpack.c.b16 %v2109, %v2101
    %v2238 = vpack.c.b16 %v2110, %v2102
    %2367 = vmatprep.subr.bf16.mxu0 %v2112
    %2368 = vmatpush1.bf16.msra.mxu0 %v2111
    %2369 = vmatprep.subr.bf16.mxu0 %v2120
    %2370 = vmatpush1.bf16.msra.mxu0 %v2119
    %2371 = vmatprep.subr.bf16.mxu0 %v2128
    %2372 = vmatpush1.bf16.msra.mxu0 %v2127
    %2373 = vmatprep.subr.bf16.mxu0 %v2136
    %2374 = vmatpush1.bf16.msra.mxu0 %v2135
    %2375 = vmatprep.subr.bf16.mxu0 %v2144
    %2376 = vmatpush1.bf16.msra.mxu0 %v2143
    %2377 = vmatprep.subr.bf16.mxu0 %v2152
    %2378 = vmatpush1.bf16.msra.mxu0 %v2151
    %2379 = vmatprep.subr.bf16.mxu0 %v2160
    %2380 = vmatpush1.bf16.msra.mxu0 %v2159
    %2381 = vmatprep.subr.bf16.mxu0 %v2168
    %2382 = vmatpush1.bf16.msra.mxu0 %v2167
    %2383 = vmatprep.subr.bf16.mxu0 %v2176
    %2384 = vmatpush1.bf16.msra.mxu0 %v2175
    %2385 = vmatprep.subr.bf16.mxu0 %v2184
    %2386 = vmatpush1.bf16.msra.mxu0 %v2183
    %2387 = vmatprep.subr.bf16.mxu0 %v2192
    %2388 = vmatpush1.bf16.msra.mxu0 %v2191
    %2389 = vmatprep.subr.bf16.mxu0 %v2200
    %2390 = vmatpush1.bf16.msra.mxu0 %v2199
    %2391 = vmatprep.subr.bf16.mxu0 %v2208
    %2392 = vmatpush1.bf16.msra.mxu0 %v2207
    %2393 = vmatprep.subr.bf16.mxu0 %v2216
    %2394 = vmatpush1.bf16.msra.mxu0 %v2215
    %2395 = vmatprep.subr.bf16.mxu0 %v2224
    %2396 = vmatpush1.bf16.msra.mxu0 %v2223
    %2397 = vmatprep.subr.bf16.mxu0 %v2232
    %2398 = vmatpush1.bf16.msra.mxu0 %v2231
    %2399 = vmatprep.mubr.bf16.mxu0 0
    %2400 = vmatmul.mubr.bf16.gmra.mrb[0].mxu0 0
    %v2401 = vpop.f32.mrb[0].mxu0
    %v2402 = vadd.f32 0.0, %v2401
    %v2403 = vpop.f32.mrb[0].mxu0
    %v2404 = vadd.f32 0.0, %v2403
    %v2405 = vpop.f32.mrb[0].mxu0
    %v2406 = vpop.f32.mrb[0].mxu0
    %2407 = vdwg.mxu0
    %2408 = vmatprep.subr.bf16.mxu0 %v2114
    %2409 = vmatpush1.bf16.msra.mxu0 %v2113
    %2410 = vmatprep.subr.bf16.mxu0 %v2122
    %2411 = vmatpush1.bf16.msra.mxu0 %v2121
    %2412 = vmatprep.subr.bf16.mxu0 %v2130
    %2413 = vmatpush1.bf16.msra.mxu0 %v2129
    %2414 = vmatprep.subr.bf16.mxu0 %v2138
    %2415 = vmatpush1.bf16.msra.mxu0 %v2137
    %2416 = vmatprep.subr.bf16.mxu0 %v2146
    %2417 = vmatpush1.bf16.msra.mxu0 %v2145
    %2418 = vmatprep.subr.bf16.mxu0 %v2154
    %2419 = vmatpush1.bf16.msra.mxu0 %v2153
    %2420 = vmatprep.subr.bf16.mxu0 %v2162
    %2421 = vmatpush1.bf16.msra.mxu0 %v2161
    %2422 = vmatprep.subr.bf16.mxu0 %v2170
    %2423 = vmatpush1.bf16.msra.mxu0 %v2169
    %2424 = vmatprep.subr.bf16.mxu0 %v2178
    %2425 = vmatpush1.bf16.msra.mxu0 %v2177
    %2426 = vmatprep.subr.bf16.mxu0 %v2186
    %2427 = vmatpush1.bf16.msra.mxu0 %v2185
    %2428 = vmatprep.subr.bf16.mxu0 %v2194
    %2429 = vmatpush1.bf16.msra.mxu0 %v2193
    %2430 = vmatprep.subr.bf16.mxu0 %v2202
    %2431 = vmatpush1.bf16.msra.mxu0 %v2201
    %2432 = vmatprep.subr.bf16.mxu0 %v2210
    %2433 = vmatpush1.bf16.msra.mxu0 %v2209
    %2434 = vmatprep.subr.bf16.mxu0 %v2218
    %2435 = vmatpush1.bf16.msra.mxu0 %v2217
    %2436 = vmatprep.subr.bf16.mxu0 %v2226
    %2437 = vmatpush1.bf16.msra.mxu0 %v2225
    %2438 = vmatprep.subr.bf16.mxu0 %v2234
    %2439 = vmatpush1.bf16.msra.mxu0 %v2233
    %2440 = vmatprep.mubr.bf16.mxu0 0
    %2441 = vmatmul.mubr.bf16.gmra.mrb[0].mxu0 0
    %v2442 = vpop.f32.mrb[0].mxu0
    %v2443 = vadd.f32 0.0, %v2442
    %v2444 = vpop.f32.mrb[0].mxu0
    %v2445 = vadd.f32 0.0, %v2444
    %v2446 = vpop.f32.mrb[0].mxu0
    %v2447 = vpop.f32.mrb[0].mxu0
    %2448 = vdwg.mxu0
    %2449 = vmatprep.subr.bf16.mxu0 %v2116
    %2450 = vmatpush1.bf16.msra.mxu0 %v2115
    %2451 = vmatprep.subr.bf16.mxu0 %v2124
    %2452 = vmatpush1.bf16.msra.mxu0 %v2123
    %2453 = vmatprep.subr.bf16.mxu0 %v2132
    %2454 = vmatpush1.bf16.msra.mxu0 %v2131
    %2455 = vmatprep.subr.bf16.mxu0 %v2140
    %2456 = vmatpush1.bf16.msra.mxu0 %v2139
    %2457 = vmatprep.subr.bf16.mxu0 %v2148
    %2458 = vmatpush1.bf16.msra.mxu0 %v2147
    %2459 = vmatprep.subr.bf16.mxu0 %v2156
    %2460 = vmatpush1.bf16.msra.mxu0 %v2155
    %2461 = vmatprep.subr.bf16.mxu0 %v2164
    %2462 = vmatpush1.bf16.msra.mxu0 %v2163
    %2463 = vmatprep.subr.bf16.mxu0 %v2172
    %2464 = vmatpush1.bf16.msra.mxu0 %v2171
    %2465 = vmatprep.subr.bf16.mxu0 %v2180
    %2466 = vmatpush1.bf16.msra.mxu0 %v2179
    %2467 = vmatprep.subr.bf16.mxu0 %v2188
    %2468 = vmatpush1.bf16.msra.mxu0 %v2187
    %2469 = vmatprep.subr.bf16.mxu0 %v2196
    %2470 = vmatpush1.bf16.msra.mxu0 %v2195
    %2471 = vmatprep.subr.bf16.mxu0 %v2204
    %2472 = vmatpush1.bf16.msra.mxu0 %v2203
    %2473 = vmatprep.subr.bf16.mxu0 %v2212
    %2474 = vmatpush1.bf16.msra.mxu0 %v2211
    %2475 = vmatprep.subr.bf16.mxu0 %v2220
    %2476 = vmatpush1.bf16.msra.mxu0 %v2219
    %2477 = vmatprep.subr.bf16.mxu0 %v2228
    %2478 = vmatpush1.bf16.msra.mxu0 %v2227
    %2479 = vmatprep.subr.bf16.mxu0 %v2236
    %2480 = vmatpush1.bf16.msra.mxu0 %v2235
    %2481 = vmatprep.mubr.bf16.mxu0 0
    %2482 = vmatmul.mubr.bf16.gmra.mrb[0].mxu0 0
    %v2483 = vpop.f32.mrb[0].mxu0
    %v2484 = vadd.f32 0.0, %v2483
    %v2485 = vpop.f32.mrb[0].mxu0
    %v2486 = vadd.f32 0.0, %v2485
    %v2487 = vpop.f32.mrb[0].mxu0
    %v2488 = vpop.f32.mrb[0].mxu0
    %2489 = vdwg.mxu0
    %2490 = vmatprep.subr.bf16.mxu0 %v2118
    %2491 = vmatpush1.bf16.msra.mxu0 %v2117
    %2492 = vmatprep.subr.bf16.mxu0 %v2126
    %2493 = vmatpush1.bf16.msra.mxu0 %v2125
    %2494 = vmatprep.subr.bf16.mxu0 %v2134
    %2495 = vmatpush1.bf16.msra.mxu0 %v2133
    %2496 = vmatprep.subr.bf16.mxu0 %v2142
    %2497 = vmatpush1.bf16.msra.mxu0 %v2141
    %2498 = vmatprep.subr.bf16.mxu0 %v2150
    %2499 = vmatpush1.bf16.msra.mxu0 %v2149
    %2500 = vmatprep.subr.bf16.mxu0 %v2158
    %2501 = vmatpush1.bf16.msra.mxu0 %v2157
    %2502 = vmatprep.subr.bf16.mxu0 %v2166
    %2503 = vmatpush1.bf16.msra.mxu0 %v2165
    %2504 = vmatprep.subr.bf16.mxu0 %v2174
    %2505 = vmatpush1.bf16.msra.mxu0 %v2173
    %2506 = vmatprep.subr.bf16.mxu0 %v2182
    %2507 = vmatpush1.bf16.msra.mxu0 %v2181
    %2508 = vmatprep.subr.bf16.mxu0 %v2190
    %2509 = vmatpush1.bf16.msra.mxu0 %v2189
    %2510 = vmatprep.subr.bf16.mxu0 %v2198
    %2511 = vmatpush1.bf16.msra.mxu0 %v2197
    %2512 = vmatprep.subr.bf16.mxu0 %v2206
    %2513 = vmatpush1.bf16.msra.mxu0 %v2205
    %2514 = vmatprep.subr.bf16.mxu0 %v2214
    %2515 = vmatpush1.bf16.msra.mxu0 %v2213
    %2516 = vmatprep.subr.bf16.mxu0 %v2222
    %2517 = vmatpush1.bf16.msra.mxu0 %v2221
    %2518 = vmatprep.subr.bf16.mxu0 %v2230
    %2519 = vmatpush1.bf16.msra.mxu0 %v2229
    %2520 = vmatprep.subr.bf16.mxu0 %v2238
    %2521 = vmatpush1.bf16.msra.mxu0 %v2237
    %2522 = vmatprep.mubr.bf16.mxu0 0
    %2523 = vmatmul.mubr.bf16.gmra.mrb[0].mxu0 0
    %v2524 = vpop.f32.mrb[0].mxu0
    %v2525 = vadd.f32 0.0, %v2524
    %v2526 = vpop.f32.mrb[0].mxu0
    %v2527 = vadd.f32 0.0, %v2526
    %v2528 = vpop.f32.mrb[0].mxu0
    %v2529 = vpop.f32.mrb[0].mxu0
    %2530 = vdwg.mxu0
    %v2531 = vadd.f32 %v1598, %v2402
    %v2532 = vadd.f32 %v1600, %v2404
    %v2533 = vadd.f32 %v1639, %v2443
    %v2534 = vadd.f32 %v1641, %v2445
    %v2535 = vadd.f32 %v1680, %v2484
    %v2536 = vadd.f32 %v1682, %v2486
    %v2537 = vadd.f32 %v1721, %v2525
    %v2538 = vadd.f32 %v1723, %v2527
    %v2539 = vxor.u32 %v2531, 2147483648
    %v2540 = vxor.u32 %v2532, 2147483648
    %v2541 = vmul.f32 %v2539, 1.442695
    %v2542 = vpow.pop %v2541
    %v2543 = vmul.f32 %v2540, 1.442695
    %v2544 = vpow.pop %v2543
    %v2545 = vadd.f32 %v2542, 1.0
    %v2546 = vadd.f32 %v2544, 1.0
    %v2547 = vrcp.pop %v2545
    %v2548 = vmul.f32 1.0, %v2547
    %v2549 = vrcp.pop %v2546
    %v2550 = vmul.f32 1.0, %v2549
    %v2551 = vxor.u32 %v2533, 2147483648
    %v2552 = vxor.u32 %v2534, 2147483648
    %v2553 = vmul.f32 %v2551, 1.442695
    %v2554 = vpow.pop %v2553
    %v2555 = vmul.f32 %v2552, 1.442695
    %v2556 = vpow.pop %v2555
    %v2557 = vadd.f32 %v2554, 1.0
    %v2558 = vadd.f32 %v2556, 1.0
    %v2559 = vrcp.pop %v2557
    %v2560 = vmul.f32 1.0, %v2559
    %v2561 = vrcp.pop %v2558
    %v2562 = vmul.f32 1.0, %v2561
    %v2563 = vtanh.pop %v2535
    %v2564 = vtanh.pop %v2536
    %v2565 = vxor.u32 %v2537, 2147483648
    %v2566 = vxor.u32 %v2538, 2147483648
    %v2567 = vmul.f32 %v2565, 1.442695
    %v2568 = vpow.pop %v2567
    %v2569 = vmul.f32 %v2566, 1.442695
    %v2570 = vpow.pop %v2569
    %v2571 = vadd.f32 %v2568, 1.0
    %v2572 = vadd.f32 %v2570, 1.0
    %v2573 = vrcp.pop %v2571
    %v2574 = vmul.f32 1.0, %v2573
    %v2575 = vrcp.pop %v2572
    %v2576 = vmul.f32 1.0, %v2575
    %v2577 = vmul.f32 %v2560, 0.0
    %v2578 = vmul.f32 %v2562, 0.0
    %v2579 = vmul.f32 %v2548, %v2563
    %v2580 = vmul.f32 %v2550, %v2564
    %v2581 = vadd.f32 %v2577, %v2579
    %v2582 = vadd.f32 %v2578, %v2580
    %v2583 = vtanh.pop %v2581
    %v2584 = vtanh.pop %v2582
    %v2585 = vmul.f32 %v2574, %v2583
    %v2586 = vmul.f32 %v2576, %v2584
    %v2587 = vpack.c.bf16 %v2585, %v2585
    %v2588 = vpack.c.bf16 %v2586, %v2586
    %2589 = vmatprep.subr.bf16.mxu0 %v2112
    %2590 = vmatpush1.bf16.msra.mxu0 %v2111
    %2591 = vmatprep.subr.bf16.mxu0 %v2120
    %2592 = vmatpush1.bf16.msra.mxu0 %v2119
    %2593 = vmatprep.subr.bf16.mxu0 %v2128
    %2594 = vmatpush1.bf16.msra.mxu0 %v2127
    %2595 = vmatprep.subr.bf16.mxu0 %v2136
    %2596 = vmatpush1.bf16.msra.mxu0 %v2135
    %2597 = vmatprep.subr.bf16.mxu0 %v2144
    %2598 = vmatpush1.bf16.msra.mxu0 %v2143
    %2599 = vmatprep.subr.bf16.mxu0 %v2152
    %2600 = vmatpush1.bf16.msra.mxu0 %v2151
    %2601 = vmatprep.subr.bf16.mxu0 %v2160
    %2602 = vmatpush1.bf16.msra.mxu0 %v2159
    %2603 = vmatprep.subr.bf16.mxu0 %v2168
    %2604 = vmatpush1.bf16.msra.mxu0 %v2167
    %2605 = vmatprep.subr.bf16.mxu0 %v2176
    %2606 = vmatpush1.bf16.msra.mxu0 %v2175
    %2607 = vmatprep.subr.bf16.mxu0 %v2184
    %2608 = vmatpush1.bf16.msra.mxu0 %v2183
    %2609 = vmatprep.subr.bf16.mxu0 %v2192
    %2610 = vmatpush1.bf16.msra.mxu0 %v2191
    %2611 = vmatprep.subr.bf16.mxu0 %v2200
    %2612 = vmatpush1.bf16.msra.mxu0 %v2199
    %2613 = vmatprep.subr.bf16.mxu0 %v2208
    %2614 = vmatpush1.bf16.msra.mxu0 %v2207
    %2615 = vmatprep.subr.bf16.mxu0 %v2216
    %2616 = vmatpush1.bf16.msra.mxu0 %v2215
    %2617 = vmatprep.subr.bf16.mxu0 %v2224
    %2618 = vmatpush1.bf16.msra.mxu0 %v2223
    %2619 = vmatprep.subr.bf16.mxu0 %v2232
    %2620 = vmatpush1.bf16.msra.mxu0 %v2231
    %2621 = vmatprep.mubr.bf16.mxu0 %v2588
    %2622 = vmatmul.mubr.bf16.gmra.mrb[0].mxu0 %v2587
    %v2623 = vpop.f32.mrb[0].mxu0
    %v2624 = vadd.f32 0.0, %v2623
    %v2625 = vpop.f32.mrb[0].mxu0
    %v2626 = vadd.f32 0.0, %v2625
    %v2627 = vpop.f32.mrb[0].mxu0
    %v2628 = vpop.f32.mrb[0].mxu0
    %2629 = vdwg.mxu0
    %2630 = vmatprep.subr.bf16.mxu0 %v2114
    %2631 = vmatpush1.bf16.msra.mxu0 %v2113
    %2632 = vmatprep.subr.bf16.mxu0 %v2122
    %2633 = vmatpush1.bf16.msra.mxu0 %v2121
    %2634 = vmatprep.subr.bf16.mxu0 %v2130
    %2635 = vmatpush1.bf16.msra.mxu0 %v2129
    %2636 = vmatprep.subr.bf16.mxu0 %v2138
    %2637 = vmatpush1.bf16.msra.mxu0 %v2137
    %2638 = vmatprep.subr.bf16.mxu0 %v2146
    %2639 = vmatpush1.bf16.msra.mxu0 %v2145
    %2640 = vmatprep.subr.bf16.mxu0 %v2154
    %2641 = vmatpush1.bf16.msra.mxu0 %v2153
    %2642 = vmatprep.subr.bf16.mxu0 %v2162
    %2643 = vmatpush1.bf16.msra.mxu0 %v2161
    %2644 = vmatprep.subr.bf16.mxu0 %v2170
    %2645 = vmatpush1.bf16.msra.mxu0 %v2169
    %2646 = vmatprep.subr.bf16.mxu0 %v2178
    %2647 = vmatpush1.bf16.msra.mxu0 %v2177
    %2648 = vmatprep.subr.bf16.mxu0 %v2186
    %2649 = vmatpush1.bf16.msra.mxu0 %v2185
    %2650 = vmatprep.subr.bf16.mxu0 %v2194
    %2651 = vmatpush1.bf16.msra.mxu0 %v2193
    %2652 = vmatprep.subr.bf16.mxu0 %v2202
    %2653 = vmatpush1.bf16.msra.mxu0 %v2201
    %2654 = vmatprep.subr.bf16.mxu0 %v2210
    %2655 = vmatpush1.bf16.msra.mxu0 %v2209
    %2656 = vmatprep.subr.bf16.mxu0 %v2218
    %2657 = vmatpush1.bf16.msra.mxu0 %v2217
    %2658 = vmatprep.subr.bf16.mxu0 %v2226
    %2659 = vmatpush1.bf16.msra.mxu0 %v2225
    %2660 = vmatprep.subr.bf16.mxu0 %v2234
    %2661 = vmatpush1.bf16.msra.mxu0 %v2233
    %2662 = vmatprep.mubr.bf16.mxu0 %v2588
    %2663 = vmatmul.mubr.bf16.gmra.mrb[0].mxu0 %v2587
    %v2664 = vpop.f32.mrb[0].mxu0
    %v2665 = vadd.f32 0.0, %v2664
    %v2666 = vpop.f32.mrb[0].mxu0
    %v2667 = vadd.f32 0.0, %v2666
    %v2668 = vpop.f32.mrb[0].mxu0
    %v2669 = vpop.f32.mrb[0].mxu0
    %2670 = vdwg.mxu0
    %2671 = vmatprep.subr.bf16.mxu0 %v2116
    %2672 = vmatpush1.bf16.msra.mxu0 %v2115
    %2673 = vmatprep.subr.bf16.mxu0 %v2124
    %2674 = vmatpush1.bf16.msra.mxu0 %v2123
    %2675 = vmatprep.subr.bf16.mxu0 %v2132
    %2676 = vmatpush1.bf16.msra.mxu0 %v2131
    %2677 = vmatprep.subr.bf16.mxu0 %v2140
    %2678 = vmatpush1.bf16.msra.mxu0 %v2139
    %2679 = vmatprep.subr.bf16.mxu0 %v2148
    %2680 = vmatpush1.bf16.msra.mxu0 %v2147
    %2681 = vmatprep.subr.bf16.mxu0 %v2156
    %2682 = vmatpush1.bf16.msra.mxu0 %v2155
    %2683 = vmatprep.subr.bf16.mxu0 %v2164
    %2684 = vmatpush1.bf16.msra.mxu0 %v2163
    %2685 = vmatprep.subr.bf16.mxu0 %v2172
    %2686 = vmatpush1.bf16.msra.mxu0 %v2171
    %2687 = vmatprep.subr.bf16.mxu0 %v2180
    %2688 = vmatpush1.bf16.msra.mxu0 %v2179
    %2689 = vmatprep.subr.bf16.mxu0 %v2188
    %2690 = vmatpush1.bf16.msra.mxu0 %v2187
    %2691 = vmatprep.subr.bf16.mxu0 %v2196
    %2692 = vmatpush1.bf16.msra.mxu0 %v2195
    %2693 = vmatprep.subr.bf16.mxu0 %v2204
    %2694 = vmatpush1.bf16.msra.mxu0 %v2203
    %2695 = vmatprep.subr.bf16.mxu0 %v2212
    %2696 = vmatpush1.bf16.msra.mxu0 %v2211
    %2697 = vmatprep.subr.bf16.mxu0 %v2220
    %2698 = vmatpush1.bf16.msra.mxu0 %v2219
    %2699 = vmatprep.subr.bf16.mxu0 %v2228
    %2700 = vmatpush1.bf16.msra.mxu0 %v2227
    %2701 = vmatprep.subr.bf16.mxu0 %v2236
    %2702 = vmatpush1.bf16.msra.mxu0 %v2235
    %2703 = vmatprep.mubr.bf16.mxu0 %v2588
    %2704 = vmatmul.mubr.bf16.gmra.mrb[0].mxu0 %v2587
    %v2705 = vpop.f32.mrb[0].mxu0
    %v2706 = vadd.f32 0.0, %v2705
    %v2707 = vpop.f32.mrb[0].mxu0
    %v2708 = vadd.f32 0.0, %v2707
    %v2709 = vpop.f32.mrb[0].mxu0
    %v2710 = vpop.f32.mrb[0].mxu0
    %2711 = vdwg.mxu0
    %2712 = vmatprep.subr.bf16.mxu0 %v2118
    %2713 = vmatpush1.bf16.msra.mxu0 %v2117
    %2714 = vmatprep.subr.bf16.mxu0 %v2126
    %2715 = vmatpush1.bf16.msra.mxu0 %v2125
    %2716 = vmatprep.subr.bf16.mxu0 %v2134
    %2717 = vmatpush1.bf16.msra.mxu0 %v2133
    %2718 = vmatprep.subr.bf16.mxu0 %v2142
    %2719 = vmatpush1.bf16.msra.mxu0 %v2141
    %2720 = vmatprep.subr.bf16.mxu0 %v2150
    %2721 = vmatpush1.bf16.msra.mxu0 %v2149
    %2722 = vmatprep.subr.bf16.mxu0 %v2158
    %2723 = vmatpush1.bf16.msra.mxu0 %v2157
    %2724 = vmatprep.subr.bf16.mxu0 %v2166
    %2725 = vmatpush1.bf16.msra.mxu0 %v2165
    %2726 = vmatprep.subr.bf16.mxu0 %v2174
    %2727 = vmatpush1.bf16.msra.mxu0 %v2173
    %2728 = vmatprep.subr.bf16.mxu0 %v2182
    %2729 = vmatpush1.bf16.msra.mxu0 %v2181
    %2730 = vmatprep.subr.bf16.mxu0 %v2190
    %2731 = vmatpush1.bf16.msra.mxu0 %v2189
    %2732 = vmatprep.subr.bf16.mxu0 %v2198
    %2733 = vmatpush1.bf16.msra.mxu0 %v2197
    %2734 = vmatprep.subr.bf16.mxu0 %v2206
    %2735 = vmatpush1.bf16.msra.mxu0 %v2205
    %2736 = vmatprep.subr.bf16.mxu0 %v2214
    %2737 = vmatpush1.bf16.msra.mxu0 %v2213
    %2738 = vmatprep.subr.bf16.mxu0 %v2222
    %2739 = vmatpush1.bf16.msra.mxu0 %v2221
    %2740 = vmatprep.subr.bf16.mxu0 %v2230
    %2741 = vmatpush1.bf16.msra.mxu0 %v2229
    %2742 = vmatprep.subr.bf16.mxu0 %v2238
    %2743 = vmatpush1.bf16.msra.mxu0 %v2237
    %2744 = vmatprep.mubr.bf16.mxu0 %v2588
    %2745 = vmatmul.mubr.bf16.gmra.mrb[0].mxu0 %v2587
    %v2746 = vpop.f32.mrb[0].mxu0
    %v2747 = vadd.f32 0.0, %v2746
    %v2748 = vpop.f32.mrb[0].mxu0
    %v2749 = vadd.f32 0.0, %v2748
    %v2750 = vpop.f32.mrb[0].mxu0
    %v2751 = vpop.f32.mrb[0].mxu0
    %2752 = vdwg.mxu0
    %v2761 = vrot.slane %v2624, 7
    %v2762 = vrot.slane %v2626, 7
    %v2763 = vrot.slane %v2665, 7
    %v2764 = vrot.slane %v2667, 7
    %v2765 = vrot.slane %v2706, 7
    %v2766 = vrot.slane %v2708, 7
    %v2767 = vrot.slane %v2747, 7
    %v2768 = vrot.slane %v2749, 7
    %v2777 = vadd.f32 %v1598, %v2761
    %v2778 = vadd.f32 %v1600, %v2762
    %v2779 = vadd.f32 %v1639, %v2763
    %v2780 = vadd.f32 %v1641, %v2764
    %v2781 = vadd.f32 %v1680, %v2765
    %v2782 = vadd.f32 %v1682, %v2766
    %v2783 = vadd.f32 %v1721, %v2767
    %v2784 = vadd.f32 %v1723, %v2768
    %v2785 = vxor.u32 %v2777, 2147483648
    %v2786 = vxor.u32 %v2778, 2147483648
    %v2787 = vmul.f32 %v2785, 1.442695
    %v2788 = vpow.pop %v2787
    %v2789 = vmul.f32 %v2786, 1.442695
    %v2790 = vpow.pop %v2789
    %v2791 = vadd.f32 %v2788, 1.0
    %v2792 = vadd.f32 %v2790, 1.0
    %v2793 = vrcp.pop %v2791
    %v2794 = vmul.f32 1.0, %v2793
    %v2795 = vrcp.pop %v2792
    %v2796 = vmul.f32 1.0, %v2795
    %v2797 = vxor.u32 %v2779, 2147483648
    %v2798 = vxor.u32 %v2780, 2147483648
    %v2799 = vmul.f32 %v2797, 1.442695
    %v2800 = vpow.pop %v2799
    %v2801 = vmul.f32 %v2798, 1.442695
    %v2802 = vpow.pop %v2801
    %v2803 = vadd.f32 %v2800, 1.0
    %v2804 = vadd.f32 %v2802, 1.0
    %v2805 = vrcp.pop %v2803
    %v2806 = vmul.f32 1.0, %v2805
    %v2807 = vrcp.pop %v2804
    %v2808 = vmul.f32 1.0, %v2807
    %v2809 = vtanh.pop %v2781
    %v2810 = vtanh.pop %v2782
    %v2811 = vxor.u32 %v2783, 2147483648
    %v2812 = vxor.u32 %v2784, 2147483648
    %v2813 = vmul.f32 %v2811, 1.442695
    %v2814 = vpow.pop %v2813
    %v2815 = vmul.f32 %v2812, 1.442695
    %v2816 = vpow.pop %v2815
    %v2817 = vadd.f32 %v2814, 1.0
    %v2818 = vadd.f32 %v2816, 1.0
    %v2819 = vrcp.pop %v2817
    %v2820 = vmul.f32 1.0, %v2819
    %v2821 = vrcp.pop %v2818
    %v2822 = vmul.f32 1.0, %v2821
    %v2825 = vrot.slane %v2581, 7
    %v2826 = vrot.slane %v2582, 7
    %v2829 = vmul.f32 %v2806, %v2825
    %v2830 = vmul.f32 %v2808, %v2826
    %v2831 = vmul.f32 %v2794, %v2809
    %v2832 = vmul.f32 %v2796, %v2810
    %v2833 = vadd.f32 %v2829, %v2831
    %v2834 = vadd.f32 %v2830, %v2832
    %v2835 = vtanh.pop %v2833
    %v2836 = vtanh.pop %v2834
    %v2837 = vmul.f32 %v2820, %v2835
    %v2838 = vmul.f32 %v2822, %v2836
    %vm2839 = vcmask 1040384
    %v2840 = vsel %vm2839, %v2585, %v2837
    %v2841 = vsel %vm2839, %v2586, %v2838
    %v2842 = vld [vmem:[#allocation13] sm:$0xff]
    %v2843 = vld [vmem:[#allocation13 + $0x8] sm:$0xff]
    %v2844 = vld [vmem:[#allocation13 + $0x10] sm:$0xff]
    %v2845 = vld [vmem:[#allocation13 + $0x18] sm:$0xff]
    %v2846 = vld [vmem:[#allocation13 + $0x20] sm:$0xff]
    %v2847 = vld [vmem:[#allocation13 + $0x28] sm:$0xff]
    %v2848 = vld [vmem:[#allocation13 + $0x30] sm:$0xff]
    %v2849 = vld [vmem:[#allocation13 + $0x38] sm:$0xff]
    %v2850 = vld [vmem:[#allocation13 + $0x40] sm:$0xff]
    %v2851 = vld [vmem:[#allocation13 + $0x48] sm:$0xff]
    %v2852 = vld [vmem:[#allocation13 + $0x50] sm:$0xff]
    %v2853 = vld [vmem:[#allocation13 + $0x58] sm:$0xff]
    %v2854 = vld [vmem:[#allocation13 + $0x60] sm:$0xff]
    %v2855 = vld [vmem:[#allocation13 + $0x68] sm:$0xff]
    %v2856 = vld [vmem:[#allocation13 + $0x70] sm:$0xff]
    %v2857 = vld [vmem:[#allocation13 + $0x78] sm:$0xff]
    %v2858 = vld [vmem:[#allocation13 + $0x80] sm:$0xff]
    %v2859 = vld [vmem:[#allocation13 + $0x88] sm:$0xff]
    %v2860 = vld [vmem:[#allocation13 + $0x90] sm:$0xff]
    %v2861 = vld [vmem:[#allocation13 + $0x98] sm:$0xff]
    %v2862 = vld [vmem:[#allocation13 + $0xa0] sm:$0xff]
    %v2863 = vld [vmem:[#allocation13 + $0xa8] sm:$0xff]
    %v2864 = vld [vmem:[#allocation13 + $0xb0] sm:$0xff]
    %v2865 = vld [vmem:[#allocation13 + $0xb8] sm:$0xff]
    %v2866 = vld [vmem:[#allocation13 + $0xc0] sm:$0xff]
    %v2867 = vld [vmem:[#allocation13 + $0xc8] sm:$0xff]
    %v2868 = vld [vmem:[#allocation13 + $0xd0] sm:$0xff]
    %v2869 = vld [vmem:[#allocation13 + $0xd8] sm:$0xff]
    %v2870 = vld [vmem:[#allocation13 + $0xe0] sm:$0xff]
    %v2871 = vld [vmem:[#allocation13 + $0xe8] sm:$0xff]
    %v2872 = vld [vmem:[#allocation13 + $0xf0] sm:$0xff]
    %v2873 = vld [vmem:[#allocation13 + $0xf8] sm:$0xff]
    %v2874 = vld [vmem:[#allocation13 + $0x100] sm:$0xff]
    %v2875 = vld [vmem:[#allocation13 + $0x108] sm:$0xff]
    %v2876 = vld [vmem:[#allocation13 + $0x110] sm:$0xff]
    %v2877 = vld [vmem:[#allocation13 + $0x118] sm:$0xff]
    %v2878 = vld [vmem:[#allocation13 + $0x120] sm:$0xff]
    %v2879 = vld [vmem:[#allocation13 + $0x128] sm:$0xff]
    %v2880 = vld [vmem:[#allocation13 + $0x130] sm:$0xff]
    %v2881 = vld [vmem:[#allocation13 + $0x138] sm:$0xff]
    %v2882 = vld [vmem:[#allocation13 + $0x140] sm:$0xff]
    %v2883 = vld [vmem:[#allocation13 + $0x148] sm:$0xff]
    %v2884 = vld [vmem:[#allocation13 + $0x150] sm:$0xff]
    %v2885 = vld [vmem:[#allocation13 + $0x158] sm:$0xff]
    %v2886 = vld [vmem:[#allocation13 + $0x160] sm:$0xff]
    %v2887 = vld [vmem:[#allocation13 + $0x168] sm:$0xff]
    %v2888 = vld [vmem:[#allocation13 + $0x170] sm:$0xff]
    %v2889 = vld [vmem:[#allocation13 + $0x178] sm:$0xff]
    %v2890 = vld [vmem:[#allocation13 + $0x180] sm:$0xff]
    %v2891 = vld [vmem:[#allocation13 + $0x188] sm:$0xff]
    %v2892 = vld [vmem:[#allocation13 + $0x190] sm:$0xff]
    %v2893 = vld [vmem:[#allocation13 + $0x198] sm:$0xff]
    %v2894 = vld [vmem:[#allocation13 + $0x1a0] sm:$0xff]
    %v2895 = vld [vmem:[#allocation13 + $0x1a8] sm:$0xff]
    %v2896 = vld [vmem:[#allocation13 + $0x1b0] sm:$0xff]
    %v2897 = vld [vmem:[#allocation13 + $0x1b8] sm:$0xff]
    %v2898 = vld [vmem:[#allocation13 + $0x1c0] sm:$0xff]
    %v2899 = vld [vmem:[#allocation13 + $0x1c8] sm:$0xff]
    %v2900 = vld [vmem:[#allocation13 + $0x1d0] sm:$0xff]
    %v2901 = vld [vmem:[#allocation13 + $0x1d8] sm:$0xff]
    %v2902 = vld [vmem:[#allocation13 + $0x1e0] sm:$0xff]
    %v2903 = vld [vmem:[#allocation13 + $0x1e8] sm:$0xff]
    %v2904 = vld [vmem:[#allocation13 + $0x1f0] sm:$0xff]
    %v2905 = vld [vmem:[#allocation13 + $0x1f8] sm:$0xff]
    %v2906 = vld [vmem:[#allocation13 + $0x200] sm:$0xff]
    %v2907 = vld [vmem:[#allocation13 + $0x208] sm:$0xff]
    %v2908 = vld [vmem:[#allocation13 + $0x210] sm:$0xff]
    %v2909 = vld [vmem:[#allocation13 + $0x218] sm:$0xff]
    %v2910 = vld [vmem:[#allocation13 + $0x220] sm:$0xff]
    %v2911 = vld [vmem:[#allocation13 + $0x228] sm:$0xff]
    %v2912 = vld [vmem:[#allocation13 + $0x230] sm:$0xff]
    %v2913 = vld [vmem:[#allocation13 + $0x238] sm:$0xff]
    %v2914 = vld [vmem:[#allocation13 + $0x240] sm:$0xff]
    %v2915 = vld [vmem:[#allocation13 + $0x248] sm:$0xff]
    %v2916 = vld [vmem:[#allocation13 + $0x250] sm:$0xff]
    %v2917 = vld [vmem:[#allocation13 + $0x258] sm:$0xff]
    %v2918 = vld [vmem:[#allocation13 + $0x260] sm:$0xff]
    %v2919 = vld [vmem:[#allocation13 + $0x268] sm:$0xff]
    %v2920 = vld [vmem:[#allocation13 + $0x270] sm:$0xff]
    %v2921 = vld [vmem:[#allocation13 + $0x278] sm:$0xff]
    %v2922 = vld [vmem:[#allocation13 + $0x280] sm:$0xff]
    %v2923 = vld [vmem:[#allocation13 + $0x288] sm:$0xff]
    %v2924 = vld [vmem:[#allocation13 + $0x290] sm:$0xff]
    %v2925 = vld [vmem:[#allocation13 + $0x298] sm:$0xff]
    %v2926 = vld [vmem:[#allocation13 + $0x2a0] sm:$0xff]
    %v2927 = vld [vmem:[#allocation13 + $0x2a8] sm:$0xff]
    %v2928 = vld [vmem:[#allocation13 + $0x2b0] sm:$0xff]
    %v2929 = vld [vmem:[#allocation13 + $0x2b8] sm:$0xff]
    %v2930 = vld [vmem:[#allocation13 + $0x2c0] sm:$0xff]
    %v2931 = vld [vmem:[#allocation13 + $0x2c8] sm:$0xff]
    %v2932 = vld [vmem:[#allocation13 + $0x2d0] sm:$0xff]
    %v2933 = vld [vmem:[#allocation13 + $0x2d8] sm:$0xff]
    %v2934 = vld [vmem:[#allocation13 + $0x2e0] sm:$0xff]
    %v2935 = vld [vmem:[#allocation13 + $0x2e8] sm:$0xff]
    %v2936 = vld [vmem:[#allocation13 + $0x2f0] sm:$0xff]
    %v2937 = vld [vmem:[#allocation13 + $0x2f8] sm:$0xff]
    %v2938 = vld [vmem:[#allocation13 + $0x300] sm:$0xff]
    %v2939 = vld [vmem:[#allocation13 + $0x308] sm:$0xff]
    %v2940 = vld [vmem:[#allocation13 + $0x310] sm:$0xff]
    %v2941 = vld [vmem:[#allocation13 + $0x318] sm:$0xff]
    %v2942 = vld [vmem:[#allocation13 + $0x320] sm:$0xff]
    %v2943 = vld [vmem:[#allocation13 + $0x328] sm:$0xff]
    %v2944 = vld [vmem:[#allocation13 + $0x330] sm:$0xff]
    %v2945 = vld [vmem:[#allocation13 + $0x338] sm:$0xff]
    %v2946 = vld [vmem:[#allocation13 + $0x340] sm:$0xff]
    %v2947 = vld [vmem:[#allocation13 + $0x348] sm:$0xff]
    %v2948 = vld [vmem:[#allocation13 + $0x350] sm:$0xff]
    %v2949 = vld [vmem:[#allocation13 + $0x358] sm:$0xff]
    %v2950 = vld [vmem:[#allocation13 + $0x360] sm:$0xff]
    %v2951 = vld [vmem:[#allocation13 + $0x368] sm:$0xff]
    %v2952 = vld [vmem:[#allocation13 + $0x370] sm:$0xff]
    %v2953 = vld [vmem:[#allocation13 + $0x378] sm:$0xff]
    %v2954 = vld [vmem:[#allocation13 + $0x380] sm:$0xff]
    %v2955 = vld [vmem:[#allocation13 + $0x388] sm:$0xff]
    %v2956 = vld [vmem:[#allocation13 + $0x390] sm:$0xff]
    %v2957 = vld [vmem:[#allocation13 + $0x398] sm:$0xff]
    %v2958 = vld [vmem:[#allocation13 + $0x3a0] sm:$0xff]
    %v2959 = vld [vmem:[#allocation13 + $0x3a8] sm:$0xff]
    %v2960 = vld [vmem:[#allocation13 + $0x3b0] sm:$0xff]
    %v2961 = vld [vmem:[#allocation13 + $0x3b8] sm:$0xff]
    %v2962 = vld [vmem:[#allocation13 + $0x3c0] sm:$0xff]
    %v2963 = vld [vmem:[#allocation13 + $0x3c8] sm:$0xff]
    %v2964 = vld [vmem:[#allocation13 + $0x3d0] sm:$0xff]
    %v2965 = vld [vmem:[#allocation13 + $0x3d8] sm:$0xff]
    %v2966 = vld [vmem:[#allocation13 + $0x3e0] sm:$0xff]
    %v2967 = vld [vmem:[#allocation13 + $0x3e8] sm:$0xff]
    %v2968 = vld [vmem:[#allocation13 + $0x3f0] sm:$0xff]
    %v2969 = vld [vmem:[#allocation13 + $0x3f8] sm:$0xff]
    %v2970 = vpack.c.bf16 %v2840, %v2840
    %v2971 = vpack.c.bf16 %v2841, %v2841
    %v2972 = vld [vmem:[#allocation11] sm:$0xff]
    %v2973 = vld [vmem:[#allocation11 + $0x8] sm:$0xff]
    %v2974 = vld [vmem:[#allocation11 + $0x10] sm:$0xff]
    %v2975 = vld [vmem:[#allocation11 + $0x18] sm:$0xff]
    %v2976 = vld [vmem:[#allocation11 + $0x20] sm:$0xff]
    %v2977 = vld [vmem:[#allocation11 + $0x28] sm:$0xff]
    %v2978 = vld [vmem:[#allocation11 + $0x30] sm:$0xff]
    %v2979 = vld [vmem:[#allocation11 + $0x38] sm:$0xff]
    %v2980 = vld [vmem:[#allocation11 + $0x40] sm:$0xff]
    %v2981 = vld [vmem:[#allocation11 + $0x48] sm:$0xff]
    %v2982 = vld [vmem:[#allocation11 + $0x50] sm:$0xff]
    %v2983 = vld [vmem:[#allocation11 + $0x58] sm:$0xff]
    %v2984 = vld [vmem:[#allocation11 + $0x60] sm:$0xff]
    %v2985 = vld [vmem:[#allocation11 + $0x68] sm:$0xff]
    %v2986 = vld [vmem:[#allocation11 + $0x70] sm:$0xff]
    %v2987 = vld [vmem:[#allocation11 + $0x78] sm:$0xff]
    %v2988 = vld [vmem:[#allocation11 + $0x80] sm:$0xff]
    %v2989 = vld [vmem:[#allocation11 + $0x88] sm:$0xff]
    %v2990 = vld [vmem:[#allocation11 + $0x90] sm:$0xff]
    %v2991 = vld [vmem:[#allocation11 + $0x98] sm:$0xff]
    %v2992 = vld [vmem:[#allocation11 + $0xa0] sm:$0xff]
    %v2993 = vld [vmem:[#allocation11 + $0xa8] sm:$0xff]
    %v2994 = vld [vmem:[#allocation11 + $0xb0] sm:$0xff]
    %v2995 = vld [vmem:[#allocation11 + $0xb8] sm:$0xff]
    %v2996 = vld [vmem:[#allocation11 + $0xc0] sm:$0xff]
    %v2997 = vld [vmem:[#allocation11 + $0xc8] sm:$0xff]
    %v2998 = vld [vmem:[#allocation11 + $0xd0] sm:$0xff]
    %v2999 = vld [vmem:[#allocation11 + $0xd8] sm:$0xff]
    %v3000 = vld [vmem:[#allocation11 + $0xe0] sm:$0xff]
    %v3001 = vld [vmem:[#allocation11 + $0xe8] sm:$0xff]
    %v3002 = vld [vmem:[#allocation11 + $0xf0] sm:$0xff]
    %v3003 = vld [vmem:[#allocation11 + $0xf8] sm:$0xff]
    %v3004 = vld [vmem:[#allocation11 + $0x100] sm:$0xff]
    %v3005 = vld [vmem:[#allocation11 + $0x108] sm:$0xff]
    %v3006 = vld [vmem:[#allocation11 + $0x110] sm:$0xff]
    %v3007 = vld [vmem:[#allocation11 + $0x118] sm:$0xff]
    %v3008 = vld [vmem:[#allocation11 + $0x120] sm:$0xff]
    %v3009 = vld [vmem:[#allocation11 + $0x128] sm:$0xff]
    %v3010 = vld [vmem:[#allocation11 + $0x130] sm:$0xff]
    %v3011 = vld [vmem:[#allocation11 + $0x138] sm:$0xff]
    %v3012 = vld [vmem:[#allocation11 + $0x140] sm:$0xff]
    %v3013 = vld [vmem:[#allocation11 + $0x148] sm:$0xff]
    %v3014 = vld [vmem:[#allocation11 + $0x150] sm:$0xff]
    %v3015 = vld [vmem:[#allocation11 + $0x158] sm:$0xff]
    %v3016 = vld [vmem:[#allocation11 + $0x160] sm:$0xff]
    %v3017 = vld [vmem:[#allocation11 + $0x168] sm:$0xff]
    %v3018 = vld [vmem:[#allocation11 + $0x170] sm:$0xff]
    %v3019 = vld [vmem:[#allocation11 + $0x178] sm:$0xff]
    %v3020 = vld [vmem:[#allocation11 + $0x180] sm:$0xff]
    %v3021 = vld [vmem:[#allocation11 + $0x188] sm:$0xff]
    %v3022 = vld [vmem:[#allocation11 + $0x190] sm:$0xff]
    %v3023 = vld [vmem:[#allocation11 + $0x198] sm:$0xff]
    %v3024 = vld [vmem:[#allocation11 + $0x1a0] sm:$0xff]
    %v3025 = vld [vmem:[#allocation11 + $0x1a8] sm:$0xff]
    %v3026 = vld [vmem:[#allocation11 + $0x1b0] sm:$0xff]
    %v3027 = vld [vmem:[#allocation11 + $0x1b8] sm:$0xff]
    %v3028 = vld [vmem:[#allocation11 + $0x1c0] sm:$0xff]
    %v3029 = vld [vmem:[#allocation11 + $0x1c8] sm:$0xff]
    %v3030 = vld [vmem:[#allocation11 + $0x1d0] sm:$0xff]
    %v3031 = vld [vmem:[#allocation11 + $0x1d8] sm:$0xff]
    %v3032 = vld [vmem:[#allocation11 + $0x1e0] sm:$0xff]
    %v3033 = vld [vmem:[#allocation11 + $0x1e8] sm:$0xff]
    %v3034 = vld [vmem:[#allocation11 + $0x1f0] sm:$0xff]
    %v3035 = vld [vmem:[#allocation11 + $0x1f8] sm:$0xff]
    %v3036 = vld [vmem:[#allocation11 + $0x200] sm:$0xff]
    %v3037 = vld [vmem:[#allocation11 + $0x208] sm:$0xff]
    %v3038 = vld [vmem:[#allocation11 + $0x210] sm:$0xff]
    %v3039 = vld [vmem:[#allocation11 + $0x218] sm:$0xff]
    %v3040 = vld [vmem:[#allocation11 + $0x220] sm:$0xff]
    %v3041 = vld [vmem:[#allocation11 + $0x228] sm:$0xff]
    %v3042 = vld [vmem:[#allocation11 + $0x230] sm:$0xff]
    %v3043 = vld [vmem:[#allocation11 + $0x238] sm:$0xff]
    %v3044 = vld [vmem:[#allocation11 + $0x240] sm:$0xff]
    %v3045 = vld [vmem:[#allocation11 + $0x248] sm:$0xff]
    %v3046 = vld [vmem:[#allocation11 + $0x250] sm:$0xff]
    %v3047 = vld [vmem:[#allocation11 + $0x258] sm:$0xff]
    %v3048 = vld [vmem:[#allocation11 + $0x260] sm:$0xff]
    %v3049 = vld [vmem:[#allocation11 + $0x268] sm:$0xff]
    %v3050 = vld [vmem:[#allocation11 + $0x270] sm:$0xff]
    %v3051 = vld [vmem:[#allocation11 + $0x278] sm:$0xff]
    %v3052 = vld [vmem:[#allocation11 + $0x280] sm:$0xff]
    %v3053 = vld [vmem:[#allocation11 + $0x288] sm:$0xff]
    %v3054 = vld [vmem:[#allocation11 + $0x290] sm:$0xff]
    %v3055 = vld [vmem:[#allocation11 + $0x298] sm:$0xff]
    %v3056 = vld [vmem:[#allocation11 + $0x2a0] sm:$0xff]
    %v3057 = vld [vmem:[#allocation11 + $0x2a8] sm:$0xff]
    %v3058 = vld [vmem:[#allocation11 + $0x2b0] sm:$0xff]
    %v3059 = vld [vmem:[#allocation11 + $0x2b8] sm:$0xff]
    %v3060 = vld [vmem:[#allocation11 + $0x2c0] sm:$0xff]
    %v3061 = vld [vmem:[#allocation11 + $0x2c8] sm:$0xff]
    %v3062 = vld [vmem:[#allocation11 + $0x2d0] sm:$0xff]
    %v3063 = vld [vmem:[#allocation11 + $0x2d8] sm:$0xff]
    %v3064 = vld [vmem:[#allocation11 + $0x2e0] sm:$0xff]
    %v3065 = vld [vmem:[#allocation11 + $0x2e8] sm:$0xff]
    %v3066 = vld [vmem:[#allocation11 + $0x2f0] sm:$0xff]
    %v3067 = vld [vmem:[#allocation11 + $0x2f8] sm:$0xff]
    %v3068 = vld [vmem:[#allocation11 + $0x300] sm:$0xff]
    %v3069 = vld [vmem:[#allocation11 + $0x308] sm:$0xff]
    %v3070 = vld [vmem:[#allocation11 + $0x310] sm:$0xff]
    %v3071 = vld [vmem:[#allocation11 + $0x318] sm:$0xff]
    %v3072 = vld [vmem:[#allocation11 + $0x320] sm:$0xff]
    %v3073 = vld [vmem:[#allocation11 + $0x328] sm:$0xff]
    %v3074 = vld [vmem:[#allocation11 + $0x330] sm:$0xff]
    %v3075 = vld [vmem:[#allocation11 + $0x338] sm:$0xff]
    %v3076 = vld [vmem:[#allocation11 + $0x340] sm:$0xff]
    %v3077 = vld [vmem:[#allocation11 + $0x348] sm:$0xff]
    %v3078 = vld [vmem:[#allocation11 + $0x350] sm:$0xff]
    %v3079 = vld [vmem:[#allocation11 + $0x358] sm:$0xff]
    %v3080 = vld [vmem:[#allocation11 + $0x360] sm:$0xff]
    %v3081 = vld [vmem:[#allocation11 + $0x368] sm:$0xff]
    %v3082 = vld [vmem:[#allocation11 + $0x370] sm:$0xff]
    %v3083 = vld [vmem:[#allocation11 + $0x378] sm:$0xff]
    %v3084 = vld [vmem:[#allocation11 + $0x380] sm:$0xff]
    %v3085 = vld [vmem:[#allocation11 + $0x388] sm:$0xff]
    %v3086 = vld [vmem:[#allocation11 + $0x390] sm:$0xff]
    %v3087 = vld [vmem:[#allocation11 + $0x398] sm:$0xff]
    %v3088 = vld [vmem:[#allocation11 + $0x3a0] sm:$0xff]
    %v3089 = vld [vmem:[#allocation11 + $0x3a8] sm:$0xff]
    %v3090 = vld [vmem:[#allocation11 + $0x3b0] sm:$0xff]
    %v3091 = vld [vmem:[#allocation11 + $0x3b8] sm:$0xff]
    %v3092 = vld [vmem:[#allocation11 + $0x3c0] sm:$0xff]
    %v3093 = vld [vmem:[#allocation11 + $0x3c8] sm:$0xff]
    %v3094 = vld [vmem:[#allocation11 + $0x3d0] sm:$0xff]
    %v3095 = vld [vmem:[#allocation11 + $0x3d8] sm:$0xff]
    %v3096 = vld [vmem:[#allocation11 + $0x3e0] sm:$0xff]
    %v3097 = vld [vmem:[#allocation11 + $0x3e8] sm:$0xff]
    %v3098 = vld [vmem:[#allocation11 + $0x3f0] sm:$0xff]
    %v3099 = vld [vmem:[#allocation11 + $0x3f8] sm:$0xff]
    %v3100 = vld [vmem:[%s9] sm:$0xff]
    %v3102 = vlaneseq
    %v3103 = vshrl.u32 %v3102, 7
    %v3104 = vsub.s32 0, %v3103
    %v3105 = vrot.slane %v3100, %v3104
    %v3106 = vlaneseq
    %v3107 = vshrl.u32 %v3106, 7
    %v3108 = vsub.s32 1, %v3107
    %v3109 = vrot.slane %v3100, %v3108
    %v3110 = vlaneseq
    %v3111 = vshrl.u32 %v3110, 7
    %v3112 = vsub.s32 2, %v3111
    %v3113 = vrot.slane %v3100, %v3112
    %v3114 = vlaneseq
    %v3115 = vshrl.u32 %v3114, 7
    %v3116 = vsub.s32 3, %v3115
    %v3117 = vrot.slane %v3100, %v3116
    %v3118 = vlaneseq
    %v3119 = vshrl.u32 %v3118, 7
    %v3120 = vsub.s32 4, %v3119
    %v3121 = vrot.slane %v3100, %v3120
    %v3122 = vlaneseq
    %v3123 = vshrl.u32 %v3122, 7
    %v3124 = vsub.s32 5, %v3123
    %v3125 = vrot.slane %v3100, %v3124
    %v3126 = vlaneseq
    %v3127 = vshrl.u32 %v3126, 7
    %v3128 = vsub.s32 6, %v3127
    %v3129 = vrot.slane %v3100, %v3128
    %v3130 = vlaneseq
    %v3131 = vshrl.u32 %v3130, 7
    %v3132 = vsub.s32 7, %v3131
    %v3133 = vrot.slane %v3100, %v3132
    %v3270 = vunpack.c.l.b16 %v2972
    %v3271 = vunpack.c.h.b16 %v2972
    %v3272 = vunpack.c.l.b16 %v2973
    %v3273 = vunpack.c.h.b16 %v2973
    %v3274 = vunpack.c.l.b16 %v2974
    %v3275 = vunpack.c.h.b16 %v2974
    %v3276 = vunpack.c.l.b16 %v2975
    %v3277 = vunpack.c.h.b16 %v2975
    %v3278 = vunpack.c.l.b16 %v2976
    %v3279 = vunpack.c.h.b16 %v2976
    %v3280 = vunpack.c.l.b16 %v2977
    %v3281 = vunpack.c.h.b16 %v2977
    %v3282 = vunpack.c.l.b16 %v2978
    %v3283 = vunpack.c.h.b16 %v2978
    %v3284 = vunpack.c.l.b16 %v2979
    %v3285 = vunpack.c.h.b16 %v2979
    %v3286 = vunpack.c.l.b16 %v2980
    %v3287 = vunpack.c.h.b16 %v2980
    %v3288 = vunpack.c.l.b16 %v2981
    %v3289 = vunpack.c.h.b16 %v2981
    %v3290 = vunpack.c.l.b16 %v2982
    %v3291 = vunpack.c.h.b16 %v2982
    %v3292 = vunpack.c.l.b16 %v2983
    %v3293 = vunpack.c.h.b16 %v2983
    %v3294 = vunpack.c.l.b16 %v2984
    %v3295 = vunpack.c.h.b16 %v2984
    %v3296 = vunpack.c.l.b16 %v2985
    %v3297 = vunpack.c.h.b16 %v2985
    %v3298 = vunpack.c.l.b16 %v2986
    %v3299 = vunpack.c.h.b16 %v2986
    %v3300 = vunpack.c.l.b16 %v2987
    %v3301 = vunpack.c.h.b16 %v2987
    %v3302 = vunpack.c.l.b16 %v2988
    %v3303 = vunpack.c.h.b16 %v2988
    %v3304 = vunpack.c.l.b16 %v2989
    %v3305 = vunpack.c.h.b16 %v2989
    %v3306 = vunpack.c.l.b16 %v2990
    %v3307 = vunpack.c.h.b16 %v2990
    %v3308 = vunpack.c.l.b16 %v2991
    %v3309 = vunpack.c.h.b16 %v2991
    %v3310 = vunpack.c.l.b16 %v2992
    %v3311 = vunpack.c.h.b16 %v2992
    %v3312 = vunpack.c.l.b16 %v2993
    %v3313 = vunpack.c.h.b16 %v2993
    %v3314 = vunpack.c.l.b16 %v2994
    %v3315 = vunpack.c.h.b16 %v2994
    %v3316 = vunpack.c.l.b16 %v2995
    %v3317 = vunpack.c.h.b16 %v2995
    %v3318 = vunpack.c.l.b16 %v2996
    %v3319 = vunpack.c.h.b16 %v2996
    %v3320 = vunpack.c.l.b16 %v2997
    %v3321 = vunpack.c.h.b16 %v2997
    %v3322 = vunpack.c.l.b16 %v2998
    %v3323 = vunpack.c.h.b16 %v2998
    %v3324 = vunpack.c.l.b16 %v2999
    %v3325 = vunpack.c.h.b16 %v2999
    %v3326 = vunpack.c.l.b16 %v3000
    %v3327 = vunpack.c.h.b16 %v3000
    %v3328 = vunpack.c.l.b16 %v3001
    %v3329 = vunpack.c.h.b16 %v3001
    %v3330 = vunpack.c.l.b16 %v3002
    %v3331 = vunpack.c.h.b16 %v3002
    %v3332 = vunpack.c.l.b16 %v3003
    %v3333 = vunpack.c.h.b16 %v3003
    %v3334 = vunpack.c.l.b16 %v3004
    %v3335 = vunpack.c.h.b16 %v3004
    %v3336 = vunpack.c.l.b16 %v3005
    %v3337 = vunpack.c.h.b16 %v3005
    %v3338 = vunpack.c.l.b16 %v3006
    %v3339 = vunpack.c.h.b16 %v3006
    %v3340 = vunpack.c.l.b16 %v3007
    %v3341 = vunpack.c.h.b16 %v3007
    %v3342 = vunpack.c.l.b16 %v3008
    %v3343 = vunpack.c.h.b16 %v3008
    %v3344 = vunpack.c.l.b16 %v3009
    %v3345 = vunpack.c.h.b16 %v3009
    %v3346 = vunpack.c.l.b16 %v3010
    %v3347 = vunpack.c.h.b16 %v3010
    %v3348 = vunpack.c.l.b16 %v3011
    %v3349 = vunpack.c.h.b16 %v3011
    %v3350 = vunpack.c.l.b16 %v3012
    %v3351 = vunpack.c.h.b16 %v3012
    %v3352 = vunpack.c.l.b16 %v3013
    %v3353 = vunpack.c.h.b16 %v3013
    %v3354 = vunpack.c.l.b16 %v3014
    %v3355 = vunpack.c.h.b16 %v3014
    %v3356 = vunpack.c.l.b16 %v3015
    %v3357 = vunpack.c.h.b16 %v3015
    %v3358 = vunpack.c.l.b16 %v3016
    %v3359 = vunpack.c.h.b16 %v3016
    %v3360 = vunpack.c.l.b16 %v3017
    %v3361 = vunpack.c.h.b16 %v3017
    %v3362 = vunpack.c.l.b16 %v3018
    %v3363 = vunpack.c.h.b16 %v3018
    %v3364 = vunpack.c.l.b16 %v3019
    %v3365 = vunpack.c.h.b16 %v3019
    %v3366 = vunpack.c.l.b16 %v3020
    %v3367 = vunpack.c.h.b16 %v3020
    %v3368 = vunpack.c.l.b16 %v3021
    %v3369 = vunpack.c.h.b16 %v3021
    %v3370 = vunpack.c.l.b16 %v3022
    %v3371 = vunpack.c.h.b16 %v3022
    %v3372 = vunpack.c.l.b16 %v3023
    %v3373 = vunpack.c.h.b16 %v3023
    %v3374 = vunpack.c.l.b16 %v3024
    %v3375 = vunpack.c.h.b16 %v3024
    %v3376 = vunpack.c.l.b16 %v3025
    %v3377 = vunpack.c.h.b16 %v3025
    %v3378 = vunpack.c.l.b16 %v3026
    %v3379 = vunpack.c.h.b16 %v3026
    %v3380 = vunpack.c.l.b16 %v3027
    %v3381 = vunpack.c.h.b16 %v3027
    %v3382 = vunpack.c.l.b16 %v3028
    %v3383 = vunpack.c.h.b16 %v3028
    %v3384 = vunpack.c.l.b16 %v3029
    %v3385 = vunpack.c.h.b16 %v3029
    %v3386 = vunpack.c.l.b16 %v3030
    %v3387 = vunpack.c.h.b16 %v3030
    %v3388 = vunpack.c.l.b16 %v3031
    %v3389 = vunpack.c.h.b16 %v3031
    %v3390 = vunpack.c.l.b16 %v3032
    %v3391 = vunpack.c.h.b16 %v3032
    %v3392 = vunpack.c.l.b16 %v3033
    %v3393 = vunpack.c.h.b16 %v3033
    %v3394 = vunpack.c.l.b16 %v3034
    %v3395 = vunpack.c.h.b16 %v3034
    %v3396 = vunpack.c.l.b16 %v3035
    %v3397 = vunpack.c.h.b16 %v3035
    %v3398 = vunpack.c.l.b16 %v3036
    %v3399 = vunpack.c.h.b16 %v3036
    %v3400 = vunpack.c.l.b16 %v3037
    %v3401 = vunpack.c.h.b16 %v3037
    %v3402 = vunpack.c.l.b16 %v3038
    %v3403 = vunpack.c.h.b16 %v3038
    %v3404 = vunpack.c.l.b16 %v3039
    %v3405 = vunpack.c.h.b16 %v3039
    %v3406 = vunpack.c.l.b16 %v3040
    %v3407 = vunpack.c.h.b16 %v3040
    %v3408 = vunpack.c.l.b16 %v3041
    %v3409 = vunpack.c.h.b16 %v3041
    %v3410 = vunpack.c.l.b16 %v3042
    %v3411 = vunpack.c.h.b16 %v3042
    %v3412 = vunpack.c.l.b16 %v3043
    %v3413 = vunpack.c.h.b16 %v3043
    %v3414 = vunpack.c.l.b16 %v3044
    %v3415 = vunpack.c.h.b16 %v3044
    %v3416 = vunpack.c.l.b16 %v3045
    %v3417 = vunpack.c.h.b16 %v3045
    %v3418 = vunpack.c.l.b16 %v3046
    %v3419 = vunpack.c.h.b16 %v3046
    %v3420 = vunpack.c.l.b16 %v3047
    %v3421 = vunpack.c.h.b16 %v3047
    %v3422 = vunpack.c.l.b16 %v3048
    %v3423 = vunpack.c.h.b16 %v3048
    %v3424 = vunpack.c.l.b16 %v3049
    %v3425 = vunpack.c.h.b16 %v3049
    %v3426 = vunpack.c.l.b16 %v3050
    %v3427 = vunpack.c.h.b16 %v3050
    %v3428 = vunpack.c.l.b16 %v3051
    %v3429 = vunpack.c.h.b16 %v3051
    %v3430 = vunpack.c.l.b16 %v3052
    %v3431 = vunpack.c.h.b16 %v3052
    %v3432 = vunpack.c.l.b16 %v3053
    %v3433 = vunpack.c.h.b16 %v3053
    %v3434 = vunpack.c.l.b16 %v3054
    %v3435 = vunpack.c.h.b16 %v3054
    %v3436 = vunpack.c.l.b16 %v3055
    %v3437 = vunpack.c.h.b16 %v3055
    %v3438 = vunpack.c.l.b16 %v3056
    %v3439 = vunpack.c.h.b16 %v3056
    %v3440 = vunpack.c.l.b16 %v3057
    %v3441 = vunpack.c.h.b16 %v3057
    %v3442 = vunpack.c.l.b16 %v3058
    %v3443 = vunpack.c.h.b16 %v3058
    %v3444 = vunpack.c.l.b16 %v3059
    %v3445 = vunpack.c.h.b16 %v3059
    %v3446 = vunpack.c.l.b16 %v3060
    %v3447 = vunpack.c.h.b16 %v3060
    %v3448 = vunpack.c.l.b16 %v3061
    %v3449 = vunpack.c.h.b16 %v3061
    %v3450 = vunpack.c.l.b16 %v3062
    %v3451 = vunpack.c.h.b16 %v3062
    %v3452 = vunpack.c.l.b16 %v3063
    %v3453 = vunpack.c.h.b16 %v3063
    %v3454 = vunpack.c.l.b16 %v3064
    %v3455 = vunpack.c.h.b16 %v3064
    %v3456 = vunpack.c.l.b16 %v3065
    %v3457 = vunpack.c.h.b16 %v3065
    %v3458 = vunpack.c.l.b16 %v3066
    %v3459 = vunpack.c.h.b16 %v3066
    %v3460 = vunpack.c.l.b16 %v3067
    %v3461 = vunpack.c.h.b16 %v3067
    %v3462 = vunpack.c.l.b16 %v3068
    %v3463 = vunpack.c.h.b16 %v3068
    %v3464 = vunpack.c.l.b16 %v3069
    %v3465 = vunpack.c.h.b16 %v3069
    %v3466 = vunpack.c.l.b16 %v3070
    %v3467 = vunpack.c.h.b16 %v3070
    %v3468 = vunpack.c.l.b16 %v3071
    %v3469 = vunpack.c.h.b16 %v3071
    %v3470 = vunpack.c.l.b16 %v3072
    %v3471 = vunpack.c.h.b16 %v3072
    %v3472 = vunpack.c.l.b16 %v3073
    %v3473 = vunpack.c.h.b16 %v3073
    %v3474 = vunpack.c.l.b16 %v3074
    %v3475 = vunpack.c.h.b16 %v3074
    %v3476 = vunpack.c.l.b16 %v3075
    %v3477 = vunpack.c.h.b16 %v3075
    %v3478 = vunpack.c.l.b16 %v3076
    %v3479 = vunpack.c.h.b16 %v3076
    %v3480 = vunpack.c.l.b16 %v3077
    %v3481 = vunpack.c.h.b16 %v3077
    %v3482 = vunpack.c.l.b16 %v3078
    %v3483 = vunpack.c.h.b16 %v3078
    %v3484 = vunpack.c.l.b16 %v3079
    %v3485 = vunpack.c.h.b16 %v3079
    %v3486 = vunpack.c.l.b16 %v3080
    %v3487 = vunpack.c.h.b16 %v3080
    %v3488 = vunpack.c.l.b16 %v3081
    %v3489 = vunpack.c.h.b16 %v3081
    %v3490 = vunpack.c.l.b16 %v3082
    %v3491 = vunpack.c.h.b16 %v3082
    %v3492 = vunpack.c.l.b16 %v3083
    %v3493 = vunpack.c.h.b16 %v3083
    %v3494 = vunpack.c.l.b16 %v3084
    %v3495 = vunpack.c.h.b16 %v3084
    %v3496 = vunpack.c.l.b16 %v3085
    %v3497 = vunpack.c.h.b16 %v3085
    %v3498 = vunpack.c.l.b16 %v3086
    %v3499 = vunpack.c.h.b16 %v3086
    %v3500 = vunpack.c.l.b16 %v3087
    %v3501 = vunpack.c.h.b16 %v3087
    %v3502 = vunpack.c.l.b16 %v3088
    %v3503 = vunpack.c.h.b16 %v3088
    %v3504 = vunpack.c.l.b16 %v3089
    %v3505 = vunpack.c.h.b16 %v3089
    %v3506 = vunpack.c.l.b16 %v3090
    %v3507 = vunpack.c.h.b16 %v3090
    %v3508 = vunpack.c.l.b16 %v3091
    %v3509 = vunpack.c.h.b16 %v3091
    %v3510 = vunpack.c.l.b16 %v3092
    %v3511 = vunpack.c.h.b16 %v3092
    %v3512 = vunpack.c.l.b16 %v3093
    %v3513 = vunpack.c.h.b16 %v3093
    %v3514 = vunpack.c.l.b16 %v3094
    %v3515 = vunpack.c.h.b16 %v3094
    %v3516 = vunpack.c.l.b16 %v3095
    %v3517 = vunpack.c.h.b16 %v3095
    %v3518 = vunpack.c.l.b16 %v3096
    %v3519 = vunpack.c.h.b16 %v3096
    %v3520 = vunpack.c.l.b16 %v3097
    %v3521 = vunpack.c.h.b16 %v3097
    %v3522 = vunpack.c.l.b16 %v3098
    %v3523 = vunpack.c.h.b16 %v3098
    %v3524 = vunpack.c.l.b16 %v3099
    %v3525 = vunpack.c.h.b16 %v3099
    %v3526 = vpack.c.b16 %v3278, %v3270
    %v3527 = vpack.c.b16 %v3279, %v3271
    %v3528 = vpack.c.b16 %v3280, %v3272
    %v3529 = vpack.c.b16 %v3281, %v3273
    %v3530 = vpack.c.b16 %v3282, %v3274
    %v3531 = vpack.c.b16 %v3283, %v3275
    %v3532 = vpack.c.b16 %v3284, %v3276
    %v3533 = vpack.c.b16 %v3285, %v3277
    %v3534 = vpack.c.b16 %v3294, %v3286
    %v3535 = vpack.c.b16 %v3295, %v3287
    %v3536 = vpack.c.b16 %v3296, %v3288
    %v3537 = vpack.c.b16 %v3297, %v3289
    %v3538 = vpack.c.b16 %v3298, %v3290
    %v3539 = vpack.c.b16 %v3299, %v3291
    %v3540 = vpack.c.b16 %v3300, %v3292
    %v3541 = vpack.c.b16 %v3301, %v3293
    %v3542 = vpack.c.b16 %v3310, %v3302
    %v3543 = vpack.c.b16 %v3311, %v3303
    %v3544 = vpack.c.b16 %v3312, %v3304
    %v3545 = vpack.c.b16 %v3313, %v3305
    %v3546 = vpack.c.b16 %v3314, %v3306
    %v3547 = vpack.c.b16 %v3315, %v3307
    %v3548 = vpack.c.b16 %v3316, %v3308
    %v3549 = vpack.c.b16 %v3317, %v3309
    %v3550 = vpack.c.b16 %v3326, %v3318
    %v3551 = vpack.c.b16 %v3327, %v3319
    %v3552 = vpack.c.b16 %v3328, %v3320
    %v3553 = vpack.c.b16 %v3329, %v3321
    %v3554 = vpack.c.b16 %v3330, %v3322
    %v3555 = vpack.c.b16 %v3331, %v3323
    %v3556 = vpack.c.b16 %v3332, %v3324
    %v3557 = vpack.c.b16 %v3333, %v3325
    %v3558 = vpack.c.b16 %v3342, %v3334
    %v3559 = vpack.c.b16 %v3343, %v3335
    %v3560 = vpack.c.b16 %v3344, %v3336
    %v3561 = vpack.c.b16 %v3345, %v3337
    %v3562 = vpack.c.b16 %v3346, %v3338
    %v3563 = vpack.c.b16 %v3347, %v3339
    %v3564 = vpack.c.b16 %v3348, %v3340
    %v3565 = vpack.c.b16 %v3349, %v3341
    %v3566 = vpack.c.b16 %v3358, %v3350
    %v3567 = vpack.c.b16 %v3359, %v3351
    %v3568 = vpack.c.b16 %v3360, %v3352
    %v3569 = vpack.c.b16 %v3361, %v3353
    %v3570 = vpack.c.b16 %v3362, %v3354
    %v3571 = vpack.c.b16 %v3363, %v3355
    %v3572 = vpack.c.b16 %v3364, %v3356
    %v3573 = vpack.c.b16 %v3365, %v3357
    %v3574 = vpack.c.b16 %v3374, %v3366
    %v3575 = vpack.c.b16 %v3375, %v3367
    %v3576 = vpack.c.b16 %v3376, %v3368
    %v3577 = vpack.c.b16 %v3377, %v3369
    %v3578 = vpack.c.b16 %v3378, %v3370
    %v3579 = vpack.c.b16 %v3379, %v3371
    %v3580 = vpack.c.b16 %v3380, %v3372
    %v3581 = vpack.c.b16 %v3381, %v3373
    %v3582 = vpack.c.b16 %v3390, %v3382
    %v3583 = vpack.c.b16 %v3391, %v3383
    %v3584 = vpack.c.b16 %v3392, %v3384
    %v3585 = vpack.c.b16 %v3393, %v3385
    %v3586 = vpack.c.b16 %v3394, %v3386
    %v3587 = vpack.c.b16 %v3395, %v3387
    %v3588 = vpack.c.b16 %v3396, %v3388
    %v3589 = vpack.c.b16 %v3397, %v3389
    %v3590 = vpack.c.b16 %v3406, %v3398
    %v3591 = vpack.c.b16 %v3407, %v3399
    %v3592 = vpack.c.b16 %v3408, %v3400
    %v3593 = vpack.c.b16 %v3409, %v3401
    %v3594 = vpack.c.b16 %v3410, %v3402
    %v3595 = vpack.c.b16 %v3411, %v3403
    %v3596 = vpack.c.b16 %v3412, %v3404
    %v3597 = vpack.c.b16 %v3413, %v3405
    %v3598 = vpack.c.b16 %v3422, %v3414
    %v3599 = vpack.c.b16 %v3423, %v3415
    %v3600 = vpack.c.b16 %v3424, %v3416
    %v3601 = vpack.c.b16 %v3425, %v3417
    %v3602 = vpack.c.b16 %v3426, %v3418
    %v3603 = vpack.c.b16 %v3427, %v3419
    %v3604 = vpack.c.b16 %v3428, %v3420
    %v3605 = vpack.c.b16 %v3429, %v3421
    %v3606 = vpack.c.b16 %v3438, %v3430
    %v3607 = vpack.c.b16 %v3439, %v3431
    %v3608 = vpack.c.b16 %v3440, %v3432
    %v3609 = vpack.c.b16 %v3441, %v3433
    %v3610 = vpack.c.b16 %v3442, %v3434
    %v3611 = vpack.c.b16 %v3443, %v3435
    %v3612 = vpack.c.b16 %v3444, %v3436
    %v3613 = vpack.c.b16 %v3445, %v3437
    %v3614 = vpack.c.b16 %v3454, %v3446
    %v3615 = vpack.c.b16 %v3455, %v3447
    %v3616 = vpack.c.b16 %v3456, %v3448
    %v3617 = vpack.c.b16 %v3457, %v3449
    %v3618 = vpack.c.b16 %v3458, %v3450
    %v3619 = vpack.c.b16 %v3459, %v3451
    %v3620 = vpack.c.b16 %v3460, %v3452
    %v3621 = vpack.c.b16 %v3461, %v3453
    %v3622 = vpack.c.b16 %v3470, %v3462
    %v3623 = vpack.c.b16 %v3471, %v3463
    %v3624 = vpack.c.b16 %v3472, %v3464
    %v3625 = vpack.c.b16 %v3473, %v3465
    %v3626 = vpack.c.b16 %v3474, %v3466
    %v3627 = vpack.c.b16 %v3475, %v3467
    %v3628 = vpack.c.b16 %v3476, %v3468
    %v3629 = vpack.c.b16 %v3477, %v3469
    %v3630 = vpack.c.b16 %v3486, %v3478
    %v3631 = vpack.c.b16 %v3487, %v3479
    %v3632 = vpack.c.b16 %v3488, %v3480
    %v3633 = vpack.c.b16 %v3489, %v3481
    %v3634 = vpack.c.b16 %v3490, %v3482
    %v3635 = vpack.c.b16 %v3491, %v3483
    %v3636 = vpack.c.b16 %v3492, %v3484
    %v3637 = vpack.c.b16 %v3493, %v3485
    %v3638 = vpack.c.b16 %v3502, %v3494
    %v3639 = vpack.c.b16 %v3503, %v3495
    %v3640 = vpack.c.b16 %v3504, %v3496
    %v3641 = vpack.c.b16 %v3505, %v3497
    %v3642 = vpack.c.b16 %v3506, %v3498
    %v3643 = vpack.c.b16 %v3507, %v3499
    %v3644 = vpack.c.b16 %v3508, %v3500
    %v3645 = vpack.c.b16 %v3509, %v3501
    %v3646 = vpack.c.b16 %v3518, %v3510
    %v3647 = vpack.c.b16 %v3519, %v3511
    %v3648 = vpack.c.b16 %v3520, %v3512
    %v3649 = vpack.c.b16 %v3521, %v3513
    %v3650 = vpack.c.b16 %v3522, %v3514
    %v3651 = vpack.c.b16 %v3523, %v3515
    %v3652 = vpack.c.b16 %v3524, %v3516
    %v3653 = vpack.c.b16 %v3525, %v3517
    %3782 = vmatprep.subr.bf16.mxu0 %v3527
    %3783 = vmatpush1.bf16.msra.mxu0 %v3526
    %3784 = vmatprep.subr.bf16.mxu0 %v3535
    %3785 = vmatpush1.bf16.msra.mxu0 %v3534
    %3786 = vmatprep.subr.bf16.mxu0 %v3543
    %3787 = vmatpush1.bf16.msra.mxu0 %v3542
    %3788 = vmatprep.subr.bf16.mxu0 %v3551
    %3789 = vmatpush1.bf16.msra.mxu0 %v3550
    %3790 = vmatprep.subr.bf16.mxu0 %v3559
    %3791 = vmatpush1.bf16.msra.mxu0 %v3558
    %3792 = vmatprep.subr.bf16.mxu0 %v3567
    %3793 = vmatpush1.bf16.msra.mxu0 %v3566
    %3794 = vmatprep.subr.bf16.mxu0 %v3575
    %3795 = vmatpush1.bf16.msra.mxu0 %v3574
    %3796 = vmatprep.subr.bf16.mxu0 %v3583
    %3797 = vmatpush1.bf16.msra.mxu0 %v3582
    %3798 = vmatprep.subr.bf16.mxu0 %v3591
    %3799 = vmatpush1.bf16.msra.mxu0 %v3590
    %3800 = vmatprep.subr.bf16.mxu0 %v3599
    %3801 = vmatpush1.bf16.msra.mxu0 %v3598
    %3802 = vmatprep.subr.bf16.mxu0 %v3607
    %3803 = vmatpush1.bf16.msra.mxu0 %v3606
    %3804 = vmatprep.subr.bf16.mxu0 %v3615
    %3805 = vmatpush1.bf16.msra.mxu0 %v3614
    %3806 = vmatprep.subr.bf16.mxu0 %v3623
    %3807 = vmatpush1.bf16.msra.mxu0 %v3622
    %3808 = vmatprep.subr.bf16.mxu0 %v3631
    %3809 = vmatpush1.bf16.msra.mxu0 %v3630
    %3810 = vmatprep.subr.bf16.mxu0 %v3639
    %3811 = vmatpush1.bf16.msra.mxu0 %v3638
    %3812 = vmatprep.subr.bf16.mxu0 %v3647
    %3813 = vmatpush1.bf16.msra.mxu0 %v3646
    %3814 = vmatprep.mubr.bf16.mxu0 %v2971
    %3815 = vmatmul.mubr.bf16.gmra.mrb[0].mxu0 %v2970
    %v3816 = vpop.f32.mrb[0].mxu0
    %v3817 = vadd.f32 %v3105, %v3816
    %v3818 = vpop.f32.mrb[0].mxu0
    %v3819 = vadd.f32 %v3109, %v3818
    %v3820 = vpop.f32.mrb[0].mxu0
    %v3821 = vpop.f32.mrb[0].mxu0
    %3822 = vdwg.mxu0
    %3823 = vmatprep.subr.bf16.mxu0 %v3529
    %3824 = vmatpush1.bf16.msra.mxu0 %v3528
    %3825 = vmatprep.subr.bf16.mxu0 %v3537
    %3826 = vmatpush1.bf16.msra.mxu0 %v3536
    %3827 = vmatprep.subr.bf16.mxu0 %v3545
    %3828 = vmatpush1.bf16.msra.mxu0 %v3544
    %3829 = vmatprep.subr.bf16.mxu0 %v3553
    %3830 = vmatpush1.bf16.msra.mxu0 %v3552
    %3831 = vmatprep.subr.bf16.mxu0 %v3561
    %3832 = vmatpush1.bf16.msra.mxu0 %v3560
    %3833 = vmatprep.subr.bf16.mxu0 %v3569
    %3834 = vmatpush1.bf16.msra.mxu0 %v3568
    %3835 = vmatprep.subr.bf16.mxu0 %v3577
    %3836 = vmatpush1.bf16.msra.mxu0 %v3576
    %3837 = vmatprep.subr.bf16.mxu0 %v3585
    %3838 = vmatpush1.bf16.msra.mxu0 %v3584
    %3839 = vmatprep.subr.bf16.mxu0 %v3593
    %3840 = vmatpush1.bf16.msra.mxu0 %v3592
    %3841 = vmatprep.subr.bf16.mxu0 %v3601
    %3842 = vmatpush1.bf16.msra.mxu0 %v3600
    %3843 = vmatprep.subr.bf16.mxu0 %v3609
    %3844 = vmatpush1.bf16.msra.mxu0 %v3608
    %3845 = vmatprep.subr.bf16.mxu0 %v3617
    %3846 = vmatpush1.bf16.msra.mxu0 %v3616
    %3847 = vmatprep.subr.bf16.mxu0 %v3625
    %3848 = vmatpush1.bf16.msra.mxu0 %v3624
    %3849 = vmatprep.subr.bf16.mxu0 %v3633
    %3850 = vmatpush1.bf16.msra.mxu0 %v3632
    %3851 = vmatprep.subr.bf16.mxu0 %v3641
    %3852 = vmatpush1.bf16.msra.mxu0 %v3640
    %3853 = vmatprep.subr.bf16.mxu0 %v3649
    %3854 = vmatpush1.bf16.msra.mxu0 %v3648
    %3855 = vmatprep.mubr.bf16.mxu0 %v2971
    %3856 = vmatmul.mubr.bf16.gmra.mrb[0].mxu0 %v2970
    %v3857 = vpop.f32.mrb[0].mxu0
    %v3858 = vadd.f32 %v3113, %v3857
    %v3859 = vpop.f32.mrb[0].mxu0
    %v3860 = vadd.f32 %v3117, %v3859
    %v3861 = vpop.f32.mrb[0].mxu0
    %v3862 = vpop.f32.mrb[0].mxu0
    %3863 = vdwg.mxu0
    %3864 = vmatprep.subr.bf16.mxu0 %v3531
    %3865 = vmatpush1.bf16.msra.mxu0 %v3530
    %3866 = vmatprep.subr.bf16.mxu0 %v3539
    %3867 = vmatpush1.bf16.msra.mxu0 %v3538
    %3868 = vmatprep.subr.bf16.mxu0 %v3547
    %3869 = vmatpush1.bf16.msra.mxu0 %v3546
    %3870 = vmatprep.subr.bf16.mxu0 %v3555
    %3871 = vmatpush1.bf16.msra.mxu0 %v3554
    %3872 = vmatprep.subr.bf16.mxu0 %v3563
    %3873 = vmatpush1.bf16.msra.mxu0 %v3562
    %3874 = vmatprep.subr.bf16.mxu0 %v3571
    %3875 = vmatpush1.bf16.msra.mxu0 %v3570
    %3876 = vmatprep.subr.bf16.mxu0 %v3579
    %3877 = vmatpush1.bf16.msra.mxu0 %v3578
    %3878 = vmatprep.subr.bf16.mxu0 %v3587
    %3879 = vmatpush1.bf16.msra.mxu0 %v3586
    %3880 = vmatprep.subr.bf16.mxu0 %v3595
    %3881 = vmatpush1.bf16.msra.mxu0 %v3594
    %3882 = vmatprep.subr.bf16.mxu0 %v3603
    %3883 = vmatpush1.bf16.msra.mxu0 %v3602
    %3884 = vmatprep.subr.bf16.mxu0 %v3611
    %3885 = vmatpush1.bf16.msra.mxu0 %v3610
    %3886 = vmatprep.subr.bf16.mxu0 %v3619
    %3887 = vmatpush1.bf16.msra.mxu0 %v3618
    %3888 = vmatprep.subr.bf16.mxu0 %v3627
    %3889 = vmatpush1.bf16.msra.mxu0 %v3626
    %3890 = vmatprep.subr.bf16.mxu0 %v3635
    %3891 = vmatpush1.bf16.msra.mxu0 %v3634
    %3892 = vmatprep.subr.bf16.mxu0 %v3643
    %3893 = vmatpush1.bf16.msra.mxu0 %v3642
    %3894 = vmatprep.subr.bf16.mxu0 %v3651
    %3895 = vmatpush1.bf16.msra.mxu0 %v3650
    %3896 = vmatprep.mubr.bf16.mxu0 %v2971
    %3897 = vmatmul.mubr.bf16.gmra.mrb[0].mxu0 %v2970
    %v3898 = vpop.f32.mrb[0].mxu0
    %v3899 = vadd.f32 %v3121, %v3898
    %v3900 = vpop.f32.mrb[0].mxu0
    %v3901 = vadd.f32 %v3125, %v3900
    %v3902 = vpop.f32.mrb[0].mxu0
    %v3903 = vpop.f32.mrb[0].mxu0
    %3904 = vdwg.mxu0
    %3905 = vmatprep.subr.bf16.mxu0 %v3533
    %3906 = vmatpush1.bf16.msra.mxu0 %v3532
    %3907 = vmatprep.subr.bf16.mxu0 %v3541
    %3908 = vmatpush1.bf16.msra.mxu0 %v3540
    %3909 = vmatprep.subr.bf16.mxu0 %v3549
    %3910 = vmatpush1.bf16.msra.mxu0 %v3548
    %3911 = vmatprep.subr.bf16.mxu0 %v3557
    %3912 = vmatpush1.bf16.msra.mxu0 %v3556
    %3913 = vmatprep.subr.bf16.mxu0 %v3565
    %3914 = vmatpush1.bf16.msra.mxu0 %v3564
    %3915 = vmatprep.subr.bf16.mxu0 %v3573
    %3916 = vmatpush1.bf16.msra.mxu0 %v3572
    %3917 = vmatprep.subr.bf16.mxu0 %v3581
    %3918 = vmatpush1.bf16.msra.mxu0 %v3580
    %3919 = vmatprep.subr.bf16.mxu0 %v3589
    %3920 = vmatpush1.bf16.msra.mxu0 %v3588
    %3921 = vmatprep.subr.bf16.mxu0 %v3597
    %3922 = vmatpush1.bf16.msra.mxu0 %v3596
    %3923 = vmatprep.subr.bf16.mxu0 %v3605
    %3924 = vmatpush1.bf16.msra.mxu0 %v3604
    %3925 = vmatprep.subr.bf16.mxu0 %v3613
    %3926 = vmatpush1.bf16.msra.mxu0 %v3612
    %3927 = vmatprep.subr.bf16.mxu0 %v3621
    %3928 = vmatpush1.bf16.msra.mxu0 %v3620
    %3929 = vmatprep.subr.bf16.mxu0 %v3629
    %3930 = vmatpush1.bf16.msra.mxu0 %v3628
    %3931 = vmatprep.subr.bf16.mxu0 %v3637
    %3932 = vmatpush1.bf16.msra.mxu0 %v3636
    %3933 = vmatprep.subr.bf16.mxu0 %v3645
    %3934 = vmatpush1.bf16.msra.mxu0 %v3644
    %3935 = vmatprep.subr.bf16.mxu0 %v3653
    %3936 = vmatpush1.bf16.msra.mxu0 %v3652
    %3937 = vmatprep.mubr.bf16.mxu0 %v2971
    %3938 = vmatmul.mubr.bf16.gmra.mrb[0].mxu0 %v2970
    %v3939 = vpop.f32.mrb[0].mxu0
    %v3940 = vadd.f32 %v3129, %v3939
    %v3941 = vpop.f32.mrb[0].mxu0
    %v3942 = vadd.f32 %v3133, %v3941
    %v3943 = vpop.f32.mrb[0].mxu0
    %v3944 = vpop.f32.mrb[0].mxu0
    %3945 = vdwg.mxu0
    %v4074 = vunpack.c.l.b16 %v2842
    %v4075 = vunpack.c.h.b16 %v2842
    %v4076 = vunpack.c.l.b16 %v2843
    %v4077 = vunpack.c.h.b16 %v2843
    %v4078 = vunpack.c.l.b16 %v2844
    %v4079 = vunpack.c.h.b16 %v2844
    %v4080 = vunpack.c.l.b16 %v2845
    %v4081 = vunpack.c.h.b16 %v2845
    %v4082 = vunpack.c.l.b16 %v2846
    %v4083 = vunpack.c.h.b16 %v2846
    %v4084 = vunpack.c.l.b16 %v2847
    %v4085 = vunpack.c.h.b16 %v2847
    %v4086 = vunpack.c.l.b16 %v2848
    %v4087 = vunpack.c.h.b16 %v2848
    %v4088 = vunpack.c.l.b16 %v2849
    %v4089 = vunpack.c.h.b16 %v2849
    %v4090 = vunpack.c.l.b16 %v2850
    %v4091 = vunpack.c.h.b16 %v2850
    %v4092 = vunpack.c.l.b16 %v2851
    %v4093 = vunpack.c.h.b16 %v2851
    %v4094 = vunpack.c.l.b16 %v2852
    %v4095 = vunpack.c.h.b16 %v2852
    %v4096 = vunpack.c.l.b16 %v2853
    %v4097 = vunpack.c.h.b16 %v2853
    %v4098 = vunpack.c.l.b16 %v2854
    %v4099 = vunpack.c.h.b16 %v2854
    %v4100 = vunpack.c.l.b16 %v2855
    %v4101 = vunpack.c.h.b16 %v2855
    %v4102 = vunpack.c.l.b16 %v2856
    %v4103 = vunpack.c.h.b16 %v2856
    %v4104 = vunpack.c.l.b16 %v2857
    %v4105 = vunpack.c.h.b16 %v2857
    %v4106 = vunpack.c.l.b16 %v2858
    %v4107 = vunpack.c.h.b16 %v2858
    %v4108 = vunpack.c.l.b16 %v2859
    %v4109 = vunpack.c.h.b16 %v2859
    %v4110 = vunpack.c.l.b16 %v2860
    %v4111 = vunpack.c.h.b16 %v2860
    %v4112 = vunpack.c.l.b16 %v2861
    %v4113 = vunpack.c.h.b16 %v2861
    %v4114 = vunpack.c.l.b16 %v2862
    %v4115 = vunpack.c.h.b16 %v2862
    %v4116 = vunpack.c.l.b16 %v2863
    %v4117 = vunpack.c.h.b16 %v2863
    %v4118 = vunpack.c.l.b16 %v2864
    %v4119 = vunpack.c.h.b16 %v2864
    %v4120 = vunpack.c.l.b16 %v2865
    %v4121 = vunpack.c.h.b16 %v2865
    %v4122 = vunpack.c.l.b16 %v2866
    %v4123 = vunpack.c.h.b16 %v2866
    %v4124 = vunpack.c.l.b16 %v2867
    %v4125 = vunpack.c.h.b16 %v2867
    %v4126 = vunpack.c.l.b16 %v2868
    %v4127 = vunpack.c.h.b16 %v2868
    %v4128 = vunpack.c.l.b16 %v2869
    %v4129 = vunpack.c.h.b16 %v2869
    %v4130 = vunpack.c.l.b16 %v2870
    %v4131 = vunpack.c.h.b16 %v2870
    %v4132 = vunpack.c.l.b16 %v2871
    %v4133 = vunpack.c.h.b16 %v2871
    %v4134 = vunpack.c.l.b16 %v2872
    %v4135 = vunpack.c.h.b16 %v2872
    %v4136 = vunpack.c.l.b16 %v2873
    %v4137 = vunpack.c.h.b16 %v2873
    %v4138 = vunpack.c.l.b16 %v2874
    %v4139 = vunpack.c.h.b16 %v2874
    %v4140 = vunpack.c.l.b16 %v2875
    %v4141 = vunpack.c.h.b16 %v2875
    %v4142 = vunpack.c.l.b16 %v2876
    %v4143 = vunpack.c.h.b16 %v2876
    %v4144 = vunpack.c.l.b16 %v2877
    %v4145 = vunpack.c.h.b16 %v2877
    %v4146 = vunpack.c.l.b16 %v2878
    %v4147 = vunpack.c.h.b16 %v2878
    %v4148 = vunpack.c.l.b16 %v2879
    %v4149 = vunpack.c.h.b16 %v2879
    %v4150 = vunpack.c.l.b16 %v2880
    %v4151 = vunpack.c.h.b16 %v2880
    %v4152 = vunpack.c.l.b16 %v2881
    %v4153 = vunpack.c.h.b16 %v2881
    %v4154 = vunpack.c.l.b16 %v2882
    %v4155 = vunpack.c.h.b16 %v2882
    %v4156 = vunpack.c.l.b16 %v2883
    %v4157 = vunpack.c.h.b16 %v2883
    %v4158 = vunpack.c.l.b16 %v2884
    %v4159 = vunpack.c.h.b16 %v2884
    %v4160 = vunpack.c.l.b16 %v2885
    %v4161 = vunpack.c.h.b16 %v2885
    %v4162 = vunpack.c.l.b16 %v2886
    %v4163 = vunpack.c.h.b16 %v2886
    %v4164 = vunpack.c.l.b16 %v2887
    %v4165 = vunpack.c.h.b16 %v2887
    %v4166 = vunpack.c.l.b16 %v2888
    %v4167 = vunpack.c.h.b16 %v2888
    %v4168 = vunpack.c.l.b16 %v2889
    %v4169 = vunpack.c.h.b16 %v2889
    %v4170 = vunpack.c.l.b16 %v2890
    %v4171 = vunpack.c.h.b16 %v2890
    %v4172 = vunpack.c.l.b16 %v2891
    %v4173 = vunpack.c.h.b16 %v2891
    %v4174 = vunpack.c.l.b16 %v2892
    %v4175 = vunpack.c.h.b16 %v2892
    %v4176 = vunpack.c.l.b16 %v2893
    %v4177 = vunpack.c.h.b16 %v2893
    %v4178 = vunpack.c.l.b16 %v2894
    %v4179 = vunpack.c.h.b16 %v2894
    %v4180 = vunpack.c.l.b16 %v2895
    %v4181 = vunpack.c.h.b16 %v2895
    %v4182 = vunpack.c.l.b16 %v2896
    %v4183 = vunpack.c.h.b16 %v2896
    %v4184 = vunpack.c.l.b16 %v2897
    %v4185 = vunpack.c.h.b16 %v2897
    %v4186 = vunpack.c.l.b16 %v2898
    %v4187 = vunpack.c.h.b16 %v2898
    %v4188 = vunpack.c.l.b16 %v2899
    %v4189 = vunpack.c.h.b16 %v2899
    %v4190 = vunpack.c.l.b16 %v2900
    %v4191 = vunpack.c.h.b16 %v2900
    %v4192 = vunpack.c.l.b16 %v2901
    %v4193 = vunpack.c.h.b16 %v2901
    %v4194 = vunpack.c.l.b16 %v2902
    %v4195 = vunpack.c.h.b16 %v2902
    %v4196 = vunpack.c.l.b16 %v2903
    %v4197 = vunpack.c.h.b16 %v2903
    %v4198 = vunpack.c.l.b16 %v2904
    %v4199 = vunpack.c.h.b16 %v2904
    %v4200 = vunpack.c.l.b16 %v2905
    %v4201 = vunpack.c.h.b16 %v2905
    %v4202 = vunpack.c.l.b16 %v2906
    %v4203 = vunpack.c.h.b16 %v2906
    %v4204 = vunpack.c.l.b16 %v2907
    %v4205 = vunpack.c.h.b16 %v2907
    %v4206 = vunpack.c.l.b16 %v2908
    %v4207 = vunpack.c.h.b16 %v2908
    %v4208 = vunpack.c.l.b16 %v2909
    %v4209 = vunpack.c.h.b16 %v2909
    %v4210 = vunpack.c.l.b16 %v2910
    %v4211 = vunpack.c.h.b16 %v2910
    %v4212 = vunpack.c.l.b16 %v2911
    %v4213 = vunpack.c.h.b16 %v2911
    %v4214 = vunpack.c.l.b16 %v2912
    %v4215 = vunpack.c.h.b16 %v2912
    %v4216 = vunpack.c.l.b16 %v2913
    %v4217 = vunpack.c.h.b16 %v2913
    %v4218 = vunpack.c.l.b16 %v2914
    %v4219 = vunpack.c.h.b16 %v2914
    %v4220 = vunpack.c.l.b16 %v2915
    %v4221 = vunpack.c.h.b16 %v2915
    %v4222 = vunpack.c.l.b16 %v2916
    %v4223 = vunpack.c.h.b16 %v2916
    %v4224 = vunpack.c.l.b16 %v2917
    %v4225 = vunpack.c.h.b16 %v2917
    %v4226 = vunpack.c.l.b16 %v2918
    %v4227 = vunpack.c.h.b16 %v2918
    %v4228 = vunpack.c.l.b16 %v2919
    %v4229 = vunpack.c.h.b16 %v2919
    %v4230 = vunpack.c.l.b16 %v2920
    %v4231 = vunpack.c.h.b16 %v2920
    %v4232 = vunpack.c.l.b16 %v2921
    %v4233 = vunpack.c.h.b16 %v2921
    %v4234 = vunpack.c.l.b16 %v2922
    %v4235 = vunpack.c.h.b16 %v2922
    %v4236 = vunpack.c.l.b16 %v2923
    %v4237 = vunpack.c.h.b16 %v2923
    %v4238 = vunpack.c.l.b16 %v2924
    %v4239 = vunpack.c.h.b16 %v2924
    %v4240 = vunpack.c.l.b16 %v2925
    %v4241 = vunpack.c.h.b16 %v2925
    %v4242 = vunpack.c.l.b16 %v2926
    %v4243 = vunpack.c.h.b16 %v2926
    %v4244 = vunpack.c.l.b16 %v2927
    %v4245 = vunpack.c.h.b16 %v2927
    %v4246 = vunpack.c.l.b16 %v2928
    %v4247 = vunpack.c.h.b16 %v2928
    %v4248 = vunpack.c.l.b16 %v2929
    %v4249 = vunpack.c.h.b16 %v2929
    %v4250 = vunpack.c.l.b16 %v2930
    %v4251 = vunpack.c.h.b16 %v2930
    %v4252 = vunpack.c.l.b16 %v2931
    %v4253 = vunpack.c.h.b16 %v2931
    %v4254 = vunpack.c.l.b16 %v2932
    %v4255 = vunpack.c.h.b16 %v2932
    %v4256 = vunpack.c.l.b16 %v2933
    %v4257 = vunpack.c.h.b16 %v2933
    %v4258 = vunpack.c.l.b16 %v2934
    %v4259 = vunpack.c.h.b16 %v2934
    %v4260 = vunpack.c.l.b16 %v2935
    %v4261 = vunpack.c.h.b16 %v2935
    %v4262 = vunpack.c.l.b16 %v2936
    %v4263 = vunpack.c.h.b16 %v2936
    %v4264 = vunpack.c.l.b16 %v2937
    %v4265 = vunpack.c.h.b16 %v2937
    %v4266 = vunpack.c.l.b16 %v2938
    %v4267 = vunpack.c.h.b16 %v2938
    %v4268 = vunpack.c.l.b16 %v2939
    %v4269 = vunpack.c.h.b16 %v2939
    %v4270 = vunpack.c.l.b16 %v2940
    %v4271 = vunpack.c.h.b16 %v2940
    %v4272 = vunpack.c.l.b16 %v2941
    %v4273 = vunpack.c.h.b16 %v2941
    %v4274 = vunpack.c.l.b16 %v2942
    %v4275 = vunpack.c.h.b16 %v2942
    %v4276 = vunpack.c.l.b16 %v2943
    %v4277 = vunpack.c.h.b16 %v2943
    %v4278 = vunpack.c.l.b16 %v2944
    %v4279 = vunpack.c.h.b16 %v2944
    %v4280 = vunpack.c.l.b16 %v2945
    %v4281 = vunpack.c.h.b16 %v2945
    %v4282 = vunpack.c.l.b16 %v2946
    %v4283 = vunpack.c.h.b16 %v2946
    %v4284 = vunpack.c.l.b16 %v2947
    %v4285 = vunpack.c.h.b16 %v2947
    %v4286 = vunpack.c.l.b16 %v2948
    %v4287 = vunpack.c.h.b16 %v2948
    %v4288 = vunpack.c.l.b16 %v2949
    %v4289 = vunpack.c.h.b16 %v2949
    %v4290 = vunpack.c.l.b16 %v2950
    %v4291 = vunpack.c.h.b16 %v2950
    %v4292 = vunpack.c.l.b16 %v2951
    %v4293 = vunpack.c.h.b16 %v2951
    %v4294 = vunpack.c.l.b16 %v2952
    %v4295 = vunpack.c.h.b16 %v2952
    %v4296 = vunpack.c.l.b16 %v2953
    %v4297 = vunpack.c.h.b16 %v2953
    %v4298 = vunpack.c.l.b16 %v2954
    %v4299 = vunpack.c.h.b16 %v2954
    %v4300 = vunpack.c.l.b16 %v2955
    %v4301 = vunpack.c.h.b16 %v2955
    %v4302 = vunpack.c.l.b16 %v2956
    %v4303 = vunpack.c.h.b16 %v2956
    %v4304 = vunpack.c.l.b16 %v2957
    %v4305 = vunpack.c.h.b16 %v2957
    %v4306 = vunpack.c.l.b16 %v2958
    %v4307 = vunpack.c.h.b16 %v2958
    %v4308 = vunpack.c.l.b16 %v2959
    %v4309 = vunpack.c.h.b16 %v2959
    %v4310 = vunpack.c.l.b16 %v2960
    %v4311 = vunpack.c.h.b16 %v2960
    %v4312 = vunpack.c.l.b16 %v2961
    %v4313 = vunpack.c.h.b16 %v2961
    %v4314 = vunpack.c.l.b16 %v2962
    %v4315 = vunpack.c.h.b16 %v2962
    %v4316 = vunpack.c.l.b16 %v2963
    %v4317 = vunpack.c.h.b16 %v2963
    %v4318 = vunpack.c.l.b16 %v2964
    %v4319 = vunpack.c.h.b16 %v2964
    %v4320 = vunpack.c.l.b16 %v2965
    %v4321 = vunpack.c.h.b16 %v2965
    %v4322 = vunpack.c.l.b16 %v2966
    %v4323 = vunpack.c.h.b16 %v2966
    %v4324 = vunpack.c.l.b16 %v2967
    %v4325 = vunpack.c.h.b16 %v2967
    %v4326 = vunpack.c.l.b16 %v2968
    %v4327 = vunpack.c.h.b16 %v2968
    %v4328 = vunpack.c.l.b16 %v2969
    %v4329 = vunpack.c.h.b16 %v2969
    %v4330 = vpack.c.b16 %v4082, %v4074
    %v4331 = vpack.c.b16 %v4083, %v4075
    %v4332 = vpack.c.b16 %v4084, %v4076
    %v4333 = vpack.c.b16 %v4085, %v4077
    %v4334 = vpack.c.b16 %v4086, %v4078
    %v4335 = vpack.c.b16 %v4087, %v4079
    %v4336 = vpack.c.b16 %v4088, %v4080
    %v4337 = vpack.c.b16 %v4089, %v4081
    %v4338 = vpack.c.b16 %v4098, %v4090
    %v4339 = vpack.c.b16 %v4099, %v4091
    %v4340 = vpack.c.b16 %v4100, %v4092
    %v4341 = vpack.c.b16 %v4101, %v4093
    %v4342 = vpack.c.b16 %v4102, %v4094
    %v4343 = vpack.c.b16 %v4103, %v4095
    %v4344 = vpack.c.b16 %v4104, %v4096
    %v4345 = vpack.c.b16 %v4105, %v4097
    %v4346 = vpack.c.b16 %v4114, %v4106
    %v4347 = vpack.c.b16 %v4115, %v4107
    %v4348 = vpack.c.b16 %v4116, %v4108
    %v4349 = vpack.c.b16 %v4117, %v4109
    %v4350 = vpack.c.b16 %v4118, %v4110
    %v4351 = vpack.c.b16 %v4119, %v4111
    %v4352 = vpack.c.b16 %v4120, %v4112
    %v4353 = vpack.c.b16 %v4121, %v4113
    %v4354 = vpack.c.b16 %v4130, %v4122
    %v4355 = vpack.c.b16 %v4131, %v4123
    %v4356 = vpack.c.b16 %v4132, %v4124
    %v4357 = vpack.c.b16 %v4133, %v4125
    %v4358 = vpack.c.b16 %v4134, %v4126
    %v4359 = vpack.c.b16 %v4135, %v4127
    %v4360 = vpack.c.b16 %v4136, %v4128
    %v4361 = vpack.c.b16 %v4137, %v4129
    %v4362 = vpack.c.b16 %v4146, %v4138
    %v4363 = vpack.c.b16 %v4147, %v4139
    %v4364 = vpack.c.b16 %v4148, %v4140
    %v4365 = vpack.c.b16 %v4149, %v4141
    %v4366 = vpack.c.b16 %v4150, %v4142
    %v4367 = vpack.c.b16 %v4151, %v4143
    %v4368 = vpack.c.b16 %v4152, %v4144
    %v4369 = vpack.c.b16 %v4153, %v4145
    %v4370 = vpack.c.b16 %v4162, %v4154
    %v4371 = vpack.c.b16 %v4163, %v4155
    %v4372 = vpack.c.b16 %v4164, %v4156
    %v4373 = vpack.c.b16 %v4165, %v4157
    %v4374 = vpack.c.b16 %v4166, %v4158
    %v4375 = vpack.c.b16 %v4167, %v4159
    %v4376 = vpack.c.b16 %v4168, %v4160
    %v4377 = vpack.c.b16 %v4169, %v4161
    %v4378 = vpack.c.b16 %v4178, %v4170
    %v4379 = vpack.c.b16 %v4179, %v4171
    %v4380 = vpack.c.b16 %v4180, %v4172
    %v4381 = vpack.c.b16 %v4181, %v4173
    %v4382 = vpack.c.b16 %v4182, %v4174
    %v4383 = vpack.c.b16 %v4183, %v4175
    %v4384 = vpack.c.b16 %v4184, %v4176
    %v4385 = vpack.c.b16 %v4185, %v4177
    %v4386 = vpack.c.b16 %v4194, %v4186
    %v4387 = vpack.c.b16 %v4195, %v4187
    %v4388 = vpack.c.b16 %v4196, %v4188
    %v4389 = vpack.c.b16 %v4197, %v4189
    %v4390 = vpack.c.b16 %v4198, %v4190
    %v4391 = vpack.c.b16 %v4199, %v4191
    %v4392 = vpack.c.b16 %v4200, %v4192
    %v4393 = vpack.c.b16 %v4201, %v4193
    %v4394 = vpack.c.b16 %v4210, %v4202
    %v4395 = vpack.c.b16 %v4211, %v4203
    %v4396 = vpack.c.b16 %v4212, %v4204
    %v4397 = vpack.c.b16 %v4213, %v4205
    %v4398 = vpack.c.b16 %v4214, %v4206
    %v4399 = vpack.c.b16 %v4215, %v4207
    %v4400 = vpack.c.b16 %v4216, %v4208
    %v4401 = vpack.c.b16 %v4217, %v4209
    %v4402 = vpack.c.b16 %v4226, %v4218
    %v4403 = vpack.c.b16 %v4227, %v4219
    %v4404 = vpack.c.b16 %v4228, %v4220
    %v4405 = vpack.c.b16 %v4229, %v4221
    %v4406 = vpack.c.b16 %v4230, %v4222
    %v4407 = vpack.c.b16 %v4231, %v4223
    %v4408 = vpack.c.b16 %v4232, %v4224
    %v4409 = vpack.c.b16 %v4233, %v4225
    %v4410 = vpack.c.b16 %v4242, %v4234
    %v4411 = vpack.c.b16 %v4243, %v4235
    %v4412 = vpack.c.b16 %v4244, %v4236
    %v4413 = vpack.c.b16 %v4245, %v4237
    %v4414 = vpack.c.b16 %v4246, %v4238
    %v4415 = vpack.c.b16 %v4247, %v4239
    %v4416 = vpack.c.b16 %v4248, %v4240
    %v4417 = vpack.c.b16 %v4249, %v4241
    %v4418 = vpack.c.b16 %v4258, %v4250
    %v4419 = vpack.c.b16 %v4259, %v4251
    %v4420 = vpack.c.b16 %v4260, %v4252
    %v4421 = vpack.c.b16 %v4261, %v4253
    %v4422 = vpack.c.b16 %v4262, %v4254
    %v4423 = vpack.c.b16 %v4263, %v4255
    %v4424 = vpack.c.b16 %v4264, %v4256
    %v4425 = vpack.c.b16 %v4265, %v4257
    %v4426 = vpack.c.b16 %v4274, %v4266
    %v4427 = vpack.c.b16 %v4275, %v4267
    %v4428 = vpack.c.b16 %v4276, %v4268
    %v4429 = vpack.c.b16 %v4277, %v4269
    %v4430 = vpack.c.b16 %v4278, %v4270
    %v4431 = vpack.c.b16 %v4279, %v4271
    %v4432 = vpack.c.b16 %v4280, %v4272
    %v4433 = vpack.c.b16 %v4281, %v4273
    %v4434 = vpack.c.b16 %v4290, %v4282
    %v4435 = vpack.c.b16 %v4291, %v4283
    %v4436 = vpack.c.b16 %v4292, %v4284
    %v4437 = vpack.c.b16 %v4293, %v4285
    %v4438 = vpack.c.b16 %v4294, %v4286
    %v4439 = vpack.c.b16 %v4295, %v4287
    %v4440 = vpack.c.b16 %v4296, %v4288
    %v4441 = vpack.c.b16 %v4297, %v4289
    %v4442 = vpack.c.b16 %v4306, %v4298
    %v4443 = vpack.c.b16 %v4307, %v4299
    %v4444 = vpack.c.b16 %v4308, %v4300
    %v4445 = vpack.c.b16 %v4309, %v4301
    %v4446 = vpack.c.b16 %v4310, %v4302
    %v4447 = vpack.c.b16 %v4311, %v4303
    %v4448 = vpack.c.b16 %v4312, %v4304
    %v4449 = vpack.c.b16 %v4313, %v4305
    %v4450 = vpack.c.b16 %v4322, %v4314
    %v4451 = vpack.c.b16 %v4323, %v4315
    %v4452 = vpack.c.b16 %v4324, %v4316
    %v4453 = vpack.c.b16 %v4325, %v4317
    %v4454 = vpack.c.b16 %v4326, %v4318
    %v4455 = vpack.c.b16 %v4327, %v4319
    %v4456 = vpack.c.b16 %v4328, %v4320
    %v4457 = vpack.c.b16 %v4329, %v4321
    %4586 = vmatprep.subr.bf16.mxu0 %v4331
    %4587 = vmatpush1.bf16.msra.mxu0 %v4330
    %4588 = vmatprep.subr.bf16.mxu0 %v4339
    %4589 = vmatpush1.bf16.msra.mxu0 %v4338
    %4590 = vmatprep.subr.bf16.mxu0 %v4347
    %4591 = vmatpush1.bf16.msra.mxu0 %v4346
    %4592 = vmatprep.subr.bf16.mxu0 %v4355
    %4593 = vmatpush1.bf16.msra.mxu0 %v4354
    %4594 = vmatprep.subr.bf16.mxu0 %v4363
    %4595 = vmatpush1.bf16.msra.mxu0 %v4362
    %4596 = vmatprep.subr.bf16.mxu0 %v4371
    %4597 = vmatpush1.bf16.msra.mxu0 %v4370
    %4598 = vmatprep.subr.bf16.mxu0 %v4379
    %4599 = vmatpush1.bf16.msra.mxu0 %v4378
    %4600 = vmatprep.subr.bf16.mxu0 %v4387
    %4601 = vmatpush1.bf16.msra.mxu0 %v4386
    %4602 = vmatprep.subr.bf16.mxu0 %v4395
    %4603 = vmatpush1.bf16.msra.mxu0 %v4394
    %4604 = vmatprep.subr.bf16.mxu0 %v4403
    %4605 = vmatpush1.bf16.msra.mxu0 %v4402
    %4606 = vmatprep.subr.bf16.mxu0 %v4411
    %4607 = vmatpush1.bf16.msra.mxu0 %v4410
    %4608 = vmatprep.subr.bf16.mxu0 %v4419
    %4609 = vmatpush1.bf16.msra.mxu0 %v4418
    %4610 = vmatprep.subr.bf16.mxu0 %v4427
    %4611 = vmatpush1.bf16.msra.mxu0 %v4426
    %4612 = vmatprep.subr.bf16.mxu0 %v4435
    %4613 = vmatpush1.bf16.msra.mxu0 %v4434
    %4614 = vmatprep.subr.bf16.mxu0 %v4443
    %4615 = vmatpush1.bf16.msra.mxu0 %v4442
    %4616 = vmatprep.subr.bf16.mxu0 %v4451
    %4617 = vmatpush1.bf16.msra.mxu0 %v4450
    %4618 = vmatprep.mubr.bf16.mxu0 0
    %4619 = vmatmul.mubr.bf16.gmra.mrb[0].mxu0 0
    %v4620 = vpop.f32.mrb[0].mxu0
    %v4621 = vadd.f32 0.0, %v4620
    %v4622 = vpop.f32.mrb[0].mxu0
    %v4623 = vadd.f32 0.0, %v4622
    %v4624 = vpop.f32.mrb[0].mxu0
    %v4625 = vpop.f32.mrb[0].mxu0
    %4626 = vdwg.mxu0
    %4627 = vmatprep.subr.bf16.mxu0 %v4333
    %4628 = vmatpush1.bf16.msra.mxu0 %v4332
    %4629 = vmatprep.subr.bf16.mxu0 %v4341
    %4630 = vmatpush1.bf16.msra.mxu0 %v4340
    %4631 = vmatprep.subr.bf16.mxu0 %v4349
    %4632 = vmatpush1.bf16.msra.mxu0 %v4348
    %4633 = vmatprep.subr.bf16.mxu0 %v4357
    %4634 = vmatpush1.bf16.msra.mxu0 %v4356
    %4635 = vmatprep.subr.bf16.mxu0 %v4365
    %4636 = vmatpush1.bf16.msra.mxu0 %v4364
    %4637 = vmatprep.subr.bf16.mxu0 %v4373
    %4638 = vmatpush1.bf16.msra.mxu0 %v4372
    %4639 = vmatprep.subr.bf16.mxu0 %v4381
    %4640 = vmatpush1.bf16.msra.mxu0 %v4380
    %4641 = vmatprep.subr.bf16.mxu0 %v4389
    %4642 = vmatpush1.bf16.msra.mxu0 %v4388
    %4643 = vmatprep.subr.bf16.mxu0 %v4397
    %4644 = vmatpush1.bf16.msra.mxu0 %v4396
    %4645 = vmatprep.subr.bf16.mxu0 %v4405
    %4646 = vmatpush1.bf16.msra.mxu0 %v4404
    %4647 = vmatprep.subr.bf16.mxu0 %v4413
    %4648 = vmatpush1.bf16.msra.mxu0 %v4412
    %4649 = vmatprep.subr.bf16.mxu0 %v4421
    %4650 = vmatpush1.bf16.msra.mxu0 %v4420
    %4651 = vmatprep.subr.bf16.mxu0 %v4429
    %4652 = vmatpush1.bf16.msra.mxu0 %v4428
    %4653 = vmatprep.subr.bf16.mxu0 %v4437
    %4654 = vmatpush1.bf16.msra.mxu0 %v4436
    %4655 = vmatprep.subr.bf16.mxu0 %v4445
    %4656 = vmatpush1.bf16.msra.mxu0 %v4444
    %4657 = vmatprep.subr.bf16.mxu0 %v4453
    %4658 = vmatpush1.bf16.msra.mxu0 %v4452
    %4659 = vmatprep.mubr.bf16.mxu0 0
    %4660 = vmatmul.mubr.bf16.gmra.mrb[0].mxu0 0
    %v4661 = vpop.f32.mrb[0].mxu0
    %v4662 = vadd.f32 0.0, %v4661
    %v4663 = vpop.f32.mrb[0].mxu0
    %v4664 = vadd.f32 0.0, %v4663
    %v4665 = vpop.f32.mrb[0].mxu0
    %v4666 = vpop.f32.mrb[0].mxu0
    %4667 = vdwg.mxu0
    %4668 = vmatprep.subr.bf16.mxu0 %v4335
    %4669 = vmatpush1.bf16.msra.mxu0 %v4334
    %4670 = vmatprep.subr.bf16.mxu0 %v4343
    %4671 = vmatpush1.bf16.msra.mxu0 %v4342
    %4672 = vmatprep.subr.bf16.mxu0 %v4351
    %4673 = vmatpush1.bf16.msra.mxu0 %v4350
    %4674 = vmatprep.subr.bf16.mxu0 %v4359
    %4675 = vmatpush1.bf16.msra.mxu0 %v4358
    %4676 = vmatprep.subr.bf16.mxu0 %v4367
    %4677 = vmatpush1.bf16.msra.mxu0 %v4366
    %4678 = vmatprep.subr.bf16.mxu0 %v4375
    %4679 = vmatpush1.bf16.msra.mxu0 %v4374
    %4680 = vmatprep.subr.bf16.mxu0 %v4383
    %4681 = vmatpush1.bf16.msra.mxu0 %v4382
    %4682 = vmatprep.subr.bf16.mxu0 %v4391
    %4683 = vmatpush1.bf16.msra.mxu0 %v4390
    %4684 = vmatprep.subr.bf16.mxu0 %v4399
    %4685 = vmatpush1.bf16.msra.mxu0 %v4398
    %4686 = vmatprep.subr.bf16.mxu0 %v4407
    %4687 = vmatpush1.bf16.msra.mxu0 %v4406
    %4688 = vmatprep.subr.bf16.mxu0 %v4415
    %4689 = vmatpush1.bf16.msra.mxu0 %v4414
    %4690 = vmatprep.subr.bf16.mxu0 %v4423
    %4691 = vmatpush1.bf16.msra.mxu0 %v4422
    %4692 = vmatprep.subr.bf16.mxu0 %v4431
    %4693 = vmatpush1.bf16.msra.mxu0 %v4430
    %4694 = vmatprep.subr.bf16.mxu0 %v4439
    %4695 = vmatpush1.bf16.msra.mxu0 %v4438
    %4696 = vmatprep.subr.bf16.mxu0 %v4447
    %4697 = vmatpush1.bf16.msra.mxu0 %v4446
    %4698 = vmatprep.subr.bf16.mxu0 %v4455
    %4699 = vmatpush1.bf16.msra.mxu0 %v4454
    %4700 = vmatprep.mubr.bf16.mxu0 0
    %4701 = vmatmul.mubr.bf16.gmra.mrb[0].mxu0 0
    %v4702 = vpop.f32.mrb[0].mxu0
    %v4703 = vadd.f32 0.0, %v4702
    %v4704 = vpop.f32.mrb[0].mxu0
    %v4705 = vadd.f32 0.0, %v4704
    %v4706 = vpop.f32.mrb[0].mxu0
    %v4707 = vpop.f32.mrb[0].mxu0
    %4708 = vdwg.mxu0
    %4709 = vmatprep.subr.bf16.mxu0 %v4337
    %4710 = vmatpush1.bf16.msra.mxu0 %v4336
    %4711 = vmatprep.subr.bf16.mxu0 %v4345
    %4712 = vmatpush1.bf16.msra.mxu0 %v4344
    %4713 = vmatprep.subr.bf16.mxu0 %v4353
    %4714 = vmatpush1.bf16.msra.mxu0 %v4352
    %4715 = vmatprep.subr.bf16.mxu0 %v4361
    %4716 = vmatpush1.bf16.msra.mxu0 %v4360
    %4717 = vmatprep.subr.bf16.mxu0 %v4369
    %4718 = vmatpush1.bf16.msra.mxu0 %v4368
    %4719 = vmatprep.subr.bf16.mxu0 %v4377
    %4720 = vmatpush1.bf16.msra.mxu0 %v4376
    %4721 = vmatprep.subr.bf16.mxu0 %v4385
    %4722 = vmatpush1.bf16.msra.mxu0 %v4384
    %4723 = vmatprep.subr.bf16.mxu0 %v4393
    %4724 = vmatpush1.bf16.msra.mxu0 %v4392
    %4725 = vmatprep.subr.bf16.mxu0 %v4401
    %4726 = vmatpush1.bf16.msra.mxu0 %v4400
    %4727 = vmatprep.subr.bf16.mxu0 %v4409
    %4728 = vmatpush1.bf16.msra.mxu0 %v4408
    %4729 = vmatprep.subr.bf16.mxu0 %v4417
    %4730 = vmatpush1.bf16.msra.mxu0 %v4416
    %4731 = vmatprep.subr.bf16.mxu0 %v4425
    %4732 = vmatpush1.bf16.msra.mxu0 %v4424
    %4733 = vmatprep.subr.bf16.mxu0 %v4433
    %4734 = vmatpush1.bf16.msra.mxu0 %v4432
    %4735 = vmatprep.subr.bf16.mxu0 %v4441
    %4736 = vmatpush1.bf16.msra.mxu0 %v4440
    %4737 = vmatprep.subr.bf16.mxu0 %v4449
    %4738 = vmatpush1.bf16.msra.mxu0 %v4448
    %4739 = vmatprep.subr.bf16.mxu0 %v4457
    %4740 = vmatpush1.bf16.msra.mxu0 %v4456
    %4741 = vmatprep.mubr.bf16.mxu0 0
    %4742 = vmatmul.mubr.bf16.gmra.mrb[0].mxu0 0
    %v4743 = vpop.f32.mrb[0].mxu0
    %v4744 = vadd.f32 0.0, %v4743
    %v4745 = vpop.f32.mrb[0].mxu0
    %v4746 = vadd.f32 0.0, %v4745
    %v4747 = vpop.f32.mrb[0].mxu0
    %v4748 = vpop.f32.mrb[0].mxu0
    %4749 = vdwg.mxu0
    %v4750 = vadd.f32 %v3817, %v4621
    %v4751 = vadd.f32 %v3819, %v4623
    %v4752 = vadd.f32 %v3858, %v4662
    %v4753 = vadd.f32 %v3860, %v4664
    %v4754 = vadd.f32 %v3899, %v4703
    %v4755 = vadd.f32 %v3901, %v4705
    %v4756 = vadd.f32 %v3940, %v4744
    %v4757 = vadd.f32 %v3942, %v4746
    %v4758 = vxor.u32 %v4750, 2147483648
    %v4759 = vxor.u32 %v4751, 2147483648
    %v4760 = vmul.f32 %v4758, 1.442695
    %v4761 = vpow.pop %v4760
    %v4762 = vmul.f32 %v4759, 1.442695
    %v4763 = vpow.pop %v4762
    %v4764 = vadd.f32 %v4761, 1.0
    %v4765 = vadd.f32 %v4763, 1.0
    %v4766 = vrcp.pop %v4764
    %v4767 = vmul.f32 1.0, %v4766
    %v4768 = vrcp.pop %v4765
    %v4769 = vmul.f32 1.0, %v4768
    %v4770 = vxor.u32 %v4752, 2147483648
    %v4771 = vxor.u32 %v4753, 2147483648
    %v4772 = vmul.f32 %v4770, 1.442695
    %v4773 = vpow.pop %v4772
    %v4774 = vmul.f32 %v4771, 1.442695
    %v4775 = vpow.pop %v4774
    %v4776 = vadd.f32 %v4773, 1.0
    %v4777 = vadd.f32 %v4775, 1.0
    %v4778 = vrcp.pop %v4776
    %v4779 = vmul.f32 1.0, %v4778
    %v4780 = vrcp.pop %v4777
    %v4781 = vmul.f32 1.0, %v4780
    %v4782 = vtanh.pop %v4754
    %v4783 = vtanh.pop %v4755
    %v4784 = vxor.u32 %v4756, 2147483648
    %v4785 = vxor.u32 %v4757, 2147483648
    %v4786 = vmul.f32 %v4784, 1.442695
    %v4787 = vpow.pop %v4786
    %v4788 = vmul.f32 %v4785, 1.442695
    %v4789 = vpow.pop %v4788
    %v4790 = vadd.f32 %v4787, 1.0
    %v4791 = vadd.f32 %v4789, 1.0
    %v4792 = vrcp.pop %v4790
    %v4793 = vmul.f32 1.0, %v4792
    %v4794 = vrcp.pop %v4791
    %v4795 = vmul.f32 1.0, %v4794
    %v4796 = vmul.f32 %v4779, 0.0
    %v4797 = vmul.f32 %v4781, 0.0
    %v4798 = vmul.f32 %v4767, %v4782
    %v4799 = vmul.f32 %v4769, %v4783
    %v4800 = vadd.f32 %v4796, %v4798
    %v4801 = vadd.f32 %v4797, %v4799
    %v4802 = vtanh.pop %v4800
    %v4803 = vtanh.pop %v4801
    %v4804 = vmul.f32 %v4793, %v4802
    %v4805 = vmul.f32 %v4795, %v4803
    %v4806 = vpack.c.bf16 %v4804, %v4804
    %v4807 = vpack.c.bf16 %v4805, %v4805
    %4808 = vmatprep.subr.bf16.mxu0 %v4331
    %4809 = vmatpush1.bf16.msra.mxu0 %v4330
    %4810 = vmatprep.subr.bf16.mxu0 %v4339
    %4811 = vmatpush1.bf16.msra.mxu0 %v4338
    %4812 = vmatprep.subr.bf16.mxu0 %v4347
    %4813 = vmatpush1.bf16.msra.mxu0 %v4346
    %4814 = vmatprep.subr.bf16.mxu0 %v4355
    %4815 = vmatpush1.bf16.msra.mxu0 %v4354
    %4816 = vmatprep.subr.bf16.mxu0 %v4363
    %4817 = vmatpush1.bf16.msra.mxu0 %v4362
    %4818 = vmatprep.subr.bf16.mxu0 %v4371
    %4819 = vmatpush1.bf16.msra.mxu0 %v4370
    %4820 = vmatprep.subr.bf16.mxu0 %v4379
    %4821 = vmatpush1.bf16.msra.mxu0 %v4378
    %4822 = vmatprep.subr.bf16.mxu0 %v4387
    %4823 = vmatpush1.bf16.msra.mxu0 %v4386
    %4824 = vmatprep.subr.bf16.mxu0 %v4395
    %4825 = vmatpush1.bf16.msra.mxu0 %v4394
    %4826 = vmatprep.subr.bf16.mxu0 %v4403
    %4827 = vmatpush1.bf16.msra.mxu0 %v4402
    %4828 = vmatprep.subr.bf16.mxu0 %v4411
    %4829 = vmatpush1.bf16.msra.mxu0 %v4410
    %4830 = vmatprep.subr.bf16.mxu0 %v4419
    %4831 = vmatpush1.bf16.msra.mxu0 %v4418
    %4832 = vmatprep.subr.bf16.mxu0 %v4427
    %4833 = vmatpush1.bf16.msra.mxu0 %v4426
    %4834 = vmatprep.subr.bf16.mxu0 %v4435
    %4835 = vmatpush1.bf16.msra.mxu0 %v4434
    %4836 = vmatprep.subr.bf16.mxu0 %v4443
    %4837 = vmatpush1.bf16.msra.mxu0 %v4442
    %4838 = vmatprep.subr.bf16.mxu0 %v4451
    %4839 = vmatpush1.bf16.msra.mxu0 %v4450
    %4840 = vmatprep.mubr.bf16.mxu0 %v4807
    %4841 = vmatmul.mubr.bf16.gmra.mrb[0].mxu0 %v4806
    %v4842 = vpop.f32.mrb[0].mxu0
    %v4843 = vadd.f32 0.0, %v4842
    %v4844 = vpop.f32.mrb[0].mxu0
    %v4845 = vadd.f32 0.0, %v4844
    %v4846 = vpop.f32.mrb[0].mxu0
    %v4847 = vpop.f32.mrb[0].mxu0
    %4848 = vdwg.mxu0
    %4849 = vmatprep.subr.bf16.mxu0 %v4333
    %4850 = vmatpush1.bf16.msra.mxu0 %v4332
    %4851 = vmatprep.subr.bf16.mxu0 %v4341
    %4852 = vmatpush1.bf16.msra.mxu0 %v4340
    %4853 = vmatprep.subr.bf16.mxu0 %v4349
    %4854 = vmatpush1.bf16.msra.mxu0 %v4348
    %4855 = vmatprep.subr.bf16.mxu0 %v4357
    %4856 = vmatpush1.bf16.msra.mxu0 %v4356
    %4857 = vmatprep.subr.bf16.mxu0 %v4365
    %4858 = vmatpush1.bf16.msra.mxu0 %v4364
    %4859 = vmatprep.subr.bf16.mxu0 %v4373
    %4860 = vmatpush1.bf16.msra.mxu0 %v4372
    %4861 = vmatprep.subr.bf16.mxu0 %v4381
    %4862 = vmatpush1.bf16.msra.mxu0 %v4380
    %4863 = vmatprep.subr.bf16.mxu0 %v4389
    %4864 = vmatpush1.bf16.msra.mxu0 %v4388
    %4865 = vmatprep.subr.bf16.mxu0 %v4397
    %4866 = vmatpush1.bf16.msra.mxu0 %v4396
    %4867 = vmatprep.subr.bf16.mxu0 %v4405
    %4868 = vmatpush1.bf16.msra.mxu0 %v4404
    %4869 = vmatprep.subr.bf16.mxu0 %v4413
    %4870 = vmatpush1.bf16.msra.mxu0 %v4412
    %4871 = vmatprep.subr.bf16.mxu0 %v4421
    %4872 = vmatpush1.bf16.msra.mxu0 %v4420
    %4873 = vmatprep.subr.bf16.mxu0 %v4429
    %4874 = vmatpush1.bf16.msra.mxu0 %v4428
    %4875 = vmatprep.subr.bf16.mxu0 %v4437
    %4876 = vmatpush1.bf16.msra.mxu0 %v4436
    %4877 = vmatprep.subr.bf16.mxu0 %v4445
    %4878 = vmatpush1.bf16.msra.mxu0 %v4444
    %4879 = vmatprep.subr.bf16.mxu0 %v4453
    %4880 = vmatpush1.bf16.msra.mxu0 %v4452
    %4881 = vmatprep.mubr.bf16.mxu0 %v4807
    %4882 = vmatmul.mubr.bf16.gmra.mrb[0].mxu0 %v4806
    %v4883 = vpop.f32.mrb[0].mxu0
    %v4884 = vadd.f32 0.0, %v4883
    %v4885 = vpop.f32.mrb[0].mxu0
    %v4886 = vadd.f32 0.0, %v4885
    %v4887 = vpop.f32.mrb[0].mxu0
    %v4888 = vpop.f32.mrb[0].mxu0
    %4889 = vdwg.mxu0
    %4890 = vmatprep.subr.bf16.mxu0 %v4335
    %4891 = vmatpush1.bf16.msra.mxu0 %v4334
    %4892 = vmatprep.subr.bf16.mxu0 %v4343
    %4893 = vmatpush1.bf16.msra.mxu0 %v4342
    %4894 = vmatprep.subr.bf16.mxu0 %v4351
    %4895 = vmatpush1.bf16.msra.mxu0 %v4350
    %4896 = vmatprep.subr.bf16.mxu0 %v4359
    %4897 = vmatpush1.bf16.msra.mxu0 %v4358
    %4898 = vmatprep.subr.bf16.mxu0 %v4367
    %4899 = vmatpush1.bf16.msra.mxu0 %v4366
    %4900 = vmatprep.subr.bf16.mxu0 %v4375
    %4901 = vmatpush1.bf16.msra.mxu0 %v4374
    %4902 = vmatprep.subr.bf16.mxu0 %v4383
    %4903 = vmatpush1.bf16.msra.mxu0 %v4382
    %4904 = vmatprep.subr.bf16.mxu0 %v4391
    %4905 = vmatpush1.bf16.msra.mxu0 %v4390
    %4906 = vmatprep.subr.bf16.mxu0 %v4399
    %4907 = vmatpush1.bf16.msra.mxu0 %v4398
    %4908 = vmatprep.subr.bf16.mxu0 %v4407
    %4909 = vmatpush1.bf16.msra.mxu0 %v4406
    %4910 = vmatprep.subr.bf16.mxu0 %v4415
    %4911 = vmatpush1.bf16.msra.mxu0 %v4414
    %4912 = vmatprep.subr.bf16.mxu0 %v4423
    %4913 = vmatpush1.bf16.msra.mxu0 %v4422
    %4914 = vmatprep.subr.bf16.mxu0 %v4431
    %4915 = vmatpush1.bf16.msra.mxu0 %v4430
    %4916 = vmatprep.subr.bf16.mxu0 %v4439
    %4917 = vmatpush1.bf16.msra.mxu0 %v4438
    %4918 = vmatprep.subr.bf16.mxu0 %v4447
    %4919 = vmatpush1.bf16.msra.mxu0 %v4446
    %4920 = vmatprep.subr.bf16.mxu0 %v4455
    %4921 = vmatpush1.bf16.msra.mxu0 %v4454
    %4922 = vmatprep.mubr.bf16.mxu0 %v4807
    %4923 = vmatmul.mubr.bf16.gmra.mrb[0].mxu0 %v4806
    %v4924 = vpop.f32.mrb[0].mxu0
    %v4925 = vadd.f32 0.0, %v4924
    %v4926 = vpop.f32.mrb[0].mxu0
    %v4927 = vadd.f32 0.0, %v4926
    %v4928 = vpop.f32.mrb[0].mxu0
    %v4929 = vpop.f32.mrb[0].mxu0
    %4930 = vdwg.mxu0
    %4931 = vmatprep.subr.bf16.mxu0 %v4337
    %4932 = vmatpush1.bf16.msra.mxu0 %v4336
    %4933 = vmatprep.subr.bf16.mxu0 %v4345
    %4934 = vmatpush1.bf16.msra.mxu0 %v4344
    %4935 = vmatprep.subr.bf16.mxu0 %v4353
    %4936 = vmatpush1.bf16.msra.mxu0 %v4352
    %4937 = vmatprep.subr.bf16.mxu0 %v4361
    %4938 = vmatpush1.bf16.msra.mxu0 %v4360
    %4939 = vmatprep.subr.bf16.mxu0 %v4369
    %4940 = vmatpush1.bf16.msra.mxu0 %v4368
    %4941 = vmatprep.subr.bf16.mxu0 %v4377
    %4942 = vmatpush1.bf16.msra.mxu0 %v4376
    %4943 = vmatprep.subr.bf16.mxu0 %v4385
    %4944 = vmatpush1.bf16.msra.mxu0 %v4384
    %4945 = vmatprep.subr.bf16.mxu0 %v4393
    %4946 = vmatpush1.bf16.msra.mxu0 %v4392
    %4947 = vmatprep.subr.bf16.mxu0 %v4401
    %4948 = vmatpush1.bf16.msra.mxu0 %v4400
    %4949 = vmatprep.subr.bf16.mxu0 %v4409
    %4950 = vmatpush1.bf16.msra.mxu0 %v4408
    %4951 = vmatprep.subr.bf16.mxu0 %v4417
    %4952 = vmatpush1.bf16.msra.mxu0 %v4416
    %4953 = vmatprep.subr.bf16.mxu0 %v4425
    %4954 = vmatpush1.bf16.msra.mxu0 %v4424
    %4955 = vmatprep.subr.bf16.mxu0 %v4433
    %4956 = vmatpush1.bf16.msra.mxu0 %v4432
    %4957 = vmatprep.subr.bf16.mxu0 %v4441
    %4958 = vmatpush1.bf16.msra.mxu0 %v4440
    %4959 = vmatprep.subr.bf16.mxu0 %v4449
    %4960 = vmatpush1.bf16.msra.mxu0 %v4448
    %4961 = vmatprep.subr.bf16.mxu0 %v4457
    %4962 = vmatpush1.bf16.msra.mxu0 %v4456
    %4963 = vmatprep.mubr.bf16.mxu0 %v4807
    %4964 = vmatmul.mubr.bf16.gmra.mrb[0].mxu0 %v4806
    %v4965 = vpop.f32.mrb[0].mxu0
    %v4966 = vadd.f32 0.0, %v4965
    %v4967 = vpop.f32.mrb[0].mxu0
    %v4968 = vadd.f32 0.0, %v4967
    %v4969 = vpop.f32.mrb[0].mxu0
    %v4970 = vpop.f32.mrb[0].mxu0
    %4971 = vdwg.mxu0
    %v4980 = vrot.slane %v4843, 7
    %v4981 = vrot.slane %v4845, 7
    %v4982 = vrot.slane %v4884, 7
    %v4983 = vrot.slane %v4886, 7
    %v4984 = vrot.slane %v4925, 7
    %v4985 = vrot.slane %v4927, 7
    %v4986 = vrot.slane %v4966, 7
    %v4987 = vrot.slane %v4968, 7
    %v4996 = vadd.f32 %v3817, %v4980
    %v4997 = vadd.f32 %v3819, %v4981
    %v4998 = vadd.f32 %v3858, %v4982
    %v4999 = vadd.f32 %v3860, %v4983
    %v5000 = vadd.f32 %v3899, %v4984
    %v5001 = vadd.f32 %v3901, %v4985
    %v5002 = vadd.f32 %v3940, %v4986
    %v5003 = vadd.f32 %v3942, %v4987
    %v5004 = vxor.u32 %v4996, 2147483648
    %v5005 = vxor.u32 %v4997, 2147483648
    %v5006 = vmul.f32 %v5004, 1.442695
    %v5007 = vpow.pop %v5006
    %v5008 = vmul.f32 %v5005, 1.442695
    %v5009 = vpow.pop %v5008
    %v5010 = vadd.f32 %v5007, 1.0
    %v5011 = vadd.f32 %v5009, 1.0
    %v5012 = vrcp.pop %v5010
    %v5013 = vmul.f32 1.0, %v5012
    %v5014 = vrcp.pop %v5011
    %v5015 = vmul.f32 1.0, %v5014
    %v5016 = vxor.u32 %v4998, 2147483648
    %v5017 = vxor.u32 %v4999, 2147483648
    %v5018 = vmul.f32 %v5016, 1.442695
    %v5019 = vpow.pop %v5018
    %v5020 = vmul.f32 %v5017, 1.442695
    %v5021 = vpow.pop %v5020
    %v5022 = vadd.f32 %v5019, 1.0
    %v5023 = vadd.f32 %v5021, 1.0
    %v5024 = vrcp.pop %v5022
    %v5025 = vmul.f32 1.0, %v5024
    %v5026 = vrcp.pop %v5023
    %v5027 = vmul.f32 1.0, %v5026
    %v5028 = vtanh.pop %v5000
    %v5029 = vtanh.pop %v5001
    %v5030 = vxor.u32 %v5002, 2147483648
    %v5031 = vxor.u32 %v5003, 2147483648
    %v5032 = vmul.f32 %v5030, 1.442695
    %v5033 = vpow.pop %v5032
    %v5034 = vmul.f32 %v5031, 1.442695
    %v5035 = vpow.pop %v5034
    %v5036 = vadd.f32 %v5033, 1.0
    %v5037 = vadd.f32 %v5035, 1.0
    %v5038 = vrcp.pop %v5036
    %v5039 = vmul.f32 1.0, %v5038
    %v5040 = vrcp.pop %v5037
    %v5041 = vmul.f32 1.0, %v5040
    %v5044 = vrot.slane %v4800, 7
    %v5045 = vrot.slane %v4801, 7
    %v5048 = vmul.f32 %v5025, %v5044
    %v5049 = vmul.f32 %v5027, %v5045
    %v5050 = vmul.f32 %v5013, %v5028
    %v5051 = vmul.f32 %v5015, %v5029
    %v5052 = vadd.f32 %v5048, %v5050
    %v5053 = vadd.f32 %v5049, %v5051
    %v5054 = vtanh.pop %v5052
    %v5055 = vtanh.pop %v5053
    %v5056 = vmul.f32 %v5039, %v5054
    %v5057 = vmul.f32 %v5041, %v5055
    %v5058 = vsel %vm2839, %v4804, %v5056
    %v5059 = vsel %vm2839, %v4805, %v5057
    %v5060 = vld [vmem:[#allocation16] sm:$0xff]
    %v5061 = vld [vmem:[#allocation16 + $0x8] sm:$0xff]
    %v5062 = vld [vmem:[#allocation16 + $0x10] sm:$0xff]
    %v5063 = vld [vmem:[#allocation16 + $0x18] sm:$0xff]
    %v5064 = vld [vmem:[#allocation16 + $0x20] sm:$0xff]
    %v5065 = vld [vmem:[#allocation16 + $0x28] sm:$0xff]
    %v5066 = vld [vmem:[#allocation16 + $0x30] sm:$0xff]
    %v5067 = vld [vmem:[#allocation16 + $0x38] sm:$0xff]
    %v5068 = vld [vmem:[#allocation16 + $0x40] sm:$0xff]
    %v5069 = vld [vmem:[#allocation16 + $0x48] sm:$0xff]
    %v5070 = vld [vmem:[#allocation16 + $0x50] sm:$0xff]
    %v5071 = vld [vmem:[#allocation16 + $0x58] sm:$0xff]
    %v5072 = vld [vmem:[#allocation16 + $0x60] sm:$0xff]
    %v5073 = vld [vmem:[#allocation16 + $0x68] sm:$0xff]
    %v5074 = vld [vmem:[#allocation16 + $0x70] sm:$0xff]
    %v5075 = vld [vmem:[#allocation16 + $0x78] sm:$0xff]
    %v5076 = vld [vmem:[#allocation16 + $0x80] sm:$0xff]
    %v5077 = vld [vmem:[#allocation16 + $0x88] sm:$0xff]
    %v5078 = vld [vmem:[#allocation16 + $0x90] sm:$0xff]
    %v5079 = vld [vmem:[#allocation16 + $0x98] sm:$0xff]
    %v5080 = vld [vmem:[#allocation16 + $0xa0] sm:$0xff]
    %v5081 = vld [vmem:[#allocation16 + $0xa8] sm:$0xff]
    %v5082 = vld [vmem:[#allocation16 + $0xb0] sm:$0xff]
    %v5083 = vld [vmem:[#allocation16 + $0xb8] sm:$0xff]
    %v5084 = vld [vmem:[#allocation16 + $0xc0] sm:$0xff]
    %v5085 = vld [vmem:[#allocation16 + $0xc8] sm:$0xff]
    %v5086 = vld [vmem:[#allocation16 + $0xd0] sm:$0xff]
    %v5087 = vld [vmem:[#allocation16 + $0xd8] sm:$0xff]
    %v5088 = vld [vmem:[#allocation16 + $0xe0] sm:$0xff]
    %v5089 = vld [vmem:[#allocation16 + $0xe8] sm:$0xff]
    %v5090 = vld [vmem:[#allocation16 + $0xf0] sm:$0xff]
    %v5091 = vld [vmem:[#allocation16 + $0xf8] sm:$0xff]
    %v5092 = vld [vmem:[#allocation16 + $0x100] sm:$0xff]
    %v5093 = vld [vmem:[#allocation16 + $0x108] sm:$0xff]
    %v5094 = vld [vmem:[#allocation16 + $0x110] sm:$0xff]
    %v5095 = vld [vmem:[#allocation16 + $0x118] sm:$0xff]
    %v5096 = vld [vmem:[#allocation16 + $0x120] sm:$0xff]
    %v5097 = vld [vmem:[#allocation16 + $0x128] sm:$0xff]
    %v5098 = vld [vmem:[#allocation16 + $0x130] sm:$0xff]
    %v5099 = vld [vmem:[#allocation16 + $0x138] sm:$0xff]
    %v5100 = vld [vmem:[#allocation16 + $0x140] sm:$0xff]
    %v5101 = vld [vmem:[#allocation16 + $0x148] sm:$0xff]
    %v5102 = vld [vmem:[#allocation16 + $0x150] sm:$0xff]
    %v5103 = vld [vmem:[#allocation16 + $0x158] sm:$0xff]
    %v5104 = vld [vmem:[#allocation16 + $0x160] sm:$0xff]
    %v5105 = vld [vmem:[#allocation16 + $0x168] sm:$0xff]
    %v5106 = vld [vmem:[#allocation16 + $0x170] sm:$0xff]
    %v5107 = vld [vmem:[#allocation16 + $0x178] sm:$0xff]
    %v5108 = vld [vmem:[#allocation16 + $0x180] sm:$0xff]
    %v5109 = vld [vmem:[#allocation16 + $0x188] sm:$0xff]
    %v5110 = vld [vmem:[#allocation16 + $0x190] sm:$0xff]
    %v5111 = vld [vmem:[#allocation16 + $0x198] sm:$0xff]
    %v5112 = vld [vmem:[#allocation16 + $0x1a0] sm:$0xff]
    %v5113 = vld [vmem:[#allocation16 + $0x1a8] sm:$0xff]
    %v5114 = vld [vmem:[#allocation16 + $0x1b0] sm:$0xff]
    %v5115 = vld [vmem:[#allocation16 + $0x1b8] sm:$0xff]
    %v5116 = vld [vmem:[#allocation16 + $0x1c0] sm:$0xff]
    %v5117 = vld [vmem:[#allocation16 + $0x1c8] sm:$0xff]
    %v5118 = vld [vmem:[#allocation16 + $0x1d0] sm:$0xff]
    %v5119 = vld [vmem:[#allocation16 + $0x1d8] sm:$0xff]
    %v5120 = vld [vmem:[#allocation16 + $0x1e0] sm:$0xff]
    %v5121 = vld [vmem:[#allocation16 + $0x1e8] sm:$0xff]
    %v5122 = vld [vmem:[#allocation16 + $0x1f0] sm:$0xff]
    %v5123 = vld [vmem:[#allocation16 + $0x1f8] sm:$0xff]
    %v5124 = vld [vmem:[#allocation16 + $0x200] sm:$0xff]
    %v5125 = vld [vmem:[#allocation16 + $0x208] sm:$0xff]
    %v5126 = vld [vmem:[#allocation16 + $0x210] sm:$0xff]
    %v5127 = vld [vmem:[#allocation16 + $0x218] sm:$0xff]
    %v5128 = vld [vmem:[#allocation16 + $0x220] sm:$0xff]
    %v5129 = vld [vmem:[#allocation16 + $0x228] sm:$0xff]
    %v5130 = vld [vmem:[#allocation16 + $0x230] sm:$0xff]
    %v5131 = vld [vmem:[#allocation16 + $0x238] sm:$0xff]
    %v5132 = vld [vmem:[#allocation16 + $0x240] sm:$0xff]
    %v5133 = vld [vmem:[#allocation16 + $0x248] sm:$0xff]
    %v5134 = vld [vmem:[#allocation16 + $0x250] sm:$0xff]
    %v5135 = vld [vmem:[#allocation16 + $0x258] sm:$0xff]
    %v5136 = vld [vmem:[#allocation16 + $0x260] sm:$0xff]
    %v5137 = vld [vmem:[#allocation16 + $0x268] sm:$0xff]
    %v5138 = vld [vmem:[#allocation16 + $0x270] sm:$0xff]
    %v5139 = vld [vmem:[#allocation16 + $0x278] sm:$0xff]
    %v5140 = vld [vmem:[#allocation16 + $0x280] sm:$0xff]
    %v5141 = vld [vmem:[#allocation16 + $0x288] sm:$0xff]
    %v5142 = vld [vmem:[#allocation16 + $0x290] sm:$0xff]
    %v5143 = vld [vmem:[#allocation16 + $0x298] sm:$0xff]
    %v5144 = vld [vmem:[#allocation16 + $0x2a0] sm:$0xff]
    %v5145 = vld [vmem:[#allocation16 + $0x2a8] sm:$0xff]
    %v5146 = vld [vmem:[#allocation16 + $0x2b0] sm:$0xff]
    %v5147 = vld [vmem:[#allocation16 + $0x2b8] sm:$0xff]
    %v5148 = vld [vmem:[#allocation16 + $0x2c0] sm:$0xff]
    %v5149 = vld [vmem:[#allocation16 + $0x2c8] sm:$0xff]
    %v5150 = vld [vmem:[#allocation16 + $0x2d0] sm:$0xff]
    %v5151 = vld [vmem:[#allocation16 + $0x2d8] sm:$0xff]
    %v5152 = vld [vmem:[#allocation16 + $0x2e0] sm:$0xff]
    %v5153 = vld [vmem:[#allocation16 + $0x2e8] sm:$0xff]
    %v5154 = vld [vmem:[#allocation16 + $0x2f0] sm:$0xff]
    %v5155 = vld [vmem:[#allocation16 + $0x2f8] sm:$0xff]
    %v5156 = vld [vmem:[#allocation16 + $0x300] sm:$0xff]
    %v5157 = vld [vmem:[#allocation16 + $0x308] sm:$0xff]
    %v5158 = vld [vmem:[#allocation16 + $0x310] sm:$0xff]
    %v5159 = vld [vmem:[#allocation16 + $0x318] sm:$0xff]
    %v5160 = vld [vmem:[#allocation16 + $0x320] sm:$0xff]
    %v5161 = vld [vmem:[#allocation16 + $0x328] sm:$0xff]
    %v5162 = vld [vmem:[#allocation16 + $0x330] sm:$0xff]
    %v5163 = vld [vmem:[#allocation16 + $0x338] sm:$0xff]
    %v5164 = vld [vmem:[#allocation16 + $0x340] sm:$0xff]
    %v5165 = vld [vmem:[#allocation16 + $0x348] sm:$0xff]
    %v5166 = vld [vmem:[#allocation16 + $0x350] sm:$0xff]
    %v5167 = vld [vmem:[#allocation16 + $0x358] sm:$0xff]
    %v5168 = vld [vmem:[#allocation16 + $0x360] sm:$0xff]
    %v5169 = vld [vmem:[#allocation16 + $0x368] sm:$0xff]
    %v5170 = vld [vmem:[#allocation16 + $0x370] sm:$0xff]
    %v5171 = vld [vmem:[#allocation16 + $0x378] sm:$0xff]
    %v5172 = vld [vmem:[#allocation16 + $0x380] sm:$0xff]
    %v5173 = vld [vmem:[#allocation16 + $0x388] sm:$0xff]
    %v5174 = vld [vmem:[#allocation16 + $0x390] sm:$0xff]
    %v5175 = vld [vmem:[#allocation16 + $0x398] sm:$0xff]
    %v5176 = vld [vmem:[#allocation16 + $0x3a0] sm:$0xff]
    %v5177 = vld [vmem:[#allocation16 + $0x3a8] sm:$0xff]
    %v5178 = vld [vmem:[#allocation16 + $0x3b0] sm:$0xff]
    %v5179 = vld [vmem:[#allocation16 + $0x3b8] sm:$0xff]
    %v5180 = vld [vmem:[#allocation16 + $0x3c0] sm:$0xff]
    %v5181 = vld [vmem:[#allocation16 + $0x3c8] sm:$0xff]
    %v5182 = vld [vmem:[#allocation16 + $0x3d0] sm:$0xff]
    %v5183 = vld [vmem:[#allocation16 + $0x3d8] sm:$0xff]
    %v5184 = vld [vmem:[#allocation16 + $0x3e0] sm:$0xff]
    %v5185 = vld [vmem:[#allocation16 + $0x3e8] sm:$0xff]
    %v5186 = vld [vmem:[#allocation16 + $0x3f0] sm:$0xff]
    %v5187 = vld [vmem:[#allocation16 + $0x3f8] sm:$0xff]
    %v5188 = vpack.c.bf16 %v5058, %v5058
    %v5189 = vpack.c.bf16 %v5059, %v5059
    %v5190 = vld [vmem:[#allocation14] sm:$0xff]
    %v5191 = vld [vmem:[#allocation14 + $0x8] sm:$0xff]
    %v5192 = vld [vmem:[#allocation14 + $0x10] sm:$0xff]
    %v5193 = vld [vmem:[#allocation14 + $0x18] sm:$0xff]
    %v5194 = vld [vmem:[#allocation14 + $0x20] sm:$0xff]
    %v5195 = vld [vmem:[#allocation14 + $0x28] sm:$0xff]
    %v5196 = vld [vmem:[#allocation14 + $0x30] sm:$0xff]
    %v5197 = vld [vmem:[#allocation14 + $0x38] sm:$0xff]
    %v5198 = vld [vmem:[#allocation14 + $0x40] sm:$0xff]
    %v5199 = vld [vmem:[#allocation14 + $0x48] sm:$0xff]
    %v5200 = vld [vmem:[#allocation14 + $0x50] sm:$0xff]
    %v5201 = vld [vmem:[#allocation14 + $0x58] sm:$0xff]
    %v5202 = vld [vmem:[#allocation14 + $0x60] sm:$0xff]
    %v5203 = vld [vmem:[#allocation14 + $0x68] sm:$0xff]
    %v5204 = vld [vmem:[#allocation14 + $0x70] sm:$0xff]
    %v5205 = vld [vmem:[#allocation14 + $0x78] sm:$0xff]
    %v5206 = vld [vmem:[#allocation14 + $0x80] sm:$0xff]
    %v5207 = vld [vmem:[#allocation14 + $0x88] sm:$0xff]
    %v5208 = vld [vmem:[#allocation14 + $0x90] sm:$0xff]
    %v5209 = vld [vmem:[#allocation14 + $0x98] sm:$0xff]
    %v5210 = vld [vmem:[#allocation14 + $0xa0] sm:$0xff]
    %v5211 = vld [vmem:[#allocation14 + $0xa8] sm:$0xff]
    %v5212 = vld [vmem:[#allocation14 + $0xb0] sm:$0xff]
    %v5213 = vld [vmem:[#allocation14 + $0xb8] sm:$0xff]
    %v5214 = vld [vmem:[#allocation14 + $0xc0] sm:$0xff]
    %v5215 = vld [vmem:[#allocation14 + $0xc8] sm:$0xff]
    %v5216 = vld [vmem:[#allocation14 + $0xd0] sm:$0xff]
    %v5217 = vld [vmem:[#allocation14 + $0xd8] sm:$0xff]
    %v5218 = vld [vmem:[#allocation14 + $0xe0] sm:$0xff]
    %v5219 = vld [vmem:[#allocation14 + $0xe8] sm:$0xff]
    %v5220 = vld [vmem:[#allocation14 + $0xf0] sm:$0xff]
    %v5221 = vld [vmem:[#allocation14 + $0xf8] sm:$0xff]
    %v5222 = vld [vmem:[#allocation14 + $0x100] sm:$0xff]
    %v5223 = vld [vmem:[#allocation14 + $0x108] sm:$0xff]
    %v5224 = vld [vmem:[#allocation14 + $0x110] sm:$0xff]
    %v5225 = vld [vmem:[#allocation14 + $0x118] sm:$0xff]
    %v5226 = vld [vmem:[#allocation14 + $0x120] sm:$0xff]
    %v5227 = vld [vmem:[#allocation14 + $0x128] sm:$0xff]
    %v5228 = vld [vmem:[#allocation14 + $0x130] sm:$0xff]
    %v5229 = vld [vmem:[#allocation14 + $0x138] sm:$0xff]
    %v5230 = vld [vmem:[#allocation14 + $0x140] sm:$0xff]
    %v5231 = vld [vmem:[#allocation14 + $0x148] sm:$0xff]
    %v5232 = vld [vmem:[#allocation14 + $0x150] sm:$0xff]
    %v5233 = vld [vmem:[#allocation14 + $0x158] sm:$0xff]
    %v5234 = vld [vmem:[#allocation14 + $0x160] sm:$0xff]
    %v5235 = vld [vmem:[#allocation14 + $0x168] sm:$0xff]
    %v5236 = vld [vmem:[#allocation14 + $0x170] sm:$0xff]
    %v5237 = vld [vmem:[#allocation14 + $0x178] sm:$0xff]
    %v5238 = vld [vmem:[#allocation14 + $0x180] sm:$0xff]
    %v5239 = vld [vmem:[#allocation14 + $0x188] sm:$0xff]
    %v5240 = vld [vmem:[#allocation14 + $0x190] sm:$0xff]
    %v5241 = vld [vmem:[#allocation14 + $0x198] sm:$0xff]
    %v5242 = vld [vmem:[#allocation14 + $0x1a0] sm:$0xff]
    %v5243 = vld [vmem:[#allocation14 + $0x1a8] sm:$0xff]
    %v5244 = vld [vmem:[#allocation14 + $0x1b0] sm:$0xff]
    %v5245 = vld [vmem:[#allocation14 + $0x1b8] sm:$0xff]
    %v5246 = vld [vmem:[#allocation14 + $0x1c0] sm:$0xff]
    %v5247 = vld [vmem:[#allocation14 + $0x1c8] sm:$0xff]
    %v5248 = vld [vmem:[#allocation14 + $0x1d0] sm:$0xff]
    %v5249 = vld [vmem:[#allocation14 + $0x1d8] sm:$0xff]
    %v5250 = vld [vmem:[#allocation14 + $0x1e0] sm:$0xff]
    %v5251 = vld [vmem:[#allocation14 + $0x1e8] sm:$0xff]
    %v5252 = vld [vmem:[#allocation14 + $0x1f0] sm:$0xff]
    %v5253 = vld [vmem:[#allocation14 + $0x1f8] sm:$0xff]
    %v5254 = vld [vmem:[#allocation14 + $0x200] sm:$0xff]
    %v5255 = vld [vmem:[#allocation14 + $0x208] sm:$0xff]
    %v5256 = vld [vmem:[#allocation14 + $0x210] sm:$0xff]
    %v5257 = vld [vmem:[#allocation14 + $0x218] sm:$0xff]
    %v5258 = vld [vmem:[#allocation14 + $0x220] sm:$0xff]
    %v5259 = vld [vmem:[#allocation14 + $0x228] sm:$0xff]
    %v5260 = vld [vmem:[#allocation14 + $0x230] sm:$0xff]
    %v5261 = vld [vmem:[#allocation14 + $0x238] sm:$0xff]
    %v5262 = vld [vmem:[#allocation14 + $0x240] sm:$0xff]
    %v5263 = vld [vmem:[#allocation14 + $0x248] sm:$0xff]
    %v5264 = vld [vmem:[#allocation14 + $0x250] sm:$0xff]
    %v5265 = vld [vmem:[#allocation14 + $0x258] sm:$0xff]
    %v5266 = vld [vmem:[#allocation14 + $0x260] sm:$0xff]
    %v5267 = vld [vmem:[#allocation14 + $0x268] sm:$0xff]
    %v5268 = vld [vmem:[#allocation14 + $0x270] sm:$0xff]
    %v5269 = vld [vmem:[#allocation14 + $0x278] sm:$0xff]
    %v5270 = vld [vmem:[#allocation14 + $0x280] sm:$0xff]
    %v5271 = vld [vmem:[#allocation14 + $0x288] sm:$0xff]
    %v5272 = vld [vmem:[#allocation14 + $0x290] sm:$0xff]
    %v5273 = vld [vmem:[#allocation14 + $0x298] sm:$0xff]
    %v5274 = vld [vmem:[#allocation14 + $0x2a0] sm:$0xff]
    %v5275 = vld [vmem:[#allocation14 + $0x2a8] sm:$0xff]
    %v5276 = vld [vmem:[#allocation14 + $0x2b0] sm:$0xff]
    %v5277 = vld [vmem:[#allocation14 + $0x2b8] sm:$0xff]
    %v5278 = vld [vmem:[#allocation14 + $0x2c0] sm:$0xff]
    %v5279 = vld [vmem:[#allocation14 + $0x2c8] sm:$0xff]
    %v5280 = vld [vmem:[#allocation14 + $0x2d0] sm:$0xff]
    %v5281 = vld [vmem:[#allocation14 + $0x2d8] sm:$0xff]
    %v5282 = vld [vmem:[#allocation14 + $0x2e0] sm:$0xff]
    %v5283 = vld [vmem:[#allocation14 + $0x2e8] sm:$0xff]
    %v5284 = vld [vmem:[#allocation14 + $0x2f0] sm:$0xff]
    %v5285 = vld [vmem:[#allocation14 + $0x2f8] sm:$0xff]
    %v5286 = vld [vmem:[#allocation14 + $0x300] sm:$0xff]
    %v5287 = vld [vmem:[#allocation14 + $0x308] sm:$0xff]
    %v5288 = vld [vmem:[#allocation14 + $0x310] sm:$0xff]
    %v5289 = vld [vmem:[#allocation14 + $0x318] sm:$0xff]
    %v5290 = vld [vmem:[#allocation14 + $0x320] sm:$0xff]
    %v5291 = vld [vmem:[#allocation14 + $0x328] sm:$0xff]
    %v5292 = vld [vmem:[#allocation14 + $0x330] sm:$0xff]
    %v5293 = vld [vmem:[#allocation14 + $0x338] sm:$0xff]
    %v5294 = vld [vmem:[#allocation14 + $0x340] sm:$0xff]
    %v5295 = vld [vmem:[#allocation14 + $0x348] sm:$0xff]
    %v5296 = vld [vmem:[#allocation14 + $0x350] sm:$0xff]
    %v5297 = vld [vmem:[#allocation14 + $0x358] sm:$0xff]
    %v5298 = vld [vmem:[#allocation14 + $0x360] sm:$0xff]
    %v5299 = vld [vmem:[#allocation14 + $0x368] sm:$0xff]
    %v5300 = vld [vmem:[#allocation14 + $0x370] sm:$0xff]
    %v5301 = vld [vmem:[#allocation14 + $0x378] sm:$0xff]
    %v5302 = vld [vmem:[#allocation14 + $0x380] sm:$0xff]
    %v5303 = vld [vmem:[#allocation14 + $0x388] sm:$0xff]
    %v5304 = vld [vmem:[#allocation14 + $0x390] sm:$0xff]
    %v5305 = vld [vmem:[#allocation14 + $0x398] sm:$0xff]
    %v5306 = vld [vmem:[#allocation14 + $0x3a0] sm:$0xff]
    %v5307 = vld [vmem:[#allocation14 + $0x3a8] sm:$0xff]
    %v5308 = vld [vmem:[#allocation14 + $0x3b0] sm:$0xff]
    %v5309 = vld [vmem:[#allocation14 + $0x3b8] sm:$0xff]
    %v5310 = vld [vmem:[#allocation14 + $0x3c0] sm:$0xff]
    %v5311 = vld [vmem:[#allocation14 + $0x3c8] sm:$0xff]
    %v5312 = vld [vmem:[#allocation14 + $0x3d0] sm:$0xff]
    %v5313 = vld [vmem:[#allocation14 + $0x3d8] sm:$0xff]
    %v5314 = vld [vmem:[#allocation14 + $0x3e0] sm:$0xff]
    %v5315 = vld [vmem:[#allocation14 + $0x3e8] sm:$0xff]
    %v5316 = vld [vmem:[#allocation14 + $0x3f0] sm:$0xff]
    %v5317 = vld [vmem:[#allocation14 + $0x3f8] sm:$0xff]
    %v5318 = vld [vmem:[%s12] sm:$0xff]
    %v5320 = vlaneseq
    %v5321 = vshrl.u32 %v5320, 7
    %v5322 = vsub.s32 0, %v5321
    %v5323 = vrot.slane %v5318, %v5322
    %v5324 = vlaneseq
    %v5325 = vshrl.u32 %v5324, 7
    %v5326 = vsub.s32 1, %v5325
    %v5327 = vrot.slane %v5318, %v5326
    %v5328 = vlaneseq
    %v5329 = vshrl.u32 %v5328, 7
    %v5330 = vsub.s32 2, %v5329
    %v5331 = vrot.slane %v5318, %v5330
    %v5332 = vlaneseq
    %v5333 = vshrl.u32 %v5332, 7
    %v5334 = vsub.s32 3, %v5333
    %v5335 = vrot.slane %v5318, %v5334
    %v5336 = vlaneseq
    %v5337 = vshrl.u32 %v5336, 7
    %v5338 = vsub.s32 4, %v5337
    %v5339 = vrot.slane %v5318, %v5338
    %v5340 = vlaneseq
    %v5341 = vshrl.u32 %v5340, 7
    %v5342 = vsub.s32 5, %v5341
    %v5343 = vrot.slane %v5318, %v5342
    %v5344 = vlaneseq
    %v5345 = vshrl.u32 %v5344, 7
    %v5346 = vsub.s32 6, %v5345
    %v5347 = vrot.slane %v5318, %v5346
    %v5348 = vlaneseq
    %v5349 = vshrl.u32 %v5348, 7
    %v5350 = vsub.s32 7, %v5349
    %v5351 = vrot.slane %v5318, %v5350
    %v5488 = vunpack.c.l.b16 %v5190
    %v5489 = vunpack.c.h.b16 %v5190
    %v5490 = vunpack.c.l.b16 %v5191
    %v5491 = vunpack.c.h.b16 %v5191
    %v5492 = vunpack.c.l.b16 %v5192
    %v5493 = vunpack.c.h.b16 %v5192
    %v5494 = vunpack.c.l.b16 %v5193
    %v5495 = vunpack.c.h.b16 %v5193
    %v5496 = vunpack.c.l.b16 %v5194
    %v5497 = vunpack.c.h.b16 %v5194
    %v5498 = vunpack.c.l.b16 %v5195
    %v5499 = vunpack.c.h.b16 %v5195
    %v5500 = vunpack.c.l.b16 %v5196
    %v5501 = vunpack.c.h.b16 %v5196
    %v5502 = vunpack.c.l.b16 %v5197
    %v5503 = vunpack.c.h.b16 %v5197
    %v5504 = vunpack.c.l.b16 %v5198
    %v5505 = vunpack.c.h.b16 %v5198
    %v5506 = vunpack.c.l.b16 %v5199
    %v5507 = vunpack.c.h.b16 %v5199
    %v5508 = vunpack.c.l.b16 %v5200
    %v5509 = vunpack.c.h.b16 %v5200
    %v5510 = vunpack.c.l.b16 %v5201
    %v5511 = vunpack.c.h.b16 %v5201
    %v5512 = vunpack.c.l.b16 %v5202
    %v5513 = vunpack.c.h.b16 %v5202
    %v5514 = vunpack.c.l.b16 %v5203
    %v5515 = vunpack.c.h.b16 %v5203
    %v5516 = vunpack.c.l.b16 %v5204
    %v5517 = vunpack.c.h.b16 %v5204
    %v5518 = vunpack.c.l.b16 %v5205
    %v5519 = vunpack.c.h.b16 %v5205
    %v5520 = vunpack.c.l.b16 %v5206
    %v5521 = vunpack.c.h.b16 %v5206
    %v5522 = vunpack.c.l.b16 %v5207
    %v5523 = vunpack.c.h.b16 %v5207
    %v5524 = vunpack.c.l.b16 %v5208
    %v5525 = vunpack.c.h.b16 %v5208
    %v5526 = vunpack.c.l.b16 %v5209
    %v5527 = vunpack.c.h.b16 %v5209
    %v5528 = vunpack.c.l.b16 %v5210
    %v5529 = vunpack.c.h.b16 %v5210
    %v5530 = vunpack.c.l.b16 %v5211
    %v5531 = vunpack.c.h.b16 %v5211
    %v5532 = vunpack.c.l.b16 %v5212
    %v5533 = vunpack.c.h.b16 %v5212
    %v5534 = vunpack.c.l.b16 %v5213
    %v5535 = vunpack.c.h.b16 %v5213
    %v5536 = vunpack.c.l.b16 %v5214
    %v5537 = vunpack.c.h.b16 %v5214
    %v5538 = vunpack.c.l.b16 %v5215
    %v5539 = vunpack.c.h.b16 %v5215
    %v5540 = vunpack.c.l.b16 %v5216
    %v5541 = vunpack.c.h.b16 %v5216
    %v5542 = vunpack.c.l.b16 %v5217
    %v5543 = vunpack.c.h.b16 %v5217
    %v5544 = vunpack.c.l.b16 %v5218
    %v5545 = vunpack.c.h.b16 %v5218
    %v5546 = vunpack.c.l.b16 %v5219
    %v5547 = vunpack.c.h.b16 %v5219
    %v5548 = vunpack.c.l.b16 %v5220
    %v5549 = vunpack.c.h.b16 %v5220
    %v5550 = vunpack.c.l.b16 %v5221
    %v5551 = vunpack.c.h.b16 %v5221
    %v5552 = vunpack.c.l.b16 %v5222
    %v5553 = vunpack.c.h.b16 %v5222
    %v5554 = vunpack.c.l.b16 %v5223
    %v5555 = vunpack.c.h.b16 %v5223
    %v5556 = vunpack.c.l.b16 %v5224
    %v5557 = vunpack.c.h.b16 %v5224
    %v5558 = vunpack.c.l.b16 %v5225
    %v5559 = vunpack.c.h.b16 %v5225
    %v5560 = vunpack.c.l.b16 %v5226
    %v5561 = vunpack.c.h.b16 %v5226
    %v5562 = vunpack.c.l.b16 %v5227
    %v5563 = vunpack.c.h.b16 %v5227
    %v5564 = vunpack.c.l.b16 %v5228
    %v5565 = vunpack.c.h.b16 %v5228
    %v5566 = vunpack.c.l.b16 %v5229
    %v5567 = vunpack.c.h.b16 %v5229
    %v5568 = vunpack.c.l.b16 %v5230
    %v5569 = vunpack.c.h.b16 %v5230
    %v5570 = vunpack.c.l.b16 %v5231
    %v5571 = vunpack.c.h.b16 %v5231
    %v5572 = vunpack.c.l.b16 %v5232
    %v5573 = vunpack.c.h.b16 %v5232
    %v5574 = vunpack.c.l.b16 %v5233
    %v5575 = vunpack.c.h.b16 %v5233
    %v5576 = vunpack.c.l.b16 %v5234
    %v5577 = vunpack.c.h.b16 %v5234
    %v5578 = vunpack.c.l.b16 %v5235
    %v5579 = vunpack.c.h.b16 %v5235
    %v5580 = vunpack.c.l.b16 %v5236
    %v5581 = vunpack.c.h.b16 %v5236
    %v5582 = vunpack.c.l.b16 %v5237
    %v5583 = vunpack.c.h.b16 %v5237
    %v5584 = vunpack.c.l.b16 %v5238
    %v5585 = vunpack.c.h.b16 %v5238
    %v5586 = vunpack.c.l.b16 %v5239
    %v5587 = vunpack.c.h.b16 %v5239
    %v5588 = vunpack.c.l.b16 %v5240
    %v5589 = vunpack.c.h.b16 %v5240
    %v5590 = vunpack.c.l.b16 %v5241
    %v5591 = vunpack.c.h.b16 %v5241
    %v5592 = vunpack.c.l.b16 %v5242
    %v5593 = vunpack.c.h.b16 %v5242
    %v5594 = vunpack.c.l.b16 %v5243
    %v5595 = vunpack.c.h.b16 %v5243
    %v5596 = vunpack.c.l.b16 %v5244
    %v5597 = vunpack.c.h.b16 %v5244
    %v5598 = vunpack.c.l.b16 %v5245
    %v5599 = vunpack.c.h.b16 %v5245
    %v5600 = vunpack.c.l.b16 %v5246
    %v5601 = vunpack.c.h.b16 %v5246
    %v5602 = vunpack.c.l.b16 %v5247
    %v5603 = vunpack.c.h.b16 %v5247
    %v5604 = vunpack.c.l.b16 %v5248
    %v5605 = vunpack.c.h.b16 %v5248
    %v5606 = vunpack.c.l.b16 %v5249
    %v5607 = vunpack.c.h.b16 %v5249
    %v5608 = vunpack.c.l.b16 %v5250
    %v5609 = vunpack.c.h.b16 %v5250
    %v5610 = vunpack.c.l.b16 %v5251
    %v5611 = vunpack.c.h.b16 %v5251
    %v5612 = vunpack.c.l.b16 %v5252
    %v5613 = vunpack.c.h.b16 %v5252
    %v5614 = vunpack.c.l.b16 %v5253
    %v5615 = vunpack.c.h.b16 %v5253
    %v5616 = vunpack.c.l.b16 %v5254
    %v5617 = vunpack.c.h.b16 %v5254
    %v5618 = vunpack.c.l.b16 %v5255
    %v5619 = vunpack.c.h.b16 %v5255
    %v5620 = vunpack.c.l.b16 %v5256
    %v5621 = vunpack.c.h.b16 %v5256
    %v5622 = vunpack.c.l.b16 %v5257
    %v5623 = vunpack.c.h.b16 %v5257
    %v5624 = vunpack.c.l.b16 %v5258
    %v5625 = vunpack.c.h.b16 %v5258
    %v5626 = vunpack.c.l.b16 %v5259
    %v5627 = vunpack.c.h.b16 %v5259
    %v5628 = vunpack.c.l.b16 %v5260
    %v5629 = vunpack.c.h.b16 %v5260
    %v5630 = vunpack.c.l.b16 %v5261
    %v5631 = vunpack.c.h.b16 %v5261
    %v5632 = vunpack.c.l.b16 %v5262
    %v5633 = vunpack.c.h.b16 %v5262
    %v5634 = vunpack.c.l.b16 %v5263
    %v5635 = vunpack.c.h.b16 %v5263
    %v5636 = vunpack.c.l.b16 %v5264
    %v5637 = vunpack.c.h.b16 %v5264
    %v5638 = vunpack.c.l.b16 %v5265
    %v5639 = vunpack.c.h.b16 %v5265
    %v5640 = vunpack.c.l.b16 %v5266
    %v5641 = vunpack.c.h.b16 %v5266
    %v5642 = vunpack.c.l.b16 %v5267
    %v5643 = vunpack.c.h.b16 %v5267
    %v5644 = vunpack.c.l.b16 %v5268
    %v5645 = vunpack.c.h.b16 %v5268
    %v5646 = vunpack.c.l.b16 %v5269
    %v5647 = vunpack.c.h.b16 %v5269
    %v5648 = vunpack.c.l.b16 %v5270
    %v5649 = vunpack.c.h.b16 %v5270
    %v5650 = vunpack.c.l.b16 %v5271
    %v5651 = vunpack.c.h.b16 %v5271
    %v5652 = vunpack.c.l.b16 %v5272
    %v5653 = vunpack.c.h.b16 %v5272
    %v5654 = vunpack.c.l.b16 %v5273
    %v5655 = vunpack.c.h.b16 %v5273
    %v5656 = vunpack.c.l.b16 %v5274
    %v5657 = vunpack.c.h.b16 %v5274
    %v5658 = vunpack.c.l.b16 %v5275
    %v5659 = vunpack.c.h.b16 %v5275
    %v5660 = vunpack.c.l.b16 %v5276
    %v5661 = vunpack.c.h.b16 %v5276
    %v5662 = vunpack.c.l.b16 %v5277
    %v5663 = vunpack.c.h.b16 %v5277
    %v5664 = vunpack.c.l.b16 %v5278
    %v5665 = vunpack.c.h.b16 %v5278
    %v5666 = vunpack.c.l.b16 %v5279
    %v5667 = vunpack.c.h.b16 %v5279
    %v5668 = vunpack.c.l.b16 %v5280
    %v5669 = vunpack.c.h.b16 %v5280
    %v5670 = vunpack.c.l.b16 %v5281
    %v5671 = vunpack.c.h.b16 %v5281
    %v5672 = vunpack.c.l.b16 %v5282
    %v5673 = vunpack.c.h.b16 %v5282
    %v5674 = vunpack.c.l.b16 %v5283
    %v5675 = vunpack.c.h.b16 %v5283
    %v5676 = vunpack.c.l.b16 %v5284
    %v5677 = vunpack.c.h.b16 %v5284
    %v5678 = vunpack.c.l.b16 %v5285
    %v5679 = vunpack.c.h.b16 %v5285
    %v5680 = vunpack.c.l.b16 %v5286
    %v5681 = vunpack.c.h.b16 %v5286
    %v5682 = vunpack.c.l.b16 %v5287
    %v5683 = vunpack.c.h.b16 %v5287
    %v5684 = vunpack.c.l.b16 %v5288
    %v5685 = vunpack.c.h.b16 %v5288
    %v5686 = vunpack.c.l.b16 %v5289
    %v5687 = vunpack.c.h.b16 %v5289
    %v5688 = vunpack.c.l.b16 %v5290
    %v5689 = vunpack.c.h.b16 %v5290
    %v5690 = vunpack.c.l.b16 %v5291
    %v5691 = vunpack.c.h.b16 %v5291
    %v5692 = vunpack.c.l.b16 %v5292
    %v5693 = vunpack.c.h.b16 %v5292
    %v5694 = vunpack.c.l.b16 %v5293
    %v5695 = vunpack.c.h.b16 %v5293
    %v5696 = vunpack.c.l.b16 %v5294
    %v5697 = vunpack.c.h.b16 %v5294
    %v5698 = vunpack.c.l.b16 %v5295
    %v5699 = vunpack.c.h.b16 %v5295
    %v5700 = vunpack.c.l.b16 %v5296
    %v5701 = vunpack.c.h.b16 %v5296
    %v5702 = vunpack.c.l.b16 %v5297
    %v5703 = vunpack.c.h.b16 %v5297
    %v5704 = vunpack.c.l.b16 %v5298
    %v5705 = vunpack.c.h.b16 %v5298
    %v5706 = vunpack.c.l.b16 %v5299
    %v5707 = vunpack.c.h.b16 %v5299
    %v5708 = vunpack.c.l.b16 %v5300
    %v5709 = vunpack.c.h.b16 %v5300
    %v5710 = vunpack.c.l.b16 %v5301
    %v5711 = vunpack.c.h.b16 %v5301
    %v5712 = vunpack.c.l.b16 %v5302
    %v5713 = vunpack.c.h.b16 %v5302
    %v5714 = vunpack.c.l.b16 %v5303
    %v5715 = vunpack.c.h.b16 %v5303
    %v5716 = vunpack.c.l.b16 %v5304
    %v5717 = vunpack.c.h.b16 %v5304
    %v5718 = vunpack.c.l.b16 %v5305
    %v5719 = vunpack.c.h.b16 %v5305
    %v5720 = vunpack.c.l.b16 %v5306
    %v5721 = vunpack.c.h.b16 %v5306
    %v5722 = vunpack.c.l.b16 %v5307
    %v5723 = vunpack.c.h.b16 %v5307
    %v5724 = vunpack.c.l.b16 %v5308
    %v5725 = vunpack.c.h.b16 %v5308
    %v5726 = vunpack.c.l.b16 %v5309
    %v5727 = vunpack.c.h.b16 %v5309
    %v5728 = vunpack.c.l.b16 %v5310
    %v5729 = vunpack.c.h.b16 %v5310
    %v5730 = vunpack.c.l.b16 %v5311
    %v5731 = vunpack.c.h.b16 %v5311
    %v5732 = vunpack.c.l.b16 %v5312
    %v5733 = vunpack.c.h.b16 %v5312
    %v5734 = vunpack.c.l.b16 %v5313
    %v5735 = vunpack.c.h.b16 %v5313
    %v5736 = vunpack.c.l.b16 %v5314
    %v5737 = vunpack.c.h.b16 %v5314
    %v5738 = vunpack.c.l.b16 %v5315
    %v5739 = vunpack.c.h.b16 %v5315
    %v5740 = vunpack.c.l.b16 %v5316
    %v5741 = vunpack.c.h.b16 %v5316
    %v5742 = vunpack.c.l.b16 %v5317
    %v5743 = vunpack.c.h.b16 %v5317
    %v5744 = vpack.c.b16 %v5496, %v5488
    %v5745 = vpack.c.b16 %v5497, %v5489
    %v5746 = vpack.c.b16 %v5498, %v5490
    %v5747 = vpack.c.b16 %v5499, %v5491
    %v5748 = vpack.c.b16 %v5500, %v5492
    %v5749 = vpack.c.b16 %v5501, %v5493
    %v5750 = vpack.c.b16 %v5502, %v5494
    %v5751 = vpack.c.b16 %v5503, %v5495
    %v5752 = vpack.c.b16 %v5512, %v5504
    %v5753 = vpack.c.b16 %v5513, %v5505
    %v5754 = vpack.c.b16 %v5514, %v5506
    %v5755 = vpack.c.b16 %v5515, %v5507
    %v5756 = vpack.c.b16 %v5516, %v5508
    %v5757 = vpack.c.b16 %v5517, %v5509
    %v5758 = vpack.c.b16 %v5518, %v5510
    %v5759 = vpack.c.b16 %v5519, %v5511
    %v5760 = vpack.c.b16 %v5528, %v5520
    %v5761 = vpack.c.b16 %v5529, %v5521
    %v5762 = vpack.c.b16 %v5530, %v5522
    %v5763 = vpack.c.b16 %v5531, %v5523
    %v5764 = vpack.c.b16 %v5532, %v5524
    %v5765 = vpack.c.b16 %v5533, %v5525
    %v5766 = vpack.c.b16 %v5534, %v5526
    %v5767 = vpack.c.b16 %v5535, %v5527
    %v5768 = vpack.c.b16 %v5544, %v5536
    %v5769 = vpack.c.b16 %v5545, %v5537
    %v5770 = vpack.c.b16 %v5546, %v5538
    %v5771 = vpack.c.b16 %v5547, %v5539
    %v5772 = vpack.c.b16 %v5548, %v5540
    %v5773 = vpack.c.b16 %v5549, %v5541
    %v5774 = vpack.c.b16 %v5550, %v5542
    %v5775 = vpack.c.b16 %v5551, %v5543
    %v5776 = vpack.c.b16 %v5560, %v5552
    %v5777 = vpack.c.b16 %v5561, %v5553
    %v5778 = vpack.c.b16 %v5562, %v5554
    %v5779 = vpack.c.b16 %v5563, %v5555
    %v5780 = vpack.c.b16 %v5564, %v5556
    %v5781 = vpack.c.b16 %v5565, %v5557
    %v5782 = vpack.c.b16 %v5566, %v5558
    %v5783 = vpack.c.b16 %v5567, %v5559
    %v5784 = vpack.c.b16 %v5576, %v5568
    %v5785 = vpack.c.b16 %v5577, %v5569
    %v5786 = vpack.c.b16 %v5578, %v5570
    %v5787 = vpack.c.b16 %v5579, %v5571
    %v5788 = vpack.c.b16 %v5580, %v5572
    %v5789 = vpack.c.b16 %v5581, %v5573
    %v5790 = vpack.c.b16 %v5582, %v5574
    %v5791 = vpack.c.b16 %v5583, %v5575
    %v5792 = vpack.c.b16 %v5592, %v5584
    %v5793 = vpack.c.b16 %v5593, %v5585
    %v5794 = vpack.c.b16 %v5594, %v5586
    %v5795 = vpack.c.b16 %v5595, %v5587
    %v5796 = vpack.c.b16 %v5596, %v5588
    %v5797 = vpack.c.b16 %v5597, %v5589
    %v5798 = vpack.c.b16 %v5598, %v5590
    %v5799 = vpack.c.b16 %v5599, %v5591
    %v5800 = vpack.c.b16 %v5608, %v5600
    %v5801 = vpack.c.b16 %v5609, %v5601
    %v5802 = vpack.c.b16 %v5610, %v5602
    %v5803 = vpack.c.b16 %v5611, %v5603
    %v5804 = vpack.c.b16 %v5612, %v5604
    %v5805 = vpack.c.b16 %v5613, %v5605
    %v5806 = vpack.c.b16 %v5614, %v5606
    %v5807 = vpack.c.b16 %v5615, %v5607
    %v5808 = vpack.c.b16 %v5624, %v5616
    %v5809 = vpack.c.b16 %v5625, %v5617
    %v5810 = vpack.c.b16 %v5626, %v5618
    %v5811 = vpack.c.b16 %v5627, %v5619
    %v5812 = vpack.c.b16 %v5628, %v5620
    %v5813 = vpack.c.b16 %v5629, %v5621
    %v5814 = vpack.c.b16 %v5630, %v5622
    %v5815 = vpack.c.b16 %v5631, %v5623
    %v5816 = vpack.c.b16 %v5640, %v5632
    %v5817 = vpack.c.b16 %v5641, %v5633
    %v5818 = vpack.c.b16 %v5642, %v5634
    %v5819 = vpack.c.b16 %v5643, %v5635
    %v5820 = vpack.c.b16 %v5644, %v5636
    %v5821 = vpack.c.b16 %v5645, %v5637
    %v5822 = vpack.c.b16 %v5646, %v5638
    %v5823 = vpack.c.b16 %v5647, %v5639
    %v5824 = vpack.c.b16 %v5656, %v5648
    %v5825 = vpack.c.b16 %v5657, %v5649
    %v5826 = vpack.c.b16 %v5658, %v5650
    %v5827 = vpack.c.b16 %v5659, %v5651
    %v5828 = vpack.c.b16 %v5660, %v5652
    %v5829 = vpack.c.b16 %v5661, %v5653
    %v5830 = vpack.c.b16 %v5662, %v5654
    %v5831 = vpack.c.b16 %v5663, %v5655
    %v5832 = vpack.c.b16 %v5672, %v5664
    %v5833 = vpack.c.b16 %v5673, %v5665
    %v5834 = vpack.c.b16 %v5674, %v5666
    %v5835 = vpack.c.b16 %v5675, %v5667
    %v5836 = vpack.c.b16 %v5676, %v5668
    %v5837 = vpack.c.b16 %v5677, %v5669
    %v5838 = vpack.c.b16 %v5678, %v5670
    %v5839 = vpack.c.b16 %v5679, %v5671
    %v5840 = vpack.c.b16 %v5688, %v5680
    %v5841 = vpack.c.b16 %v5689, %v5681
    %v5842 = vpack.c.b16 %v5690, %v5682
    %v5843 = vpack.c.b16 %v5691, %v5683
    %v5844 = vpack.c.b16 %v5692, %v5684
    %v5845 = vpack.c.b16 %v5693, %v5685
    %v5846 = vpack.c.b16 %v5694, %v5686
    %v5847 = vpack.c.b16 %v5695, %v5687
    %v5848 = vpack.c.b16 %v5704, %v5696
    %v5849 = vpack.c.b16 %v5705, %v5697
    %v5850 = vpack.c.b16 %v5706, %v5698
    %v5851 = vpack.c.b16 %v5707, %v5699
    %v5852 = vpack.c.b16 %v5708, %v5700
    %v5853 = vpack.c.b16 %v5709, %v5701
    %v5854 = vpack.c.b16 %v5710, %v5702
    %v5855 = vpack.c.b16 %v5711, %v5703
    %v5856 = vpack.c.b16 %v5720, %v5712
    %v5857 = vpack.c.b16 %v5721, %v5713
    %v5858 = vpack.c.b16 %v5722, %v5714
    %v5859 = vpack.c.b16 %v5723, %v5715
    %v5860 = vpack.c.b16 %v5724, %v5716
    %v5861 = vpack.c.b16 %v5725, %v5717
    %v5862 = vpack.c.b16 %v5726, %v5718
    %v5863 = vpack.c.b16 %v5727, %v5719
    %v5864 = vpack.c.b16 %v5736, %v5728
    %v5865 = vpack.c.b16 %v5737, %v5729
    %v5866 = vpack.c.b16 %v5738, %v5730
    %v5867 = vpack.c.b16 %v5739, %v5731
    %v5868 = vpack.c.b16 %v5740, %v5732
    %v5869 = vpack.c.b16 %v5741, %v5733
    %v5870 = vpack.c.b16 %v5742, %v5734
    %v5871 = vpack.c.b16 %v5743, %v5735
    %6000 = vmatprep.subr.bf16.mxu0 %v5745
    %6001 = vmatpush1.bf16.msra.mxu0 %v5744
    %6002 = vmatprep.subr.bf16.mxu0 %v5753
    %6003 = vmatpush1.bf16.msra.mxu0 %v5752
    %6004 = vmatprep.subr.bf16.mxu0 %v5761
    %6005 = vmatpush1.bf16.msra.mxu0 %v5760
    %6006 = vmatprep.subr.bf16.mxu0 %v5769
    %6007 = vmatpush1.bf16.msra.mxu0 %v5768
    %6008 = vmatprep.subr.bf16.mxu0 %v5777
    %6009 = vmatpush1.bf16.msra.mxu0 %v5776
    %6010 = vmatprep.subr.bf16.mxu0 %v5785
    %6011 = vmatpush1.bf16.msra.mxu0 %v5784
    %6012 = vmatprep.subr.bf16.mxu0 %v5793
    %6013 = vmatpush1.bf16.msra.mxu0 %v5792
    %6014 = vmatprep.subr.bf16.mxu0 %v5801
    %6015 = vmatpush1.bf16.msra.mxu0 %v5800
    %6016 = vmatprep.subr.bf16.mxu0 %v5809
    %6017 = vmatpush1.bf16.msra.mxu0 %v5808
    %6018 = vmatprep.subr.bf16.mxu0 %v5817
    %6019 = vmatpush1.bf16.msra.mxu0 %v5816
    %6020 = vmatprep.subr.bf16.mxu0 %v5825
    %6021 = vmatpush1.bf16.msra.mxu0 %v5824
    %6022 = vmatprep.subr.bf16.mxu0 %v5833
    %6023 = vmatpush1.bf16.msra.mxu0 %v5832
    %6024 = vmatprep.subr.bf16.mxu0 %v5841
    %6025 = vmatpush1.bf16.msra.mxu0 %v5840
    %6026 = vmatprep.subr.bf16.mxu0 %v5849
    %6027 = vmatpush1.bf16.msra.mxu0 %v5848
    %6028 = vmatprep.subr.bf16.mxu0 %v5857
    %6029 = vmatpush1.bf16.msra.mxu0 %v5856
    %6030 = vmatprep.subr.bf16.mxu0 %v5865
    %6031 = vmatpush1.bf16.msra.mxu0 %v5864
    %6032 = vmatprep.mubr.bf16.mxu0 %v5189
    %6033 = vmatmul.mubr.bf16.gmra.mrb[0].mxu0 %v5188
    %v6034 = vpop.f32.mrb[0].mxu0
    %v6035 = vadd.f32 %v5323, %v6034
    %v6036 = vpop.f32.mrb[0].mxu0
    %v6037 = vadd.f32 %v5327, %v6036
    %v6038 = vpop.f32.mrb[0].mxu0
    %v6039 = vpop.f32.mrb[0].mxu0
    %6040 = vdwg.mxu0
    %6041 = vmatprep.subr.bf16.mxu0 %v5747
    %6042 = vmatpush1.bf16.msra.mxu0 %v5746
    %6043 = vmatprep.subr.bf16.mxu0 %v5755
    %6044 = vmatpush1.bf16.msra.mxu0 %v5754
    %6045 = vmatprep.subr.bf16.mxu0 %v5763
    %6046 = vmatpush1.bf16.msra.mxu0 %v5762
    %6047 = vmatprep.subr.bf16.mxu0 %v5771
    %6048 = vmatpush1.bf16.msra.mxu0 %v5770
    %6049 = vmatprep.subr.bf16.mxu0 %v5779
    %6050 = vmatpush1.bf16.msra.mxu0 %v5778
    %6051 = vmatprep.subr.bf16.mxu0 %v5787
    %6052 = vmatpush1.bf16.msra.mxu0 %v5786
    %6053 = vmatprep.subr.bf16.mxu0 %v5795
    %6054 = vmatpush1.bf16.msra.mxu0 %v5794
    %6055 = vmatprep.subr.bf16.mxu0 %v5803
    %6056 = vmatpush1.bf16.msra.mxu0 %v5802
    %6057 = vmatprep.subr.bf16.mxu0 %v5811
    %6058 = vmatpush1.bf16.msra.mxu0 %v5810
    %6059 = vmatprep.subr.bf16.mxu0 %v5819
    %6060 = vmatpush1.bf16.msra.mxu0 %v5818
    %6061 = vmatprep.subr.bf16.mxu0 %v5827
    %6062 = vmatpush1.bf16.msra.mxu0 %v5826
    %6063 = vmatprep.subr.bf16.mxu0 %v5835
    %6064 = vmatpush1.bf16.msra.mxu0 %v5834
    %6065 = vmatprep.subr.bf16.mxu0 %v5843
    %6066 = vmatpush1.bf16.msra.mxu0 %v5842
    %6067 = vmatprep.subr.bf16.mxu0 %v5851
    %6068 = vmatpush1.bf16.msra.mxu0 %v5850
    %6069 = vmatprep.subr.bf16.mxu0 %v5859
    %6070 = vmatpush1.bf16.msra.mxu0 %v5858
    %6071 = vmatprep.subr.bf16.mxu0 %v5867
    %6072 = vmatpush1.bf16.msra.mxu0 %v5866
    %6073 = vmatprep.mubr.bf16.mxu0 %v5189
    %6074 = vmatmul.mubr.bf16.gmra.mrb[0].mxu0 %v5188
    %v6075 = vpop.f32.mrb[0].mxu0
    %v6076 = vadd.f32 %v5331, %v6075
    %v6077 = vpop.f32.mrb[0].mxu0
    %v6078 = vadd.f32 %v5335, %v6077
    %v6079 = vpop.f32.mrb[0].mxu0
    %v6080 = vpop.f32.mrb[0].mxu0
    %6081 = vdwg.mxu0
    %6082 = vmatprep.subr.bf16.mxu0 %v5749
    %6083 = vmatpush1.bf16.msra.mxu0 %v5748
    %6084 = vmatprep.subr.bf16.mxu0 %v5757
    %6085 = vmatpush1.bf16.msra.mxu0 %v5756
    %6086 = vmatprep.subr.bf16.mxu0 %v5765
    %6087 = vmatpush1.bf16.msra.mxu0 %v5764
    %6088 = vmatprep.subr.bf16.mxu0 %v5773
    %6089 = vmatpush1.bf16.msra.mxu0 %v5772
    %6090 = vmatprep.subr.bf16.mxu0 %v5781
    %6091 = vmatpush1.bf16.msra.mxu0 %v5780
    %6092 = vmatprep.subr.bf16.mxu0 %v5789
    %6093 = vmatpush1.bf16.msra.mxu0 %v5788
    %6094 = vmatprep.subr.bf16.mxu0 %v5797
    %6095 = vmatpush1.bf16.msra.mxu0 %v5796
    %6096 = vmatprep.subr.bf16.mxu0 %v5805
    %6097 = vmatpush1.bf16.msra.mxu0 %v5804
    %6098 = vmatprep.subr.bf16.mxu0 %v5813
    %6099 = vmatpush1.bf16.msra.mxu0 %v5812
    %6100 = vmatprep.subr.bf16.mxu0 %v5821
    %6101 = vmatpush1.bf16.msra.mxu0 %v5820
    %6102 = vmatprep.subr.bf16.mxu0 %v5829
    %6103 = vmatpush1.bf16.msra.mxu0 %v5828
    %6104 = vmatprep.subr.bf16.mxu0 %v5837
    %6105 = vmatpush1.bf16.msra.mxu0 %v5836
    %6106 = vmatprep.subr.bf16.mxu0 %v5845
    %6107 = vmatpush1.bf16.msra.mxu0 %v5844
    %6108 = vmatprep.subr.bf16.mxu0 %v5853
    %6109 = vmatpush1.bf16.msra.mxu0 %v5852
    %6110 = vmatprep.subr.bf16.mxu0 %v5861
    %6111 = vmatpush1.bf16.msra.mxu0 %v5860
    %6112 = vmatprep.subr.bf16.mxu0 %v5869
    %6113 = vmatpush1.bf16.msra.mxu0 %v5868
    %6114 = vmatprep.mubr.bf16.mxu0 %v5189
    %6115 = vmatmul.mubr.bf16.gmra.mrb[0].mxu0 %v5188
    %v6116 = vpop.f32.mrb[0].mxu0
    %v6117 = vadd.f32 %v5339, %v6116
    %v6118 = vpop.f32.mrb[0].mxu0
    %v6119 = vadd.f32 %v5343, %v6118
    %v6120 = vpop.f32.mrb[0].mxu0
    %v6121 = vpop.f32.mrb[0].mxu0
    %6122 = vdwg.mxu0
    %6123 = vmatprep.subr.bf16.mxu0 %v5751
    %6124 = vmatpush1.bf16.msra.mxu0 %v5750
    %6125 = vmatprep.subr.bf16.mxu0 %v5759
    %6126 = vmatpush1.bf16.msra.mxu0 %v5758
    %6127 = vmatprep.subr.bf16.mxu0 %v5767
    %6128 = vmatpush1.bf16.msra.mxu0 %v5766
    %6129 = vmatprep.subr.bf16.mxu0 %v5775
    %6130 = vmatpush1.bf16.msra.mxu0 %v5774
    %6131 = vmatprep.subr.bf16.mxu0 %v5783
    %6132 = vmatpush1.bf16.msra.mxu0 %v5782
    %6133 = vmatprep.subr.bf16.mxu0 %v5791
    %6134 = vmatpush1.bf16.msra.mxu0 %v5790
    %6135 = vmatprep.subr.bf16.mxu0 %v5799
    %6136 = vmatpush1.bf16.msra.mxu0 %v5798
    %6137 = vmatprep.subr.bf16.mxu0 %v5807
    %6138 = vmatpush1.bf16.msra.mxu0 %v5806
    %6139 = vmatprep.subr.bf16.mxu0 %v5815
    %6140 = vmatpush1.bf16.msra.mxu0 %v5814
    %6141 = vmatprep.subr.bf16.mxu0 %v5823
    %6142 = vmatpush1.bf16.msra.mxu0 %v5822
    %6143 = vmatprep.subr.bf16.mxu0 %v5831
    %6144 = vmatpush1.bf16.msra.mxu0 %v5830
    %6145 = vmatprep.subr.bf16.mxu0 %v5839
    %6146 = vmatpush1.bf16.msra.mxu0 %v5838
    %6147 = vmatprep.subr.bf16.mxu0 %v5847
    %6148 = vmatpush1.bf16.msra.mxu0 %v5846
    %6149 = vmatprep.subr.bf16.mxu0 %v5855
    %6150 = vmatpush1.bf16.msra.mxu0 %v5854
    %6151 = vmatprep.subr.bf16.mxu0 %v5863
    %6152 = vmatpush1.bf16.msra.mxu0 %v5862
    %6153 = vmatprep.subr.bf16.mxu0 %v5871
    %6154 = vmatpush1.bf16.msra.mxu0 %v5870
    %6155 = vmatprep.mubr.bf16.mxu0 %v5189
    %6156 = vmatmul.mubr.bf16.gmra.mrb[0].mxu0 %v5188
    %v6157 = vpop.f32.mrb[0].mxu0
    %v6158 = vadd.f32 %v5347, %v6157
    %v6159 = vpop.f32.mrb[0].mxu0
    %v6160 = vadd.f32 %v5351, %v6159
    %v6161 = vpop.f32.mrb[0].mxu0
    %v6162 = vpop.f32.mrb[0].mxu0
    %6163 = vdwg.mxu0
    %v6292 = vunpack.c.l.b16 %v5060
    %v6293 = vunpack.c.h.b16 %v5060
    %v6294 = vunpack.c.l.b16 %v5061
    %v6295 = vunpack.c.h.b16 %v5061
    %v6296 = vunpack.c.l.b16 %v5062
    %v6297 = vunpack.c.h.b16 %v5062
    %v6298 = vunpack.c.l.b16 %v5063
    %v6299 = vunpack.c.h.b16 %v5063
    %v6300 = vunpack.c.l.b16 %v5064
    %v6301 = vunpack.c.h.b16 %v5064
    %v6302 = vunpack.c.l.b16 %v5065
    %v6303 = vunpack.c.h.b16 %v5065
    %v6304 = vunpack.c.l.b16 %v5066
    %v6305 = vunpack.c.h.b16 %v5066
    %v6306 = vunpack.c.l.b16 %v5067
    %v6307 = vunpack.c.h.b16 %v5067
    %v6308 = vunpack.c.l.b16 %v5068
    %v6309 = vunpack.c.h.b16 %v5068
    %v6310 = vunpack.c.l.b16 %v5069
    %v6311 = vunpack.c.h.b16 %v5069
    %v6312 = vunpack.c.l.b16 %v5070
    %v6313 = vunpack.c.h.b16 %v5070
    %v6314 = vunpack.c.l.b16 %v5071
    %v6315 = vunpack.c.h.b16 %v5071
    %v6316 = vunpack.c.l.b16 %v5072
    %v6317 = vunpack.c.h.b16 %v5072
    %v6318 = vunpack.c.l.b16 %v5073
    %v6319 = vunpack.c.h.b16 %v5073
    %v6320 = vunpack.c.l.b16 %v5074
    %v6321 = vunpack.c.h.b16 %v5074
    %v6322 = vunpack.c.l.b16 %v5075
    %v6323 = vunpack.c.h.b16 %v5075
    %v6324 = vunpack.c.l.b16 %v5076
    %v6325 = vunpack.c.h.b16 %v5076
    %v6326 = vunpack.c.l.b16 %v5077
    %v6327 = vunpack.c.h.b16 %v5077
    %v6328 = vunpack.c.l.b16 %v5078
    %v6329 = vunpack.c.h.b16 %v5078
    %v6330 = vunpack.c.l.b16 %v5079
    %v6331 = vunpack.c.h.b16 %v5079
    %v6332 = vunpack.c.l.b16 %v5080
    %v6333 = vunpack.c.h.b16 %v5080
    %v6334 = vunpack.c.l.b16 %v5081
    %v6335 = vunpack.c.h.b16 %v5081
    %v6336 = vunpack.c.l.b16 %v5082
    %v6337 = vunpack.c.h.b16 %v5082
    %v6338 = vunpack.c.l.b16 %v5083
    %v6339 = vunpack.c.h.b16 %v5083
    %v6340 = vunpack.c.l.b16 %v5084
    %v6341 = vunpack.c.h.b16 %v5084
    %v6342 = vunpack.c.l.b16 %v5085
    %v6343 = vunpack.c.h.b16 %v5085
    %v6344 = vunpack.c.l.b16 %v5086
    %v6345 = vunpack.c.h.b16 %v5086
    %v6346 = vunpack.c.l.b16 %v5087
    %v6347 = vunpack.c.h.b16 %v5087
    %v6348 = vunpack.c.l.b16 %v5088
    %v6349 = vunpack.c.h.b16 %v5088
    %v6350 = vunpack.c.l.b16 %v5089
    %v6351 = vunpack.c.h.b16 %v5089
    %v6352 = vunpack.c.l.b16 %v5090
    %v6353 = vunpack.c.h.b16 %v5090
    %v6354 = vunpack.c.l.b16 %v5091
    %v6355 = vunpack.c.h.b16 %v5091
    %v6356 = vunpack.c.l.b16 %v5092
    %v6357 = vunpack.c.h.b16 %v5092
    %v6358 = vunpack.c.l.b16 %v5093
    %v6359 = vunpack.c.h.b16 %v5093
    %v6360 = vunpack.c.l.b16 %v5094
    %v6361 = vunpack.c.h.b16 %v5094
    %v6362 = vunpack.c.l.b16 %v5095
    %v6363 = vunpack.c.h.b16 %v5095
    %v6364 = vunpack.c.l.b16 %v5096
    %v6365 = vunpack.c.h.b16 %v5096
    %v6366 = vunpack.c.l.b16 %v5097
    %v6367 = vunpack.c.h.b16 %v5097
    %v6368 = vunpack.c.l.b16 %v5098
    %v6369 = vunpack.c.h.b16 %v5098
    %v6370 = vunpack.c.l.b16 %v5099
    %v6371 = vunpack.c.h.b16 %v5099
    %v6372 = vunpack.c.l.b16 %v5100
    %v6373 = vunpack.c.h.b16 %v5100
    %v6374 = vunpack.c.l.b16 %v5101
    %v6375 = vunpack.c.h.b16 %v5101
    %v6376 = vunpack.c.l.b16 %v5102
    %v6377 = vunpack.c.h.b16 %v5102
    %v6378 = vunpack.c.l.b16 %v5103
    %v6379 = vunpack.c.h.b16 %v5103
    %v6380 = vunpack.c.l.b16 %v5104
    %v6381 = vunpack.c.h.b16 %v5104
    %v6382 = vunpack.c.l.b16 %v5105
    %v6383 = vunpack.c.h.b16 %v5105
    %v6384 = vunpack.c.l.b16 %v5106
    %v6385 = vunpack.c.h.b16 %v5106
    %v6386 = vunpack.c.l.b16 %v5107
    %v6387 = vunpack.c.h.b16 %v5107
    %v6388 = vunpack.c.l.b16 %v5108
    %v6389 = vunpack.c.h.b16 %v5108
    %v6390 = vunpack.c.l.b16 %v5109
    %v6391 = vunpack.c.h.b16 %v5109
    %v6392 = vunpack.c.l.b16 %v5110
    %v6393 = vunpack.c.h.b16 %v5110
    %v6394 = vunpack.c.l.b16 %v5111
    %v6395 = vunpack.c.h.b16 %v5111
    %v6396 = vunpack.c.l.b16 %v5112
    %v6397 = vunpack.c.h.b16 %v5112
    %v6398 = vunpack.c.l.b16 %v5113
    %v6399 = vunpack.c.h.b16 %v5113
    %v6400 = vunpack.c.l.b16 %v5114
    %v6401 = vunpack.c.h.b16 %v5114
    %v6402 = vunpack.c.l.b16 %v5115
    %v6403 = vunpack.c.h.b16 %v5115
    %v6404 = vunpack.c.l.b16 %v5116
    %v6405 = vunpack.c.h.b16 %v5116
    %v6406 = vunpack.c.l.b16 %v5117
    %v6407 = vunpack.c.h.b16 %v5117
    %v6408 = vunpack.c.l.b16 %v5118
    %v6409 = vunpack.c.h.b16 %v5118
    %v6410 = vunpack.c.l.b16 %v5119
    %v6411 = vunpack.c.h.b16 %v5119
    %v6412 = vunpack.c.l.b16 %v5120
    %v6413 = vunpack.c.h.b16 %v5120
    %v6414 = vunpack.c.l.b16 %v5121
    %v6415 = vunpack.c.h.b16 %v5121
    %v6416 = vunpack.c.l.b16 %v5122
    %v6417 = vunpack.c.h.b16 %v5122
    %v6418 = vunpack.c.l.b16 %v5123
    %v6419 = vunpack.c.h.b16 %v5123
    %v6420 = vunpack.c.l.b16 %v5124
    %v6421 = vunpack.c.h.b16 %v5124
    %v6422 = vunpack.c.l.b16 %v5125
    %v6423 = vunpack.c.h.b16 %v5125
    %v6424 = vunpack.c.l.b16 %v5126
    %v6425 = vunpack.c.h.b16 %v5126
    %v6426 = vunpack.c.l.b16 %v5127
    %v6427 = vunpack.c.h.b16 %v5127
    %v6428 = vunpack.c.l.b16 %v5128
    %v6429 = vunpack.c.h.b16 %v5128
    %v6430 = vunpack.c.l.b16 %v5129
    %v6431 = vunpack.c.h.b16 %v5129
    %v6432 = vunpack.c.l.b16 %v5130
    %v6433 = vunpack.c.h.b16 %v5130
    %v6434 = vunpack.c.l.b16 %v5131
    %v6435 = vunpack.c.h.b16 %v5131
    %v6436 = vunpack.c.l.b16 %v5132
    %v6437 = vunpack.c.h.b16 %v5132
    %v6438 = vunpack.c.l.b16 %v5133
    %v6439 = vunpack.c.h.b16 %v5133
    %v6440 = vunpack.c.l.b16 %v5134
    %v6441 = vunpack.c.h.b16 %v5134
    %v6442 = vunpack.c.l.b16 %v5135
    %v6443 = vunpack.c.h.b16 %v5135
    %v6444 = vunpack.c.l.b16 %v5136
    %v6445 = vunpack.c.h.b16 %v5136
    %v6446 = vunpack.c.l.b16 %v5137
    %v6447 = vunpack.c.h.b16 %v5137
    %v6448 = vunpack.c.l.b16 %v5138
    %v6449 = vunpack.c.h.b16 %v5138
    %v6450 = vunpack.c.l.b16 %v5139
    %v6451 = vunpack.c.h.b16 %v5139
    %v6452 = vunpack.c.l.b16 %v5140
    %v6453 = vunpack.c.h.b16 %v5140
    %v6454 = vunpack.c.l.b16 %v5141
    %v6455 = vunpack.c.h.b16 %v5141
    %v6456 = vunpack.c.l.b16 %v5142
    %v6457 = vunpack.c.h.b16 %v5142
    %v6458 = vunpack.c.l.b16 %v5143
    %v6459 = vunpack.c.h.b16 %v5143
    %v6460 = vunpack.c.l.b16 %v5144
    %v6461 = vunpack.c.h.b16 %v5144
    %v6462 = vunpack.c.l.b16 %v5145
    %v6463 = vunpack.c.h.b16 %v5145
    %v6464 = vunpack.c.l.b16 %v5146
    %v6465 = vunpack.c.h.b16 %v5146
    %v6466 = vunpack.c.l.b16 %v5147
    %v6467 = vunpack.c.h.b16 %v5147
    %v6468 = vunpack.c.l.b16 %v5148
    %v6469 = vunpack.c.h.b16 %v5148
    %v6470 = vunpack.c.l.b16 %v5149
    %v6471 = vunpack.c.h.b16 %v5149
    %v6472 = vunpack.c.l.b16 %v5150
    %v6473 = vunpack.c.h.b16 %v5150
    %v6474 = vunpack.c.l.b16 %v5151
    %v6475 = vunpack.c.h.b16 %v5151
    %v6476 = vunpack.c.l.b16 %v5152
    %v6477 = vunpack.c.h.b16 %v5152
    %v6478 = vunpack.c.l.b16 %v5153
    %v6479 = vunpack.c.h.b16 %v5153
    %v6480 = vunpack.c.l.b16 %v5154
    %v6481 = vunpack.c.h.b16 %v5154
    %v6482 = vunpack.c.l.b16 %v5155
    %v6483 = vunpack.c.h.b16 %v5155
    %v6484 = vunpack.c.l.b16 %v5156
    %v6485 = vunpack.c.h.b16 %v5156
    %v6486 = vunpack.c.l.b16 %v5157
    %v6487 = vunpack.c.h.b16 %v5157
    %v6488 = vunpack.c.l.b16 %v5158
    %v6489 = vunpack.c.h.b16 %v5158
    %v6490 = vunpack.c.l.b16 %v5159
    %v6491 = vunpack.c.h.b16 %v5159
    %v6492 = vunpack.c.l.b16 %v5160
    %v6493 = vunpack.c.h.b16 %v5160
    %v6494 = vunpack.c.l.b16 %v5161
    %v6495 = vunpack.c.h.b16 %v5161
    %v6496 = vunpack.c.l.b16 %v5162
    %v6497 = vunpack.c.h.b16 %v5162
    %v6498 = vunpack.c.l.b16 %v5163
    %v6499 = vunpack.c.h.b16 %v5163
    %v6500 = vunpack.c.l.b16 %v5164
    %v6501 = vunpack.c.h.b16 %v5164
    %v6502 = vunpack.c.l.b16 %v5165
    %v6503 = vunpack.c.h.b16 %v5165
    %v6504 = vunpack.c.l.b16 %v5166
    %v6505 = vunpack.c.h.b16 %v5166
    %v6506 = vunpack.c.l.b16 %v5167
    %v6507 = vunpack.c.h.b16 %v5167
    %v6508 = vunpack.c.l.b16 %v5168
    %v6509 = vunpack.c.h.b16 %v5168
    %v6510 = vunpack.c.l.b16 %v5169
    %v6511 = vunpack.c.h.b16 %v5169
    %v6512 = vunpack.c.l.b16 %v5170
    %v6513 = vunpack.c.h.b16 %v5170
    %v6514 = vunpack.c.l.b16 %v5171
    %v6515 = vunpack.c.h.b16 %v5171
    %v6516 = vunpack.c.l.b16 %v5172
    %v6517 = vunpack.c.h.b16 %v5172
    %v6518 = vunpack.c.l.b16 %v5173
    %v6519 = vunpack.c.h.b16 %v5173
    %v6520 = vunpack.c.l.b16 %v5174
    %v6521 = vunpack.c.h.b16 %v5174
    %v6522 = vunpack.c.l.b16 %v5175
    %v6523 = vunpack.c.h.b16 %v5175
    %v6524 = vunpack.c.l.b16 %v5176
    %v6525 = vunpack.c.h.b16 %v5176
    %v6526 = vunpack.c.l.b16 %v5177
    %v6527 = vunpack.c.h.b16 %v5177
    %v6528 = vunpack.c.l.b16 %v5178
    %v6529 = vunpack.c.h.b16 %v5178
    %v6530 = vunpack.c.l.b16 %v5179
    %v6531 = vunpack.c.h.b16 %v5179
    %v6532 = vunpack.c.l.b16 %v5180
    %v6533 = vunpack.c.h.b16 %v5180
    %v6534 = vunpack.c.l.b16 %v5181
    %v6535 = vunpack.c.h.b16 %v5181
    %v6536 = vunpack.c.l.b16 %v5182
    %v6537 = vunpack.c.h.b16 %v5182
    %v6538 = vunpack.c.l.b16 %v5183
    %v6539 = vunpack.c.h.b16 %v5183
    %v6540 = vunpack.c.l.b16 %v5184
    %v6541 = vunpack.c.h.b16 %v5184
    %v6542 = vunpack.c.l.b16 %v5185
    %v6543 = vunpack.c.h.b16 %v5185
    %v6544 = vunpack.c.l.b16 %v5186
    %v6545 = vunpack.c.h.b16 %v5186
    %v6546 = vunpack.c.l.b16 %v5187
    %v6547 = vunpack.c.h.b16 %v5187
    %v6548 = vpack.c.b16 %v6300, %v6292
    %v6549 = vpack.c.b16 %v6301, %v6293
    %v6550 = vpack.c.b16 %v6302, %v6294
    %v6551 = vpack.c.b16 %v6303, %v6295
    %v6552 = vpack.c.b16 %v6304, %v6296
    %v6553 = vpack.c.b16 %v6305, %v6297
    %v6554 = vpack.c.b16 %v6306, %v6298
    %v6555 = vpack.c.b16 %v6307, %v6299
    %v6556 = vpack.c.b16 %v6316, %v6308
    %v6557 = vpack.c.b16 %v6317, %v6309
    %v6558 = vpack.c.b16 %v6318, %v6310
    %v6559 = vpack.c.b16 %v6319, %v6311
    %v6560 = vpack.c.b16 %v6320, %v6312
    %v6561 = vpack.c.b16 %v6321, %v6313
    %v6562 = vpack.c.b16 %v6322, %v6314
    %v6563 = vpack.c.b16 %v6323, %v6315
    %v6564 = vpack.c.b16 %v6332, %v6324
    %v6565 = vpack.c.b16 %v6333, %v6325
    %v6566 = vpack.c.b16 %v6334, %v6326
    %v6567 = vpack.c.b16 %v6335, %v6327
    %v6568 = vpack.c.b16 %v6336, %v6328
    %v6569 = vpack.c.b16 %v6337, %v6329
    %v6570 = vpack.c.b16 %v6338, %v6330
    %v6571 = vpack.c.b16 %v6339, %v6331
    %v6572 = vpack.c.b16 %v6348, %v6340
    %v6573 = vpack.c.b16 %v6349, %v6341
    %v6574 = vpack.c.b16 %v6350, %v6342
    %v6575 = vpack.c.b16 %v6351, %v6343
    %v6576 = vpack.c.b16 %v6352, %v6344
    %v6577 = vpack.c.b16 %v6353, %v6345
    %v6578 = vpack.c.b16 %v6354, %v6346
    %v6579 = vpack.c.b16 %v6355, %v6347
    %v6580 = vpack.c.b16 %v6364, %v6356
    %v6581 = vpack.c.b16 %v6365, %v6357
    %v6582 = vpack.c.b16 %v6366, %v6358
    %v6583 = vpack.c.b16 %v6367, %v6359
    %v6584 = vpack.c.b16 %v6368, %v6360
    %v6585 = vpack.c.b16 %v6369, %v6361
    %v6586 = vpack.c.b16 %v6370, %v6362
    %v6587 = vpack.c.b16 %v6371, %v6363
    %v6588 = vpack.c.b16 %v6380, %v6372
    %v6589 = vpack.c.b16 %v6381, %v6373
    %v6590 = vpack.c.b16 %v6382, %v6374
    %v6591 = vpack.c.b16 %v6383, %v6375
    %v6592 = vpack.c.b16 %v6384, %v6376
    %v6593 = vpack.c.b16 %v6385, %v6377
    %v6594 = vpack.c.b16 %v6386, %v6378
    %v6595 = vpack.c.b16 %v6387, %v6379
    %v6596 = vpack.c.b16 %v6396, %v6388
    %v6597 = vpack.c.b16 %v6397, %v6389
    %v6598 = vpack.c.b16 %v6398, %v6390
    %v6599 = vpack.c.b16 %v6399, %v6391
    %v6600 = vpack.c.b16 %v6400, %v6392
    %v6601 = vpack.c.b16 %v6401, %v6393
    %v6602 = vpack.c.b16 %v6402, %v6394
    %v6603 = vpack.c.b16 %v6403, %v6395
    %v6604 = vpack.c.b16 %v6412, %v6404
    %v6605 = vpack.c.b16 %v6413, %v6405
    %v6606 = vpack.c.b16 %v6414, %v6406
    %v6607 = vpack.c.b16 %v6415, %v6407
    %v6608 = vpack.c.b16 %v6416, %v6408
    %v6609 = vpack.c.b16 %v6417, %v6409
    %v6610 = vpack.c.b16 %v6418, %v6410
    %v6611 = vpack.c.b16 %v6419, %v6411
    %v6612 = vpack.c.b16 %v6428, %v6420
    %v6613 = vpack.c.b16 %v6429, %v6421
    %v6614 = vpack.c.b16 %v6430, %v6422
    %v6615 = vpack.c.b16 %v6431, %v6423
    %v6616 = vpack.c.b16 %v6432, %v6424
    %v6617 = vpack.c.b16 %v6433, %v6425
    %v6618 = vpack.c.b16 %v6434, %v6426
    %v6619 = vpack.c.b16 %v6435, %v6427
    %v6620 = vpack.c.b16 %v6444, %v6436
    %v6621 = vpack.c.b16 %v6445, %v6437
    %v6622 = vpack.c.b16 %v6446, %v6438
    %v6623 = vpack.c.b16 %v6447, %v6439
    %v6624 = vpack.c.b16 %v6448, %v6440
    %v6625 = vpack.c.b16 %v6449, %v6441
    %v6626 = vpack.c.b16 %v6450, %v6442
    %v6627 = vpack.c.b16 %v6451, %v6443
    %v6628 = vpack.c.b16 %v6460, %v6452
    %v6629 = vpack.c.b16 %v6461, %v6453
    %v6630 = vpack.c.b16 %v6462, %v6454
    %v6631 = vpack.c.b16 %v6463, %v6455
    %v6632 = vpack.c.b16 %v6464, %v6456
    %v6633 = vpack.c.b16 %v6465, %v6457
    %v6634 = vpack.c.b16 %v6466, %v6458
    %v6635 = vpack.c.b16 %v6467, %v6459
    %v6636 = vpack.c.b16 %v6476, %v6468
    %v6637 = vpack.c.b16 %v6477, %v6469
    %v6638 = vpack.c.b16 %v6478, %v6470
    %v6639 = vpack.c.b16 %v6479, %v6471
    %v6640 = vpack.c.b16 %v6480, %v6472
    %v6641 = vpack.c.b16 %v6481, %v6473
    %v6642 = vpack.c.b16 %v6482, %v6474
    %v6643 = vpack.c.b16 %v6483, %v6475
    %v6644 = vpack.c.b16 %v6492, %v6484
    %v6645 = vpack.c.b16 %v6493, %v6485
    %v6646 = vpack.c.b16 %v6494, %v6486
    %v6647 = vpack.c.b16 %v6495, %v6487
    %v6648 = vpack.c.b16 %v6496, %v6488
    %v6649 = vpack.c.b16 %v6497, %v6489
    %v6650 = vpack.c.b16 %v6498, %v6490
    %v6651 = vpack.c.b16 %v6499, %v6491
    %v6652 = vpack.c.b16 %v6508, %v6500
    %v6653 = vpack.c.b16 %v6509, %v6501
    %v6654 = vpack.c.b16 %v6510, %v6502
    %v6655 = vpack.c.b16 %v6511, %v6503
    %v6656 = vpack.c.b16 %v6512, %v6504
    %v6657 = vpack.c.b16 %v6513, %v6505
    %v6658 = vpack.c.b16 %v6514, %v6506
    %v6659 = vpack.c.b16 %v6515, %v6507
    %v6660 = vpack.c.b16 %v6524, %v6516
    %v6661 = vpack.c.b16 %v6525, %v6517
    %v6662 = vpack.c.b16 %v6526, %v6518
    %v6663 = vpack.c.b16 %v6527, %v6519
    %v6664 = vpack.c.b16 %v6528, %v6520
    %v6665 = vpack.c.b16 %v6529, %v6521
    %v6666 = vpack.c.b16 %v6530, %v6522
    %v6667 = vpack.c.b16 %v6531, %v6523
    %v6668 = vpack.c.b16 %v6540, %v6532
    %v6669 = vpack.c.b16 %v6541, %v6533
    %v6670 = vpack.c.b16 %v6542, %v6534
    %v6671 = vpack.c.b16 %v6543, %v6535
    %v6672 = vpack.c.b16 %v6544, %v6536
    %v6673 = vpack.c.b16 %v6545, %v6537
    %v6674 = vpack.c.b16 %v6546, %v6538
    %v6675 = vpack.c.b16 %v6547, %v6539
    %6804 = vmatprep.subr.bf16.mxu0 %v6549
    %6805 = vmatpush1.bf16.msra.mxu0 %v6548
    %6806 = vmatprep.subr.bf16.mxu0 %v6557
    %6807 = vmatpush1.bf16.msra.mxu0 %v6556
    %6808 = vmatprep.subr.bf16.mxu0 %v6565
    %6809 = vmatpush1.bf16.msra.mxu0 %v6564
    %6810 = vmatprep.subr.bf16.mxu0 %v6573
    %6811 = vmatpush1.bf16.msra.mxu0 %v6572
    %6812 = vmatprep.subr.bf16.mxu0 %v6581
    %6813 = vmatpush1.bf16.msra.mxu0 %v6580
    %6814 = vmatprep.subr.bf16.mxu0 %v6589
    %6815 = vmatpush1.bf16.msra.mxu0 %v6588
    %6816 = vmatprep.subr.bf16.mxu0 %v6597
    %6817 = vmatpush1.bf16.msra.mxu0 %v6596
    %6818 = vmatprep.subr.bf16.mxu0 %v6605
    %6819 = vmatpush1.bf16.msra.mxu0 %v6604
    %6820 = vmatprep.subr.bf16.mxu0 %v6613
    %6821 = vmatpush1.bf16.msra.mxu0 %v6612
    %6822 = vmatprep.subr.bf16.mxu0 %v6621
    %6823 = vmatpush1.bf16.msra.mxu0 %v6620
    %6824 = vmatprep.subr.bf16.mxu0 %v6629
    %6825 = vmatpush1.bf16.msra.mxu0 %v6628
    %6826 = vmatprep.subr.bf16.mxu0 %v6637
    %6827 = vmatpush1.bf16.msra.mxu0 %v6636
    %6828 = vmatprep.subr.bf16.mxu0 %v6645
    %6829 = vmatpush1.bf16.msra.mxu0 %v6644
    %6830 = vmatprep.subr.bf16.mxu0 %v6653
    %6831 = vmatpush1.bf16.msra.mxu0 %v6652
    %6832 = vmatprep.subr.bf16.mxu0 %v6661
    %6833 = vmatpush1.bf16.msra.mxu0 %v6660
    %6834 = vmatprep.subr.bf16.mxu0 %v6669
    %6835 = vmatpush1.bf16.msra.mxu0 %v6668
    %6836 = vmatprep.mubr.bf16.mxu0 0
    %6837 = vmatmul.mubr.bf16.gmra.mrb[0].mxu0 0
    %v6838 = vpop.f32.mrb[0].mxu0
    %v6839 = vadd.f32 0.0, %v6838
    %v6840 = vpop.f32.mrb[0].mxu0
    %v6841 = vadd.f32 0.0, %v6840
    %v6842 = vpop.f32.mrb[0].mxu0
    %v6843 = vpop.f32.mrb[0].mxu0
    %6844 = vdwg.mxu0
    %6845 = vmatprep.subr.bf16.mxu0 %v6551
    %6846 = vmatpush1.bf16.msra.mxu0 %v6550
    %6847 = vmatprep.subr.bf16.mxu0 %v6559
    %6848 = vmatpush1.bf16.msra.mxu0 %v6558
    %6849 = vmatprep.subr.bf16.mxu0 %v6567
    %6850 = vmatpush1.bf16.msra.mxu0 %v6566
    %6851 = vmatprep.subr.bf16.mxu0 %v6575
    %6852 = vmatpush1.bf16.msra.mxu0 %v6574
    %6853 = vmatprep.subr.bf16.mxu0 %v6583
    %6854 = vmatpush1.bf16.msra.mxu0 %v6582
    %6855 = vmatprep.subr.bf16.mxu0 %v6591
    %6856 = vmatpush1.bf16.msra.mxu0 %v6590
    %6857 = vmatprep.subr.bf16.mxu0 %v6599
    %6858 = vmatpush1.bf16.msra.mxu0 %v6598
    %6859 = vmatprep.subr.bf16.mxu0 %v6607
    %6860 = vmatpush1.bf16.msra.mxu0 %v6606
    %6861 = vmatprep.subr.bf16.mxu0 %v6615
    %6862 = vmatpush1.bf16.msra.mxu0 %v6614
    %6863 = vmatprep.subr.bf16.mxu0 %v6623
    %6864 = vmatpush1.bf16.msra.mxu0 %v6622
    %6865 = vmatprep.subr.bf16.mxu0 %v6631
    %6866 = vmatpush1.bf16.msra.mxu0 %v6630
    %6867 = vmatprep.subr.bf16.mxu0 %v6639
    %6868 = vmatpush1.bf16.msra.mxu0 %v6638
    %6869 = vmatprep.subr.bf16.mxu0 %v6647
    %6870 = vmatpush1.bf16.msra.mxu0 %v6646
    %6871 = vmatprep.subr.bf16.mxu0 %v6655
    %6872 = vmatpush1.bf16.msra.mxu0 %v6654
    %6873 = vmatprep.subr.bf16.mxu0 %v6663
    %6874 = vmatpush1.bf16.msra.mxu0 %v6662
    %6875 = vmatprep.subr.bf16.mxu0 %v6671
    %6876 = vmatpush1.bf16.msra.mxu0 %v6670
    %6877 = vmatprep.mubr.bf16.mxu0 0
    %6878 = vmatmul.mubr.bf16.gmra.mrb[0].mxu0 0
    %v6879 = vpop.f32.mrb[0].mxu0
    %v6880 = vadd.f32 0.0, %v6879
    %v6881 = vpop.f32.mrb[0].mxu0
    %v6882 = vadd.f32 0.0, %v6881
    %v6883 = vpop.f32.mrb[0].mxu0
    %v6884 = vpop.f32.mrb[0].mxu0
    %6885 = vdwg.mxu0
    %6886 = vmatprep.subr.bf16.mxu0 %v6553
    %6887 = vmatpush1.bf16.msra.mxu0 %v6552
    %6888 = vmatprep.subr.bf16.mxu0 %v6561
    %6889 = vmatpush1.bf16.msra.mxu0 %v6560
    %6890 = vmatprep.subr.bf16.mxu0 %v6569
    %6891 = vmatpush1.bf16.msra.mxu0 %v6568
    %6892 = vmatprep.subr.bf16.mxu0 %v6577
    %6893 = vmatpush1.bf16.msra.mxu0 %v6576
    %6894 = vmatprep.subr.bf16.mxu0 %v6585
    %6895 = vmatpush1.bf16.msra.mxu0 %v6584
    %6896 = vmatprep.subr.bf16.mxu0 %v6593
    %6897 = vmatpush1.bf16.msra.mxu0 %v6592
    %6898 = vmatprep.subr.bf16.mxu0 %v6601
    %6899 = vmatpush1.bf16.msra.mxu0 %v6600
    %6900 = vmatprep.subr.bf16.mxu0 %v6609
    %6901 = vmatpush1.bf16.msra.mxu0 %v6608
    %6902 = vmatprep.subr.bf16.mxu0 %v6617
    %6903 = vmatpush1.bf16.msra.mxu0 %v6616
    %6904 = vmatprep.subr.bf16.mxu0 %v6625
    %6905 = vmatpush1.bf16.msra.mxu0 %v6624
    %6906 = vmatprep.subr.bf16.mxu0 %v6633
    %6907 = vmatpush1.bf16.msra.mxu0 %v6632
    %6908 = vmatprep.subr.bf16.mxu0 %v6641
    %6909 = vmatpush1.bf16.msra.mxu0 %v6640
    %6910 = vmatprep.subr.bf16.mxu0 %v6649
    %6911 = vmatpush1.bf16.msra.mxu0 %v6648
    %6912 = vmatprep.subr.bf16.mxu0 %v6657
    %6913 = vmatpush1.bf16.msra.mxu0 %v6656
    %6914 = vmatprep.subr.bf16.mxu0 %v6665
    %6915 = vmatpush1.bf16.msra.mxu0 %v6664
    %6916 = vmatprep.subr.bf16.mxu0 %v6673
    %6917 = vmatpush1.bf16.msra.mxu0 %v6672
    %6918 = vmatprep.mubr.bf16.mxu0 0
    %6919 = vmatmul.mubr.bf16.gmra.mrb[0].mxu0 0
    %v6920 = vpop.f32.mrb[0].mxu0
    %v6921 = vadd.f32 0.0, %v6920
    %v6922 = vpop.f32.mrb[0].mxu0
    %v6923 = vadd.f32 0.0, %v6922
    %v6924 = vpop.f32.mrb[0].mxu0
    %v6925 = vpop.f32.mrb[0].mxu0
    %6926 = vdwg.mxu0
    %6927 = vmatprep.subr.bf16.mxu0 %v6555
    %6928 = vmatpush1.bf16.msra.mxu0 %v6554
    %6929 = vmatprep.subr.bf16.mxu0 %v6563
    %6930 = vmatpush1.bf16.msra.mxu0 %v6562
    %6931 = vmatprep.subr.bf16.mxu0 %v6571
    %6932 = vmatpush1.bf16.msra.mxu0 %v6570
    %6933 = vmatprep.subr.bf16.mxu0 %v6579
    %6934 = vmatpush1.bf16.msra.mxu0 %v6578
    %6935 = vmatprep.subr.bf16.mxu0 %v6587
    %6936 = vmatpush1.bf16.msra.mxu0 %v6586
    %6937 = vmatprep.subr.bf16.mxu0 %v6595
    %6938 = vmatpush1.bf16.msra.mxu0 %v6594
    %6939 = vmatprep.subr.bf16.mxu0 %v6603
    %6940 = vmatpush1.bf16.msra.mxu0 %v6602
    %6941 = vmatprep.subr.bf16.mxu0 %v6611
    %6942 = vmatpush1.bf16.msra.mxu0 %v6610
    %6943 = vmatprep.subr.bf16.mxu0 %v6619
    %6944 = vmatpush1.bf16.msra.mxu0 %v6618
    %6945 = vmatprep.subr.bf16.mxu0 %v6627
    %6946 = vmatpush1.bf16.msra.mxu0 %v6626
    %6947 = vmatprep.subr.bf16.mxu0 %v6635
    %6948 = vmatpush1.bf16.msra.mxu0 %v6634
    %6949 = vmatprep.subr.bf16.mxu0 %v6643
    %6950 = vmatpush1.bf16.msra.mxu0 %v6642
    %6951 = vmatprep.subr.bf16.mxu0 %v6651
    %6952 = vmatpush1.bf16.msra.mxu0 %v6650
    %6953 = vmatprep.subr.bf16.mxu0 %v6659
    %6954 = vmatpush1.bf16.msra.mxu0 %v6658
    %6955 = vmatprep.subr.bf16.mxu0 %v6667
    %6956 = vmatpush1.bf16.msra.mxu0 %v6666
    %6957 = vmatprep.subr.bf16.mxu0 %v6675
    %6958 = vmatpush1.bf16.msra.mxu0 %v6674
    %6959 = vmatprep.mubr.bf16.mxu0 0
    %6960 = vmatmul.mubr.bf16.gmra.mrb[0].mxu0 0
    %v6961 = vpop.f32.mrb[0].mxu0
    %v6962 = vadd.f32 0.0, %v6961
    %v6963 = vpop.f32.mrb[0].mxu0
    %v6964 = vadd.f32 0.0, %v6963
    %v6965 = vpop.f32.mrb[0].mxu0
    %v6966 = vpop.f32.mrb[0].mxu0
    %6967 = vdwg.mxu0
    %v6968 = vadd.f32 %v6035, %v6839
    %v6969 = vadd.f32 %v6037, %v6841
    %v6970 = vadd.f32 %v6076, %v6880
    %v6971 = vadd.f32 %v6078, %v6882
    %v6972 = vadd.f32 %v6117, %v6921
    %v6973 = vadd.f32 %v6119, %v6923
    %v6974 = vadd.f32 %v6158, %v6962
    %v6975 = vadd.f32 %v6160, %v6964
    %v6976 = vxor.u32 %v6968, 2147483648
    %v6977 = vxor.u32 %v6969, 2147483648
    %v6978 = vmul.f32 %v6976, 1.442695
    %v6979 = vpow.pop %v6978
    %v6980 = vmul.f32 %v6977, 1.442695
    %v6981 = vpow.pop %v6980
    %v6982 = vadd.f32 %v6979, 1.0
    %v6983 = vadd.f32 %v6981, 1.0
    %v6984 = vrcp.pop %v6982
    %v6985 = vmul.f32 1.0, %v6984
    %v6986 = vrcp.pop %v6983
    %v6987 = vmul.f32 1.0, %v6986
    %v6988 = vxor.u32 %v6970, 2147483648
    %v6989 = vxor.u32 %v6971, 2147483648
    %v6990 = vmul.f32 %v6988, 1.442695
    %v6991 = vpow.pop %v6990
    %v6992 = vmul.f32 %v6989, 1.442695
    %v6993 = vpow.pop %v6992
    %v6994 = vadd.f32 %v6991, 1.0
    %v6995 = vadd.f32 %v6993, 1.0
    %v6996 = vrcp.pop %v6994
    %v6997 = vmul.f32 1.0, %v6996
    %v6998 = vrcp.pop %v6995
    %v6999 = vmul.f32 1.0, %v6998
    %v7000 = vtanh.pop %v6972
    %v7001 = vtanh.pop %v6973
    %v7002 = vxor.u32 %v6974, 2147483648
    %v7003 = vxor.u32 %v6975, 2147483648
    %v7004 = vmul.f32 %v7002, 1.442695
    %v7005 = vpow.pop %v7004
    %v7006 = vmul.f32 %v7003, 1.442695
    %v7007 = vpow.pop %v7006
    %v7008 = vadd.f32 %v7005, 1.0
    %v7009 = vadd.f32 %v7007, 1.0
    %v7010 = vrcp.pop %v7008
    %v7011 = vmul.f32 1.0, %v7010
    %v7012 = vrcp.pop %v7009
    %v7013 = vmul.f32 1.0, %v7012
    %v7014 = vmul.f32 %v6997, 0.0
    %v7015 = vmul.f32 %v6999, 0.0
    %v7016 = vmul.f32 %v6985, %v7000
    %v7017 = vmul.f32 %v6987, %v7001
    %v7018 = vadd.f32 %v7014, %v7016
    %v7019 = vadd.f32 %v7015, %v7017
    %v7020 = vtanh.pop %v7018
    %v7021 = vtanh.pop %v7019
    %v7022 = vmul.f32 %v7011, %v7020
    %v7023 = vmul.f32 %v7013, %v7021
    %v7024 = vpack.c.bf16 %v7022, %v7022
    %v7025 = vpack.c.bf16 %v7023, %v7023
    %7026 = vmatprep.subr.bf16.mxu0 %v6549
    %7027 = vmatpush1.bf16.msra.mxu0 %v6548
    %7028 = vmatprep.subr.bf16.mxu0 %v6557
    %7029 = vmatpush1.bf16.msra.mxu0 %v6556
    %7030 = vmatprep.subr.bf16.mxu0 %v6565
    %7031 = vmatpush1.bf16.msra.mxu0 %v6564
    %7032 = vmatprep.subr.bf16.mxu0 %v6573
    %7033 = vmatpush1.bf16.msra.mxu0 %v6572
    %7034 = vmatprep.subr.bf16.mxu0 %v6581
    %7035 = vmatpush1.bf16.msra.mxu0 %v6580
    %7036 = vmatprep.subr.bf16.mxu0 %v6589
    %7037 = vmatpush1.bf16.msra.mxu0 %v6588
    %7038 = vmatprep.subr.bf16.mxu0 %v6597
    %7039 = vmatpush1.bf16.msra.mxu0 %v6596
    %7040 = vmatprep.subr.bf16.mxu0 %v6605
    %7041 = vmatpush1.bf16.msra.mxu0 %v6604
    %7042 = vmatprep.subr.bf16.mxu0 %v6613
    %7043 = vmatpush1.bf16.msra.mxu0 %v6612
    %7044 = vmatprep.subr.bf16.mxu0 %v6621
    %7045 = vmatpush1.bf16.msra.mxu0 %v6620
    %7046 = vmatprep.subr.bf16.mxu0 %v6629
    %7047 = vmatpush1.bf16.msra.mxu0 %v6628
    %7048 = vmatprep.subr.bf16.mxu0 %v6637
    %7049 = vmatpush1.bf16.msra.mxu0 %v6636
    %7050 = vmatprep.subr.bf16.mxu0 %v6645
    %7051 = vmatpush1.bf16.msra.mxu0 %v6644
    %7052 = vmatprep.subr.bf16.mxu0 %v6653
    %7053 = vmatpush1.bf16.msra.mxu0 %v6652
    %7054 = vmatprep.subr.bf16.mxu0 %v6661
    %7055 = vmatpush1.bf16.msra.mxu0 %v6660
    %7056 = vmatprep.subr.bf16.mxu0 %v6669
    %7057 = vmatpush1.bf16.msra.mxu0 %v6668
    %7058 = vmatprep.mubr.bf16.mxu0 %v7025
    %7059 = vmatmul.mubr.bf16.gmra.mrb[0].mxu0 %v7024
    %v7060 = vpop.f32.mrb[0].mxu0
    %v7061 = vadd.f32 0.0, %v7060
    %v7062 = vpop.f32.mrb[0].mxu0
    %v7063 = vadd.f32 0.0, %v7062
    %v7064 = vpop.f32.mrb[0].mxu0
    %v7065 = vpop.f32.mrb[0].mxu0
    %7066 = vdwg.mxu0
    %7067 = vmatprep.subr.bf16.mxu0 %v6551
    %7068 = vmatpush1.bf16.msra.mxu0 %v6550
    %7069 = vmatprep.subr.bf16.mxu0 %v6559
    %7070 = vmatpush1.bf16.msra.mxu0 %v6558
    %7071 = vmatprep.subr.bf16.mxu0 %v6567
    %7072 = vmatpush1.bf16.msra.mxu0 %v6566
    %7073 = vmatprep.subr.bf16.mxu0 %v6575
    %7074 = vmatpush1.bf16.msra.mxu0 %v6574
    %7075 = vmatprep.subr.bf16.mxu0 %v6583
    %7076 = vmatpush1.bf16.msra.mxu0 %v6582
    %7077 = vmatprep.subr.bf16.mxu0 %v6591
    %7078 = vmatpush1.bf16.msra.mxu0 %v6590
    %7079 = vmatprep.subr.bf16.mxu0 %v6599
    %7080 = vmatpush1.bf16.msra.mxu0 %v6598
    %7081 = vmatprep.subr.bf16.mxu0 %v6607
    %7082 = vmatpush1.bf16.msra.mxu0 %v6606
    %7083 = vmatprep.subr.bf16.mxu0 %v6615
    %7084 = vmatpush1.bf16.msra.mxu0 %v6614
    %7085 = vmatprep.subr.bf16.mxu0 %v6623
    %7086 = vmatpush1.bf16.msra.mxu0 %v6622
    %7087 = vmatprep.subr.bf16.mxu0 %v6631
    %7088 = vmatpush1.bf16.msra.mxu0 %v6630
    %7089 = vmatprep.subr.bf16.mxu0 %v6639
    %7090 = vmatpush1.bf16.msra.mxu0 %v6638
    %7091 = vmatprep.subr.bf16.mxu0 %v6647
    %7092 = vmatpush1.bf16.msra.mxu0 %v6646
    %7093 = vmatprep.subr.bf16.mxu0 %v6655
    %7094 = vmatpush1.bf16.msra.mxu0 %v6654
    %7095 = vmatprep.subr.bf16.mxu0 %v6663
    %7096 = vmatpush1.bf16.msra.mxu0 %v6662
    %7097 = vmatprep.subr.bf16.mxu0 %v6671
    %7098 = vmatpush1.bf16.msra.mxu0 %v6670
    %7099 = vmatprep.mubr.bf16.mxu0 %v7025
    %7100 = vmatmul.mubr.bf16.gmra.mrb[0].mxu0 %v7024
    %v7101 = vpop.f32.mrb[0].mxu0
    %v7102 = vadd.f32 0.0, %v7101
    %v7103 = vpop.f32.mrb[0].mxu0
    %v7104 = vadd.f32 0.0, %v7103
    %v7105 = vpop.f32.mrb[0].mxu0
    %v7106 = vpop.f32.mrb[0].mxu0
    %7107 = vdwg.mxu0
    %7108 = vmatprep.subr.bf16.mxu0 %v6553
    %7109 = vmatpush1.bf16.msra.mxu0 %v6552
    %7110 = vmatprep.subr.bf16.mxu0 %v6561
    %7111 = vmatpush1.bf16.msra.mxu0 %v6560
    %7112 = vmatprep.subr.bf16.mxu0 %v6569
    %7113 = vmatpush1.bf16.msra.mxu0 %v6568
    %7114 = vmatprep.subr.bf16.mxu0 %v6577
    %7115 = vmatpush1.bf16.msra.mxu0 %v6576
    %7116 = vmatprep.subr.bf16.mxu0 %v6585
    %7117 = vmatpush1.bf16.msra.mxu0 %v6584
    %7118 = vmatprep.subr.bf16.mxu0 %v6593
    %7119 = vmatpush1.bf16.msra.mxu0 %v6592
    %7120 = vmatprep.subr.bf16.mxu0 %v6601
    %7121 = vmatpush1.bf16.msra.mxu0 %v6600
    %7122 = vmatprep.subr.bf16.mxu0 %v6609
    %7123 = vmatpush1.bf16.msra.mxu0 %v6608
    %7124 = vmatprep.subr.bf16.mxu0 %v6617
    %7125 = vmatpush1.bf16.msra.mxu0 %v6616
    %7126 = vmatprep.subr.bf16.mxu0 %v6625
    %7127 = vmatpush1.bf16.msra.mxu0 %v6624
    %7128 = vmatprep.subr.bf16.mxu0 %v6633
    %7129 = vmatpush1.bf16.msra.mxu0 %v6632
    %7130 = vmatprep.subr.bf16.mxu0 %v6641
    %7131 = vmatpush1.bf16.msra.mxu0 %v6640
    %7132 = vmatprep.subr.bf16.mxu0 %v6649
    %7133 = vmatpush1.bf16.msra.mxu0 %v6648
    %7134 = vmatprep.subr.bf16.mxu0 %v6657
    %7135 = vmatpush1.bf16.msra.mxu0 %v6656
    %7136 = vmatprep.subr.bf16.mxu0 %v6665
    %7137 = vmatpush1.bf16.msra.mxu0 %v6664
    %7138 = vmatprep.subr.bf16.mxu0 %v6673
    %7139 = vmatpush1.bf16.msra.mxu0 %v6672
    %7140 = vmatprep.mubr.bf16.mxu0 %v7025
    %7141 = vmatmul.mubr.bf16.gmra.mrb[0].mxu0 %v7024
    %v7142 = vpop.f32.mrb[0].mxu0
    %v7143 = vadd.f32 0.0, %v7142
    %v7144 = vpop.f32.mrb[0].mxu0
    %v7145 = vadd.f32 0.0, %v7144
    %v7146 = vpop.f32.mrb[0].mxu0
    %v7147 = vpop.f32.mrb[0].mxu0
    %7148 = vdwg.mxu0
    %7149 = vmatprep.subr.bf16.mxu0 %v6555
    %7150 = vmatpush1.bf16.msra.mxu0 %v6554
    %7151 = vmatprep.subr.bf16.mxu0 %v6563
    %7152 = vmatpush1.bf16.msra.mxu0 %v6562
    %7153 = vmatprep.subr.bf16.mxu0 %v6571
    %7154 = vmatpush1.bf16.msra.mxu0 %v6570
    %7155 = vmatprep.subr.bf16.mxu0 %v6579
    %7156 = vmatpush1.bf16.msra.mxu0 %v6578
    %7157 = vmatprep.subr.bf16.mxu0 %v6587
    %7158 = vmatpush1.bf16.msra.mxu0 %v6586
    %7159 = vmatprep.subr.bf16.mxu0 %v6595
    %7160 = vmatpush1.bf16.msra.mxu0 %v6594
    %7161 = vmatprep.subr.bf16.mxu0 %v6603
    %7162 = vmatpush1.bf16.msra.mxu0 %v6602
    %7163 = vmatprep.subr.bf16.mxu0 %v6611
    %7164 = vmatpush1.bf16.msra.mxu0 %v6610
    %7165 = vmatprep.subr.bf16.mxu0 %v6619
    %7166 = vmatpush1.bf16.msra.mxu0 %v6618
    %7167 = vmatprep.subr.bf16.mxu0 %v6627
    %7168 = vmatpush1.bf16.msra.mxu0 %v6626
    %7169 = vmatprep.subr.bf16.mxu0 %v6635
    %7170 = vmatpush1.bf16.msra.mxu0 %v6634
    %7171 = vmatprep.subr.bf16.mxu0 %v6643
    %7172 = vmatpush1.bf16.msra.mxu0 %v6642
    %7173 = vmatprep.subr.bf16.mxu0 %v6651
    %7174 = vmatpush1.bf16.msra.mxu0 %v6650
    %7175 = vmatprep.subr.bf16.mxu0 %v6659
    %7176 = vmatpush1.bf16.msra.mxu0 %v6658
    %7177 = vmatprep.subr.bf16.mxu0 %v6667
    %7178 = vmatpush1.bf16.msra.mxu0 %v6666
    %7179 = vmatprep.subr.bf16.mxu0 %v6675
    %7180 = vmatpush1.bf16.msra.mxu0 %v6674
    %7181 = vmatprep.mubr.bf16.mxu0 %v7025
    %7182 = vmatmul.mubr.bf16.gmra.mrb[0].mxu0 %v7024
    %v7183 = vpop.f32.mrb[0].mxu0
    %v7184 = vadd.f32 0.0, %v7183
    %v7185 = vpop.f32.mrb[0].mxu0
    %v7186 = vadd.f32 0.0, %v7185
    %v7187 = vpop.f32.mrb[0].mxu0
    %v7188 = vpop.f32.mrb[0].mxu0
    %7189 = vdwg.mxu0
    %v7198 = vrot.slane %v7061, 7
    %v7199 = vrot.slane %v7063, 7
    %v7200 = vrot.slane %v7102, 7
    %v7201 = vrot.slane %v7104, 7
    %v7202 = vrot.slane %v7143, 7
    %v7203 = vrot.slane %v7145, 7
    %v7204 = vrot.slane %v7184, 7
    %v7205 = vrot.slane %v7186, 7
    %v7214 = vadd.f32 %v6035, %v7198
    %v7215 = vadd.f32 %v6037, %v7199
    %v7216 = vadd.f32 %v6076, %v7200
    %v7217 = vadd.f32 %v6078, %v7201
    %v7218 = vadd.f32 %v6117, %v7202
    %v7219 = vadd.f32 %v6119, %v7203
    %v7220 = vadd.f32 %v6158, %v7204
    %v7221 = vadd.f32 %v6160, %v7205
    %v7222 = vxor.u32 %v7214, 2147483648
    %v7223 = vxor.u32 %v7215, 2147483648
    %v7224 = vmul.f32 %v7222, 1.442695
    %v7225 = vpow.pop %v7224
    %v7226 = vmul.f32 %v7223, 1.442695
    %v7227 = vpow.pop %v7226
    %v7228 = vadd.f32 %v7225, 1.0
    %v7229 = vadd.f32 %v7227, 1.0
    %v7230 = vrcp.pop %v7228
    %v7231 = vmul.f32 1.0, %v7230
    %v7232 = vrcp.pop %v7229
    %v7233 = vmul.f32 1.0, %v7232
    %v7234 = vxor.u32 %v7216, 2147483648
    %v7235 = vxor.u32 %v7217, 2147483648
    %v7236 = vmul.f32 %v7234, 1.442695
    %v7237 = vpow.pop %v7236
    %v7238 = vmul.f32 %v7235, 1.442695
    %v7239 = vpow.pop %v7238
    %v7240 = vadd.f32 %v7237, 1.0
    %v7241 = vadd.f32 %v7239, 1.0
    %v7242 = vrcp.pop %v7240
    %v7243 = vmul.f32 1.0, %v7242
    %v7244 = vrcp.pop %v7241
    %v7245 = vmul.f32 1.0, %v7244
    %v7246 = vtanh.pop %v7218
    %v7247 = vtanh.pop %v7219
    %v7248 = vxor.u32 %v7220, 2147483648
    %v7249 = vxor.u32 %v7221, 2147483648
    %v7250 = vmul.f32 %v7248, 1.442695
    %v7251 = vpow.pop %v7250
    %v7252 = vmul.f32 %v7249, 1.442695
    %v7253 = vpow.pop %v7252
    %v7254 = vadd.f32 %v7251, 1.0
    %v7255 = vadd.f32 %v7253, 1.0
    %v7256 = vrcp.pop %v7254
    %v7257 = vmul.f32 1.0, %v7256
    %v7258 = vrcp.pop %v7255
    %v7259 = vmul.f32 1.0, %v7258
    %v7262 = vrot.slane %v7018, 7
    %v7263 = vrot.slane %v7019, 7
    %v7266 = vmul.f32 %v7243, %v7262
    %v7267 = vmul.f32 %v7245, %v7263
    %v7268 = vmul.f32 %v7231, %v7246
    %v7269 = vmul.f32 %v7233, %v7247
    %v7270 = vadd.f32 %v7266, %v7268
    %v7271 = vadd.f32 %v7267, %v7269
    %v7272 = vtanh.pop %v7270
    %v7273 = vtanh.pop %v7271
    %v7274 = vmul.f32 %v7257, %v7272
    %v7275 = vmul.f32 %v7259, %v7273
    %v7276 = vsel %vm2839, %v7022, %v7274
    %v7277 = vsel %vm2839, %v7023, %v7275
    %v7278 = vpack.c.bf16 %v7276, %v7276
    %v7279 = vpack.c.bf16 %v7277, %v7277
    %v7280 = vld [vmem:[#allocation17] sm:$0xf]
    %v7281 = vld [vmem:[#allocation17 + $0x4] sm:$0xf]
    %v7282 = vld [vmem:[#allocation17 + $0x8] sm:$0xf]
    %v7283 = vld [vmem:[#allocation17 + $0xc] sm:$0xf]
    %v7284 = vld [vmem:[#allocation17 + $0x10] sm:$0xf]
    %v7285 = vld [vmem:[#allocation17 + $0x14] sm:$0xf]
    %v7286 = vld [vmem:[#allocation17 + $0x18] sm:$0xf]
    %v7287 = vld [vmem:[#allocation17 + $0x1c] sm:$0xf]
    %v7288 = vld [vmem:[#allocation17 + $0x20] sm:$0xf]
    %v7289 = vld [vmem:[#allocation17 + $0x24] sm:$0xf]
    %v7290 = vld [vmem:[#allocation17 + $0x28] sm:$0xf]
    %v7291 = vld [vmem:[#allocation17 + $0x2c] sm:$0xf]
    %v7292 = vld [vmem:[#allocation17 + $0x30] sm:$0xf]
    %v7293 = vld [vmem:[#allocation17 + $0x34] sm:$0xf]
    %v7294 = vld [vmem:[#allocation17 + $0x38] sm:$0xf]
    %v7295 = vld [vmem:[#allocation17 + $0x3c] sm:$0xf]
    %v7296 = vld [vmem:[#allocation17 + $0x40] sm:$0xf]
    %v7297 = vld [vmem:[#allocation17 + $0x44] sm:$0xf]
    %v7298 = vld [vmem:[#allocation17 + $0x48] sm:$0xf]
    %v7299 = vld [vmem:[#allocation17 + $0x4c] sm:$0xf]
    %v7300 = vld [vmem:[#allocation17 + $0x50] sm:$0xf]
    %v7301 = vld [vmem:[#allocation17 + $0x54] sm:$0xf]
    %v7302 = vld [vmem:[#allocation17 + $0x58] sm:$0xf]
    %v7303 = vld [vmem:[#allocation17 + $0x5c] sm:$0xf]
    %v7304 = vld [vmem:[#allocation17 + $0x60] sm:$0xf]
    %v7305 = vld [vmem:[#allocation17 + $0x64] sm:$0xf]
    %v7306 = vld [vmem:[#allocation17 + $0x68] sm:$0xf]
    %v7307 = vld [vmem:[#allocation17 + $0x6c] sm:$0xf]
    %v7308 = vld [vmem:[#allocation17 + $0x70] sm:$0xf]
    %v7309 = vld [vmem:[#allocation17 + $0x74] sm:$0xf]
    %v7310 = vld [vmem:[#allocation17 + $0x78] sm:$0xf]
    %v7311 = vld [vmem:[#allocation17 + $0x7c] sm:$0xf]
    %v7312 = vld [vmem:[%s14] sm:$0x1]
    %v7314 = vlaneseq
    %v7315 = vshrl.u32 %v7314, 7
    %v7316 = vsub.s32 0, %v7315
    %v7317 = vrot.slane %v7312, %v7316
    %v7351 = vunpack.c.l.b16 %v7280
    %v7352 = vunpack.c.l.b16 %v7281
    %v7353 = vunpack.c.l.b16 %v7282
    %v7354 = vunpack.c.l.b16 %v7283
    %v7355 = vunpack.c.l.b16 %v7284
    %v7356 = vunpack.c.l.b16 %v7285
    %v7357 = vunpack.c.l.b16 %v7286
    %v7358 = vunpack.c.l.b16 %v7287
    %v7359 = vunpack.c.l.b16 %v7288
    %v7360 = vunpack.c.l.b16 %v7289
    %v7361 = vunpack.c.l.b16 %v7290
    %v7362 = vunpack.c.l.b16 %v7291
    %v7363 = vunpack.c.l.b16 %v7292
    %v7364 = vunpack.c.l.b16 %v7293
    %v7365 = vunpack.c.l.b16 %v7294
    %v7366 = vunpack.c.l.b16 %v7295
    %v7367 = vunpack.c.l.b16 %v7296
    %v7368 = vunpack.c.l.b16 %v7297
    %v7369 = vunpack.c.l.b16 %v7298
    %v7370 = vunpack.c.l.b16 %v7299
    %v7371 = vunpack.c.l.b16 %v7300
    %v7372 = vunpack.c.l.b16 %v7301
    %v7373 = vunpack.c.l.b16 %v7302
    %v7374 = vunpack.c.l.b16 %v7303
    %v7375 = vunpack.c.l.b16 %v7304
    %v7376 = vunpack.c.l.b16 %v7305
    %v7377 = vunpack.c.l.b16 %v7306
    %v7378 = vunpack.c.l.b16 %v7307
    %v7379 = vunpack.c.l.b16 %v7308
    %v7380 = vunpack.c.l.b16 %v7309
    %v7381 = vunpack.c.l.b16 %v7310
    %v7382 = vunpack.c.l.b16 %v7311
    %v7383 = vpack.c.b16 %v7352, %v7351
    %v7384 = vpack.c.b16 %v7354, %v7353
    %v7385 = vpack.c.b16 %v7356, %v7355
    %v7386 = vpack.c.b16 %v7358, %v7357
    %v7387 = vpack.c.b16 %v7360, %v7359
    %v7388 = vpack.c.b16 %v7362, %v7361
    %v7389 = vpack.c.b16 %v7364, %v7363
    %v7390 = vpack.c.b16 %v7366, %v7365
    %v7391 = vpack.c.b16 %v7368, %v7367
    %v7392 = vpack.c.b16 %v7370, %v7369
    %v7393 = vpack.c.b16 %v7372, %v7371
    %v7394 = vpack.c.b16 %v7374, %v7373
    %v7395 = vpack.c.b16 %v7376, %v7375
    %v7396 = vpack.c.b16 %v7378, %v7377
    %v7397 = vpack.c.b16 %v7380, %v7379
    %v7398 = vpack.c.b16 %v7382, %v7381
    %7415 = vmatprep.subr.bf16.mxu0 0
    %7416 = vmatpush1.bf16.msra.mxu0 %v7383
    %7417 = vmatprep.subr.bf16.mxu0 0
    %7418 = vmatpush1.bf16.msra.mxu0 %v7384
    %7419 = vmatprep.subr.bf16.mxu0 0
    %7420 = vmatpush1.bf16.msra.mxu0 %v7385
    %7421 = vmatprep.subr.bf16.mxu0 0
    %7422 = vmatpush1.bf16.msra.mxu0 %v7386
    %7423 = vmatprep.subr.bf16.mxu0 0
    %7424 = vmatpush1.bf16.msra.mxu0 %v7387
    %7425 = vmatprep.subr.bf16.mxu0 0
    %7426 = vmatpush1.bf16.msra.mxu0 %v7388
    %7427 = vmatprep.subr.bf16.mxu0 0
    %7428 = vmatpush1.bf16.msra.mxu0 %v7389
    %7429 = vmatprep.subr.bf16.mxu0 0
    %7430 = vmatpush1.bf16.msra.mxu0 %v7390
    %7431 = vmatprep.subr.bf16.mxu0 0
    %7432 = vmatpush1.bf16.msra.mxu0 %v7391
    %7433 = vmatprep.subr.bf16.mxu0 0
    %7434 = vmatpush1.bf16.msra.mxu0 %v7392
    %7435 = vmatprep.subr.bf16.mxu0 0
    %7436 = vmatpush1.bf16.msra.mxu0 %v7393
    %7437 = vmatprep.subr.bf16.mxu0 0
    %7438 = vmatpush1.bf16.msra.mxu0 %v7394
    %7439 = vmatprep.subr.bf16.mxu0 0
    %7440 = vmatpush1.bf16.msra.mxu0 %v7395
    %7441 = vmatprep.subr.bf16.mxu0 0
    %7442 = vmatpush1.bf16.msra.mxu0 %v7396
    %7443 = vmatprep.subr.bf16.mxu0 0
    %7444 = vmatpush1.bf16.msra.mxu0 %v7397
    %7445 = vmatprep.subr.bf16.mxu0 0
    %7446 = vmatpush1.bf16.msra.mxu0 %v7398
    %7447 = vmatprep.mubr.bf16.mxu0 %v7279
    %7448 = vmatmul.mubr.bf16.gmra.mrb[0].mxu0 %v7278
    %v7449 = vpop.f32.mrb[0].mxu0
    %v7450 = vadd.f32 %v7317, %v7449
    %v7451 = vpop.f32.mrb[0].mxu0
    %v7452 = vpop.f32.mrb[0].mxu0
    %v7453 = vpop.f32.mrb[0].mxu0
    %7454 = vdwg.mxu0
    %7455 = vst [vmem:[#allocation19] sm:$0x3] %v7450
    // Predicated region
    $region102: #{tpu_custom_call.1} parent=1 // pred_check
      _
    $region103: #{tpu_custom_call.1} parent=1 // pred_check_branch
      %7457 = sbr.rel (0) target = $region105
    $region104: #{tpu_custom_call.1} parent=1 // pred_region
      %s7459 = ssub.s32 32, 32
      %7460 = vsyncadd [#allocation4], %s7459
      %s7462 = sshll.u32 [#allocation19], 4
      %s7463 = int_to_ptr.vmem [resolvable:$true] %s7462
      %7465 = dma.vmem_to_hbm [thread:$0]  %s7463, 32, %s15, [#allocation4]
    $region105: #{tpu_custom_call.1} parent=1 // pred_fallthru
      _
    // Predicated region
    $region106: #{tpu_custom_call.1} parent=1 // pred_check
      _
    $region107: #{tpu_custom_call.1} parent=1 // pred_check_branch
      %7467 = sbr.rel (0) target = $region109
    $region108: #{tpu_custom_call.1} parent=1 // pred_region
      %7468 = dma.done [#allocation4], 32
    $region109: #{tpu_custom_call.1} parent=1 // pred_fallthru
      _
    %7469 = vsyncpa [#allocation3], 1
    %7470 = vsyncpa [#allocation6], 1
    %7471 = vsyncpa [#allocation9], 1
    %7472 = vsyncpa [#allocation12], 1
    %7473 = vsyncpa [#allocation15], 1
    %7474 = vsyncpa [#allocation18], 1
    %7475 = vsyncpa [#allocation4], 1

</llo_original>
